<compile_context>
chip_gen: v7x
topology: tpu7x:2x2x1
jax: 0.10.0
libtpu: 0.0.40
codegen_flags: <defaults>
</compile_context>

<pallas_src>
import numpy as np
import jax
import jax.numpy as jnp
from jax.experimental import pallas as pl
from jax.experimental.pallas import tpu as pltpu

# ----------------------------- model hyper-params ---------------------------
H = 16            # hidden_channels
OUT_C = 1         # out_channels
NBLK = 2          # num_blocks
NB = 2            # num_bilinear
NS = 6            # num_spherical
NR = 16           # num_radial
CUTOFF = 4.7
ENV_P = 6.0       # envelope_exponent (5) + 1
N_BEFORE = 1      # num_before_skip
N_AFTER = 2       # num_after_skip
N_OUT_LAYERS = 3  # num_output_layers
SR = NS * NR      # 96 spherical*radial columns

# ----------------------------- synthetic graph size -------------------------
N_ATOMS = 6
E = N_ATOMS * (N_ATOMS - 1)        # 30 dense directed edges (masked by cutoff)
T = E * (N_ATOMS - 2)              # 120 triplets k->j->i with k != i

# -------------------------- packed slab static layout -----------------------
# per-edge slab (E, EC_W): [dist | emb_zi|emb_zj | scat_ji]
EC_DIST = 0
EC_EMB = 1
EC_SCATJI = EC_EMB + 2 * H
EC_W = EC_SCATJI + T                               # 153

# per-triplet slab (T, TC_W): [angle | gath_kj]
TC_ANGLE = 0
TC_GATH = 1
TC_W = TC_GATH + E                                 # 31

# constants + scat_node slab (CR_ROWS, SR)
CR_FREQ = 0
CR_SBZ = 1
CR_SBN = 2
CR_MASK = 3                                        # NS rows of per-order selectors
CR_SCATN = CR_MASK + NS                            # N_ATOMS rows, lanes 0:E
CR_ROWS = CR_SCATN + N_ATOMS                       # 15

# weight slab (W_ROWS=96, W_LANES): rows = input dim, lane-dense matrices
N_SQ_PER_BLK = 2 * N_BEFORE + 1 + 2 * N_AFTER      # 7 square mats per interaction block
N_SQ = NBLK * N_SQ_PER_BLK                         # 14
OFF_RBF = 0                                        # (NR, SR)       -> 96 lanes
OFF_EMBW = OFF_RBF + SR                            # (3H, H)        -> 16 lanes
OFF_SQ = OFF_EMBW + H                              # (H, H) x 14    -> 224 lanes
OFF_JIKJ = OFF_SQ + N_SQ * H                       # (H, 2H) x 2    -> 64 lanes
OFF_BIL = OFF_JIKJ + NBLK * 2 * H                  # (NB*H, H) x 2  -> 32 lanes
OFF_SBFW = OFF_BIL + NBLK * H                      # (SR, NBLK*NB)  -> 4 lanes
OFF_OBD = OFF_SBFW + NBLK * NB                     # (3H, 3H) x 3   -> 144 lanes
W_LANES = OFF_OBD + N_OUT_LAYERS * (NBLK + 1) * H  # 580
W_ROWS = SR

# bias slab (B_ROWS, B_LANES)
BR_ERBF = 0                                        # (1,H)  embedding rbf-lin bias
BR_EMB = 1                                         # (1,H)  embedding lin bias
BR_IB = 2                                          # 7 rows per interaction block (1,H)
BR_OBD = BR_IB + N_SQ                              # 3 rows (1,3H) output block-diag biases
BR_FW = BR_OBD + N_OUT_LAYERS                      # 1 row  (1,3H) final H->1 weights (concat)
BR_JIKJ = BR_FW + 1                                # NBLK rows (1,2H) ji/kj biases
B_ROWS = BR_JIKJ + NBLK                            # 22
B_LANES = (NBLK + 1) * H                           # 48


# ===================== host-side spherical-Bessel setup ======================
def _sph_jn(x, n):
    """Spherical Bessel j_n(x) (x > 0), upward recurrence."""
    j0 = np.sin(x) / x
    if n == 0:
        return j0
    j1 = np.sin(x) / (x * x) - np.cos(x) / x
    jp, jc = j0, j1
    for k in range(1, n):
        jp, jc = jc, (2 * k + 1) / x * jc - jp
    return jc


def _bisect_root(f, lo, hi, iters=90):
    flo = f(lo)
    for _ in range(iters):
        mid = 0.5 * (lo + hi)
        fm = f(mid)
        if np.sign(fm) == np.sign(flo):
            lo, flo = mid, fm
        else:
            hi = mid
    return 0.5 * (lo + hi)


def bessel_zeros_and_norms(n_sph, n_rad):
    """Zeros z_{l,n} of spherical Bessel j_l and DimeNet normalizers (host, no scipy)."""
    zeros = np.zeros((n_sph, n_rad), dtype=np.float64)
    zeros[0] = np.arange(1, n_rad + 1) * np.pi
    points = np.arange(1, n_rad + n_sph) * np.pi
    for l in range(1, n_sph):
        roots = []
        for j in range(n_rad + n_sph - 1 - l):
            roots.append(_bisect_root(lambda r, ll=l: _sph_jn(r, ll),
                                      points[j], points[j + 1]))
        points = np.array(roots)
        zeros[l, :] = points[:n_rad]
    norms = np.zeros_like(zeros)
    for l in range(n_sph):
        for i in range(n_rad):
            norms[l, i] = 1.0 / np.sqrt(0.5 * _sph_jn(zeros[l, i], l + 1) ** 2)
    return zeros.astype(np.float32), norms.astype(np.float32)


# ============================ DimeNet forward math ===========================
def _silu(x):
    return x * jax.nn.sigmoid(x)


def _bdot(a, b):
    # single-pass bf16 MXU dot with f32 accumulation
    return jnp.dot(a.astype(jnp.bfloat16), b.astype(jnp.bfloat16),
                   preferred_element_type=jnp.float32)


def dimenet_forward(edge, tri, cbs, W, B):
    """Shared math, traced inside the Pallas kernel (hot path) and reusable as reference.

    Args are the 5 packed slabs; static slicing works identically on VMEM refs and
    plain jnp arrays.

    TODO(synk): numerics are validated against this identical JAX trace, not against
    the PyTorch DimeNet implementation itself (bf16 dot operands lose ~0.4% per element
    relative to a pure-f32 torch run).
    """
    f32 = jnp.float32

    # ---- static-slice unpack of the packed slabs ----
    dist = edge[:, EC_DIST:EC_DIST + 1]                      # (E,1)
    emb_cat = edge[:, EC_EMB:EC_EMB + 2 * H]                 # (E,2H)
    scat_ji = edge[:, EC_SCATJI:EC_SCATJI + T]               # (E,T)
    angle = tri[:, TC_ANGLE:TC_ANGLE + 1]                    # (T,1)
    gath_kj = tri[:, TC_GATH:TC_GATH + E]                    # (T,E)
    freq = cbs[CR_FREQ:CR_FREQ + 1, 0:NR]                    # (1,NR)
    sbz = cbs[CR_SBZ:CR_SBZ + 1, 0:SR]                       # (1,SR)
    sbn = cbs[CR_SBN:CR_SBN + 1, 0:SR]                       # (1,SR)
    blkmask = cbs[CR_MASK:CR_MASK + NS, 0:SR]                # (NS,SR)
    scat_node = cbs[CR_SCATN:CR_SCATN + N_ATOMS, 0:E]        # (N,E)

    sq = lambda i: W[0:H, OFF_SQ + H * i: OFF_SQ + H * (i + 1)]      # (H,H)
    brow = lambda r: B[r:r + 1, 0:H]                                  # (1,H)

    # ---- scaled distance + smooth cutoff envelope ----
    d = jnp.maximum(dist * (1.0 / CUTOFF), 1e-9)             # clamp avoids inf*0 -> nan
    inv_d = 1.0 / d
    p = ENV_P
    a_e = -(p + 1.0) * (p + 2.0) / 2.0
    b_e = p * (p + 2.0)
    c_e = -p * (p + 1.0) / 2.0
    d2 = d * d
    d5 = d2 * d2 * d
    env_d = (inv_d + a_e * d5 + b_e * d5 * d + c_e * d5 * d2) * (d < 1.0).astype(f32)

    # ---- BesselBasisLayer (E, NR) ----
    rbf = env_d * jnp.sin(freq * d)

    # ---- SphericalBasisLayer: all NS orders fused into one lane-dense (.,96) slab ----
    x = d * sbz                                              # (E, SR)
    inv_x = 1.0 / x
    sx = jnp.sin(x)
    cx = jnp.cos(x)
    j_prev = sx * inv_x                                      # j0 at every column
    j_cur = (sx * inv_x - cx) * inv_x                        # j1 at every column
    jl = j_prev * blkmask[0:1, :] + j_cur * blkmask[1:2, :]
    for k in range(1, NS - 1):                               # upward recurrence to j_{NS-1}
        j_prev, j_cur = j_cur, (2 * k + 1) * inv_x * j_cur - j_prev
        jl = jl + j_cur * blkmask[k + 1:k + 2, :]            # select j_l for its own columns
    srbf = env_d * sbn * jl                                  # (E, SR)

    cos_t = jnp.cos(angle)                                   # (T,1)
    legs = [jnp.ones_like(cos_t), cos_t]
    for l in range(2, NS):
        legs.append(((2 * l - 1) * cos_t * legs[l - 1] - (l - 1) * legs[l - 2]) / l)
    y_cat = jnp.concatenate(
        [float(np.sqrt((2 * l + 1) / (4.0 * np.pi))) * legs[l] for l in range(NS)],
        axis=1)                                              # (T, NS)
    # one gather matmul + one broadcast matmul instead of 6 of each
    sbf = _bdot(gath_kj, srbf) * _bdot(y_cat, blkmask)       # (T, SR)

    # ---- ALL rbf projections of the net in ONE matmul ----
    rbf_proj = _bdot(rbf, W[0:NR, OFF_RBF:OFF_RBF + SR])                 # (E, 96)
    # ---- ALL sbf projections of the net in ONE matmul ----
    sbf_h_all = _bdot(sbf, W[0:SR, OFF_SBFW:OFF_SBFW + NBLK * NB])       # (T, NBLK*NB)

    # ---- EmbeddingBlock (K-concat [emb_zi | emb_zj | rbf_emb] @ (3H,H)) ----
    rbf_emb = _silu(rbf_proj[:, 0:H] + brow(BR_ERBF))
    xe = _silu(_bdot(jnp.concatenate([emb_cat, rbf_emb], axis=1),
                     W[0:3 * H, OFF_EMBW:OFF_EMBW + H]) + brow(BR_EMB))  # (E,H)

    def res_layer(h, wi, bi):
        return h + _silu(_bdot(_silu(_bdot(h, sq(wi)) + brow(bi)), sq(wi + 1))
                         + brow(bi + 1))

    def interaction_block(h_edge, blk):
        rbf_h = rbf_proj[:, H * (1 + blk): H * (2 + blk)]                # (E,H)
        sbf_h = sbf_h_all[:, blk * NB:(blk + 1) * NB]                    # (T,NB)
        # N-concatenated ji/kj projections: one (E,16)@(16,32) matmul
        jikj_w = W[0:H, OFF_JIKJ + 2 * H * blk: OFF_JIKJ + 2 * H * (blk + 1)]
        proj = _silu(_bdot(h_edge, jikj_w)
                     + B[BR_JIKJ + blk:BR_JIKJ + blk + 1, 0:2 * H])      # (E,2H)
        x_ji = proj[:, 0:H]
        x_kj = _bdot(gath_kj, proj[:, H:2 * H] * rbf_h)                  # (T,H)
        # fused bilinear: (T, NB*H) @ (NB*H, H)
        bil_in = jnp.concatenate([x_kj * sbf_h[:, jb:jb + 1] for jb in range(NB)],
                                 axis=1)                                 # (T,NB*H)
        w_bil = W[0:NB * H, OFF_BIL + H * blk: OFF_BIL + H * (blk + 1)]
        msg = _bdot(bil_in, w_bil)                                       # (T,H)
        h = x_ji + _bdot(scat_ji, msg)                                   # (E,H)
        wb = blk * N_SQ_PER_BLK
        bb = BR_IB + blk * N_SQ_PER_BLK
        for r in range(N_BEFORE):
            h = res_layer(h, wb + 2 * r, bb + 2 * r)
        h = _silu(_bdot(h, sq(wb + 2 * N_BEFORE)) + brow(bb + 2 * N_BEFORE)) + h_edge
        for r in range(N_AFTER):
            h = res_layer(h, wb + 2 * N_BEFORE + 1 + 2 * r,
                          bb + 2 * N_BEFORE + 1 + 2 * r)
        return h

    # ---- interaction blocks; snapshot edge features for the deferred output blocks --
    h_snap = [xe]
    for blk in range(NBLK):
        xe = interaction_block(xe, blk)
        h_snap.append(xe)

    # ---- deferred output blocks: one scatter + block-diagonal MLP + one reduction ----
    h_cat = jnp.concatenate(h_snap, axis=1)                              # (E, 3H)
    g_cat = rbf_proj[:, (1 + NBLK) * H:] * h_cat                         # (E, 3H)
    t = _bdot(scat_node, g_cat)                                          # (N, 3H)
    for li in range(N_OUT_LAYERS):
        obd_w = W[0:3 * H, OFF_OBD + 3 * H * li: OFF_OBD + 3 * H * (li + 1)]
        t = _silu(_bdot(t, obd_w) + B[BR_OBD + li:BR_OBD + li + 1, 0:3 * H])
    # final (H -> 1) projections + node/channel/block sums folded into one VPU reduction
    return jnp.sum(t * B[BR_FW:BR_FW + 1, 0:3 * H], keepdims=True)       # (1,1)


# ================================ Pallas kernel ==============================
def dimenet_kernel(edge_ref, tri_ref, cbs_ref, w_ref, b_ref, out_ref):
    # Refs are sliced statically inside dimenet_forward (no whole-slab vreg loads).
    out_ref[...] = dimenet_forward(edge_ref, tri_ref, cbs_ref, w_ref, b_ref)


def run_dimenet(edge, tri, cbs, W, B):
    args = (edge, tri, cbs, W, B)
    nbytes = sum(int(np.prod(a.shape)) * a.dtype.itemsize for a in args) + 4
    return pl.pallas_call(
        dimenet_kernel,
        out_shape=jax.ShapeDtypeStruct((1, 1), jnp.float32),
        in_specs=[pl.BlockSpec(memory_space=pltpu.MemorySpace.VMEM)] * len(args),
        out_specs=pl.BlockSpec(memory_space=pltpu.MemorySpace.VMEM),
        cost_estimate=pl.CostEstimate(flops=2_200_000, transcendentals=25_000,
                                      bytes_accessed=nbytes),
    )(*args)


# ==================================== main ===================================
if __name__ == "__main__":
    key = jax.random.PRNGKey(0)
    k_pos, k_par = jax.random.split(key, 2)

    # Deterministic small molecule: jittered grid so 0.6 < dist < cutoff for all pairs.
    base = np.array([[ix, iy, 0.0] for ix in range(2) for iy in range(3)], dtype=np.float32)
    jitter = np.asarray(jax.random.uniform(k_pos, (N_ATOMS, 3), dtype=jnp.float32)) * 0.2
    pos = base + jitter                                            # (N,3)
    z = (np.arange(N_ATOMS) % 9 + 1).astype(np.int32)              # atomic numbers in [1,9]

    # ---------- graph construction (host glue) ----------
    # TODO(synk): radius_graph/triplets have data-dependent sizes in torch_geometric;
    # built densely here with validity masks folded into the one-hot gather/scatter matrices.
    edge_i, edge_j = [], []
    for ti in range(N_ATOMS):
        for tj in range(N_ATOMS):
            if ti != tj:
                edge_i.append(ti)     # target i
                edge_j.append(tj)     # source j
    edge_i = np.array(edge_i, dtype=np.int32)
    edge_j = np.array(edge_j, dtype=np.int32)
    dist_np = np.linalg.norm(pos[edge_i] - pos[edge_j], axis=-1).astype(np.float32)
    edge_valid = (dist_np < CUTOFF).astype(np.float32)

    eid = {(int(edge_j[e]), int(edge_i[e])): e for e in range(E)}  # (src,dst) -> edge id
    t_i, t_j, t_k, t_kj, t_ji = [], [], [], [], []
    for e in range(E):
        ii, jj = int(edge_i[e]), int(edge_j[e])
        for kk in range(N_ATOMS):
            if kk == jj or kk == ii:
                continue
            t_i.append(ii); t_j.append(jj); t_k.append(kk)
            t_kj.append(eid[(kk, jj)]); t_ji.append(e)
    t_i = np.array(t_i); t_j = np.array(t_j); t_k = np.array(t_k)
    t_kj = np.array(t_kj); t_ji = np.array(t_ji)
    assert len(t_i) == T
    t_valid = edge_valid[t_ji] * edge_valid[t_kj]

    pos_i = pos[t_i]
    v_ji = pos[t_j] - pos_i
    v_ki = pos[t_k] - pos_i
    ang_a = (v_ji * v_ki).sum(-1)
    ang_b = np.linalg.norm(np.cross(v_ji, v_ki), axis=-1)
    angle_np = np.arctan2(ang_b, ang_a).astype(np.float32)

    scat_node_np = np.zeros((N_ATOMS, E), np.float32)
    scat_node_np[edge_i, np.arange(E)] = edge_valid
    gath_kj_np = np.zeros((T, E), np.float32)
    gath_kj_np[np.arange(T), t_kj] = t_valid
    scat_ji_np = np.zeros((E, T), np.float32)
    scat_ji_np[t_ji, np.arange(T)] = t_valid

    # ---------- basis constants + scat_node packed into one table ----------
    freq_np = (np.arange(1, NR + 1) * np.pi).astype(np.float32)
    sbz_np, sbn_np = bessel_zeros_and_norms(NS, NR)
    cbs_np = np.zeros((CR_ROWS, SR), np.float32)
    cbs_np[CR_FREQ, :NR] = freq_np
    cbs_np[CR_SBZ, :] = sbz_np.reshape(-1)
    cbs_np[CR_SBN, :] = sbn_np.reshape(-1)
    for l in range(NS):
        cbs_np[CR_MASK + l, l * NR:(l + 1) * NR] = 1.0       # per-order column selector
    cbs_np[CR_SCATN:CR_SCATN + N_ATOMS, :E] = scat_node_np

    # ---------- deterministic parameter init ----------
    keys = iter(jax.random.split(k_par, 32))

    def w(shape, fan_in):
        return jax.random.normal(next(keys), shape, dtype=jnp.float32) / np.sqrt(float(fan_in))

    emb_table = jax.random.uniform(next(keys), (95, H), dtype=jnp.float32,
                                   minval=-np.sqrt(3.0), maxval=np.sqrt(3.0))
    emb_zi = np.asarray(emb_table[z[edge_i]])
    emb_zj = np.asarray(emb_table[z[edge_j]])

    e_rbf_w = w((NR, H), NR);  e_rbf_b = w((1, H), H)
    e_wi = w((H, H), 3 * H);   e_wj = w((H, H), 3 * H)
    e_wr = w((H, H), 3 * H);   e_b = w((1, H), H)

    o_rbf_w = w((NBLK + 1, NR, H), NR)
    o_lw = w((NBLK + 1, N_OUT_LAYERS, H, H), H)
    o_lb = w((NBLK + 1, N_OUT_LAYERS, 1, H), H)
    o_fw = w((NBLK + 1, H, OUT_C), H)

    i_rbf_w = w((NBLK, NR, H), NR)
    i_sbf_w = w((NBLK, SR, NB), SR)
    i_W = w((NBLK, NB, H, H), H)          # layout [blk, j(bilinear), l(in), i(out)]
    i_kj_w = w((NBLK, H, H), H);  i_kj_b = w((NBLK, 1, H), H)
    i_ji_w = w((NBLK, H, H), H);  i_ji_b = w((NBLK, 1, H), H)
    i_bw = w((NBLK, 2 * N_BEFORE, H, H), H);  i_bb = w((NBLK, 2 * N_BEFORE, 1, H), H)
    i_lw = w((NBLK, H, H), H);    i_lb = w((NBLK, 1, H), H)
    i_aw = w((NBLK, 2 * N_AFTER, H, H), H);   i_ab = w((NBLK, 2 * N_AFTER, 1, H), H)

    # ---------- host-side slab packing (5 lane-dense buffers -> 5 DMAs) ----------
    # per-edge slab: [dist | emb_zi|emb_zj | scat_ji]
    edge_np = np.zeros((E, EC_W), np.float32)
    edge_np[:, EC_DIST] = dist_np
    edge_np[:, EC_EMB:EC_EMB + 2 * H] = np.concatenate([emb_zi, emb_zj], axis=1)
    edge_np[:, EC_SCATJI:EC_SCATJI + T] = scat_ji_np

    # per-triplet slab: [angle | gath_kj]
    tri_np = np.zeros((T, TC_W), np.float32)
    tri_np[:, TC_ANGLE] = angle_np
    tri_np[:, TC_GATH:TC_GATH + E] = gath_kj_np

    # weight slab: rows = input dim (zero-padded to 96), matrices tiled along lanes
    w_rbf_all = np.concatenate([np.asarray(e_rbf_w)]
                               + [np.asarray(i_rbf_w[b]) for b in range(NBLK)]
                               + [np.asarray(o_rbf_w[b]) for b in range(NBLK + 1)], axis=1)
    e_w_cat = np.concatenate([np.asarray(e_wi), np.asarray(e_wj), np.asarray(e_wr)], axis=0)

    sq_list = []
    for b in range(NBLK):
        sq_list += [np.asarray(i_bw[b, r]) for r in range(2 * N_BEFORE)] \
                 + [np.asarray(i_lw[b])] \
                 + [np.asarray(i_aw[b, r]) for r in range(2 * N_AFTER)]
    assert len(sq_list) == N_SQ

    Wslab = np.zeros((W_ROWS, W_LANES), np.float32)
    Wslab[0:NR, OFF_RBF:OFF_RBF + SR] = w_rbf_all
    Wslab[0:3 * H, OFF_EMBW:OFF_EMBW + H] = e_w_cat
    for i, m in enumerate(sq_list):
        Wslab[0:H, OFF_SQ + H * i: OFF_SQ + H * (i + 1)] = m
    for b in range(NBLK):
        Wslab[0:H, OFF_JIKJ + 2 * H * b: OFF_JIKJ + 2 * H * (b + 1)] = \
            np.concatenate([np.asarray(i_ji_w[b]), np.asarray(i_kj_w[b])], axis=1)
        Wslab[0:NB * H, OFF_BIL + H * b: OFF_BIL + H * (b + 1)] = \
            np.asarray(i_W[b]).reshape(NB * H, H)
    Wslab[0:SR, OFF_SBFW:OFF_SBFW + NBLK * NB] = \
        np.concatenate([np.asarray(i_sbf_w[b]) for b in range(NBLK)], axis=1)
    # block-diagonal output-MLP weights: one (48,48) per output layer
    for li in range(N_OUT_LAYERS):
        for ob in range(NBLK + 1):
            c0 = OFF_OBD + 3 * H * li + ob * H
            Wslab[ob * H:(ob + 1) * H, c0:c0 + H] = np.asarray(o_lw[ob, li])

    # bias slab
    Bslab = np.zeros((B_ROWS, B_LANES), np.float32)
    Bslab[BR_ERBF, 0:H] = np.asarray(e_rbf_b[0])
    Bslab[BR_EMB, 0:H] = np.asarray(e_b[0])
    for b in range(NBLK):
        brows = [np.asarray(i_bb[b, r, 0]) for r in range(2 * N_BEFORE)] \
              + [np.asarray(i_lb[b, 0])] \
              + [np.asarray(i_ab[b, r, 0]) for r in range(2 * N_AFTER)]
        for r, v in enumerate(brows):
            Bslab[BR_IB + b * N_SQ_PER_BLK + r, 0:H] = v
    for li in range(N_OUT_LAYERS):
        Bslab[BR_OBD + li, 0:3 * H] = np.concatenate(
            [np.asarray(o_lb[ob, li, 0]) for ob in range(NBLK + 1)])
    Bslab[BR_FW, 0:3 * H] = np.concatenate(
        [np.asarray(o_fw[ob][:, 0]) for ob in range(NBLK + 1)])
    for b in range(NBLK):
        Bslab[BR_JIKJ + b, 0:2 * H] = np.concatenate(
            [np.asarray(i_ji_b[b, 0]), np.asarray(i_kj_b[b, 0])])

    inputs = (jnp.asarray(edge_np), jnp.asarray(tri_np), jnp.asarray(cbs_np),
              jnp.asarray(Wslab), jnp.asarray(Bslab))

    out = jax.block_until_ready(run_dimenet(*inputs))
    ref = jax.block_until_ready(jax.jit(dimenet_forward)(*inputs))

    assert np.isfinite(float(out[0, 0]))
    assert abs(float(out[0, 0]) - float(ref[0, 0])) <= 1e-3 * max(1.0, abs(float(ref[0, 0])))
    print("KERNEL_OK")
</pallas_src>

<mosaic_0001>
module attributes {stable_mosaic.version = 11 : i64} {
  func.func @dimenet_kernel(%arg0: memref<30x153xf32, #tpu.memory_space<vmem>>, %arg1: memref<120x31xf32, #tpu.memory_space<vmem>>, %arg2: memref<15x96xf32, #tpu.memory_space<vmem>>, %arg3: memref<96x580xf32, #tpu.memory_space<vmem>>, %arg4: memref<22x48xf32, #tpu.memory_space<vmem>>, %arg5: memref<1x1xf32, #tpu.memory_space<vmem>>) attributes {dimension_semantics = [], scalar_prefetch = 0 : i64, scratch_operands = 0 : i64, tpu.core_type = #tpu.core_type<tc>} {
    %c0 = arith.constant 0 : index
    %c0_0 = arith.constant 0 : index
    %0 = vector.load %arg0[%c0, %c0_0] : memref<30x153xf32, #tpu.memory_space<vmem>>, vector<30x1xf32>
    %c0_1 = arith.constant 0 : index
    %c1 = arith.constant 1 : index
    %1 = vector.load %arg0[%c0_1, %c1] : memref<30x153xf32, #tpu.memory_space<vmem>>, vector<30x32xf32>
    %c0_2 = arith.constant 0 : index
    %c33 = arith.constant 33 : index
    %2 = vector.load %arg0[%c0_2, %c33] : memref<30x153xf32, #tpu.memory_space<vmem>>, vector<30x120xf32>
    %c0_3 = arith.constant 0 : index
    %c0_4 = arith.constant 0 : index
    %3 = vector.load %arg1[%c0_3, %c0_4] : memref<120x31xf32, #tpu.memory_space<vmem>>, vector<120x1xf32>
    %c0_5 = arith.constant 0 : index
    %c1_6 = arith.constant 1 : index
    %4 = vector.load %arg1[%c0_5, %c1_6] : memref<120x31xf32, #tpu.memory_space<vmem>>, vector<120x30xf32>
    %c0_7 = arith.constant 0 : index
    %c0_8 = arith.constant 0 : index
    %5 = vector.load %arg2[%c0_7, %c0_8] : memref<15x96xf32, #tpu.memory_space<vmem>>, vector<1x16xf32>
    %c1_9 = arith.constant 1 : index
    %c0_10 = arith.constant 0 : index
    %6 = vector.load %arg2[%c1_9, %c0_10] : memref<15x96xf32, #tpu.memory_space<vmem>>, vector<1x96xf32>
    %c2 = arith.constant 2 : index
    %c0_11 = arith.constant 0 : index
    %7 = vector.load %arg2[%c2, %c0_11] : memref<15x96xf32, #tpu.memory_space<vmem>>, vector<1x96xf32>
    %c3 = arith.constant 3 : index
    %c0_12 = arith.constant 0 : index
    %8 = vector.load %arg2[%c3, %c0_12] : memref<15x96xf32, #tpu.memory_space<vmem>>, vector<6x96xf32>
    %c9 = arith.constant 9 : index
    %c0_13 = arith.constant 0 : index
    %9 = vector.load %arg2[%c9, %c0_13] : memref<15x96xf32, #tpu.memory_space<vmem>>, vector<6x30xf32>
    %cst = arith.constant 0.212765962 : f32
    %10 = vector.broadcast %cst : f32 to vector<30x1xf32>
    %11 = arith.mulf %0, %10 : vector<30x1xf32>
    %cst_14 = arith.constant 9.99999971E-10 : f32
    %12 = vector.broadcast %cst_14 : f32 to vector<30x1xf32>
    %13 = arith.maximumf %11, %12 : vector<30x1xf32>
    %cst_15 = arith.constant 1.000000e+00 : f32
    %14 = vector.broadcast %cst_15 : f32 to vector<30x1xf32>
    %15 = arith.divf %14, %13 : vector<30x1xf32>
    %16 = arith.mulf %13, %13 : vector<30x1xf32>
    %17 = arith.mulf %16, %16 : vector<30x1xf32>
    %18 = arith.mulf %17, %13 : vector<30x1xf32>
    %cst_16 = arith.constant -2.800000e+01 : f32
    %19 = vector.broadcast %cst_16 : f32 to vector<30x1xf32>
    %20 = arith.mulf %19, %18 : vector<30x1xf32>
    %21 = arith.addf %15, %20 : vector<30x1xf32>
    %cst_17 = arith.constant 4.800000e+01 : f32
    %22 = vector.broadcast %cst_17 : f32 to vector<30x1xf32>
    %23 = arith.mulf %22, %18 : vector<30x1xf32>
    %24 = arith.mulf %23, %13 : vector<30x1xf32>
    %25 = arith.addf %21, %24 : vector<30x1xf32>
    %cst_18 = arith.constant -2.100000e+01 : f32
    %26 = vector.broadcast %cst_18 : f32 to vector<30x1xf32>
    %27 = arith.mulf %26, %18 : vector<30x1xf32>
    %28 = arith.mulf %27, %16 : vector<30x1xf32>
    %29 = arith.addf %25, %28 : vector<30x1xf32>
    %cst_19 = arith.constant 1.000000e+00 : f32
    %30 = vector.broadcast %cst_19 : f32 to vector<30x1xf32>
    %31 = arith.cmpf olt, %13, %30 : vector<30x1xf32>
    %32 = arith.extui %31 : vector<30x1xi1> to vector<30x1xi32>
    %33 = arith.sitofp %32 : vector<30x1xi32> to vector<30x1xf32>
    %34 = arith.mulf %29, %33 : vector<30x1xf32>
    %35 = vector.broadcast %5 : vector<1x16xf32> to vector<30x16xf32>
    %36 = vector.broadcast %13 : vector<30x1xf32> to vector<30x16xf32>
    %37 = arith.mulf %35, %36 : vector<30x16xf32>
    %38 = math.sin %37 : vector<30x16xf32>
    %39 = vector.broadcast %34 : vector<30x1xf32> to vector<30x16xf32>
    %40 = arith.mulf %39, %38 : vector<30x16xf32>
    %41 = vector.broadcast %13 : vector<30x1xf32> to vector<30x96xf32>
    %42 = vector.broadcast %6 : vector<1x96xf32> to vector<30x96xf32>
    %43 = arith.mulf %41, %42 : vector<30x96xf32>
    %cst_20 = arith.constant 1.000000e+00 : f32
    %44 = vector.broadcast %cst_20 : f32 to vector<30x96xf32>
    %45 = arith.divf %44, %43 : vector<30x96xf32>
    %46 = math.sin %43 : vector<30x96xf32>
    %47 = math.cos %43 : vector<30x96xf32>
    %48 = arith.mulf %46, %45 : vector<30x96xf32>
    %49 = arith.mulf %46, %45 : vector<30x96xf32>
    %50 = arith.subf %49, %47 : vector<30x96xf32>
    %51 = arith.mulf %50, %45 : vector<30x96xf32>
    %52 = vector.extract_strided_slice %8 {offsets = [0, 0], sizes = [1, 96], strides = [1, 1]} : vector<6x96xf32> to vector<1x96xf32>
    %53 = vector.broadcast %52 : vector<1x96xf32> to vector<30x96xf32>
    %54 = arith.mulf %48, %53 : vector<30x96xf32>
    %55 = vector.extract_strided_slice %8 {offsets = [1, 0], sizes = [1, 96], strides = [1, 1]} : vector<6x96xf32> to vector<1x96xf32>
    %56 = vector.broadcast %55 : vector<1x96xf32> to vector<30x96xf32>
    %57 = arith.mulf %51, %56 : vector<30x96xf32>
    %58 = arith.addf %54, %57 : vector<30x96xf32>
    %cst_21 = arith.constant 3.000000e+00 : f32
    %59 = vector.broadcast %cst_21 : f32 to vector<30x96xf32>
    %60 = arith.mulf %59, %45 : vector<30x96xf32>
    %61 = arith.mulf %60, %51 : vector<30x96xf32>
    %62 = arith.subf %61, %48 : vector<30x96xf32>
    %63 = vector.extract_strided_slice %8 {offsets = [2, 0], sizes = [1, 96], strides = [1, 1]} : vector<6x96xf32> to vector<1x96xf32>
    %64 = vector.broadcast %63 : vector<1x96xf32> to vector<30x96xf32>
    %65 = arith.mulf %62, %64 : vector<30x96xf32>
    %66 = arith.addf %58, %65 : vector<30x96xf32>
    %cst_22 = arith.constant 5.000000e+00 : f32
    %67 = vector.broadcast %cst_22 : f32 to vector<30x96xf32>
    %68 = arith.mulf %67, %45 : vector<30x96xf32>
    %69 = arith.mulf %68, %62 : vector<30x96xf32>
    %70 = arith.subf %69, %51 : vector<30x96xf32>
    %71 = vector.extract_strided_slice %8 {offsets = [3, 0], sizes = [1, 96], strides = [1, 1]} : vector<6x96xf32> to vector<1x96xf32>
    %72 = vector.broadcast %71 : vector<1x96xf32> to vector<30x96xf32>
    %73 = arith.mulf %70, %72 : vector<30x96xf32>
    %74 = arith.addf %66, %73 : vector<30x96xf32>
    %cst_23 = arith.constant 7.000000e+00 : f32
    %75 = vector.broadcast %cst_23 : f32 to vector<30x96xf32>
    %76 = arith.mulf %75, %45 : vector<30x96xf32>
    %77 = arith.mulf %76, %70 : vector<30x96xf32>
    %78 = arith.subf %77, %62 : vector<30x96xf32>
    %79 = vector.extract_strided_slice %8 {offsets = [4, 0], sizes = [1, 96], strides = [1, 1]} : vector<6x96xf32> to vector<1x96xf32>
    %80 = vector.broadcast %79 : vector<1x96xf32> to vector<30x96xf32>
    %81 = arith.mulf %78, %80 : vector<30x96xf32>
    %82 = arith.addf %74, %81 : vector<30x96xf32>
    %cst_24 = arith.constant 9.000000e+00 : f32
    %83 = vector.broadcast %cst_24 : f32 to vector<30x96xf32>
    %84 = arith.mulf %83, %45 : vector<30x96xf32>
    %85 = arith.mulf %84, %78 : vector<30x96xf32>
    %86 = arith.subf %85, %70 : vector<30x96xf32>
    %87 = vector.extract_strided_slice %8 {offsets = [5, 0], sizes = [1, 96], strides = [1, 1]} : vector<6x96xf32> to vector<1x96xf32>
    %88 = vector.broadcast %87 : vector<1x96xf32> to vector<30x96xf32>
    %89 = arith.mulf %86, %88 : vector<30x96xf32>
    %90 = arith.addf %82, %89 : vector<30x96xf32>
    %91 = vector.broadcast %34 : vector<30x1xf32> to vector<30x96xf32>
    %92 = vector.broadcast %7 : vector<1x96xf32> to vector<30x96xf32>
    %93 = arith.mulf %91, %92 : vector<30x96xf32>
    %94 = arith.mulf %93, %90 : vector<30x96xf32>
    %95 = math.cos %3 : vector<120x1xf32>
    %cst_25 = arith.constant 1.000000e+00 : f32
    %96 = vector.broadcast %cst_25 : f32 to vector<120x1xf32>
    %cst_26 = arith.constant 3.000000e+00 : f32
    %97 = vector.broadcast %cst_26 : f32 to vector<120x1xf32>
    %98 = arith.mulf %97, %95 : vector<120x1xf32>
    %99 = arith.mulf %98, %95 : vector<120x1xf32>
    %cst_27 = arith.constant 1.000000e+00 : f32
    %100 = vector.broadcast %cst_27 : f32 to vector<120x1xf32>
    %101 = arith.mulf %100, %96 : vector<120x1xf32>
    %102 = arith.subf %99, %101 : vector<120x1xf32>
    %cst_28 = arith.constant 2.000000e+00 : f32
    %103 = vector.broadcast %cst_28 : f32 to vector<120x1xf32>
    %104 = arith.divf %102, %103 : vector<120x1xf32>
    %cst_29 = arith.constant 5.000000e+00 : f32
    %105 = vector.broadcast %cst_29 : f32 to vector<120x1xf32>
    %106 = arith.mulf %105, %95 : vector<120x1xf32>
    %107 = arith.mulf %106, %104 : vector<120x1xf32>
    %cst_30 = arith.constant 2.000000e+00 : f32
    %108 = vector.broadcast %cst_30 : f32 to vector<120x1xf32>
    %109 = arith.mulf %108, %95 : vector<120x1xf32>
    %110 = arith.subf %107, %109 : vector<120x1xf32>
    %cst_31 = arith.constant 3.000000e+00 : f32
    %111 = vector.broadcast %cst_31 : f32 to vector<120x1xf32>
    %112 = arith.divf %110, %111 : vector<120x1xf32>
    %cst_32 = arith.constant 7.000000e+00 : f32
    %113 = vector.broadcast %cst_32 : f32 to vector<120x1xf32>
    %114 = arith.mulf %113, %95 : vector<120x1xf32>
    %115 = arith.mulf %114, %112 : vector<120x1xf32>
    %cst_33 = arith.constant 3.000000e+00 : f32
    %116 = vector.broadcast %cst_33 : f32 to vector<120x1xf32>
    %117 = arith.mulf %116, %104 : vector<120x1xf32>
    %118 = arith.subf %115, %117 : vector<120x1xf32>
    %cst_34 = arith.constant 4.000000e+00 : f32
    %119 = vector.broadcast %cst_34 : f32 to vector<120x1xf32>
    %120 = arith.divf %118, %119 : vector<120x1xf32>
    %cst_35 = arith.constant 9.000000e+00 : f32
    %121 = vector.broadcast %cst_35 : f32 to vector<120x1xf32>
    %122 = arith.mulf %121, %95 : vector<120x1xf32>
    %123 = arith.mulf %122, %120 : vector<120x1xf32>
    %cst_36 = arith.constant 4.000000e+00 : f32
    %124 = vector.broadcast %cst_36 : f32 to vector<120x1xf32>
    %125 = arith.mulf %124, %112 : vector<120x1xf32>
    %126 = arith.subf %123, %125 : vector<120x1xf32>
    %cst_37 = arith.constant 5.000000e+00 : f32
    %127 = vector.broadcast %cst_37 : f32 to vector<120x1xf32>
    %128 = arith.divf %126, %127 : vector<120x1xf32>
    %cst_38 = arith.constant 0.282094806 : f32
    %129 = vector.broadcast %cst_38 : f32 to vector<120x1xf32>
    %130 = arith.mulf %129, %96 : vector<120x1xf32>
    %cst_39 = arith.constant 0.488602519 : f32
    %131 = vector.broadcast %cst_39 : f32 to vector<120x1xf32>
    %132 = arith.mulf %131, %95 : vector<120x1xf32>
    %cst_40 = arith.constant 0.63078314 : f32
    %133 = vector.broadcast %cst_40 : f32 to vector<120x1xf32>
    %134 = arith.mulf %133, %104 : vector<120x1xf32>
    %cst_41 = arith.constant 0.746352672 : f32
    %135 = vector.broadcast %cst_41 : f32 to vector<120x1xf32>
    %136 = arith.mulf %135, %112 : vector<120x1xf32>
    %cst_42 = arith.constant 0.846284389 : f32
    %137 = vector.broadcast %cst_42 : f32 to vector<120x1xf32>
    %138 = arith.mulf %137, %120 : vector<120x1xf32>
    %cst_43 = arith.constant 0.935602605 : f32
    %139 = vector.broadcast %cst_43 : f32 to vector<120x1xf32>
    %140 = arith.mulf %139, %128 : vector<120x1xf32>
    %141 = tpu.concatenate %130, %132, %134, %136, %138, %140 in 1 : vector<120x1xf32>, vector<120x1xf32>, vector<120x1xf32>, vector<120x1xf32>, vector<120x1xf32>, vector<120x1xf32> -> vector<120x6xf32>
    %142 = arith.truncf %4 : vector<120x30xf32> to vector<120x30xbf16>
    %143 = arith.truncf %94 : vector<30x96xf32> to vector<30x96xbf16>
    %cst_44 = arith.constant dense<0.000000e+00> : vector<120x96xf32>
    %144 = tpu.matmul %142, %143, %cst_44 {dimension_numbers = #tpu.dot_dimension_numbers<[1], [0], [0], [1], [0, 0, 1, 1], [], []>} : vector<120x30xbf16>, vector<30x96xbf16>, vector<120x96xf32> -> vector<120x96xf32>
    %145 = arith.truncf %141 : vector<120x6xf32> to vector<120x6xbf16>
    %146 = arith.truncf %8 : vector<6x96xf32> to vector<6x96xbf16>
    %cst_45 = arith.constant dense<0.000000e+00> : vector<120x96xf32>
    %147 = tpu.matmul %145, %146, %cst_45 {dimension_numbers = #tpu.dot_dimension_numbers<[1], [0], [0], [1], [0, 0, 1, 1], [], []>} : vector<120x6xbf16>, vector<6x96xbf16>, vector<120x96xf32> -> vector<120x96xf32>
    %148 = arith.mulf %144, %147 : vector<120x96xf32>
    %c0_46 = arith.constant 0 : index
    %c0_47 = arith.constant 0 : index
    %149 = vector.load %arg3[%c0_46, %c0_47] : memref<96x580xf32, #tpu.memory_space<vmem>>, vector<16x96xf32>
    %150 = arith.truncf %40 : vector<30x16xf32> to vector<30x16xbf16>
    %151 = arith.truncf %149 : vector<16x96xf32> to vector<16x96xbf16>
    %cst_48 = arith.constant dense<0.000000e+00> : vector<30x96xf32>
    %152 = tpu.matmul %150, %151, %cst_48 {dimension_numbers = #tpu.dot_dimension_numbers<[1], [0], [0], [1], [0, 0, 1, 1], [], []>} : vector<30x16xbf16>, vector<16x96xbf16>, vector<30x96xf32> -> vector<30x96xf32>
    %c0_49 = arith.constant 0 : index
    %c432 = arith.constant 432 : index
    %153 = vector.load %arg3[%c0_49, %c432] : memref<96x580xf32, #tpu.memory_space<vmem>>, vector<96x4xf32>
    %154 = arith.truncf %148 : vector<120x96xf32> to vector<120x96xbf16>
    %155 = arith.truncf %153 : vector<96x4xf32> to vector<96x4xbf16>
    %cst_50 = arith.constant dense<0.000000e+00> : vector<120x4xf32>
    %156 = tpu.matmul %154, %155, %cst_50 {dimension_numbers = #tpu.dot_dimension_numbers<[1], [0], [0], [1], [0, 0, 1, 1], [], []>} : vector<120x96xbf16>, vector<96x4xbf16>, vector<120x4xf32> -> vector<120x4xf32>
    %157 = vector.extract_strided_slice %152 {offsets = [0, 0], sizes = [30, 16], strides = [1, 1]} : vector<30x96xf32> to vector<30x16xf32>
    %c0_51 = arith.constant 0 : index
    %c0_52 = arith.constant 0 : index
    %158 = vector.load %arg4[%c0_51, %c0_52] : memref<22x48xf32, #tpu.memory_space<vmem>>, vector<1x16xf32>
    %159 = vector.broadcast %158 : vector<1x16xf32> to vector<30x16xf32>
    %160 = arith.addf %157, %159 : vector<30x16xf32>
    %161 = arith.negf %160 : vector<30x16xf32>
    %162 = math.exp %161 : vector<30x16xf32>
    %cst_53 = arith.constant 1.000000e+00 : f32
    %163 = vector.broadcast %cst_53 : f32 to vector<30x16xf32>
    %164 = arith.addf %163, %162 : vector<30x16xf32>
    %165 = arith.divf %163, %164 : vector<30x16xf32>
    %166 = arith.mulf %160, %165 : vector<30x16xf32>
    %167 = tpu.concatenate %1, %166 in 1 : vector<30x32xf32>, vector<30x16xf32> -> vector<30x48xf32>
    %c0_54 = arith.constant 0 : index
    %c96 = arith.constant 96 : index
    %168 = vector.load %arg3[%c0_54, %c96] : memref<96x580xf32, #tpu.memory_space<vmem>>, vector<48x16xf32>
    %169 = arith.truncf %167 : vector<30x48xf32> to vector<30x48xbf16>
    %170 = arith.truncf %168 : vector<48x16xf32> to vector<48x16xbf16>
    %cst_55 = arith.constant dense<0.000000e+00> : vector<30x16xf32>
    %171 = tpu.matmul %169, %170, %cst_55 {dimension_numbers = #tpu.dot_dimension_numbers<[1], [0], [0], [1], [0, 0, 1, 1], [], []>} : vector<30x48xbf16>, vector<48x16xbf16>, vector<30x16xf32> -> vector<30x16xf32>
    %c1_56 = arith.constant 1 : index
    %c0_57 = arith.constant 0 : index
    %172 = vector.load %arg4[%c1_56, %c0_57] : memref<22x48xf32, #tpu.memory_space<vmem>>, vector<1x16xf32>
    %173 = vector.broadcast %172 : vector<1x16xf32> to vector<30x16xf32>
    %174 = arith.addf %171, %173 : vector<30x16xf32>
    %175 = arith.negf %174 : vector<30x16xf32>
    %176 = math.exp %175 : vector<30x16xf32>
    %cst_58 = arith.constant 1.000000e+00 : f32
    %177 = vector.broadcast %cst_58 : f32 to vector<30x16xf32>
    %178 = arith.addf %177, %176 : vector<30x16xf32>
    %179 = arith.divf %177, %178 : vector<30x16xf32>
    %180 = arith.mulf %174, %179 : vector<30x16xf32>
    %181 = vector.extract_strided_slice %152 {offsets = [0, 16], sizes = [30, 16], strides = [1, 1]} : vector<30x96xf32> to vector<30x16xf32>
    %182 = vector.extract_strided_slice %156 {offsets = [0, 0], sizes = [120, 2], strides = [1, 1]} : vector<120x4xf32> to vector<120x2xf32>
    %c0_59 = arith.constant 0 : index
    %c336 = arith.constant 336 : index
    %183 = vector.load %arg3[%c0_59, %c336] : memref<96x580xf32, #tpu.memory_space<vmem>>, vector<16x32xf32>
    %184 = arith.truncf %180 : vector<30x16xf32> to vector<30x16xbf16>
    %185 = arith.truncf %183 : vector<16x32xf32> to vector<16x32xbf16>
    %cst_60 = arith.constant dense<0.000000e+00> : vector<30x32xf32>
    %186 = tpu.matmul %184, %185, %cst_60 {dimension_numbers = #tpu.dot_dimension_numbers<[1], [0], [0], [1], [0, 0, 1, 1], [], []>} : vector<30x16xbf16>, vector<16x32xbf16>, vector<30x32xf32> -> vector<30x32xf32>
    %c20 = arith.constant 20 : index
    %c0_61 = arith.constant 0 : index
    %187 = vector.load %arg4[%c20, %c0_61] : memref<22x48xf32, #tpu.memory_space<vmem>>, vector<1x32xf32>
    %188 = vector.broadcast %187 : vector<1x32xf32> to vector<30x32xf32>
    %189 = arith.addf %186, %188 : vector<30x32xf32>
    %190 = arith.negf %189 : vector<30x32xf32>
    %191 = math.exp %190 : vector<30x32xf32>
    %cst_62 = arith.constant 1.000000e+00 : f32
    %192 = vector.broadcast %cst_62 : f32 to vector<30x32xf32>
    %193 = arith.addf %192, %191 : vector<30x32xf32>
    %194 = arith.divf %192, %193 : vector<30x32xf32>
    %195 = arith.mulf %189, %194 : vector<30x32xf32>
    %196 = vector.extract_strided_slice %195 {offsets = [0, 0], sizes = [30, 16], strides = [1, 1]} : vector<30x32xf32> to vector<30x16xf32>
    %197 = vector.extract_strided_slice %195 {offsets = [0, 16], sizes = [30, 16], strides = [1, 1]} : vector<30x32xf32> to vector<30x16xf32>
    %198 = arith.mulf %197, %181 : vector<30x16xf32>
    %199 = arith.truncf %4 : vector<120x30xf32> to vector<120x30xbf16>
    %200 = arith.truncf %198 : vector<30x16xf32> to vector<30x16xbf16>
    %cst_63 = arith.constant dense<0.000000e+00> : vector<120x16xf32>
    %201 = tpu.matmul %199, %200, %cst_63 {dimension_numbers = #tpu.dot_dimension_numbers<[1], [0], [0], [1], [0, 0, 1, 1], [], []>} : vector<120x30xbf16>, vector<30x16xbf16>, vector<120x16xf32> -> vector<120x16xf32>
    %202 = vector.extract_strided_slice %182 {offsets = [0, 0], sizes = [120, 1], strides = [1, 1]} : vector<120x2xf32> to vector<120x1xf32>
    %203 = vector.broadcast %202 : vector<120x1xf32> to vector<120x16xf32>
    %204 = arith.mulf %201, %203 : vector<120x16xf32>
    %205 = vector.extract_strided_slice %182 {offsets = [0, 1], sizes = [120, 1], strides = [1, 1]} : vector<120x2xf32> to vector<120x1xf32>
    %206 = vector.broadcast %205 : vector<120x1xf32> to vector<120x16xf32>
    %207 = arith.mulf %201, %206 : vector<120x16xf32>
    %208 = tpu.concatenate %204, %207 in 1 : vector<120x16xf32>, vector<120x16xf32> -> vector<120x32xf32>
    %c0_64 = arith.constant 0 : index
    %c400 = arith.constant 400 : index
    %209 = vector.load %arg3[%c0_64, %c400] : memref<96x580xf32, #tpu.memory_space<vmem>>, vector<32x16xf32>
    %210 = arith.truncf %208 : vector<120x32xf32> to vector<120x32xbf16>
    %211 = arith.truncf %209 : vector<32x16xf32> to vector<32x16xbf16>
    %cst_65 = arith.constant dense<0.000000e+00> : vector<120x16xf32>
    %212 = tpu.matmul %210, %211, %cst_65 {dimension_numbers = #tpu.dot_dimension_numbers<[1], [0], [0], [1], [0, 0, 1, 1], [], []>} : vector<120x32xbf16>, vector<32x16xbf16>, vector<120x16xf32> -> vector<120x16xf32>
    %213 = arith.truncf %2 : vector<30x120xf32> to vector<30x120xbf16>
    %214 = arith.truncf %212 : vector<120x16xf32> to vector<120x16xbf16>
    %cst_66 = arith.constant dense<0.000000e+00> : vector<30x16xf32>
    %215 = tpu.matmul %213, %214, %cst_66 {dimension_numbers = #tpu.dot_dimension_numbers<[1], [0], [0], [1], [0, 0, 1, 1], [], []>} : vector<30x120xbf16>, vector<120x16xbf16>, vector<30x16xf32> -> vector<30x16xf32>
    %216 = arith.addf %196, %215 : vector<30x16xf32>
    %c0_67 = arith.constant 0 : index
    %c112 = arith.constant 112 : index
    %217 = vector.load %arg3[%c0_67, %c112] : memref<96x580xf32, #tpu.memory_space<vmem>>, vector<16x16xf32>
    %218 = arith.truncf %216 : vector<30x16xf32> to vector<30x16xbf16>
    %219 = arith.truncf %217 : vector<16x16xf32> to vector<16x16xbf16>
    %cst_68 = arith.constant dense<0.000000e+00> : vector<30x16xf32>
    %220 = tpu.matmul %218, %219, %cst_68 {dimension_numbers = #tpu.dot_dimension_numbers<[1], [0], [0], [1], [0, 0, 1, 1], [], []>} : vector<30x16xbf16>, vector<16x16xbf16>, vector<30x16xf32> -> vector<30x16xf32>
    %c2_69 = arith.constant 2 : index
    %c0_70 = arith.constant 0 : index
    %221 = vector.load %arg4[%c2_69, %c0_70] : memref<22x48xf32, #tpu.memory_space<vmem>>, vector<1x16xf32>
    %222 = vector.broadcast %221 : vector<1x16xf32> to vector<30x16xf32>
    %223 = arith.addf %220, %222 : vector<30x16xf32>
    %224 = arith.negf %223 : vector<30x16xf32>
    %225 = math.exp %224 : vector<30x16xf32>
    %cst_71 = arith.constant 1.000000e+00 : f32
    %226 = vector.broadcast %cst_71 : f32 to vector<30x16xf32>
    %227 = arith.addf %226, %225 : vector<30x16xf32>
    %228 = arith.divf %226, %227 : vector<30x16xf32>
    %229 = arith.mulf %223, %228 : vector<30x16xf32>
    %c0_72 = arith.constant 0 : index
    %c128 = arith.constant 128 : index
    %230 = vector.load %arg3[%c0_72, %c128] : memref<96x580xf32, #tpu.memory_space<vmem>>, vector<16x16xf32>
    %231 = arith.truncf %229 : vector<30x16xf32> to vector<30x16xbf16>
    %232 = arith.truncf %230 : vector<16x16xf32> to vector<16x16xbf16>
    %cst_73 = arith.constant dense<0.000000e+00> : vector<30x16xf32>
    %233 = tpu.matmul %231, %232, %cst_73 {dimension_numbers = #tpu.dot_dimension_numbers<[1], [0], [0], [1], [0, 0, 1, 1], [], []>} : vector<30x16xbf16>, vector<16x16xbf16>, vector<30x16xf32> -> vector<30x16xf32>
    %c3_74 = arith.constant 3 : index
    %c0_75 = arith.constant 0 : index
    %234 = vector.load %arg4[%c3_74, %c0_75] : memref<22x48xf32, #tpu.memory_space<vmem>>, vector<1x16xf32>
    %235 = vector.broadcast %234 : vector<1x16xf32> to vector<30x16xf32>
    %236 = arith.addf %233, %235 : vector<30x16xf32>
    %237 = arith.negf %236 : vector<30x16xf32>
    %238 = math.exp %237 : vector<30x16xf32>
    %cst_76 = arith.constant 1.000000e+00 : f32
    %239 = vector.broadcast %cst_76 : f32 to vector<30x16xf32>
    %240 = arith.addf %239, %238 : vector<30x16xf32>
    %241 = arith.divf %239, %240 : vector<30x16xf32>
    %242 = arith.mulf %236, %241 : vector<30x16xf32>
    %243 = arith.addf %216, %242 : vector<30x16xf32>
    %c0_77 = arith.constant 0 : index
    %c144 = arith.constant 144 : index
    %244 = vector.load %arg3[%c0_77, %c144] : memref<96x580xf32, #tpu.memory_space<vmem>>, vector<16x16xf32>
    %245 = arith.truncf %243 : vector<30x16xf32> to vector<30x16xbf16>
    %246 = arith.truncf %244 : vector<16x16xf32> to vector<16x16xbf16>
    %cst_78 = arith.constant dense<0.000000e+00> : vector<30x16xf32>
    %247 = tpu.matmul %245, %246, %cst_78 {dimension_numbers = #tpu.dot_dimension_numbers<[1], [0], [0], [1], [0, 0, 1, 1], [], []>} : vector<30x16xbf16>, vector<16x16xbf16>, vector<30x16xf32> -> vector<30x16xf32>
    %c4 = arith.constant 4 : index
    %c0_79 = arith.constant 0 : index
    %248 = vector.load %arg4[%c4, %c0_79] : memref<22x48xf32, #tpu.memory_space<vmem>>, vector<1x16xf32>
    %249 = vector.broadcast %248 : vector<1x16xf32> to vector<30x16xf32>
    %250 = arith.addf %247, %249 : vector<30x16xf32>
    %251 = arith.negf %250 : vector<30x16xf32>
    %252 = math.exp %251 : vector<30x16xf32>
    %cst_80 = arith.constant 1.000000e+00 : f32
    %253 = vector.broadcast %cst_80 : f32 to vector<30x16xf32>
    %254 = arith.addf %253, %252 : vector<30x16xf32>
    %255 = arith.divf %253, %254 : vector<30x16xf32>
    %256 = arith.mulf %250, %255 : vector<30x16xf32>
    %257 = arith.addf %256, %180 : vector<30x16xf32>
    %c0_81 = arith.constant 0 : index
    %c160 = arith.constant 160 : index
    %258 = vector.load %arg3[%c0_81, %c160] : memref<96x580xf32, #tpu.memory_space<vmem>>, vector<16x16xf32>
    %259 = arith.truncf %257 : vector<30x16xf32> to vector<30x16xbf16>
    %260 = arith.truncf %258 : vector<16x16xf32> to vector<16x16xbf16>
    %cst_82 = arith.constant dense<0.000000e+00> : vector<30x16xf32>
    %261 = tpu.matmul %259, %260, %cst_82 {dimension_numbers = #tpu.dot_dimension_numbers<[1], [0], [0], [1], [0, 0, 1, 1], [], []>} : vector<30x16xbf16>, vector<16x16xbf16>, vector<30x16xf32> -> vector<30x16xf32>
    %c5 = arith.constant 5 : index
    %c0_83 = arith.constant 0 : index
    %262 = vector.load %arg4[%c5, %c0_83] : memref<22x48xf32, #tpu.memory_space<vmem>>, vector<1x16xf32>
    %263 = vector.broadcast %262 : vector<1x16xf32> to vector<30x16xf32>
    %264 = arith.addf %261, %263 : vector<30x16xf32>
    %265 = arith.negf %264 : vector<30x16xf32>
    %266 = math.exp %265 : vector<30x16xf32>
    %cst_84 = arith.constant 1.000000e+00 : f32
    %267 = vector.broadcast %cst_84 : f32 to vector<30x16xf32>
    %268 = arith.addf %267, %266 : vector<30x16xf32>
    %269 = arith.divf %267, %268 : vector<30x16xf32>
    %270 = arith.mulf %264, %269 : vector<30x16xf32>
    %c0_85 = arith.constant 0 : index
    %c176 = arith.constant 176 : index
    %271 = vector.load %arg3[%c0_85, %c176] : memref<96x580xf32, #tpu.memory_space<vmem>>, vector<16x16xf32>
    %272 = arith.truncf %270 : vector<30x16xf32> to vector<30x16xbf16>
    %273 = arith.truncf %271 : vector<16x16xf32> to vector<16x16xbf16>
    %cst_86 = arith.constant dense<0.000000e+00> : vector<30x16xf32>
    %274 = tpu.matmul %272, %273, %cst_86 {dimension_numbers = #tpu.dot_dimension_numbers<[1], [0], [0], [1], [0, 0, 1, 1], [], []>} : vector<30x16xbf16>, vector<16x16xbf16>, vector<30x16xf32> -> vector<30x16xf32>
    %c6 = arith.constant 6 : index
    %c0_87 = arith.constant 0 : index
    %275 = vector.load %arg4[%c6, %c0_87] : memref<22x48xf32, #tpu.memory_space<vmem>>, vector<1x16xf32>
    %276 = vector.broadcast %275 : vector<1x16xf32> to vector<30x16xf32>
    %277 = arith.addf %274, %276 : vector<30x16xf32>
    %278 = arith.negf %277 : vector<30x16xf32>
    %279 = math.exp %278 : vector<30x16xf32>
    %cst_88 = arith.constant 1.000000e+00 : f32
    %280 = vector.broadcast %cst_88 : f32 to vector<30x16xf32>
    %281 = arith.addf %280, %279 : vector<30x16xf32>
    %282 = arith.divf %280, %281 : vector<30x16xf32>
    %283 = arith.mulf %277, %282 : vector<30x16xf32>
    %284 = arith.addf %257, %283 : vector<30x16xf32>
    %c0_89 = arith.constant 0 : index
    %c192 = arith.constant 192 : index
    %285 = vector.load %arg3[%c0_89, %c192] : memref<96x580xf32, #tpu.memory_space<vmem>>, vector<16x16xf32>
    %286 = arith.truncf %284 : vector<30x16xf32> to vector<30x16xbf16>
    %287 = arith.truncf %285 : vector<16x16xf32> to vector<16x16xbf16>
    %cst_90 = arith.constant dense<0.000000e+00> : vector<30x16xf32>
    %288 = tpu.matmul %286, %287, %cst_90 {dimension_numbers = #tpu.dot_dimension_numbers<[1], [0], [0], [1], [0, 0, 1, 1], [], []>} : vector<30x16xbf16>, vector<16x16xbf16>, vector<30x16xf32> -> vector<30x16xf32>
    %c7 = arith.constant 7 : index
    %c0_91 = arith.constant 0 : index
    %289 = vector.load %arg4[%c7, %c0_91] : memref<22x48xf32, #tpu.memory_space<vmem>>, vector<1x16xf32>
    %290 = vector.broadcast %289 : vector<1x16xf32> to vector<30x16xf32>
    %291 = arith.addf %288, %290 : vector<30x16xf32>
    %292 = arith.negf %291 : vector<30x16xf32>
    %293 = math.exp %292 : vector<30x16xf32>
    %cst_92 = arith.constant 1.000000e+00 : f32
    %294 = vector.broadcast %cst_92 : f32 to vector<30x16xf32>
    %295 = arith.addf %294, %293 : vector<30x16xf32>
    %296 = arith.divf %294, %295 : vector<30x16xf32>
    %297 = arith.mulf %291, %296 : vector<30x16xf32>
    %c0_93 = arith.constant 0 : index
    %c208 = arith.constant 208 : index
    %298 = vector.load %arg3[%c0_93, %c208] : memref<96x580xf32, #tpu.memory_space<vmem>>, vector<16x16xf32>
    %299 = arith.truncf %297 : vector<30x16xf32> to vector<30x16xbf16>
    %300 = arith.truncf %298 : vector<16x16xf32> to vector<16x16xbf16>
    %cst_94 = arith.constant dense<0.000000e+00> : vector<30x16xf32>
    %301 = tpu.matmul %299, %300, %cst_94 {dimension_numbers = #tpu.dot_dimension_numbers<[1], [0], [0], [1], [0, 0, 1, 1], [], []>} : vector<30x16xbf16>, vector<16x16xbf16>, vector<30x16xf32> -> vector<30x16xf32>
    %c8 = arith.constant 8 : index
    %c0_95 = arith.constant 0 : index
    %302 = vector.load %arg4[%c8, %c0_95] : memref<22x48xf32, #tpu.memory_space<vmem>>, vector<1x16xf32>
    %303 = vector.broadcast %302 : vector<1x16xf32> to vector<30x16xf32>
    %304 = arith.addf %301, %303 : vector<30x16xf32>
    %305 = arith.negf %304 : vector<30x16xf32>
    %306 = math.exp %305 : vector<30x16xf32>
    %cst_96 = arith.constant 1.000000e+00 : f32
    %307 = vector.broadcast %cst_96 : f32 to vector<30x16xf32>
    %308 = arith.addf %307, %306 : vector<30x16xf32>
    %309 = arith.divf %307, %308 : vector<30x16xf32>
    %310 = arith.mulf %304, %309 : vector<30x16xf32>
    %311 = arith.addf %284, %310 : vector<30x16xf32>
    %312 = vector.extract_strided_slice %152 {offsets = [0, 32], sizes = [30, 16], strides = [1, 1]} : vector<30x96xf32> to vector<30x16xf32>
    %313 = vector.extract_strided_slice %156 {offsets = [0, 2], sizes = [120, 2], strides = [1, 1]} : vector<120x4xf32> to vector<120x2xf32>
    %c0_97 = arith.constant 0 : index
    %c368 = arith.constant 368 : index
    %314 = vector.load %arg3[%c0_97, %c368] : memref<96x580xf32, #tpu.memory_space<vmem>>, vector<16x32xf32>
    %315 = arith.truncf %311 : vector<30x16xf32> to vector<30x16xbf16>
    %316 = arith.truncf %314 : vector<16x32xf32> to vector<16x32xbf16>
    %cst_98 = arith.constant dense<0.000000e+00> : vector<30x32xf32>
    %317 = tpu.matmul %315, %316, %cst_98 {dimension_numbers = #tpu.dot_dimension_numbers<[1], [0], [0], [1], [0, 0, 1, 1], [], []>} : vector<30x16xbf16>, vector<16x32xbf16>, vector<30x32xf32> -> vector<30x32xf32>
    %c21 = arith.constant 21 : index
    %c0_99 = arith.constant 0 : index
    %318 = vector.load %arg4[%c21, %c0_99] : memref<22x48xf32, #tpu.memory_space<vmem>>, vector<1x32xf32>
    %319 = vector.broadcast %318 : vector<1x32xf32> to vector<30x32xf32>
    %320 = arith.addf %317, %319 : vector<30x32xf32>
    %321 = arith.negf %320 : vector<30x32xf32>
    %322 = math.exp %321 : vector<30x32xf32>
    %cst_100 = arith.constant 1.000000e+00 : f32
    %323 = vector.broadcast %cst_100 : f32 to vector<30x32xf32>
    %324 = arith.addf %323, %322 : vector<30x32xf32>
    %325 = arith.divf %323, %324 : vector<30x32xf32>
    %326 = arith.mulf %320, %325 : vector<30x32xf32>
    %327 = vector.extract_strided_slice %326 {offsets = [0, 0], sizes = [30, 16], strides = [1, 1]} : vector<30x32xf32> to vector<30x16xf32>
    %328 = vector.extract_strided_slice %326 {offsets = [0, 16], sizes = [30, 16], strides = [1, 1]} : vector<30x32xf32> to vector<30x16xf32>
    %329 = arith.mulf %328, %312 : vector<30x16xf32>
    %330 = arith.truncf %4 : vector<120x30xf32> to vector<120x30xbf16>
    %331 = arith.truncf %329 : vector<30x16xf32> to vector<30x16xbf16>
    %cst_101 = arith.constant dense<0.000000e+00> : vector<120x16xf32>
    %332 = tpu.matmul %330, %331, %cst_101 {dimension_numbers = #tpu.dot_dimension_numbers<[1], [0], [0], [1], [0, 0, 1, 1], [], []>} : vector<120x30xbf16>, vector<30x16xbf16>, vector<120x16xf32> -> vector<120x16xf32>
    %333 = vector.extract_strided_slice %313 {offsets = [0, 0], sizes = [120, 1], strides = [1, 1]} : vector<120x2xf32> to vector<120x1xf32>
    %334 = vector.broadcast %333 : vector<120x1xf32> to vector<120x16xf32>
    %335 = arith.mulf %332, %334 : vector<120x16xf32>
    %336 = vector.extract_strided_slice %313 {offsets = [0, 1], sizes = [120, 1], strides = [1, 1]} : vector<120x2xf32> to vector<120x1xf32>
    %337 = vector.broadcast %336 : vector<120x1xf32> to vector<120x16xf32>
    %338 = arith.mulf %332, %337 : vector<120x16xf32>
    %339 = tpu.concatenate %335, %338 in 1 : vector<120x16xf32>, vector<120x16xf32> -> vector<120x32xf32>
    %c0_102 = arith.constant 0 : index
    %c416 = arith.constant 416 : index
    %340 = vector.load %arg3[%c0_102, %c416] : memref<96x580xf32, #tpu.memory_space<vmem>>, vector<32x16xf32>
    %341 = arith.truncf %339 : vector<120x32xf32> to vector<120x32xbf16>
    %342 = arith.truncf %340 : vector<32x16xf32> to vector<32x16xbf16>
    %cst_103 = arith.constant dense<0.000000e+00> : vector<120x16xf32>
    %343 = tpu.matmul %341, %342, %cst_103 {dimension_numbers = #tpu.dot_dimension_numbers<[1], [0], [0], [1], [0, 0, 1, 1], [], []>} : vector<120x32xbf16>, vector<32x16xbf16>, vector<120x16xf32> -> vector<120x16xf32>
    %344 = arith.truncf %2 : vector<30x120xf32> to vector<30x120xbf16>
    %345 = arith.truncf %343 : vector<120x16xf32> to vector<120x16xbf16>
    %cst_104 = arith.constant dense<0.000000e+00> : vector<30x16xf32>
    %346 = tpu.matmul %344, %345, %cst_104 {dimension_numbers = #tpu.dot_dimension_numbers<[1], [0], [0], [1], [0, 0, 1, 1], [], []>} : vector<30x120xbf16>, vector<120x16xbf16>, vector<30x16xf32> -> vector<30x16xf32>
    %347 = arith.addf %327, %346 : vector<30x16xf32>
    %c0_105 = arith.constant 0 : index
    %c224 = arith.constant 224 : index
    %348 = vector.load %arg3[%c0_105, %c224] : memref<96x580xf32, #tpu.memory_space<vmem>>, vector<16x16xf32>
    %349 = arith.truncf %347 : vector<30x16xf32> to vector<30x16xbf16>
    %350 = arith.truncf %348 : vector<16x16xf32> to vector<16x16xbf16>
    %cst_106 = arith.constant dense<0.000000e+00> : vector<30x16xf32>
    %351 = tpu.matmul %349, %350, %cst_106 {dimension_numbers = #tpu.dot_dimension_numbers<[1], [0], [0], [1], [0, 0, 1, 1], [], []>} : vector<30x16xbf16>, vector<16x16xbf16>, vector<30x16xf32> -> vector<30x16xf32>
    %c9_107 = arith.constant 9 : index
    %c0_108 = arith.constant 0 : index
    %352 = vector.load %arg4[%c9_107, %c0_108] : memref<22x48xf32, #tpu.memory_space<vmem>>, vector<1x16xf32>
    %353 = vector.broadcast %352 : vector<1x16xf32> to vector<30x16xf32>
    %354 = arith.addf %351, %353 : vector<30x16xf32>
    %355 = arith.negf %354 : vector<30x16xf32>
    %356 = math.exp %355 : vector<30x16xf32>
    %cst_109 = arith.constant 1.000000e+00 : f32
    %357 = vector.broadcast %cst_109 : f32 to vector<30x16xf32>
    %358 = arith.addf %357, %356 : vector<30x16xf32>
    %359 = arith.divf %357, %358 : vector<30x16xf32>
    %360 = arith.mulf %354, %359 : vector<30x16xf32>
    %c0_110 = arith.constant 0 : index
    %c240 = arith.constant 240 : index
    %361 = vector.load %arg3[%c0_110, %c240] : memref<96x580xf32, #tpu.memory_space<vmem>>, vector<16x16xf32>
    %362 = arith.truncf %360 : vector<30x16xf32> to vector<30x16xbf16>
    %363 = arith.truncf %361 : vector<16x16xf32> to vector<16x16xbf16>
    %cst_111 = arith.constant dense<0.000000e+00> : vector<30x16xf32>
    %364 = tpu.matmul %362, %363, %cst_111 {dimension_numbers = #tpu.dot_dimension_numbers<[1], [0], [0], [1], [0, 0, 1, 1], [], []>} : vector<30x16xbf16>, vector<16x16xbf16>, vector<30x16xf32> -> vector<30x16xf32>
    %c10 = arith.constant 10 : index
    %c0_112 = arith.constant 0 : index
    %365 = vector.load %arg4[%c10, %c0_112] : memref<22x48xf32, #tpu.memory_space<vmem>>, vector<1x16xf32>
    %366 = vector.broadcast %365 : vector<1x16xf32> to vector<30x16xf32>
    %367 = arith.addf %364, %366 : vector<30x16xf32>
    %368 = arith.negf %367 : vector<30x16xf32>
    %369 = math.exp %368 : vector<30x16xf32>
    %cst_113 = arith.constant 1.000000e+00 : f32
    %370 = vector.broadcast %cst_113 : f32 to vector<30x16xf32>
    %371 = arith.addf %370, %369 : vector<30x16xf32>
    %372 = arith.divf %370, %371 : vector<30x16xf32>
    %373 = arith.mulf %367, %372 : vector<30x16xf32>
    %374 = arith.addf %347, %373 : vector<30x16xf32>
    %c0_114 = arith.constant 0 : index
    %c256 = arith.constant 256 : index
    %375 = vector.load %arg3[%c0_114, %c256] : memref<96x580xf32, #tpu.memory_space<vmem>>, vector<16x16xf32>
    %376 = arith.truncf %374 : vector<30x16xf32> to vector<30x16xbf16>
    %377 = arith.truncf %375 : vector<16x16xf32> to vector<16x16xbf16>
    %cst_115 = arith.constant dense<0.000000e+00> : vector<30x16xf32>
    %378 = tpu.matmul %376, %377, %cst_115 {dimension_numbers = #tpu.dot_dimension_numbers<[1], [0], [0], [1], [0, 0, 1, 1], [], []>} : vector<30x16xbf16>, vector<16x16xbf16>, vector<30x16xf32> -> vector<30x16xf32>
    %c11 = arith.constant 11 : index
    %c0_116 = arith.constant 0 : index
    %379 = vector.load %arg4[%c11, %c0_116] : memref<22x48xf32, #tpu.memory_space<vmem>>, vector<1x16xf32>
    %380 = vector.broadcast %379 : vector<1x16xf32> to vector<30x16xf32>
    %381 = arith.addf %378, %380 : vector<30x16xf32>
    %382 = arith.negf %381 : vector<30x16xf32>
    %383 = math.exp %382 : vector<30x16xf32>
    %cst_117 = arith.constant 1.000000e+00 : f32
    %384 = vector.broadcast %cst_117 : f32 to vector<30x16xf32>
    %385 = arith.addf %384, %383 : vector<30x16xf32>
    %386 = arith.divf %384, %385 : vector<30x16xf32>
    %387 = arith.mulf %381, %386 : vector<30x16xf32>
    %388 = arith.addf %387, %311 : vector<30x16xf32>
    %c0_118 = arith.constant 0 : index
    %c272 = arith.constant 272 : index
    %389 = vector.load %arg3[%c0_118, %c272] : memref<96x580xf32, #tpu.memory_space<vmem>>, vector<16x16xf32>
    %390 = arith.truncf %388 : vector<30x16xf32> to vector<30x16xbf16>
    %391 = arith.truncf %389 : vector<16x16xf32> to vector<16x16xbf16>
    %cst_119 = arith.constant dense<0.000000e+00> : vector<30x16xf32>
    %392 = tpu.matmul %390, %391, %cst_119 {dimension_numbers = #tpu.dot_dimension_numbers<[1], [0], [0], [1], [0, 0, 1, 1], [], []>} : vector<30x16xbf16>, vector<16x16xbf16>, vector<30x16xf32> -> vector<30x16xf32>
    %c12 = arith.constant 12 : index
    %c0_120 = arith.constant 0 : index
    %393 = vector.load %arg4[%c12, %c0_120] : memref<22x48xf32, #tpu.memory_space<vmem>>, vector<1x16xf32>
    %394 = vector.broadcast %393 : vector<1x16xf32> to vector<30x16xf32>
    %395 = arith.addf %392, %394 : vector<30x16xf32>
    %396 = arith.negf %395 : vector<30x16xf32>
    %397 = math.exp %396 : vector<30x16xf32>
    %cst_121 = arith.constant 1.000000e+00 : f32
    %398 = vector.broadcast %cst_121 : f32 to vector<30x16xf32>
    %399 = arith.addf %398, %397 : vector<30x16xf32>
    %400 = arith.divf %398, %399 : vector<30x16xf32>
    %401 = arith.mulf %395, %400 : vector<30x16xf32>
    %c0_122 = arith.constant 0 : index
    %c288 = arith.constant 288 : index
    %402 = vector.load %arg3[%c0_122, %c288] : memref<96x580xf32, #tpu.memory_space<vmem>>, vector<16x16xf32>
    %403 = arith.truncf %401 : vector<30x16xf32> to vector<30x16xbf16>
    %404 = arith.truncf %402 : vector<16x16xf32> to vector<16x16xbf16>
    %cst_123 = arith.constant dense<0.000000e+00> : vector<30x16xf32>
    %405 = tpu.matmul %403, %404, %cst_123 {dimension_numbers = #tpu.dot_dimension_numbers<[1], [0], [0], [1], [0, 0, 1, 1], [], []>} : vector<30x16xbf16>, vector<16x16xbf16>, vector<30x16xf32> -> vector<30x16xf32>
    %c13 = arith.constant 13 : index
    %c0_124 = arith.constant 0 : index
    %406 = vector.load %arg4[%c13, %c0_124] : memref<22x48xf32, #tpu.memory_space<vmem>>, vector<1x16xf32>
    %407 = vector.broadcast %406 : vector<1x16xf32> to vector<30x16xf32>
    %408 = arith.addf %405, %407 : vector<30x16xf32>
    %409 = arith.negf %408 : vector<30x16xf32>
    %410 = math.exp %409 : vector<30x16xf32>
    %cst_125 = arith.constant 1.000000e+00 : f32
    %411 = vector.broadcast %cst_125 : f32 to vector<30x16xf32>
    %412 = arith.addf %411, %410 : vector<30x16xf32>
    %413 = arith.divf %411, %412 : vector<30x16xf32>
    %414 = arith.mulf %408, %413 : vector<30x16xf32>
    %415 = arith.addf %388, %414 : vector<30x16xf32>
    %c0_126 = arith.constant 0 : index
    %c304 = arith.constant 304 : index
    %416 = vector.load %arg3[%c0_126, %c304] : memref<96x580xf32, #tpu.memory_space<vmem>>, vector<16x16xf32>
    %417 = arith.truncf %415 : vector<30x16xf32> to vector<30x16xbf16>
    %418 = arith.truncf %416 : vector<16x16xf32> to vector<16x16xbf16>
    %cst_127 = arith.constant dense<0.000000e+00> : vector<30x16xf32>
    %419 = tpu.matmul %417, %418, %cst_127 {dimension_numbers = #tpu.dot_dimension_numbers<[1], [0], [0], [1], [0, 0, 1, 1], [], []>} : vector<30x16xbf16>, vector<16x16xbf16>, vector<30x16xf32> -> vector<30x16xf32>
    %c14 = arith.constant 14 : index
    %c0_128 = arith.constant 0 : index
    %420 = vector.load %arg4[%c14, %c0_128] : memref<22x48xf32, #tpu.memory_space<vmem>>, vector<1x16xf32>
    %421 = vector.broadcast %420 : vector<1x16xf32> to vector<30x16xf32>
    %422 = arith.addf %419, %421 : vector<30x16xf32>
    %423 = arith.negf %422 : vector<30x16xf32>
    %424 = math.exp %423 : vector<30x16xf32>
    %cst_129 = arith.constant 1.000000e+00 : f32
    %425 = vector.broadcast %cst_129 : f32 to vector<30x16xf32>
    %426 = arith.addf %425, %424 : vector<30x16xf32>
    %427 = arith.divf %425, %426 : vector<30x16xf32>
    %428 = arith.mulf %422, %427 : vector<30x16xf32>
    %c0_130 = arith.constant 0 : index
    %c320 = arith.constant 320 : index
    %429 = vector.load %arg3[%c0_130, %c320] : memref<96x580xf32, #tpu.memory_space<vmem>>, vector<16x16xf32>
    %430 = arith.truncf %428 : vector<30x16xf32> to vector<30x16xbf16>
    %431 = arith.truncf %429 : vector<16x16xf32> to vector<16x16xbf16>
    %cst_131 = arith.constant dense<0.000000e+00> : vector<30x16xf32>
    %432 = tpu.matmul %430, %431, %cst_131 {dimension_numbers = #tpu.dot_dimension_numbers<[1], [0], [0], [1], [0, 0, 1, 1], [], []>} : vector<30x16xbf16>, vector<16x16xbf16>, vector<30x16xf32> -> vector<30x16xf32>
    %c15 = arith.constant 15 : index
    %c0_132 = arith.constant 0 : index
    %433 = vector.load %arg4[%c15, %c0_132] : memref<22x48xf32, #tpu.memory_space<vmem>>, vector<1x16xf32>
    %434 = vector.broadcast %433 : vector<1x16xf32> to vector<30x16xf32>
    %435 = arith.addf %432, %434 : vector<30x16xf32>
    %436 = arith.negf %435 : vector<30x16xf32>
    %437 = math.exp %436 : vector<30x16xf32>
    %cst_133 = arith.constant 1.000000e+00 : f32
    %438 = vector.broadcast %cst_133 : f32 to vector<30x16xf32>
    %439 = arith.addf %438, %437 : vector<30x16xf32>
    %440 = arith.divf %438, %439 : vector<30x16xf32>
    %441 = arith.mulf %435, %440 : vector<30x16xf32>
    %442 = arith.addf %415, %441 : vector<30x16xf32>
    %443 = tpu.concatenate %180, %311, %442 in 1 : vector<30x16xf32>, vector<30x16xf32>, vector<30x16xf32> -> vector<30x48xf32>
    %444 = vector.extract_strided_slice %152 {offsets = [0, 48], sizes = [30, 48], strides = [1, 1]} : vector<30x96xf32> to vector<30x48xf32>
    %445 = arith.mulf %444, %443 : vector<30x48xf32>
    %446 = arith.truncf %9 : vector<6x30xf32> to vector<6x30xbf16>
    %447 = arith.truncf %445 : vector<30x48xf32> to vector<30x48xbf16>
    %cst_134 = arith.constant dense<0.000000e+00> : vector<6x48xf32>
    %448 = tpu.matmul %446, %447, %cst_134 {dimension_numbers = #tpu.dot_dimension_numbers<[1], [0], [0], [1], [0, 0, 1, 1], [], []>} : vector<6x30xbf16>, vector<30x48xbf16>, vector<6x48xf32> -> vector<6x48xf32>
    %c0_135 = arith.constant 0 : index
    %c436 = arith.constant 436 : index
    %449 = vector.load %arg3[%c0_135, %c436] : memref<96x580xf32, #tpu.memory_space<vmem>>, vector<48x48xf32>
    %450 = arith.truncf %448 : vector<6x48xf32> to vector<6x48xbf16>
    %451 = arith.truncf %449 : vector<48x48xf32> to vector<48x48xbf16>
    %cst_136 = arith.constant dense<0.000000e+00> : vector<6x48xf32>
    %452 = tpu.matmul %450, %451, %cst_136 {dimension_numbers = #tpu.dot_dimension_numbers<[1], [0], [0], [1], [0, 0, 1, 1], [], []>} : vector<6x48xbf16>, vector<48x48xbf16>, vector<6x48xf32> -> vector<6x48xf32>
    %c16 = arith.constant 16 : index
    %c0_137 = arith.constant 0 : index
    %453 = vector.load %arg4[%c16, %c0_137] : memref<22x48xf32, #tpu.memory_space<vmem>>, vector<1x48xf32>
    %454 = vector.broadcast %453 : vector<1x48xf32> to vector<6x48xf32>
    %455 = arith.addf %452, %454 : vector<6x48xf32>
    %456 = arith.negf %455 : vector<6x48xf32>
    %457 = math.exp %456 : vector<6x48xf32>
    %cst_138 = arith.constant 1.000000e+00 : f32
    %458 = vector.broadcast %cst_138 : f32 to vector<6x48xf32>
    %459 = arith.addf %458, %457 : vector<6x48xf32>
    %460 = arith.divf %458, %459 : vector<6x48xf32>
    %461 = arith.mulf %455, %460 : vector<6x48xf32>
    %c0_139 = arith.constant 0 : index
    %c484 = arith.constant 484 : index
    %462 = vector.load %arg3[%c0_139, %c484] : memref<96x580xf32, #tpu.memory_space<vmem>>, vector<48x48xf32>
    %463 = arith.truncf %461 : vector<6x48xf32> to vector<6x48xbf16>
    %464 = arith.truncf %462 : vector<48x48xf32> to vector<48x48xbf16>
    %cst_140 = arith.constant dense<0.000000e+00> : vector<6x48xf32>
    %465 = tpu.matmul %463, %464, %cst_140 {dimension_numbers = #tpu.dot_dimension_numbers<[1], [0], [0], [1], [0, 0, 1, 1], [], []>} : vector<6x48xbf16>, vector<48x48xbf16>, vector<6x48xf32> -> vector<6x48xf32>
    %c17 = arith.constant 17 : index
    %c0_141 = arith.constant 0 : index
    %466 = vector.load %arg4[%c17, %c0_141] : memref<22x48xf32, #tpu.memory_space<vmem>>, vector<1x48xf32>
    %467 = vector.broadcast %466 : vector<1x48xf32> to vector<6x48xf32>
    %468 = arith.addf %465, %467 : vector<6x48xf32>
    %469 = arith.negf %468 : vector<6x48xf32>
    %470 = math.exp %469 : vector<6x48xf32>
    %cst_142 = arith.constant 1.000000e+00 : f32
    %471 = vector.broadcast %cst_142 : f32 to vector<6x48xf32>
    %472 = arith.addf %471, %470 : vector<6x48xf32>
    %473 = arith.divf %471, %472 : vector<6x48xf32>
    %474 = arith.mulf %468, %473 : vector<6x48xf32>
    %c0_143 = arith.constant 0 : index
    %c532 = arith.constant 532 : index
    %475 = vector.load %arg3[%c0_143, %c532] : memref<96x580xf32, #tpu.memory_space<vmem>>, vector<48x48xf32>
    %476 = arith.truncf %474 : vector<6x48xf32> to vector<6x48xbf16>
    %477 = arith.truncf %475 : vector<48x48xf32> to vector<48x48xbf16>
    %cst_144 = arith.constant dense<0.000000e+00> : vector<6x48xf32>
    %478 = tpu.matmul %476, %477, %cst_144 {dimension_numbers = #tpu.dot_dimension_numbers<[1], [0], [0], [1], [0, 0, 1, 1], [], []>} : vector<6x48xbf16>, vector<48x48xbf16>, vector<6x48xf32> -> vector<6x48xf32>
    %c18 = arith.constant 18 : index
    %c0_145 = arith.constant 0 : index
    %479 = vector.load %arg4[%c18, %c0_145] : memref<22x48xf32, #tpu.memory_space<vmem>>, vector<1x48xf32>
    %480 = vector.broadcast %479 : vector<1x48xf32> to vector<6x48xf32>
    %481 = arith.addf %478, %480 : vector<6x48xf32>
    %482 = arith.negf %481 : vector<6x48xf32>
    %483 = math.exp %482 : vector<6x48xf32>
    %cst_146 = arith.constant 1.000000e+00 : f32
    %484 = vector.broadcast %cst_146 : f32 to vector<6x48xf32>
    %485 = arith.addf %484, %483 : vector<6x48xf32>
    %486 = arith.divf %484, %485 : vector<6x48xf32>
    %487 = arith.mulf %481, %486 : vector<6x48xf32>
    %c19 = arith.constant 19 : index
    %c0_147 = arith.constant 0 : index
    %488 = vector.load %arg4[%c19, %c0_147] : memref<22x48xf32, #tpu.memory_space<vmem>>, vector<1x48xf32>
    %489 = vector.broadcast %488 : vector<1x48xf32> to vector<6x48xf32>
    %490 = arith.mulf %487, %489 : vector<6x48xf32>
    %491 = vector.shape_cast %490 : vector<6x48xf32> to vector<1x6x48xf32>
    %cst_148 = arith.constant dense<0.000000e+00> : vector<1xf32>
    %492 = vector.multi_reduction <add>, %491, %cst_148 [1, 2] : vector<1x6x48xf32> to vector<1xf32>
    %493 = vector.shape_cast %492 : vector<1xf32> to vector<1x1x1xf32>
    %494 = vector.extract %493[0, 0, 0] : f32 from vector<1x1x1xf32>
    %495 = vector.broadcast %494 : f32 to vector<1x1xf32>
    %c0_149 = arith.constant 0 : index
    %c0_150 = arith.constant 0 : index
    %496 = vector.load %arg5[%c0_149, %c0_150] : memref<1x1xf32, #tpu.memory_space<vmem>>, vector<1x1xf32>
    tpu.vector_store %arg5[%c0_149, %c0_150], %495 {strides = array<i32>} : memref<1x1xf32, #tpu.memory_space<vmem>>, vector<1x1xf32>,
    return
  }
}

</mosaic_0001>

<llo_original>
// kernel: tpu_custom_call.1
$region0: #{tpu_custom_call.1}
  #allocation0 [shape = 'u32[]', space=smem, size = 0x4, offset = 0x4, fixed_abs, tag = 'smem constant byte address 0x4 - core index']
  #allocation1 [shape = 'u32[144,128]{1,0:T(1,128)}', space=vmem, size = 0x12000, scoped, tag = 'internal scratch']
  %s0 = inlined_call_operand.vmem [shape: f32[30,153], index: 0, kind: input, shape index: {}]
  %s1 = inlined_call_operand.vmem [shape: f32[120,31], index: 1, kind: input, shape index: {}]
  %s2 = inlined_call_operand.vmem [shape: f32[15,96], index: 2, kind: input, shape index: {}]
  %s3 = inlined_call_operand.hbm [shape: f32[96,580], index: 3, kind: input, shape index: {}]
  %s4 = inlined_call_operand.vmem [shape: f32[22,48], index: 4, kind: input, shape index: {}]
  %s5 = inlined_call_operand.hbm [shape: f32[1,1], index: 5, kind: output, shape index: {}]
  %s6 = sld [smem:[#allocation0]]
  $region34: #{tpu_custom_call.1} parent=0
    _
  %s8 = ssub.s32 1, %s6
  %s9 = scalar_select 0, %s8, %s6
  $region1: #{tpu_custom_call.1} parent=0
    #allocation2 [shape = 'u8[245760]{0}', space=vmem, size = 0x3c000, scoped, tag = 'input window, operand 3, single buffered']
    #allocation3 [shape = 's32[1]{0}', space=sflag, size = 0x4, scoped, tag = 'scoped memory for tpu_custom_call.1']
    #allocation4 [shape = 's32[1]{0}', space=sflag, size = 0x4, scoped, tag = 'scoped memory for tpu_custom_call.1']
    #allocation5 [shape = 'u8[512]{0}', space=vmem, size = 0x400, scoped, tag = 'output window, operand 0, single buffered']
    %10 = vsyncpa [#allocation3], 0
    %11 = vsyncpa [#allocation4], 0
    // Predicated region
    $region2: #{tpu_custom_call.1} parent=1 // pred_check
      _
    $region3: #{tpu_custom_call.1} parent=1 // pred_check_branch
      %13 = sbr.rel (0) target = $region5
    $region4: #{tpu_custom_call.1} parent=1 // pred_region
      _
    $region5: #{tpu_custom_call.1} parent=1 // pred_fallthru
      _
    // Predicated region
    $region6: #{tpu_custom_call.1} parent=1 // pred_check
      _
    $region7: #{tpu_custom_call.1} parent=1 // pred_check_branch
      %15 = sbr.rel (0) target = $region9
    $region8: #{tpu_custom_call.1} parent=1 // pred_region
      _
    $region9: #{tpu_custom_call.1} parent=1 // pred_fallthru
      _
    // Predicated region
    $region10: #{tpu_custom_call.1} parent=1 // pred_check
      _
    $region11: #{tpu_custom_call.1} parent=1 // pred_check_branch
      %17 = sbr.rel (0) target = $region13
    $region12: #{tpu_custom_call.1} parent=1 // pred_region
      _
    $region13: #{tpu_custom_call.1} parent=1 // pred_fallthru
      _
    // Predicated region
    $region14: #{tpu_custom_call.1} parent=1 // pred_check
      _
    $region15: #{tpu_custom_call.1} parent=1 // pred_check_branch
      %19 = sbr.rel (0) target = $region17
    $region16: #{tpu_custom_call.1} parent=1 // pred_region
      %s21 = ssub.s32 7680, 7680
      %22 = vsyncadd [#allocation3], %s21
      %s23 = sshll.u32 [#allocation2], 4
      %s24 = int_to_ptr.vmem [resolvable:$true] %s23
      %29 = dma.hbm_to_vmem [thread:$0]  %s3, 7680, %s24, [#allocation3], 640, 640, 40
    $region17: #{tpu_custom_call.1} parent=1 // pred_fallthru
      _
    // Predicated region
    $region18: #{tpu_custom_call.1} parent=1 // pred_check
      _
    $region19: #{tpu_custom_call.1} parent=1 // pred_check_branch
      %31 = sbr.rel (0) target = $region21
    $region20: #{tpu_custom_call.1} parent=1 // pred_region
      _
    $region21: #{tpu_custom_call.1} parent=1 // pred_fallthru
      _
    // Predicated region
    $region22: #{tpu_custom_call.1} parent=1 // pred_check
      _
    $region23: #{tpu_custom_call.1} parent=1 // pred_check_branch
      %33 = sbr.rel (0) target = $region25
    $region24: #{tpu_custom_call.1} parent=1 // pred_region
      %34 = dma.done [#allocation3], 7680
    $region25: #{tpu_custom_call.1} parent=1 // pred_fallthru
      _
    %v36 = vld [vmem:[%s0] sm:$0xff]
    %v37 = vld [vmem:[%s0 + $0x10] sm:$0xff]
    %v38 = vld [vmem:[%s0 + $0x20] sm:$0xff]
    %v39 = vld [vmem:[%s0 + $0x30] sm:$0x3f]
    %v40 = vld [vmem:[%s0 + $0x8] sm:$0xff]
    %v41 = vld [vmem:[%s0 + $0x18] sm:$0xff]
    %v42 = vld [vmem:[%s0 + $0x28] sm:$0xff]
    %v43 = vld [vmem:[%s0 + $0x38] sm:$0x3f]
    %v44 = vld [vmem:[%s1] sm:$0xff]
    %v45 = vld [vmem:[%s1 + $0x8] sm:$0xff]
    %v46 = vld [vmem:[%s1 + $0x10] sm:$0xff]
    %v47 = vld [vmem:[%s1 + $0x18] sm:$0xff]
    %v48 = vld [vmem:[%s1 + $0x20] sm:$0xff]
    %v49 = vld [vmem:[%s1 + $0x28] sm:$0xff]
    %v50 = vld [vmem:[%s1 + $0x30] sm:$0xff]
    %v51 = vld [vmem:[%s1 + $0x38] sm:$0xff]
    %v52 = vld [vmem:[%s1 + $0x40] sm:$0xff]
    %v53 = vld [vmem:[%s1 + $0x48] sm:$0xff]
    %v54 = vld [vmem:[%s1 + $0x50] sm:$0xff]
    %v55 = vld [vmem:[%s1 + $0x58] sm:$0xff]
    %v56 = vld [vmem:[%s1 + $0x60] sm:$0xff]
    %v57 = vld [vmem:[%s1 + $0x68] sm:$0xff]
    %v58 = vld [vmem:[%s1 + $0x70] sm:$0xff]
    %v59 = vld [vmem:[%s2] sm:$0x1]
    %v60 = vld [vmem:[%s2 + $0x1] sm:$0x1]
    %v61 = vld [vmem:[%s2 + $0x2] sm:$0x1]
    %v62 = vld [vmem:[%s2 + $0x3] sm:$0x3f]
    %v63 = vld [vmem:[%s2 + $0x9] sm:$0x3f]
    %v64 = vmul.f32 %v36, 0.21276596
    %v65 = vmul.f32 %v37, 0.21276596
    %v66 = vmul.f32 %v38, 0.21276596
    %v67 = vmul.f32 %v39, 0.21276596
    %v68 = vmax.f32 %v64, 1e-09
    %v69 = vmax.f32 %v65, 1e-09
    %v70 = vmax.f32 %v66, 1e-09
    %v71 = vmax.f32 %v67, 1e-09
    %v72 = vrcp.pop %v68
    %v73 = vmul.f32 1.0, %v72
    %v74 = vrcp.pop %v69
    %v75 = vmul.f32 1.0, %v74
    %v76 = vrcp.pop %v70
    %v77 = vmul.f32 1.0, %v76
    %v78 = vrcp.pop %v71
    %v79 = vmul.f32 1.0, %v78
    %v80 = vmul.f32 %v68, %v68
    %v81 = vmul.f32 %v69, %v69
    %v82 = vmul.f32 %v70, %v70
    %v83 = vmul.f32 %v71, %v71
    %v84 = vmul.f32 %v80, %v80
    %v85 = vmul.f32 %v81, %v81
    %v86 = vmul.f32 %v82, %v82
    %v87 = vmul.f32 %v83, %v83
    %v88 = vmul.f32 %v84, %v68
    %v89 = vmul.f32 %v85, %v69
    %v90 = vmul.f32 %v86, %v70
    %v91 = vmul.f32 %v87, %v71
    %v92 = vmul.f32 %v88, -28.0
    %v93 = vmul.f32 %v89, -28.0
    %v94 = vmul.f32 %v90, -28.0
    %v95 = vmul.f32 %v91, -28.0
    %v96 = vadd.f32 %v73, %v92
    %v97 = vadd.f32 %v75, %v93
    %v98 = vadd.f32 %v77, %v94
    %v99 = vadd.f32 %v79, %v95
    %v100 = vmul.f32 %v88, 48.0
    %v101 = vmul.f32 %v89, 48.0
    %v102 = vmul.f32 %v90, 48.0
    %v103 = vmul.f32 %v91, 48.0
    %v104 = vmul.f32 %v100, %v68
    %v105 = vmul.f32 %v101, %v69
    %v106 = vmul.f32 %v102, %v70
    %v107 = vmul.f32 %v103, %v71
    %v108 = vadd.f32 %v96, %v104
    %v109 = vadd.f32 %v97, %v105
    %v110 = vadd.f32 %v98, %v106
    %v111 = vadd.f32 %v99, %v107
    %v112 = vmul.f32 %v88, -21.0
    %v113 = vmul.f32 %v89, -21.0
    %v114 = vmul.f32 %v90, -21.0
    %v115 = vmul.f32 %v91, -21.0
    %v116 = vmul.f32 %v112, %v80
    %v117 = vmul.f32 %v113, %v81
    %v118 = vmul.f32 %v114, %v82
    %v119 = vmul.f32 %v115, %v83
    %v120 = vadd.f32 %v108, %v116
    %v121 = vadd.f32 %v109, %v117
    %v122 = vadd.f32 %v110, %v118
    %v123 = vadd.f32 %v111, %v119
    %vm124 = vcmp.lt.f32.partialorder %v68, 1.0
    %vm125 = vcmp.lt.f32.partialorder %v69, 1.0
    %vm126 = vcmp.lt.f32.partialorder %v70, 1.0
    %vm127 = vcmp.lt.f32.partialorder %v71, 1.0
    %v128 = vsel %vm124, 1, 0
    %v129 = vsel %vm125, 1, 0
    %v130 = vsel %vm126, 1, 0
    %v131 = vsel %vm127, 1, 0
    %v132 = vcvt.s32.f32 %v128
    %v133 = vcvt.s32.f32 %v129
    %v134 = vcvt.s32.f32 %v130
    %v135 = vcvt.s32.f32 %v131
    %v136 = vmul.f32 %v120, %v132
    %v137 = vmul.f32 %v121, %v133
    %v138 = vmul.f32 %v122, %v134
    %v139 = vmul.f32 %v123, %v135
    %v140 = vlaneseq
    %v141 = vshrl.u32 %v140, 7
    %v142 = vsub.s32 0, %v141
    %v143 = vrot.slane %v59, %v142
    %145 = vset.pattern.permute.xlu0 0
    %146 = vperm.xlu0 %145, %v68
    %v147 = vpop.permute.xlu0 %146
    %150 = vset.pattern.permute.xlu0 0
    %151 = vperm.xlu0 %150, %v69
    %v152 = vpop.permute.xlu0 %151
    %155 = vset.pattern.permute.xlu0 0
    %156 = vperm.xlu0 %155, %v70
    %v157 = vpop.permute.xlu0 %156
    %160 = vset.pattern.permute.xlu0 0
    %161 = vperm.xlu0 %160, %v71
    %v162 = vpop.permute.xlu0 %161
    %v164 = vmul.f32 %v143, %v147
    %v165 = vmul.f32 %v143, %v152
    %v166 = vmul.f32 %v143, %v157
    %v167 = vmul.f32 %v143, %v162
    %v168 = vand.u32 2147483647, %v164
    %vm169 = vcmp.le.f32.partialorder %v168, 0.7853982
    %vm170 = vcmp.lt.s32.totalorder %v164, 0
    %v171 = vand.u32 %v164, 2139095040
    %v172 = vshrl.u32 %v171, 23
    %v173 = vsub.s32 %v172, 127
    %v174 = vand.u32 2147483647, %v164
    %v175 = vand.u32 %v174, 8388607
    %v176 = vor.u32 %v175, 8388608
    %v177 = vsub.s32 0, %v176
    %v178 = vadd.s32 %v173, 1
    %vm179 = vcmp.gt.s32.totalorder %v178, 0
    %v180 = vsel %vm179, %v178, 0
    %v181 = vshrl.u32 %v180, 5
    %v182 = vand.u32 %v180, 31
    %v183 = vsub.s32 32, %v182
    %v184 = vshrl.u32 683565275, %v183
    %v185 = vshll.u32 683565275, %v182
    %v186 = vshrl.u32 2475754826, %v183
    %v187 = vor.u32 %v185, %v186
    %v188 = vshll.u32 2475754826, %v182
    %v189 = vshrl.u32 2131351028, %v183
    %v190 = vor.u32 %v188, %v189
    %v191 = vshll.u32 2131351028, %v182
    %v192 = vshrl.u32 2102212464, %v183
    %v193 = vor.u32 %v191, %v192
    %v194 = vshll.u32 2102212464, %v182
    %v195 = vshrl.u32 920167782, %v183
    %v196 = vor.u32 %v194, %v195
    %v197 = vshll.u32 920167782, %v182
    %v198 = vshrl.u32 1326507024, %v183
    %v199 = vor.u32 %v197, %v198
    %vm200 = vcmp.lt.s32.totalorder %v181, 1
    %vm201 = vcmp.lt.s32.totalorder %v181, 2
    %vm202 = vcmp.lt.s32.totalorder %v181, 3
    %vm203 = vcmp.lt.s32.totalorder %v181, 4
    %v204 = vsel %vm200, %v184, %v187
    %v205 = vsel %vm203, %v193, 2102212464
    %v206 = vsel %vm202, %v190, %v205
    %v207 = vsel %vm201, %v204, %v206
    %v208 = vsel %vm200, %v187, %v190
    %v209 = vsel %vm203, %v196, 920167782
    %v210 = vsel %vm202, %v193, %v209
    %v211 = vsel %vm201, %v208, %v210
    %v212 = vsel %vm200, %v190, %v193
    %v213 = vsel %vm203, %v199, 1326507024
    %v214 = vsel %vm202, %v196, %v213
    %v215 = vsel %vm201, %v212, %v214
    %v216 = vshll.u32 %v176, 8
    %v217 = vmul.u32.u64.compose %v216, %v215
    %v218 = vextract.low.u32 %v217
    %v219 = vextract.high.u32 %v217
    %v220 = vmul.u32.u64.compose %v216, %v211
    %v221 = vextract.low.u32 %v220
    %v222 = vextract.high.u32 %v220
    %v223 = vmul.u32 %v216, %v207
    %v224 = vadd.s32 %v219, %v221
    %vm225 = vc.u32 %v219, %v221
    %v226 = vadd.s32 %v222, 1
    %v227 = vsel %vm225, %v226, %v222
    %v228 = vadd.s32 %v223, %v227
    %v229 = vadd.s32 %v228, 536870912
    %v230 = vshrl.u32 %v229, 30
    %v231 = vshll.u32 %v230, 30
    %v232 = vsub.s32 %v228, %v231
    %vm233 = vcmp.lt.s32.totalorder %v232, 0
    %v234 = vsub.s32 0, %v232
    %v235 = vsel %vm233, %v234, %v232
    %v236 = vclz %v235
    %v237 = vsub.s32 %v236, 2
    %vm238 = vcmp.gt.s32.totalorder 0, %v237
    %v239 = vsel %vm238, 0, %v237
    %v240 = vsub.s32 32, %v239
    %v241 = vshll.u32 %v232, %v239
    %v242 = vshrl.u32 %v224, %v240
    %v243 = vor.u32 %v241, %v242
    %v244 = vsub.s32 4294967266, %v239
    %v245 = vadd.s32 %v244, 127
    %v246 = vshll.u32 %v245, 23
    %v247 = vor.u32 4788187, %v246
    %v248 = vand.u32 2147483647, %v247
    %v250 = vcvt.s32.f32 %v243
    %v251 = vmul.f32 %v250, %v248
    %v252 = vxor.u32 %v251, 2147483648
    %v253 = vsel %vm170, %v252, %v251
    %v254 = vsub.s32 4, %v230
    %v255 = vsel %vm170, %v254, %v230
    %v256 = vsel %vm169, %v164, %v253
    %v257 = vsel %vm169, 0, %v255
    %v258 = vcosq.f32.pop %v256
    %v259 = vsinq.f32.pop %v256
    %vm260 = vweird.f32 %v164
    %v261 = vadd.s32 %v257, 3
    %v262 = vand.u32 %v261, 3
    %vm263 = vcmp.lt.s32.totalorder %v262, 2
    %vm264 = vcmp.eq.s32.totalorder %v262, 0
    %v265 = vxor.u32 %v259, 2147483648
    %v266 = vsel %vm264, %v258, %v265
    %vm267 = vcmp.eq.s32.totalorder %v262, 2
    %v268 = vxor.u32 %v258, 2147483648
    %v269 = vsel %vm267, %v268, %v259
    %v270 = vsel %vm263, %v266, %v269
    %v271 = vsel %vm260, nan, %v270
    %v272 = vand.u32 2147483647, %v165
    %vm273 = vcmp.le.f32.partialorder %v272, 0.7853982
    %vm274 = vcmp.lt.s32.totalorder %v165, 0
    %v275 = vand.u32 %v165, 2139095040
    %v276 = vshrl.u32 %v275, 23
    %v277 = vsub.s32 %v276, 127
    %v278 = vand.u32 2147483647, %v165
    %v279 = vand.u32 %v278, 8388607
    %v280 = vor.u32 %v279, 8388608
    %v281 = vsub.s32 0, %v280
    %v282 = vadd.s32 %v277, 1
    %vm283 = vcmp.gt.s32.totalorder %v282, 0
    %v284 = vsel %vm283, %v282, 0
    %v285 = vshrl.u32 %v284, 5
    %v286 = vand.u32 %v284, 31
    %v287 = vsub.s32 32, %v286
    %v288 = vshrl.u32 683565275, %v287
    %v289 = vshll.u32 683565275, %v286
    %v290 = vshrl.u32 2475754826, %v287
    %v291 = vor.u32 %v289, %v290
    %v292 = vshll.u32 2475754826, %v286
    %v293 = vshrl.u32 2131351028, %v287
    %v294 = vor.u32 %v292, %v293
    %v295 = vshll.u32 2131351028, %v286
    %v296 = vshrl.u32 2102212464, %v287
    %v297 = vor.u32 %v295, %v296
    %v298 = vshll.u32 2102212464, %v286
    %v299 = vshrl.u32 920167782, %v287
    %v300 = vor.u32 %v298, %v299
    %v301 = vshll.u32 920167782, %v286
    %v302 = vshrl.u32 1326507024, %v287
    %v303 = vor.u32 %v301, %v302
    %vm304 = vcmp.lt.s32.totalorder %v285, 1
    %vm305 = vcmp.lt.s32.totalorder %v285, 2
    %vm306 = vcmp.lt.s32.totalorder %v285, 3
    %vm307 = vcmp.lt.s32.totalorder %v285, 4
    %v308 = vsel %vm304, %v288, %v291
    %v309 = vsel %vm307, %v297, 2102212464
    %v310 = vsel %vm306, %v294, %v309
    %v311 = vsel %vm305, %v308, %v310
    %v312 = vsel %vm304, %v291, %v294
    %v313 = vsel %vm307, %v300, 920167782
    %v314 = vsel %vm306, %v297, %v313
    %v315 = vsel %vm305, %v312, %v314
    %v316 = vsel %vm304, %v294, %v297
    %v317 = vsel %vm307, %v303, 1326507024
    %v318 = vsel %vm306, %v300, %v317
    %v319 = vsel %vm305, %v316, %v318
    %v320 = vshll.u32 %v280, 8
    %v321 = vmul.u32.u64.compose %v320, %v319
    %v322 = vextract.low.u32 %v321
    %v323 = vextract.high.u32 %v321
    %v324 = vmul.u32.u64.compose %v320, %v315
    %v325 = vextract.low.u32 %v324
    %v326 = vextract.high.u32 %v324
    %v327 = vmul.u32 %v320, %v311
    %v328 = vadd.s32 %v323, %v325
    %vm329 = vc.u32 %v323, %v325
    %v330 = vadd.s32 %v326, 1
    %v331 = vsel %vm329, %v330, %v326
    %v332 = vadd.s32 %v327, %v331
    %v333 = vadd.s32 %v332, 536870912
    %v334 = vshrl.u32 %v333, 30
    %v335 = vshll.u32 %v334, 30
    %v336 = vsub.s32 %v332, %v335
    %vm337 = vcmp.lt.s32.totalorder %v336, 0
    %v338 = vsub.s32 0, %v336
    %v339 = vsel %vm337, %v338, %v336
    %v340 = vclz %v339
    %v341 = vsub.s32 %v340, 2
    %vm342 = vcmp.gt.s32.totalorder 0, %v341
    %v343 = vsel %vm342, 0, %v341
    %v344 = vsub.s32 32, %v343
    %v345 = vshll.u32 %v336, %v343
    %v346 = vshrl.u32 %v328, %v344
    %v347 = vor.u32 %v345, %v346
    %v348 = vsub.s32 4294967266, %v343
    %v349 = vadd.s32 %v348, 127
    %v350 = vshll.u32 %v349, 23
    %v351 = vor.u32 4788187, %v350
    %v352 = vand.u32 2147483647, %v351
    %v354 = vcvt.s32.f32 %v347
    %v355 = vmul.f32 %v354, %v352
    %v356 = vxor.u32 %v355, 2147483648
    %v357 = vsel %vm274, %v356, %v355
    %v358 = vsub.s32 4, %v334
    %v359 = vsel %vm274, %v358, %v334
    %v360 = vsel %vm273, %v165, %v357
    %v361 = vsel %vm273, 0, %v359
    %v362 = vcosq.f32.pop %v360
    %v363 = vsinq.f32.pop %v360
    %vm364 = vweird.f32 %v165
    %v365 = vadd.s32 %v361, 3
    %v366 = vand.u32 %v365, 3
    %vm367 = vcmp.lt.s32.totalorder %v366, 2
    %vm368 = vcmp.eq.s32.totalorder %v366, 0
    %v369 = vxor.u32 %v363, 2147483648
    %v370 = vsel %vm368, %v362, %v369
    %vm371 = vcmp.eq.s32.totalorder %v366, 2
    %v372 = vxor.u32 %v362, 2147483648
    %v373 = vsel %vm371, %v372, %v363
    %v374 = vsel %vm367, %v370, %v373
    %v375 = vsel %vm364, nan, %v374
    %v376 = vand.u32 2147483647, %v166
    %vm377 = vcmp.le.f32.partialorder %v376, 0.7853982
    %vm378 = vcmp.lt.s32.totalorder %v166, 0
    %v379 = vand.u32 %v166, 2139095040
    %v380 = vshrl.u32 %v379, 23
    %v381 = vsub.s32 %v380, 127
    %v382 = vand.u32 2147483647, %v166
    %v383 = vand.u32 %v382, 8388607
    %v384 = vor.u32 %v383, 8388608
    %v385 = vsub.s32 0, %v384
    %v386 = vadd.s32 %v381, 1
    %vm387 = vcmp.gt.s32.totalorder %v386, 0
    %v388 = vsel %vm387, %v386, 0
    %v389 = vshrl.u32 %v388, 5
    %v390 = vand.u32 %v388, 31
    %v391 = vsub.s32 32, %v390
    %v392 = vshrl.u32 683565275, %v391
    %v393 = vshll.u32 683565275, %v390
    %v394 = vshrl.u32 2475754826, %v391
    %v395 = vor.u32 %v393, %v394
    %v396 = vshll.u32 2475754826, %v390
    %v397 = vshrl.u32 2131351028, %v391
    %v398 = vor.u32 %v396, %v397
    %v399 = vshll.u32 2131351028, %v390
    %v400 = vshrl.u32 2102212464, %v391
    %v401 = vor.u32 %v399, %v400
    %v402 = vshll.u32 2102212464, %v390
    %v403 = vshrl.u32 920167782, %v391
    %v404 = vor.u32 %v402, %v403
    %v405 = vshll.u32 920167782, %v390
    %v406 = vshrl.u32 1326507024, %v391
    %v407 = vor.u32 %v405, %v406
    %vm408 = vcmp.lt.s32.totalorder %v389, 1
    %vm409 = vcmp.lt.s32.totalorder %v389, 2
    %vm410 = vcmp.lt.s32.totalorder %v389, 3
    %vm411 = vcmp.lt.s32.totalorder %v389, 4
    %v412 = vsel %vm408, %v392, %v395
    %v413 = vsel %vm411, %v401, 2102212464
    %v414 = vsel %vm410, %v398, %v413
    %v415 = vsel %vm409, %v412, %v414
    %v416 = vsel %vm408, %v395, %v398
    %v417 = vsel %vm411, %v404, 920167782
    %v418 = vsel %vm410, %v401, %v417
    %v419 = vsel %vm409, %v416, %v418
    %v420 = vsel %vm408, %v398, %v401
    %v421 = vsel %vm411, %v407, 1326507024
    %v422 = vsel %vm410, %v404, %v421
    %v423 = vsel %vm409, %v420, %v422
    %v424 = vshll.u32 %v384, 8
    %v425 = vmul.u32.u64.compose %v424, %v423
    %v426 = vextract.low.u32 %v425
    %v427 = vextract.high.u32 %v425
    %v428 = vmul.u32.u64.compose %v424, %v419
    %v429 = vextract.low.u32 %v428
    %v430 = vextract.high.u32 %v428
    %v431 = vmul.u32 %v424, %v415
    %v432 = vadd.s32 %v427, %v429
    %vm433 = vc.u32 %v427, %v429
    %v434 = vadd.s32 %v430, 1
    %v435 = vsel %vm433, %v434, %v430
    %v436 = vadd.s32 %v431, %v435
    %v437 = vadd.s32 %v436, 536870912
    %v438 = vshrl.u32 %v437, 30
    %v439 = vshll.u32 %v438, 30
    %v440 = vsub.s32 %v436, %v439
    %vm441 = vcmp.lt.s32.totalorder %v440, 0
    %v442 = vsub.s32 0, %v440
    %v443 = vsel %vm441, %v442, %v440
    %v444 = vclz %v443
    %v445 = vsub.s32 %v444, 2
    %vm446 = vcmp.gt.s32.totalorder 0, %v445
    %v447 = vsel %vm446, 0, %v445
    %v448 = vsub.s32 32, %v447
    %v449 = vshll.u32 %v440, %v447
    %v450 = vshrl.u32 %v432, %v448
    %v451 = vor.u32 %v449, %v450
    %v452 = vsub.s32 4294967266, %v447
    %v453 = vadd.s32 %v452, 127
    %v454 = vshll.u32 %v453, 23
    %v455 = vor.u32 4788187, %v454
    %v456 = vand.u32 2147483647, %v455
    %v458 = vcvt.s32.f32 %v451
    %v459 = vmul.f32 %v458, %v456
    %v460 = vxor.u32 %v459, 2147483648
    %v461 = vsel %vm378, %v460, %v459
    %v462 = vsub.s32 4, %v438
    %v463 = vsel %vm378, %v462, %v438
    %v464 = vsel %vm377, %v166, %v461
    %v465 = vsel %vm377, 0, %v463
    %v466 = vcosq.f32.pop %v464
    %v467 = vsinq.f32.pop %v464
    %vm468 = vweird.f32 %v166
    %v469 = vadd.s32 %v465, 3
    %v470 = vand.u32 %v469, 3
    %vm471 = vcmp.lt.s32.totalorder %v470, 2
    %vm472 = vcmp.eq.s32.totalorder %v470, 0
    %v473 = vxor.u32 %v467, 2147483648
    %v474 = vsel %vm472, %v466, %v473
    %vm475 = vcmp.eq.s32.totalorder %v470, 2
    %v476 = vxor.u32 %v466, 2147483648
    %v477 = vsel %vm475, %v476, %v467
    %v478 = vsel %vm471, %v474, %v477
    %v479 = vsel %vm468, nan, %v478
    %v480 = vand.u32 2147483647, %v167
    %vm481 = vcmp.le.f32.partialorder %v480, 0.7853982
    %vm482 = vcmp.lt.s32.totalorder %v167, 0
    %v483 = vand.u32 %v167, 2139095040
    %v484 = vshrl.u32 %v483, 23
    %v485 = vsub.s32 %v484, 127
    %v486 = vand.u32 2147483647, %v167
    %v487 = vand.u32 %v486, 8388607
    %v488 = vor.u32 %v487, 8388608
    %v489 = vsub.s32 0, %v488
    %v490 = vadd.s32 %v485, 1
    %vm491 = vcmp.gt.s32.totalorder %v490, 0
    %v492 = vsel %vm491, %v490, 0
    %v493 = vshrl.u32 %v492, 5
    %v494 = vand.u32 %v492, 31
    %v495 = vsub.s32 32, %v494
    %v496 = vshrl.u32 683565275, %v495
    %v497 = vshll.u32 683565275, %v494
    %v498 = vshrl.u32 2475754826, %v495
    %v499 = vor.u32 %v497, %v498
    %v500 = vshll.u32 2475754826, %v494
    %v501 = vshrl.u32 2131351028, %v495
    %v502 = vor.u32 %v500, %v501
    %v503 = vshll.u32 2131351028, %v494
    %v504 = vshrl.u32 2102212464, %v495
    %v505 = vor.u32 %v503, %v504
    %v506 = vshll.u32 2102212464, %v494
    %v507 = vshrl.u32 920167782, %v495
    %v508 = vor.u32 %v506, %v507
    %v509 = vshll.u32 920167782, %v494
    %v510 = vshrl.u32 1326507024, %v495
    %v511 = vor.u32 %v509, %v510
    %vm512 = vcmp.lt.s32.totalorder %v493, 1
    %vm513 = vcmp.lt.s32.totalorder %v493, 2
    %vm514 = vcmp.lt.s32.totalorder %v493, 3
    %vm515 = vcmp.lt.s32.totalorder %v493, 4
    %v516 = vsel %vm512, %v496, %v499
    %v517 = vsel %vm515, %v505, 2102212464
    %v518 = vsel %vm514, %v502, %v517
    %v519 = vsel %vm513, %v516, %v518
    %v520 = vsel %vm512, %v499, %v502
    %v521 = vsel %vm515, %v508, 920167782
    %v522 = vsel %vm514, %v505, %v521
    %v523 = vsel %vm513, %v520, %v522
    %v524 = vsel %vm512, %v502, %v505
    %v525 = vsel %vm515, %v511, 1326507024
    %v526 = vsel %vm514, %v508, %v525
    %v527 = vsel %vm513, %v524, %v526
    %v528 = vshll.u32 %v488, 8
    %v529 = vmul.u32.u64.compose %v528, %v527
    %v530 = vextract.low.u32 %v529
    %v531 = vextract.high.u32 %v529
    %v532 = vmul.u32.u64.compose %v528, %v523
    %v533 = vextract.low.u32 %v532
    %v534 = vextract.high.u32 %v532
    %v535 = vmul.u32 %v528, %v519
    %v536 = vadd.s32 %v531, %v533
    %vm537 = vc.u32 %v531, %v533
    %v538 = vadd.s32 %v534, 1
    %v539 = vsel %vm537, %v538, %v534
    %v540 = vadd.s32 %v535, %v539
    %v541 = vadd.s32 %v540, 536870912
    %v542 = vshrl.u32 %v541, 30
    %v543 = vshll.u32 %v542, 30
    %v544 = vsub.s32 %v540, %v543
    %vm545 = vcmp.lt.s32.totalorder %v544, 0
    %v546 = vsub.s32 0, %v544
    %v547 = vsel %vm545, %v546, %v544
    %v548 = vclz %v547
    %v549 = vsub.s32 %v548, 2
    %vm550 = vcmp.gt.s32.totalorder 0, %v549
    %v551 = vsel %vm550, 0, %v549
    %v552 = vsub.s32 32, %v551
    %v553 = vshll.u32 %v544, %v551
    %v554 = vshrl.u32 %v536, %v552
    %v555 = vor.u32 %v553, %v554
    %v556 = vsub.s32 4294967266, %v551
    %v557 = vadd.s32 %v556, 127
    %v558 = vshll.u32 %v557, 23
    %v559 = vor.u32 4788187, %v558
    %v560 = vand.u32 2147483647, %v559
    %v562 = vcvt.s32.f32 %v555
    %v563 = vmul.f32 %v562, %v560
    %v564 = vxor.u32 %v563, 2147483648
    %v565 = vsel %vm482, %v564, %v563
    %v566 = vsub.s32 4, %v542
    %v567 = vsel %vm482, %v566, %v542
    %v568 = vsel %vm481, %v167, %v565
    %v569 = vsel %vm481, 0, %v567
    %v570 = vcosq.f32.pop %v568
    %v571 = vsinq.f32.pop %v568
    %vm572 = vweird.f32 %v167
    %v573 = vadd.s32 %v569, 3
    %v574 = vand.u32 %v573, 3
    %vm575 = vcmp.lt.s32.totalorder %v574, 2
    %vm576 = vcmp.eq.s32.totalorder %v574, 0
    %v577 = vxor.u32 %v571, 2147483648
    %v578 = vsel %vm576, %v570, %v577
    %vm579 = vcmp.eq.s32.totalorder %v574, 2
    %v580 = vxor.u32 %v570, 2147483648
    %v581 = vsel %vm579, %v580, %v571
    %v582 = vsel %vm575, %v578, %v581
    %v583 = vsel %vm572, nan, %v582
    %585 = vset.pattern.permute.xlu0 0
    %586 = vperm.xlu0 %585, %v136
    %v587 = vpop.permute.xlu0 %586
    %590 = vset.pattern.permute.xlu0 0
    %591 = vperm.xlu0 %590, %v137
    %v592 = vpop.permute.xlu0 %591
    %595 = vset.pattern.permute.xlu0 0
    %596 = vperm.xlu0 %595, %v138
    %v597 = vpop.permute.xlu0 %596
    %600 = vset.pattern.permute.xlu0 0
    %601 = vperm.xlu0 %600, %v139
    %v602 = vpop.permute.xlu0 %601
    %v604 = vmul.f32 %v587, %v271
    %v605 = vmul.f32 %v592, %v375
    %v606 = vmul.f32 %v597, %v479
    %v607 = vmul.f32 %v602, %v583
    %v608 = vlaneseq
    %v609 = vshrl.u32 %v608, 7
    %v610 = vsub.s32 0, %v609
    %v611 = vrot.slane %v60, %v610
    %v612 = vmul.f32 %v147, %v611
    %v613 = vmul.f32 %v152, %v611
    %v614 = vmul.f32 %v157, %v611
    %v615 = vmul.f32 %v162, %v611
    %v616 = vrcp.pop %v612
    %v617 = vmul.f32 1.0, %v616
    %v618 = vrcp.pop %v613
    %v619 = vmul.f32 1.0, %v618
    %v620 = vrcp.pop %v614
    %v621 = vmul.f32 1.0, %v620
    %v622 = vrcp.pop %v615
    %v623 = vmul.f32 1.0, %v622
    %v624 = vand.u32 2147483647, %v612
    %vm625 = vcmp.le.f32.partialorder %v624, 0.7853982
    %vm626 = vcmp.lt.s32.totalorder %v612, 0
    %v627 = vand.u32 %v612, 2139095040
    %v628 = vshrl.u32 %v627, 23
    %v629 = vsub.s32 %v628, 127
    %v630 = vand.u32 2147483647, %v612
    %v631 = vand.u32 %v630, 8388607
    %v632 = vor.u32 %v631, 8388608
    %v633 = vsub.s32 0, %v632
    %v634 = vadd.s32 %v629, 1
    %vm635 = vcmp.gt.s32.totalorder %v634, 0
    %v636 = vsel %vm635, %v634, 0
    %v637 = vshrl.u32 %v636, 5
    %v638 = vand.u32 %v636, 31
    %v639 = vsub.s32 32, %v638
    %v640 = vshrl.u32 683565275, %v639
    %v641 = vshll.u32 683565275, %v638
    %v642 = vshrl.u32 2475754826, %v639
    %v643 = vor.u32 %v641, %v642
    %v644 = vshll.u32 2475754826, %v638
    %v645 = vshrl.u32 2131351028, %v639
    %v646 = vor.u32 %v644, %v645
    %v647 = vshll.u32 2131351028, %v638
    %v648 = vshrl.u32 2102212464, %v639
    %v649 = vor.u32 %v647, %v648
    %v650 = vshll.u32 2102212464, %v638
    %v651 = vshrl.u32 920167782, %v639
    %v652 = vor.u32 %v650, %v651
    %v653 = vshll.u32 920167782, %v638
    %v654 = vshrl.u32 1326507024, %v639
    %v655 = vor.u32 %v653, %v654
    %vm656 = vcmp.lt.s32.totalorder %v637, 1
    %vm657 = vcmp.lt.s32.totalorder %v637, 2
    %vm658 = vcmp.lt.s32.totalorder %v637, 3
    %vm659 = vcmp.lt.s32.totalorder %v637, 4
    %v660 = vsel %vm656, %v640, %v643
    %v661 = vsel %vm659, %v649, 2102212464
    %v662 = vsel %vm658, %v646, %v661
    %v663 = vsel %vm657, %v660, %v662
    %v664 = vsel %vm656, %v643, %v646
    %v665 = vsel %vm659, %v652, 920167782
    %v666 = vsel %vm658, %v649, %v665
    %v667 = vsel %vm657, %v664, %v666
    %v668 = vsel %vm656, %v646, %v649
    %v669 = vsel %vm659, %v655, 1326507024
    %v670 = vsel %vm658, %v652, %v669
    %v671 = vsel %vm657, %v668, %v670
    %v672 = vshll.u32 %v632, 8
    %v673 = vmul.u32.u64.compose %v672, %v671
    %v674 = vextract.low.u32 %v673
    %v675 = vextract.high.u32 %v673
    %v676 = vmul.u32.u64.compose %v672, %v667
    %v677 = vextract.low.u32 %v676
    %v678 = vextract.high.u32 %v676
    %v679 = vmul.u32 %v672, %v663
    %v680 = vadd.s32 %v675, %v677
    %vm681 = vc.u32 %v675, %v677
    %v682 = vadd.s32 %v678, 1
    %v683 = vsel %vm681, %v682, %v678
    %v684 = vadd.s32 %v679, %v683
    %v685 = vadd.s32 %v684, 536870912
    %v686 = vshrl.u32 %v685, 30
    %v687 = vshll.u32 %v686, 30
    %v688 = vsub.s32 %v684, %v687
    %vm689 = vcmp.lt.s32.totalorder %v688, 0
    %v690 = vsub.s32 0, %v688
    %v691 = vsel %vm689, %v690, %v688
    %v692 = vclz %v691
    %v693 = vsub.s32 %v692, 2
    %vm694 = vcmp.gt.s32.totalorder 0, %v693
    %v695 = vsel %vm694, 0, %v693
    %v696 = vsub.s32 32, %v695
    %v697 = vshll.u32 %v688, %v695
    %v698 = vshrl.u32 %v680, %v696
    %v699 = vor.u32 %v697, %v698
    %v700 = vsub.s32 4294967266, %v695
    %v701 = vadd.s32 %v700, 127
    %v702 = vshll.u32 %v701, 23
    %v703 = vor.u32 4788187, %v702
    %v704 = vand.u32 2147483647, %v703
    %v706 = vcvt.s32.f32 %v699
    %v707 = vmul.f32 %v706, %v704
    %v708 = vxor.u32 %v707, 2147483648
    %v709 = vsel %vm626, %v708, %v707
    %v710 = vsub.s32 4, %v686
    %v711 = vsel %vm626, %v710, %v686
    %v712 = vsel %vm625, %v612, %v709
    %v713 = vsel %vm625, 0, %v711
    %v714 = vcosq.f32.pop %v712
    %v715 = vsinq.f32.pop %v712
    %vm716 = vweird.f32 %v612
    %v717 = vadd.s32 %v713, 3
    %v718 = vand.u32 %v717, 3
    %vm719 = vcmp.lt.s32.totalorder %v718, 2
    %vm720 = vcmp.eq.s32.totalorder %v718, 0
    %v721 = vxor.u32 %v715, 2147483648
    %v722 = vsel %vm720, %v714, %v721
    %vm723 = vcmp.eq.s32.totalorder %v718, 2
    %v724 = vxor.u32 %v714, 2147483648
    %v725 = vsel %vm723, %v724, %v715
    %v726 = vsel %vm719, %v722, %v725
    %v727 = vsel %vm716, nan, %v726
    %v728 = vand.u32 2147483647, %v613
    %vm729 = vcmp.le.f32.partialorder %v728, 0.7853982
    %vm730 = vcmp.lt.s32.totalorder %v613, 0
    %v731 = vand.u32 %v613, 2139095040
    %v732 = vshrl.u32 %v731, 23
    %v733 = vsub.s32 %v732, 127
    %v734 = vand.u32 2147483647, %v613
    %v735 = vand.u32 %v734, 8388607
    %v736 = vor.u32 %v735, 8388608
    %v737 = vsub.s32 0, %v736
    %v738 = vadd.s32 %v733, 1
    %vm739 = vcmp.gt.s32.totalorder %v738, 0
    %v740 = vsel %vm739, %v738, 0
    %v741 = vshrl.u32 %v740, 5
    %v742 = vand.u32 %v740, 31
    %v743 = vsub.s32 32, %v742
    %v744 = vshrl.u32 683565275, %v743
    %v745 = vshll.u32 683565275, %v742
    %v746 = vshrl.u32 2475754826, %v743
    %v747 = vor.u32 %v745, %v746
    %v748 = vshll.u32 2475754826, %v742
    %v749 = vshrl.u32 2131351028, %v743
    %v750 = vor.u32 %v748, %v749
    %v751 = vshll.u32 2131351028, %v742
    %v752 = vshrl.u32 2102212464, %v743
    %v753 = vor.u32 %v751, %v752
    %v754 = vshll.u32 2102212464, %v742
    %v755 = vshrl.u32 920167782, %v743
    %v756 = vor.u32 %v754, %v755
    %v757 = vshll.u32 920167782, %v742
    %v758 = vshrl.u32 1326507024, %v743
    %v759 = vor.u32 %v757, %v758
    %vm760 = vcmp.lt.s32.totalorder %v741, 1
    %vm761 = vcmp.lt.s32.totalorder %v741, 2
    %vm762 = vcmp.lt.s32.totalorder %v741, 3
    %vm763 = vcmp.lt.s32.totalorder %v741, 4
    %v764 = vsel %vm760, %v744, %v747
    %v765 = vsel %vm763, %v753, 2102212464
    %v766 = vsel %vm762, %v750, %v765
    %v767 = vsel %vm761, %v764, %v766
    %v768 = vsel %vm760, %v747, %v750
    %v769 = vsel %vm763, %v756, 920167782
    %v770 = vsel %vm762, %v753, %v769
    %v771 = vsel %vm761, %v768, %v770
    %v772 = vsel %vm760, %v750, %v753
    %v773 = vsel %vm763, %v759, 1326507024
    %v774 = vsel %vm762, %v756, %v773
    %v775 = vsel %vm761, %v772, %v774
    %v776 = vshll.u32 %v736, 8
    %v777 = vmul.u32.u64.compose %v776, %v775
    %v778 = vextract.low.u32 %v777
    %v779 = vextract.high.u32 %v777
    %v780 = vmul.u32.u64.compose %v776, %v771
    %v781 = vextract.low.u32 %v780
    %v782 = vextract.high.u32 %v780
    %v783 = vmul.u32 %v776, %v767
    %v784 = vadd.s32 %v779, %v781
    %vm785 = vc.u32 %v779, %v781
    %v786 = vadd.s32 %v782, 1
    %v787 = vsel %vm785, %v786, %v782
    %v788 = vadd.s32 %v783, %v787
    %v789 = vadd.s32 %v788, 536870912
    %v790 = vshrl.u32 %v789, 30
    %v791 = vshll.u32 %v790, 30
    %v792 = vsub.s32 %v788, %v791
    %vm793 = vcmp.lt.s32.totalorder %v792, 0
    %v794 = vsub.s32 0, %v792
    %v795 = vsel %vm793, %v794, %v792
    %v796 = vclz %v795
    %v797 = vsub.s32 %v796, 2
    %vm798 = vcmp.gt.s32.totalorder 0, %v797
    %v799 = vsel %vm798, 0, %v797
    %v800 = vsub.s32 32, %v799
    %v801 = vshll.u32 %v792, %v799
    %v802 = vshrl.u32 %v784, %v800
    %v803 = vor.u32 %v801, %v802
    %v804 = vsub.s32 4294967266, %v799
    %v805 = vadd.s32 %v804, 127
    %v806 = vshll.u32 %v805, 23
    %v807 = vor.u32 4788187, %v806
    %v808 = vand.u32 2147483647, %v807
    %v810 = vcvt.s32.f32 %v803
    %v811 = vmul.f32 %v810, %v808
    %v812 = vxor.u32 %v811, 2147483648
    %v813 = vsel %vm730, %v812, %v811
    %v814 = vsub.s32 4, %v790
    %v815 = vsel %vm730, %v814, %v790
    %v816 = vsel %vm729, %v613, %v813
    %v817 = vsel %vm729, 0, %v815
    %v818 = vcosq.f32.pop %v816
    %v819 = vsinq.f32.pop %v816
    %vm820 = vweird.f32 %v613
    %v821 = vadd.s32 %v817, 3
    %v822 = vand.u32 %v821, 3
    %vm823 = vcmp.lt.s32.totalorder %v822, 2
    %vm824 = vcmp.eq.s32.totalorder %v822, 0
    %v825 = vxor.u32 %v819, 2147483648
    %v826 = vsel %vm824, %v818, %v825
    %vm827 = vcmp.eq.s32.totalorder %v822, 2
    %v828 = vxor.u32 %v818, 2147483648
    %v829 = vsel %vm827, %v828, %v819
    %v830 = vsel %vm823, %v826, %v829
    %v831 = vsel %vm820, nan, %v830
    %v832 = vand.u32 2147483647, %v614
    %vm833 = vcmp.le.f32.partialorder %v832, 0.7853982
    %vm834 = vcmp.lt.s32.totalorder %v614, 0
    %v835 = vand.u32 %v614, 2139095040
    %v836 = vshrl.u32 %v835, 23
    %v837 = vsub.s32 %v836, 127
    %v838 = vand.u32 2147483647, %v614
    %v839 = vand.u32 %v838, 8388607
    %v840 = vor.u32 %v839, 8388608
    %v841 = vsub.s32 0, %v840
    %v842 = vadd.s32 %v837, 1
    %vm843 = vcmp.gt.s32.totalorder %v842, 0
    %v844 = vsel %vm843, %v842, 0
    %v845 = vshrl.u32 %v844, 5
    %v846 = vand.u32 %v844, 31
    %v847 = vsub.s32 32, %v846
    %v848 = vshrl.u32 683565275, %v847
    %v849 = vshll.u32 683565275, %v846
    %v850 = vshrl.u32 2475754826, %v847
    %v851 = vor.u32 %v849, %v850
    %v852 = vshll.u32 2475754826, %v846
    %v853 = vshrl.u32 2131351028, %v847
    %v854 = vor.u32 %v852, %v853
    %v855 = vshll.u32 2131351028, %v846
    %v856 = vshrl.u32 2102212464, %v847
    %v857 = vor.u32 %v855, %v856
    %v858 = vshll.u32 2102212464, %v846
    %v859 = vshrl.u32 920167782, %v847
    %v860 = vor.u32 %v858, %v859
    %v861 = vshll.u32 920167782, %v846
    %v862 = vshrl.u32 1326507024, %v847
    %v863 = vor.u32 %v861, %v862
    %vm864 = vcmp.lt.s32.totalorder %v845, 1
    %vm865 = vcmp.lt.s32.totalorder %v845, 2
    %vm866 = vcmp.lt.s32.totalorder %v845, 3
    %vm867 = vcmp.lt.s32.totalorder %v845, 4
    %v868 = vsel %vm864, %v848, %v851
    %v869 = vsel %vm867, %v857, 2102212464
    %v870 = vsel %vm866, %v854, %v869
    %v871 = vsel %vm865, %v868, %v870
    %v872 = vsel %vm864, %v851, %v854
    %v873 = vsel %vm867, %v860, 920167782
    %v874 = vsel %vm866, %v857, %v873
    %v875 = vsel %vm865, %v872, %v874
    %v876 = vsel %vm864, %v854, %v857
    %v877 = vsel %vm867, %v863, 1326507024
    %v878 = vsel %vm866, %v860, %v877
    %v879 = vsel %vm865, %v876, %v878
    %v880 = vshll.u32 %v840, 8
    %v881 = vmul.u32.u64.compose %v880, %v879
    %v882 = vextract.low.u32 %v881
    %v883 = vextract.high.u32 %v881
    %v884 = vmul.u32.u64.compose %v880, %v875
    %v885 = vextract.low.u32 %v884
    %v886 = vextract.high.u32 %v884
    %v887 = vmul.u32 %v880, %v871
    %v888 = vadd.s32 %v883, %v885
    %vm889 = vc.u32 %v883, %v885
    %v890 = vadd.s32 %v886, 1
    %v891 = vsel %vm889, %v890, %v886
    %v892 = vadd.s32 %v887, %v891
    %v893 = vadd.s32 %v892, 536870912
    %v894 = vshrl.u32 %v893, 30
    %v895 = vshll.u32 %v894, 30
    %v896 = vsub.s32 %v892, %v895
    %vm897 = vcmp.lt.s32.totalorder %v896, 0
    %v898 = vsub.s32 0, %v896
    %v899 = vsel %vm897, %v898, %v896
    %v900 = vclz %v899
    %v901 = vsub.s32 %v900, 2
    %vm902 = vcmp.gt.s32.totalorder 0, %v901
    %v903 = vsel %vm902, 0, %v901
    %v904 = vsub.s32 32, %v903
    %v905 = vshll.u32 %v896, %v903
    %v906 = vshrl.u32 %v888, %v904
    %v907 = vor.u32 %v905, %v906
    %v908 = vsub.s32 4294967266, %v903
    %v909 = vadd.s32 %v908, 127
    %v910 = vshll.u32 %v909, 23
    %v911 = vor.u32 4788187, %v910
    %v912 = vand.u32 2147483647, %v911
    %v914 = vcvt.s32.f32 %v907
    %v915 = vmul.f32 %v914, %v912
    %v916 = vxor.u32 %v915, 2147483648
    %v917 = vsel %vm834, %v916, %v915
    %v918 = vsub.s32 4, %v894
    %v919 = vsel %vm834, %v918, %v894
    %v920 = vsel %vm833, %v614, %v917
    %v921 = vsel %vm833, 0, %v919
    %v922 = vcosq.f32.pop %v920
    %v923 = vsinq.f32.pop %v920
    %vm924 = vweird.f32 %v614
    %v925 = vadd.s32 %v921, 3
    %v926 = vand.u32 %v925, 3
    %vm927 = vcmp.lt.s32.totalorder %v926, 2
    %vm928 = vcmp.eq.s32.totalorder %v926, 0
    %v929 = vxor.u32 %v923, 2147483648
    %v930 = vsel %vm928, %v922, %v929
    %vm931 = vcmp.eq.s32.totalorder %v926, 2
    %v932 = vxor.u32 %v922, 2147483648
    %v933 = vsel %vm931, %v932, %v923
    %v934 = vsel %vm927, %v930, %v933
    %v935 = vsel %vm924, nan, %v934
    %v936 = vand.u32 2147483647, %v615
    %vm937 = vcmp.le.f32.partialorder %v936, 0.7853982
    %vm938 = vcmp.lt.s32.totalorder %v615, 0
    %v939 = vand.u32 %v615, 2139095040
    %v940 = vshrl.u32 %v939, 23
    %v941 = vsub.s32 %v940, 127
    %v942 = vand.u32 2147483647, %v615
    %v943 = vand.u32 %v942, 8388607
    %v944 = vor.u32 %v943, 8388608
    %v945 = vsub.s32 0, %v944
    %v946 = vadd.s32 %v941, 1
    %vm947 = vcmp.gt.s32.totalorder %v946, 0
    %v948 = vsel %vm947, %v946, 0
    %v949 = vshrl.u32 %v948, 5
    %v950 = vand.u32 %v948, 31
    %v951 = vsub.s32 32, %v950
    %v952 = vshrl.u32 683565275, %v951
    %v953 = vshll.u32 683565275, %v950
    %v954 = vshrl.u32 2475754826, %v951
    %v955 = vor.u32 %v953, %v954
    %v956 = vshll.u32 2475754826, %v950
    %v957 = vshrl.u32 2131351028, %v951
    %v958 = vor.u32 %v956, %v957
    %v959 = vshll.u32 2131351028, %v950
    %v960 = vshrl.u32 2102212464, %v951
    %v961 = vor.u32 %v959, %v960
    %v962 = vshll.u32 2102212464, %v950
    %v963 = vshrl.u32 920167782, %v951
    %v964 = vor.u32 %v962, %v963
    %v965 = vshll.u32 920167782, %v950
    %v966 = vshrl.u32 1326507024, %v951
    %v967 = vor.u32 %v965, %v966
    %vm968 = vcmp.lt.s32.totalorder %v949, 1
    %vm969 = vcmp.lt.s32.totalorder %v949, 2
    %vm970 = vcmp.lt.s32.totalorder %v949, 3
    %vm971 = vcmp.lt.s32.totalorder %v949, 4
    %v972 = vsel %vm968, %v952, %v955
    %v973 = vsel %vm971, %v961, 2102212464
    %v974 = vsel %vm970, %v958, %v973
    %v975 = vsel %vm969, %v972, %v974
    %v976 = vsel %vm968, %v955, %v958
    %v977 = vsel %vm971, %v964, 920167782
    %v978 = vsel %vm970, %v961, %v977
    %v979 = vsel %vm969, %v976, %v978
    %v980 = vsel %vm968, %v958, %v961
    %v981 = vsel %vm971, %v967, 1326507024
    %v982 = vsel %vm970, %v964, %v981
    %v983 = vsel %vm969, %v980, %v982
    %v984 = vshll.u32 %v944, 8
    %v985 = vmul.u32.u64.compose %v984, %v983
    %v986 = vextract.low.u32 %v985
    %v987 = vextract.high.u32 %v985
    %v988 = vmul.u32.u64.compose %v984, %v979
    %v989 = vextract.low.u32 %v988
    %v990 = vextract.high.u32 %v988
    %v991 = vmul.u32 %v984, %v975
    %v992 = vadd.s32 %v987, %v989
    %vm993 = vc.u32 %v987, %v989
    %v994 = vadd.s32 %v990, 1
    %v995 = vsel %vm993, %v994, %v990
    %v996 = vadd.s32 %v991, %v995
    %v997 = vadd.s32 %v996, 536870912
    %v998 = vshrl.u32 %v997, 30
    %v999 = vshll.u32 %v998, 30
    %v1000 = vsub.s32 %v996, %v999
    %vm1001 = vcmp.lt.s32.totalorder %v1000, 0
    %v1002 = vsub.s32 0, %v1000
    %v1003 = vsel %vm1001, %v1002, %v1000
    %v1004 = vclz %v1003
    %v1005 = vsub.s32 %v1004, 2
    %vm1006 = vcmp.gt.s32.totalorder 0, %v1005
    %v1007 = vsel %vm1006, 0, %v1005
    %v1008 = vsub.s32 32, %v1007
    %v1009 = vshll.u32 %v1000, %v1007
    %v1010 = vshrl.u32 %v992, %v1008
    %v1011 = vor.u32 %v1009, %v1010
    %v1012 = vsub.s32 4294967266, %v1007
    %v1013 = vadd.s32 %v1012, 127
    %v1014 = vshll.u32 %v1013, 23
    %v1015 = vor.u32 4788187, %v1014
    %v1016 = vand.u32 2147483647, %v1015
    %v1018 = vcvt.s32.f32 %v1011
    %v1019 = vmul.f32 %v1018, %v1016
    %v1020 = vxor.u32 %v1019, 2147483648
    %v1021 = vsel %vm938, %v1020, %v1019
    %v1022 = vsub.s32 4, %v998
    %v1023 = vsel %vm938, %v1022, %v998
    %v1024 = vsel %vm937, %v615, %v1021
    %v1025 = vsel %vm937, 0, %v1023
    %v1026 = vcosq.f32.pop %v1024
    %v1027 = vsinq.f32.pop %v1024
    %vm1028 = vweird.f32 %v615
    %v1029 = vadd.s32 %v1025, 3
    %v1030 = vand.u32 %v1029, 3
    %vm1031 = vcmp.lt.s32.totalorder %v1030, 2
    %vm1032 = vcmp.eq.s32.totalorder %v1030, 0
    %v1033 = vxor.u32 %v1027, 2147483648
    %v1034 = vsel %vm1032, %v1026, %v1033
    %vm1035 = vcmp.eq.s32.totalorder %v1030, 2
    %v1036 = vxor.u32 %v1026, 2147483648
    %v1037 = vsel %vm1035, %v1036, %v1027
    %v1038 = vsel %vm1031, %v1034, %v1037
    %v1039 = vsel %vm1028, nan, %v1038
    %v1040 = vand.u32 2147483647, %v612
    %vm1041 = vcmp.le.f32.partialorder %v1040, 0.7853982
    %vm1042 = vcmp.lt.s32.totalorder %v612, 0
    %v1043 = vand.u32 %v612, 2139095040
    %v1044 = vshrl.u32 %v1043, 23
    %v1045 = vsub.s32 %v1044, 127
    %v1046 = vand.u32 2147483647, %v612
    %v1047 = vand.u32 %v1046, 8388607
    %v1048 = vor.u32 %v1047, 8388608
    %v1049 = vsub.s32 0, %v1048
    %v1050 = vadd.s32 %v1045, 1
    %vm1051 = vcmp.gt.s32.totalorder %v1050, 0
    %v1052 = vsel %vm1051, %v1050, 0
    %v1053 = vshrl.u32 %v1052, 5
    %v1054 = vand.u32 %v1052, 31
    %v1055 = vsub.s32 32, %v1054
    %v1056 = vshrl.u32 683565275, %v1055
    %v1057 = vshll.u32 683565275, %v1054
    %v1058 = vshrl.u32 2475754826, %v1055
    %v1059 = vor.u32 %v1057, %v1058
    %v1060 = vshll.u32 2475754826, %v1054
    %v1061 = vshrl.u32 2131351028, %v1055
    %v1062 = vor.u32 %v1060, %v1061
    %v1063 = vshll.u32 2131351028, %v1054
    %v1064 = vshrl.u32 2102212464, %v1055
    %v1065 = vor.u32 %v1063, %v1064
    %v1066 = vshll.u32 2102212464, %v1054
    %v1067 = vshrl.u32 920167782, %v1055
    %v1068 = vor.u32 %v1066, %v1067
    %v1069 = vshll.u32 920167782, %v1054
    %v1070 = vshrl.u32 1326507024, %v1055
    %v1071 = vor.u32 %v1069, %v1070
    %vm1072 = vcmp.lt.s32.totalorder %v1053, 1
    %vm1073 = vcmp.lt.s32.totalorder %v1053, 2
    %vm1074 = vcmp.lt.s32.totalorder %v1053, 3
    %vm1075 = vcmp.lt.s32.totalorder %v1053, 4
    %v1076 = vsel %vm1072, %v1056, %v1059
    %v1077 = vsel %vm1075, %v1065, 2102212464
    %v1078 = vsel %vm1074, %v1062, %v1077
    %v1079 = vsel %vm1073, %v1076, %v1078
    %v1080 = vsel %vm1072, %v1059, %v1062
    %v1081 = vsel %vm1075, %v1068, 920167782
    %v1082 = vsel %vm1074, %v1065, %v1081
    %v1083 = vsel %vm1073, %v1080, %v1082
    %v1084 = vsel %vm1072, %v1062, %v1065
    %v1085 = vsel %vm1075, %v1071, 1326507024
    %v1086 = vsel %vm1074, %v1068, %v1085
    %v1087 = vsel %vm1073, %v1084, %v1086
    %v1088 = vshll.u32 %v1048, 8
    %v1089 = vmul.u32.u64.compose %v1088, %v1087
    %v1090 = vextract.low.u32 %v1089
    %v1091 = vextract.high.u32 %v1089
    %v1092 = vmul.u32.u64.compose %v1088, %v1083
    %v1093 = vextract.low.u32 %v1092
    %v1094 = vextract.high.u32 %v1092
    %v1095 = vmul.u32 %v1088, %v1079
    %v1096 = vadd.s32 %v1091, %v1093
    %vm1097 = vc.u32 %v1091, %v1093
    %v1098 = vadd.s32 %v1094, 1
    %v1099 = vsel %vm1097, %v1098, %v1094
    %v1100 = vadd.s32 %v1095, %v1099
    %v1101 = vadd.s32 %v1100, 536870912
    %v1102 = vshrl.u32 %v1101, 30
    %v1103 = vshll.u32 %v1102, 30
    %v1104 = vsub.s32 %v1100, %v1103
    %vm1105 = vcmp.lt.s32.totalorder %v1104, 0
    %v1106 = vsub.s32 0, %v1104
    %v1107 = vsel %vm1105, %v1106, %v1104
    %v1108 = vclz %v1107
    %v1109 = vsub.s32 %v1108, 2
    %vm1110 = vcmp.gt.s32.totalorder 0, %v1109
    %v1111 = vsel %vm1110, 0, %v1109
    %v1112 = vsub.s32 32, %v1111
    %v1113 = vshll.u32 %v1104, %v1111
    %v1114 = vshrl.u32 %v1096, %v1112
    %v1115 = vor.u32 %v1113, %v1114
    %v1116 = vsub.s32 4294967266, %v1111
    %v1117 = vadd.s32 %v1116, 127
    %v1118 = vshll.u32 %v1117, 23
    %v1119 = vor.u32 4788187, %v1118
    %v1120 = vand.u32 2147483647, %v1119
    %v1122 = vcvt.s32.f32 %v1115
    %v1123 = vmul.f32 %v1122, %v1120
    %v1124 = vxor.u32 %v1123, 2147483648
    %v1125 = vsel %vm1042, %v1124, %v1123
    %v1126 = vsub.s32 4, %v1102
    %v1127 = vsel %vm1042, %v1126, %v1102
    %v1128 = vsel %vm1041, %v612, %v1125
    %v1129 = vsel %vm1041, 0, %v1127
    %v1130 = vcosq.f32.pop %v1128
    %v1131 = vsinq.f32.pop %v1128
    %vm1132 = vweird.f32 %v612
    %v1133 = vand.u32 %v1129, 3
    %vm1134 = vcmp.lt.s32.totalorder %v1133, 2
    %vm1135 = vcmp.eq.s32.totalorder %v1133, 0
    %v1136 = vxor.u32 %v1131, 2147483648
    %v1137 = vsel %vm1135, %v1130, %v1136
    %vm1138 = vcmp.eq.s32.totalorder %v1133, 2
    %v1139 = vxor.u32 %v1130, 2147483648
    %v1140 = vsel %vm1138, %v1139, %v1131
    %v1141 = vsel %vm1134, %v1137, %v1140
    %v1142 = vsel %vm1132, nan, %v1141
    %v1143 = vand.u32 2147483647, %v613
    %vm1144 = vcmp.le.f32.partialorder %v1143, 0.7853982
    %vm1145 = vcmp.lt.s32.totalorder %v613, 0
    %v1146 = vand.u32 %v613, 2139095040
    %v1147 = vshrl.u32 %v1146, 23
    %v1148 = vsub.s32 %v1147, 127
    %v1149 = vand.u32 2147483647, %v613
    %v1150 = vand.u32 %v1149, 8388607
    %v1151 = vor.u32 %v1150, 8388608
    %v1152 = vsub.s32 0, %v1151
    %v1153 = vadd.s32 %v1148, 1
    %vm1154 = vcmp.gt.s32.totalorder %v1153, 0
    %v1155 = vsel %vm1154, %v1153, 0
    %v1156 = vshrl.u32 %v1155, 5
    %v1157 = vand.u32 %v1155, 31
    %v1158 = vsub.s32 32, %v1157
    %v1159 = vshrl.u32 683565275, %v1158
    %v1160 = vshll.u32 683565275, %v1157
    %v1161 = vshrl.u32 2475754826, %v1158
    %v1162 = vor.u32 %v1160, %v1161
    %v1163 = vshll.u32 2475754826, %v1157
    %v1164 = vshrl.u32 2131351028, %v1158
    %v1165 = vor.u32 %v1163, %v1164
    %v1166 = vshll.u32 2131351028, %v1157
    %v1167 = vshrl.u32 2102212464, %v1158
    %v1168 = vor.u32 %v1166, %v1167
    %v1169 = vshll.u32 2102212464, %v1157
    %v1170 = vshrl.u32 920167782, %v1158
    %v1171 = vor.u32 %v1169, %v1170
    %v1172 = vshll.u32 920167782, %v1157
    %v1173 = vshrl.u32 1326507024, %v1158
    %v1174 = vor.u32 %v1172, %v1173
    %vm1175 = vcmp.lt.s32.totalorder %v1156, 1
    %vm1176 = vcmp.lt.s32.totalorder %v1156, 2
    %vm1177 = vcmp.lt.s32.totalorder %v1156, 3
    %vm1178 = vcmp.lt.s32.totalorder %v1156, 4
    %v1179 = vsel %vm1175, %v1159, %v1162
    %v1180 = vsel %vm1178, %v1168, 2102212464
    %v1181 = vsel %vm1177, %v1165, %v1180
    %v1182 = vsel %vm1176, %v1179, %v1181
    %v1183 = vsel %vm1175, %v1162, %v1165
    %v1184 = vsel %vm1178, %v1171, 920167782
    %v1185 = vsel %vm1177, %v1168, %v1184
    %v1186 = vsel %vm1176, %v1183, %v1185
    %v1187 = vsel %vm1175, %v1165, %v1168
    %v1188 = vsel %vm1178, %v1174, 1326507024
    %v1189 = vsel %vm1177, %v1171, %v1188
    %v1190 = vsel %vm1176, %v1187, %v1189
    %v1191 = vshll.u32 %v1151, 8
    %v1192 = vmul.u32.u64.compose %v1191, %v1190
    %v1193 = vextract.low.u32 %v1192
    %v1194 = vextract.high.u32 %v1192
    %v1195 = vmul.u32.u64.compose %v1191, %v1186
    %v1196 = vextract.low.u32 %v1195
    %v1197 = vextract.high.u32 %v1195
    %v1198 = vmul.u32 %v1191, %v1182
    %v1199 = vadd.s32 %v1194, %v1196
    %vm1200 = vc.u32 %v1194, %v1196
    %v1201 = vadd.s32 %v1197, 1
    %v1202 = vsel %vm1200, %v1201, %v1197
    %v1203 = vadd.s32 %v1198, %v1202
    %v1204 = vadd.s32 %v1203, 536870912
    %v1205 = vshrl.u32 %v1204, 30
    %v1206 = vshll.u32 %v1205, 30
    %v1207 = vsub.s32 %v1203, %v1206
    %vm1208 = vcmp.lt.s32.totalorder %v1207, 0
    %v1209 = vsub.s32 0, %v1207
    %v1210 = vsel %vm1208, %v1209, %v1207
    %v1211 = vclz %v1210
    %v1212 = vsub.s32 %v1211, 2
    %vm1213 = vcmp.gt.s32.totalorder 0, %v1212
    %v1214 = vsel %vm1213, 0, %v1212
    %v1215 = vsub.s32 32, %v1214
    %v1216 = vshll.u32 %v1207, %v1214
    %v1217 = vshrl.u32 %v1199, %v1215
    %v1218 = vor.u32 %v1216, %v1217
    %v1219 = vsub.s32 4294967266, %v1214
    %v1220 = vadd.s32 %v1219, 127
    %v1221 = vshll.u32 %v1220, 23
    %v1222 = vor.u32 4788187, %v1221
    %v1223 = vand.u32 2147483647, %v1222
    %v1225 = vcvt.s32.f32 %v1218
    %v1226 = vmul.f32 %v1225, %v1223
    %v1227 = vxor.u32 %v1226, 2147483648
    %v1228 = vsel %vm1145, %v1227, %v1226
    %v1229 = vsub.s32 4, %v1205
    %v1230 = vsel %vm1145, %v1229, %v1205
    %v1231 = vsel %vm1144, %v613, %v1228
    %v1232 = vsel %vm1144, 0, %v1230
    %v1233 = vcosq.f32.pop %v1231
    %v1234 = vsinq.f32.pop %v1231
    %vm1235 = vweird.f32 %v613
    %v1236 = vand.u32 %v1232, 3
    %vm1237 = vcmp.lt.s32.totalorder %v1236, 2
    %vm1238 = vcmp.eq.s32.totalorder %v1236, 0
    %v1239 = vxor.u32 %v1234, 2147483648
    %v1240 = vsel %vm1238, %v1233, %v1239
    %vm1241 = vcmp.eq.s32.totalorder %v1236, 2
    %v1242 = vxor.u32 %v1233, 2147483648
    %v1243 = vsel %vm1241, %v1242, %v1234
    %v1244 = vsel %vm1237, %v1240, %v1243
    %v1245 = vsel %vm1235, nan, %v1244
    %v1246 = vand.u32 2147483647, %v614
    %vm1247 = vcmp.le.f32.partialorder %v1246, 0.7853982
    %vm1248 = vcmp.lt.s32.totalorder %v614, 0
    %v1249 = vand.u32 %v614, 2139095040
    %v1250 = vshrl.u32 %v1249, 23
    %v1251 = vsub.s32 %v1250, 127
    %v1252 = vand.u32 2147483647, %v614
    %v1253 = vand.u32 %v1252, 8388607
    %v1254 = vor.u32 %v1253, 8388608
    %v1255 = vsub.s32 0, %v1254
    %v1256 = vadd.s32 %v1251, 1
    %vm1257 = vcmp.gt.s32.totalorder %v1256, 0
    %v1258 = vsel %vm1257, %v1256, 0
    %v1259 = vshrl.u32 %v1258, 5
    %v1260 = vand.u32 %v1258, 31
    %v1261 = vsub.s32 32, %v1260
    %v1262 = vshrl.u32 683565275, %v1261
    %v1263 = vshll.u32 683565275, %v1260
    %v1264 = vshrl.u32 2475754826, %v1261
    %v1265 = vor.u32 %v1263, %v1264
    %v1266 = vshll.u32 2475754826, %v1260
    %v1267 = vshrl.u32 2131351028, %v1261
    %v1268 = vor.u32 %v1266, %v1267
    %v1269 = vshll.u32 2131351028, %v1260
    %v1270 = vshrl.u32 2102212464, %v1261
    %v1271 = vor.u32 %v1269, %v1270
    %v1272 = vshll.u32 2102212464, %v1260
    %v1273 = vshrl.u32 920167782, %v1261
    %v1274 = vor.u32 %v1272, %v1273
    %v1275 = vshll.u32 920167782, %v1260
    %v1276 = vshrl.u32 1326507024, %v1261
    %v1277 = vor.u32 %v1275, %v1276
    %vm1278 = vcmp.lt.s32.totalorder %v1259, 1
    %vm1279 = vcmp.lt.s32.totalorder %v1259, 2
    %vm1280 = vcmp.lt.s32.totalorder %v1259, 3
    %vm1281 = vcmp.lt.s32.totalorder %v1259, 4
    %v1282 = vsel %vm1278, %v1262, %v1265
    %v1283 = vsel %vm1281, %v1271, 2102212464
    %v1284 = vsel %vm1280, %v1268, %v1283
    %v1285 = vsel %vm1279, %v1282, %v1284
    %v1286 = vsel %vm1278, %v1265, %v1268
    %v1287 = vsel %vm1281, %v1274, 920167782
    %v1288 = vsel %vm1280, %v1271, %v1287
    %v1289 = vsel %vm1279, %v1286, %v1288
    %v1290 = vsel %vm1278, %v1268, %v1271
    %v1291 = vsel %vm1281, %v1277, 1326507024
    %v1292 = vsel %vm1280, %v1274, %v1291
    %v1293 = vsel %vm1279, %v1290, %v1292
    %v1294 = vshll.u32 %v1254, 8
    %v1295 = vmul.u32.u64.compose %v1294, %v1293
    %v1296 = vextract.low.u32 %v1295
    %v1297 = vextract.high.u32 %v1295
    %v1298 = vmul.u32.u64.compose %v1294, %v1289
    %v1299 = vextract.low.u32 %v1298
    %v1300 = vextract.high.u32 %v1298
    %v1301 = vmul.u32 %v1294, %v1285
    %v1302 = vadd.s32 %v1297, %v1299
    %vm1303 = vc.u32 %v1297, %v1299
    %v1304 = vadd.s32 %v1300, 1
    %v1305 = vsel %vm1303, %v1304, %v1300
    %v1306 = vadd.s32 %v1301, %v1305
    %v1307 = vadd.s32 %v1306, 536870912
    %v1308 = vshrl.u32 %v1307, 30
    %v1309 = vshll.u32 %v1308, 30
    %v1310 = vsub.s32 %v1306, %v1309
    %vm1311 = vcmp.lt.s32.totalorder %v1310, 0
    %v1312 = vsub.s32 0, %v1310
    %v1313 = vsel %vm1311, %v1312, %v1310
    %v1314 = vclz %v1313
    %v1315 = vsub.s32 %v1314, 2
    %vm1316 = vcmp.gt.s32.totalorder 0, %v1315
    %v1317 = vsel %vm1316, 0, %v1315
    %v1318 = vsub.s32 32, %v1317
    %v1319 = vshll.u32 %v1310, %v1317
    %v1320 = vshrl.u32 %v1302, %v1318
    %v1321 = vor.u32 %v1319, %v1320
    %v1322 = vsub.s32 4294967266, %v1317
    %v1323 = vadd.s32 %v1322, 127
    %v1324 = vshll.u32 %v1323, 23
    %v1325 = vor.u32 4788187, %v1324
    %v1326 = vand.u32 2147483647, %v1325
    %v1328 = vcvt.s32.f32 %v1321
    %v1329 = vmul.f32 %v1328, %v1326
    %v1330 = vxor.u32 %v1329, 2147483648
    %v1331 = vsel %vm1248, %v1330, %v1329
    %v1332 = vsub.s32 4, %v1308
    %v1333 = vsel %vm1248, %v1332, %v1308
    %v1334 = vsel %vm1247, %v614, %v1331
    %v1335 = vsel %vm1247, 0, %v1333
    %v1336 = vcosq.f32.pop %v1334
    %v1337 = vsinq.f32.pop %v1334
    %vm1338 = vweird.f32 %v614
    %v1339 = vand.u32 %v1335, 3
    %vm1340 = vcmp.lt.s32.totalorder %v1339, 2
    %vm1341 = vcmp.eq.s32.totalorder %v1339, 0
    %v1342 = vxor.u32 %v1337, 2147483648
    %v1343 = vsel %vm1341, %v1336, %v1342
    %vm1344 = vcmp.eq.s32.totalorder %v1339, 2
    %v1345 = vxor.u32 %v1336, 2147483648
    %v1346 = vsel %vm1344, %v1345, %v1337
    %v1347 = vsel %vm1340, %v1343, %v1346
    %v1348 = vsel %vm1338, nan, %v1347
    %v1349 = vand.u32 2147483647, %v615
    %vm1350 = vcmp.le.f32.partialorder %v1349, 0.7853982
    %vm1351 = vcmp.lt.s32.totalorder %v615, 0
    %v1352 = vand.u32 %v615, 2139095040
    %v1353 = vshrl.u32 %v1352, 23
    %v1354 = vsub.s32 %v1353, 127
    %v1355 = vand.u32 2147483647, %v615
    %v1356 = vand.u32 %v1355, 8388607
    %v1357 = vor.u32 %v1356, 8388608
    %v1358 = vsub.s32 0, %v1357
    %v1359 = vadd.s32 %v1354, 1
    %vm1360 = vcmp.gt.s32.totalorder %v1359, 0
    %v1361 = vsel %vm1360, %v1359, 0
    %v1362 = vshrl.u32 %v1361, 5
    %v1363 = vand.u32 %v1361, 31
    %v1364 = vsub.s32 32, %v1363
    %v1365 = vshrl.u32 683565275, %v1364
    %v1366 = vshll.u32 683565275, %v1363
    %v1367 = vshrl.u32 2475754826, %v1364
    %v1368 = vor.u32 %v1366, %v1367
    %v1369 = vshll.u32 2475754826, %v1363
    %v1370 = vshrl.u32 2131351028, %v1364
    %v1371 = vor.u32 %v1369, %v1370
    %v1372 = vshll.u32 2131351028, %v1363
    %v1373 = vshrl.u32 2102212464, %v1364
    %v1374 = vor.u32 %v1372, %v1373
    %v1375 = vshll.u32 2102212464, %v1363
    %v1376 = vshrl.u32 920167782, %v1364
    %v1377 = vor.u32 %v1375, %v1376
    %v1378 = vshll.u32 920167782, %v1363
    %v1379 = vshrl.u32 1326507024, %v1364
    %v1380 = vor.u32 %v1378, %v1379
    %vm1381 = vcmp.lt.s32.totalorder %v1362, 1
    %vm1382 = vcmp.lt.s32.totalorder %v1362, 2
    %vm1383 = vcmp.lt.s32.totalorder %v1362, 3
    %vm1384 = vcmp.lt.s32.totalorder %v1362, 4
    %v1385 = vsel %vm1381, %v1365, %v1368
    %v1386 = vsel %vm1384, %v1374, 2102212464
    %v1387 = vsel %vm1383, %v1371, %v1386
    %v1388 = vsel %vm1382, %v1385, %v1387
    %v1389 = vsel %vm1381, %v1368, %v1371
    %v1390 = vsel %vm1384, %v1377, 920167782
    %v1391 = vsel %vm1383, %v1374, %v1390
    %v1392 = vsel %vm1382, %v1389, %v1391
    %v1393 = vsel %vm1381, %v1371, %v1374
    %v1394 = vsel %vm1384, %v1380, 1326507024
    %v1395 = vsel %vm1383, %v1377, %v1394
    %v1396 = vsel %vm1382, %v1393, %v1395
    %v1397 = vshll.u32 %v1357, 8
    %v1398 = vmul.u32.u64.compose %v1397, %v1396
    %v1399 = vextract.low.u32 %v1398
    %v1400 = vextract.high.u32 %v1398
    %v1401 = vmul.u32.u64.compose %v1397, %v1392
    %v1402 = vextract.low.u32 %v1401
    %v1403 = vextract.high.u32 %v1401
    %v1404 = vmul.u32 %v1397, %v1388
    %v1405 = vadd.s32 %v1400, %v1402
    %vm1406 = vc.u32 %v1400, %v1402
    %v1407 = vadd.s32 %v1403, 1
    %v1408 = vsel %vm1406, %v1407, %v1403
    %v1409 = vadd.s32 %v1404, %v1408
    %v1410 = vadd.s32 %v1409, 536870912
    %v1411 = vshrl.u32 %v1410, 30
    %v1412 = vshll.u32 %v1411, 30
    %v1413 = vsub.s32 %v1409, %v1412
    %vm1414 = vcmp.lt.s32.totalorder %v1413, 0
    %v1415 = vsub.s32 0, %v1413
    %v1416 = vsel %vm1414, %v1415, %v1413
    %v1417 = vclz %v1416
    %v1418 = vsub.s32 %v1417, 2
    %vm1419 = vcmp.gt.s32.totalorder 0, %v1418
    %v1420 = vsel %vm1419, 0, %v1418
    %v1421 = vsub.s32 32, %v1420
    %v1422 = vshll.u32 %v1413, %v1420
    %v1423 = vshrl.u32 %v1405, %v1421
    %v1424 = vor.u32 %v1422, %v1423
    %v1425 = vsub.s32 4294967266, %v1420
    %v1426 = vadd.s32 %v1425, 127
    %v1427 = vshll.u32 %v1426, 23
    %v1428 = vor.u32 4788187, %v1427
    %v1429 = vand.u32 2147483647, %v1428
    %v1431 = vcvt.s32.f32 %v1424
    %v1432 = vmul.f32 %v1431, %v1429
    %v1433 = vxor.u32 %v1432, 2147483648
    %v1434 = vsel %vm1351, %v1433, %v1432
    %v1435 = vsub.s32 4, %v1411
    %v1436 = vsel %vm1351, %v1435, %v1411
    %v1437 = vsel %vm1350, %v615, %v1434
    %v1438 = vsel %vm1350, 0, %v1436
    %v1439 = vcosq.f32.pop %v1437
    %v1440 = vsinq.f32.pop %v1437
    %vm1441 = vweird.f32 %v615
    %v1442 = vand.u32 %v1438, 3
    %vm1443 = vcmp.lt.s32.totalorder %v1442, 2
    %vm1444 = vcmp.eq.s32.totalorder %v1442, 0
    %v1445 = vxor.u32 %v1440, 2147483648
    %v1446 = vsel %vm1444, %v1439, %v1445
    %vm1447 = vcmp.eq.s32.totalorder %v1442, 2
    %v1448 = vxor.u32 %v1439, 2147483648
    %v1449 = vsel %vm1447, %v1448, %v1440
    %v1450 = vsel %vm1443, %v1446, %v1449
    %v1451 = vsel %vm1441, nan, %v1450
    %v1452 = vmul.f32 %v727, %v617
    %v1453 = vmul.f32 %v831, %v619
    %v1454 = vmul.f32 %v935, %v621
    %v1455 = vmul.f32 %v1039, %v623
    %v1456 = vsub.f32 %v1452, %v1142
    %v1457 = vsub.f32 %v1453, %v1245
    %v1458 = vsub.f32 %v1454, %v1348
    %v1459 = vsub.f32 %v1455, %v1451
    %v1460 = vmul.f32 %v1456, %v617
    %v1461 = vmul.f32 %v1457, %v619
    %v1462 = vmul.f32 %v1458, %v621
    %v1463 = vmul.f32 %v1459, %v623
    %v1464 = vlaneseq
    %v1465 = vshrl.u32 %v1464, 7
    %v1466 = vsub.s32 0, %v1465
    %v1467 = vrot.slane %v62, %v1466
    %v1468 = vmul.f32 %v1452, %v1467
    %v1469 = vmul.f32 %v1453, %v1467
    %v1470 = vmul.f32 %v1454, %v1467
    %v1471 = vmul.f32 %v1455, %v1467
    %v1472 = vlaneseq
    %v1473 = vshrl.u32 %v1472, 7
    %v1474 = vsub.s32 1, %v1473
    %v1475 = vrot.slane %v62, %v1474
    %v1476 = vmul.f32 %v1460, %v1475
    %v1477 = vmul.f32 %v1461, %v1475
    %v1478 = vmul.f32 %v1462, %v1475
    %v1479 = vmul.f32 %v1463, %v1475
    %v1480 = vadd.f32 %v1468, %v1476
    %v1481 = vadd.f32 %v1469, %v1477
    %v1482 = vadd.f32 %v1470, %v1478
    %v1483 = vadd.f32 %v1471, %v1479
    %v1484 = vmul.f32 %v617, 3.0
    %v1485 = vmul.f32 %v619, 3.0
    %v1486 = vmul.f32 %v621, 3.0
    %v1487 = vmul.f32 %v623, 3.0
    %v1488 = vmul.f32 %v1484, %v1460
    %v1489 = vmul.f32 %v1485, %v1461
    %v1490 = vmul.f32 %v1486, %v1462
    %v1491 = vmul.f32 %v1487, %v1463
    %v1492 = vsub.f32 %v1488, %v1452
    %v1493 = vsub.f32 %v1489, %v1453
    %v1494 = vsub.f32 %v1490, %v1454
    %v1495 = vsub.f32 %v1491, %v1455
    %v1496 = vlaneseq
    %v1497 = vshrl.u32 %v1496, 7
    %v1498 = vsub.s32 2, %v1497
    %v1499 = vrot.slane %v62, %v1498
    %v1500 = vmul.f32 %v1492, %v1499
    %v1501 = vmul.f32 %v1493, %v1499
    %v1502 = vmul.f32 %v1494, %v1499
    %v1503 = vmul.f32 %v1495, %v1499
    %v1504 = vadd.f32 %v1480, %v1500
    %v1505 = vadd.f32 %v1481, %v1501
    %v1506 = vadd.f32 %v1482, %v1502
    %v1507 = vadd.f32 %v1483, %v1503
    %v1508 = vmul.f32 %v617, 5.0
    %v1509 = vmul.f32 %v619, 5.0
    %v1510 = vmul.f32 %v621, 5.0
    %v1511 = vmul.f32 %v623, 5.0
    %v1512 = vmul.f32 %v1508, %v1492
    %v1513 = vmul.f32 %v1509, %v1493
    %v1514 = vmul.f32 %v1510, %v1494
    %v1515 = vmul.f32 %v1511, %v1495
    %v1516 = vsub.f32 %v1512, %v1460
    %v1517 = vsub.f32 %v1513, %v1461
    %v1518 = vsub.f32 %v1514, %v1462
    %v1519 = vsub.f32 %v1515, %v1463
    %v1520 = vlaneseq
    %v1521 = vshrl.u32 %v1520, 7
    %v1522 = vsub.s32 3, %v1521
    %v1523 = vrot.slane %v62, %v1522
    %v1524 = vmul.f32 %v1516, %v1523
    %v1525 = vmul.f32 %v1517, %v1523
    %v1526 = vmul.f32 %v1518, %v1523
    %v1527 = vmul.f32 %v1519, %v1523
    %v1528 = vadd.f32 %v1504, %v1524
    %v1529 = vadd.f32 %v1505, %v1525
    %v1530 = vadd.f32 %v1506, %v1526
    %v1531 = vadd.f32 %v1507, %v1527
    %v1532 = vmul.f32 %v617, 7.0
    %v1533 = vmul.f32 %v619, 7.0
    %v1534 = vmul.f32 %v621, 7.0
    %v1535 = vmul.f32 %v623, 7.0
    %v1536 = vmul.f32 %v1532, %v1516
    %v1537 = vmul.f32 %v1533, %v1517
    %v1538 = vmul.f32 %v1534, %v1518
    %v1539 = vmul.f32 %v1535, %v1519
    %v1540 = vsub.f32 %v1536, %v1492
    %v1541 = vsub.f32 %v1537, %v1493
    %v1542 = vsub.f32 %v1538, %v1494
    %v1543 = vsub.f32 %v1539, %v1495
    %v1544 = vlaneseq
    %v1545 = vshrl.u32 %v1544, 7
    %v1546 = vsub.s32 4, %v1545
    %v1547 = vrot.slane %v62, %v1546
    %v1548 = vmul.f32 %v1540, %v1547
    %v1549 = vmul.f32 %v1541, %v1547
    %v1550 = vmul.f32 %v1542, %v1547
    %v1551 = vmul.f32 %v1543, %v1547
    %v1552 = vadd.f32 %v1528, %v1548
    %v1553 = vadd.f32 %v1529, %v1549
    %v1554 = vadd.f32 %v1530, %v1550
    %v1555 = vadd.f32 %v1531, %v1551
    %v1556 = vmul.f32 %v617, 9.0
    %v1557 = vmul.f32 %v619, 9.0
    %v1558 = vmul.f32 %v621, 9.0
    %v1559 = vmul.f32 %v623, 9.0
    %v1560 = vmul.f32 %v1556, %v1540
    %v1561 = vmul.f32 %v1557, %v1541
    %v1562 = vmul.f32 %v1558, %v1542
    %v1563 = vmul.f32 %v1559, %v1543
    %v1564 = vsub.f32 %v1560, %v1516
    %v1565 = vsub.f32 %v1561, %v1517
    %v1566 = vsub.f32 %v1562, %v1518
    %v1567 = vsub.f32 %v1563, %v1519
    %v1568 = vlaneseq
    %v1569 = vshrl.u32 %v1568, 7
    %v1570 = vsub.s32 5, %v1569
    %v1571 = vrot.slane %v62, %v1570
    %v1572 = vmul.f32 %v1564, %v1571
    %v1573 = vmul.f32 %v1565, %v1571
    %v1574 = vmul.f32 %v1566, %v1571
    %v1575 = vmul.f32 %v1567, %v1571
    %v1576 = vadd.f32 %v1552, %v1572
    %v1577 = vadd.f32 %v1553, %v1573
    %v1578 = vadd.f32 %v1554, %v1574
    %v1579 = vadd.f32 %v1555, %v1575
    %v1580 = vlaneseq
    %v1581 = vshrl.u32 %v1580, 7
    %v1582 = vsub.s32 0, %v1581
    %v1583 = vrot.slane %v61, %v1582
    %v1584 = vmul.f32 %v587, %v1583
    %v1585 = vmul.f32 %v592, %v1583
    %v1586 = vmul.f32 %v597, %v1583
    %v1587 = vmul.f32 %v602, %v1583
    %v1588 = vmul.f32 %v1584, %v1576
    %v1589 = vmul.f32 %v1585, %v1577
    %v1590 = vmul.f32 %v1586, %v1578
    %v1591 = vmul.f32 %v1587, %v1579
    %v1592 = vand.u32 2147483647, %v44
    %vm1593 = vcmp.le.f32.partialorder %v1592, 0.7853982
    %vm1594 = vcmp.lt.s32.totalorder %v44, 0
    %v1595 = vand.u32 %v44, 2139095040
    %v1596 = vshrl.u32 %v1595, 23
    %v1597 = vsub.s32 %v1596, 127
    %v1598 = vand.u32 2147483647, %v44
    %v1599 = vand.u32 %v1598, 8388607
    %v1600 = vor.u32 %v1599, 8388608
    %v1601 = vsub.s32 0, %v1600
    %v1602 = vadd.s32 %v1597, 1
    %vm1603 = vcmp.gt.s32.totalorder %v1602, 0
    %v1604 = vsel %vm1603, %v1602, 0
    %v1605 = vshrl.u32 %v1604, 5
    %v1606 = vand.u32 %v1604, 31
    %v1607 = vsub.s32 32, %v1606
    %v1608 = vshrl.u32 683565275, %v1607
    %v1609 = vshll.u32 683565275, %v1606
    %v1610 = vshrl.u32 2475754826, %v1607
    %v1611 = vor.u32 %v1609, %v1610
    %v1612 = vshll.u32 2475754826, %v1606
    %v1613 = vshrl.u32 2131351028, %v1607
    %v1614 = vor.u32 %v1612, %v1613
    %v1615 = vshll.u32 2131351028, %v1606
    %v1616 = vshrl.u32 2102212464, %v1607
    %v1617 = vor.u32 %v1615, %v1616
    %v1618 = vshll.u32 2102212464, %v1606
    %v1619 = vshrl.u32 920167782, %v1607
    %v1620 = vor.u32 %v1618, %v1619
    %v1621 = vshll.u32 920167782, %v1606
    %v1622 = vshrl.u32 1326507024, %v1607
    %v1623 = vor.u32 %v1621, %v1622
    %vm1624 = vcmp.lt.s32.totalorder %v1605, 1
    %vm1625 = vcmp.lt.s32.totalorder %v1605, 2
    %vm1626 = vcmp.lt.s32.totalorder %v1605, 3
    %vm1627 = vcmp.lt.s32.totalorder %v1605, 4
    %v1628 = vsel %vm1624, %v1608, %v1611
    %v1629 = vsel %vm1627, %v1617, 2102212464
    %v1630 = vsel %vm1626, %v1614, %v1629
    %v1631 = vsel %vm1625, %v1628, %v1630
    %v1632 = vsel %vm1624, %v1611, %v1614
    %v1633 = vsel %vm1627, %v1620, 920167782
    %v1634 = vsel %vm1626, %v1617, %v1633
    %v1635 = vsel %vm1625, %v1632, %v1634
    %v1636 = vsel %vm1624, %v1614, %v1617
    %v1637 = vsel %vm1627, %v1623, 1326507024
    %v1638 = vsel %vm1626, %v1620, %v1637
    %v1639 = vsel %vm1625, %v1636, %v1638
    %v1640 = vshll.u32 %v1600, 8
    %v1641 = vmul.u32.u64.compose %v1640, %v1639
    %v1642 = vextract.low.u32 %v1641
    %v1643 = vextract.high.u32 %v1641
    %v1644 = vmul.u32.u64.compose %v1640, %v1635
    %v1645 = vextract.low.u32 %v1644
    %v1646 = vextract.high.u32 %v1644
    %v1647 = vmul.u32 %v1640, %v1631
    %v1648 = vadd.s32 %v1643, %v1645
    %vm1649 = vc.u32 %v1643, %v1645
    %v1650 = vadd.s32 %v1646, 1
    %v1651 = vsel %vm1649, %v1650, %v1646
    %v1652 = vadd.s32 %v1647, %v1651
    %v1653 = vadd.s32 %v1652, 536870912
    %v1654 = vshrl.u32 %v1653, 30
    %v1655 = vshll.u32 %v1654, 30
    %v1656 = vsub.s32 %v1652, %v1655
    %vm1657 = vcmp.lt.s32.totalorder %v1656, 0
    %v1658 = vsub.s32 0, %v1656
    %v1659 = vsel %vm1657, %v1658, %v1656
    %v1660 = vclz %v1659
    %v1661 = vsub.s32 %v1660, 2
    %vm1662 = vcmp.gt.s32.totalorder 0, %v1661
    %v1663 = vsel %vm1662, 0, %v1661
    %v1664 = vsub.s32 32, %v1663
    %v1665 = vshll.u32 %v1656, %v1663
    %v1666 = vshrl.u32 %v1648, %v1664
    %v1667 = vor.u32 %v1665, %v1666
    %v1668 = vsub.s32 4294967266, %v1663
    %v1669 = vadd.s32 %v1668, 127
    %v1670 = vshll.u32 %v1669, 23
    %v1671 = vor.u32 4788187, %v1670
    %v1672 = vand.u32 2147483647, %v1671
    %v1674 = vcvt.s32.f32 %v1667
    %v1675 = vmul.f32 %v1674, %v1672
    %v1676 = vxor.u32 %v1675, 2147483648
    %v1677 = vsel %vm1594, %v1676, %v1675
    %v1678 = vsub.s32 4, %v1654
    %v1679 = vsel %vm1594, %v1678, %v1654
    %v1680 = vsel %vm1593, %v44, %v1677
    %v1681 = vsel %vm1593, 0, %v1679
    %v1682 = vcosq.f32.pop %v1680
    %v1683 = vsinq.f32.pop %v1680
    %vm1684 = vweird.f32 %v44
    %v1685 = vand.u32 %v1681, 3
    %vm1686 = vcmp.lt.s32.totalorder %v1685, 2
    %vm1687 = vcmp.eq.s32.totalorder %v1685, 0
    %v1688 = vxor.u32 %v1683, 2147483648
    %v1689 = vsel %vm1687, %v1682, %v1688
    %vm1690 = vcmp.eq.s32.totalorder %v1685, 2
    %v1691 = vxor.u32 %v1682, 2147483648
    %v1692 = vsel %vm1690, %v1691, %v1683
    %v1693 = vsel %vm1686, %v1689, %v1692
    %v1694 = vsel %vm1684, nan, %v1693
    %v1695 = vand.u32 2147483647, %v45
    %vm1696 = vcmp.le.f32.partialorder %v1695, 0.7853982
    %vm1697 = vcmp.lt.s32.totalorder %v45, 0
    %v1698 = vand.u32 %v45, 2139095040
    %v1699 = vshrl.u32 %v1698, 23
    %v1700 = vsub.s32 %v1699, 127
    %v1701 = vand.u32 2147483647, %v45
    %v1702 = vand.u32 %v1701, 8388607
    %v1703 = vor.u32 %v1702, 8388608
    %v1704 = vsub.s32 0, %v1703
    %v1705 = vadd.s32 %v1700, 1
    %vm1706 = vcmp.gt.s32.totalorder %v1705, 0
    %v1707 = vsel %vm1706, %v1705, 0
    %v1708 = vshrl.u32 %v1707, 5
    %v1709 = vand.u32 %v1707, 31
    %v1710 = vsub.s32 32, %v1709
    %v1711 = vshrl.u32 683565275, %v1710
    %v1712 = vshll.u32 683565275, %v1709
    %v1713 = vshrl.u32 2475754826, %v1710
    %v1714 = vor.u32 %v1712, %v1713
    %v1715 = vshll.u32 2475754826, %v1709
    %v1716 = vshrl.u32 2131351028, %v1710
    %v1717 = vor.u32 %v1715, %v1716
    %v1718 = vshll.u32 2131351028, %v1709
    %v1719 = vshrl.u32 2102212464, %v1710
    %v1720 = vor.u32 %v1718, %v1719
    %v1721 = vshll.u32 2102212464, %v1709
    %v1722 = vshrl.u32 920167782, %v1710
    %v1723 = vor.u32 %v1721, %v1722
    %v1724 = vshll.u32 920167782, %v1709
    %v1725 = vshrl.u32 1326507024, %v1710
    %v1726 = vor.u32 %v1724, %v1725
    %vm1727 = vcmp.lt.s32.totalorder %v1708, 1
    %vm1728 = vcmp.lt.s32.totalorder %v1708, 2
    %vm1729 = vcmp.lt.s32.totalorder %v1708, 3
    %vm1730 = vcmp.lt.s32.totalorder %v1708, 4
    %v1731 = vsel %vm1727, %v1711, %v1714
    %v1732 = vsel %vm1730, %v1720, 2102212464
    %v1733 = vsel %vm1729, %v1717, %v1732
    %v1734 = vsel %vm1728, %v1731, %v1733
    %v1735 = vsel %vm1727, %v1714, %v1717
    %v1736 = vsel %vm1730, %v1723, 920167782
    %v1737 = vsel %vm1729, %v1720, %v1736
    %v1738 = vsel %vm1728, %v1735, %v1737
    %v1739 = vsel %vm1727, %v1717, %v1720
    %v1740 = vsel %vm1730, %v1726, 1326507024
    %v1741 = vsel %vm1729, %v1723, %v1740
    %v1742 = vsel %vm1728, %v1739, %v1741
    %v1743 = vshll.u32 %v1703, 8
    %v1744 = vmul.u32.u64.compose %v1743, %v1742
    %v1745 = vextract.low.u32 %v1744
    %v1746 = vextract.high.u32 %v1744
    %v1747 = vmul.u32.u64.compose %v1743, %v1738
    %v1748 = vextract.low.u32 %v1747
    %v1749 = vextract.high.u32 %v1747
    %v1750 = vmul.u32 %v1743, %v1734
    %v1751 = vadd.s32 %v1746, %v1748
    %vm1752 = vc.u32 %v1746, %v1748
    %v1753 = vadd.s32 %v1749, 1
    %v1754 = vsel %vm1752, %v1753, %v1749
    %v1755 = vadd.s32 %v1750, %v1754
    %v1756 = vadd.s32 %v1755, 536870912
    %v1757 = vshrl.u32 %v1756, 30
    %v1758 = vshll.u32 %v1757, 30
    %v1759 = vsub.s32 %v1755, %v1758
    %vm1760 = vcmp.lt.s32.totalorder %v1759, 0
    %v1761 = vsub.s32 0, %v1759
    %v1762 = vsel %vm1760, %v1761, %v1759
    %v1763 = vclz %v1762
    %v1764 = vsub.s32 %v1763, 2
    %vm1765 = vcmp.gt.s32.totalorder 0, %v1764
    %v1766 = vsel %vm1765, 0, %v1764
    %v1767 = vsub.s32 32, %v1766
    %v1768 = vshll.u32 %v1759, %v1766
    %v1769 = vshrl.u32 %v1751, %v1767
    %v1770 = vor.u32 %v1768, %v1769
    %v1771 = vsub.s32 4294967266, %v1766
    %v1772 = vadd.s32 %v1771, 127
    %v1773 = vshll.u32 %v1772, 23
    %v1774 = vor.u32 4788187, %v1773
    %v1775 = vand.u32 2147483647, %v1774
    %v1777 = vcvt.s32.f32 %v1770
    %v1778 = vmul.f32 %v1777, %v1775
    %v1779 = vxor.u32 %v1778, 2147483648
    %v1780 = vsel %vm1697, %v1779, %v1778
    %v1781 = vsub.s32 4, %v1757
    %v1782 = vsel %vm1697, %v1781, %v1757
    %v1783 = vsel %vm1696, %v45, %v1780
    %v1784 = vsel %vm1696, 0, %v1782
    %v1785 = vcosq.f32.pop %v1783
    %v1786 = vsinq.f32.pop %v1783
    %vm1787 = vweird.f32 %v45
    %v1788 = vand.u32 %v1784, 3
    %vm1789 = vcmp.lt.s32.totalorder %v1788, 2
    %vm1790 = vcmp.eq.s32.totalorder %v1788, 0
    %v1791 = vxor.u32 %v1786, 2147483648
    %v1792 = vsel %vm1790, %v1785, %v1791
    %vm1793 = vcmp.eq.s32.totalorder %v1788, 2
    %v1794 = vxor.u32 %v1785, 2147483648
    %v1795 = vsel %vm1793, %v1794, %v1786
    %v1796 = vsel %vm1789, %v1792, %v1795
    %v1797 = vsel %vm1787, nan, %v1796
    %v1798 = vand.u32 2147483647, %v46
    %vm1799 = vcmp.le.f32.partialorder %v1798, 0.7853982
    %vm1800 = vcmp.lt.s32.totalorder %v46, 0
    %v1801 = vand.u32 %v46, 2139095040
    %v1802 = vshrl.u32 %v1801, 23
    %v1803 = vsub.s32 %v1802, 127
    %v1804 = vand.u32 2147483647, %v46
    %v1805 = vand.u32 %v1804, 8388607
    %v1806 = vor.u32 %v1805, 8388608
    %v1807 = vsub.s32 0, %v1806
    %v1808 = vadd.s32 %v1803, 1
    %vm1809 = vcmp.gt.s32.totalorder %v1808, 0
    %v1810 = vsel %vm1809, %v1808, 0
    %v1811 = vshrl.u32 %v1810, 5
    %v1812 = vand.u32 %v1810, 31
    %v1813 = vsub.s32 32, %v1812
    %v1814 = vshrl.u32 683565275, %v1813
    %v1815 = vshll.u32 683565275, %v1812
    %v1816 = vshrl.u32 2475754826, %v1813
    %v1817 = vor.u32 %v1815, %v1816
    %v1818 = vshll.u32 2475754826, %v1812
    %v1819 = vshrl.u32 2131351028, %v1813
    %v1820 = vor.u32 %v1818, %v1819
    %v1821 = vshll.u32 2131351028, %v1812
    %v1822 = vshrl.u32 2102212464, %v1813
    %v1823 = vor.u32 %v1821, %v1822
    %v1824 = vshll.u32 2102212464, %v1812
    %v1825 = vshrl.u32 920167782, %v1813
    %v1826 = vor.u32 %v1824, %v1825
    %v1827 = vshll.u32 920167782, %v1812
    %v1828 = vshrl.u32 1326507024, %v1813
    %v1829 = vor.u32 %v1827, %v1828
    %vm1830 = vcmp.lt.s32.totalorder %v1811, 1
    %vm1831 = vcmp.lt.s32.totalorder %v1811, 2
    %vm1832 = vcmp.lt.s32.totalorder %v1811, 3
    %vm1833 = vcmp.lt.s32.totalorder %v1811, 4
    %v1834 = vsel %vm1830, %v1814, %v1817
    %v1835 = vsel %vm1833, %v1823, 2102212464
    %v1836 = vsel %vm1832, %v1820, %v1835
    %v1837 = vsel %vm1831, %v1834, %v1836
    %v1838 = vsel %vm1830, %v1817, %v1820
    %v1839 = vsel %vm1833, %v1826, 920167782
    %v1840 = vsel %vm1832, %v1823, %v1839
    %v1841 = vsel %vm1831, %v1838, %v1840
    %v1842 = vsel %vm1830, %v1820, %v1823
    %v1843 = vsel %vm1833, %v1829, 1326507024
    %v1844 = vsel %vm1832, %v1826, %v1843
    %v1845 = vsel %vm1831, %v1842, %v1844
    %v1846 = vshll.u32 %v1806, 8
    %v1847 = vmul.u32.u64.compose %v1846, %v1845
    %v1848 = vextract.low.u32 %v1847
    %v1849 = vextract.high.u32 %v1847
    %v1850 = vmul.u32.u64.compose %v1846, %v1841
    %v1851 = vextract.low.u32 %v1850
    %v1852 = vextract.high.u32 %v1850
    %v1853 = vmul.u32 %v1846, %v1837
    %v1854 = vadd.s32 %v1849, %v1851
    %vm1855 = vc.u32 %v1849, %v1851
    %v1856 = vadd.s32 %v1852, 1
    %v1857 = vsel %vm1855, %v1856, %v1852
    %v1858 = vadd.s32 %v1853, %v1857
    %v1859 = vadd.s32 %v1858, 536870912
    %v1860 = vshrl.u32 %v1859, 30
    %v1861 = vshll.u32 %v1860, 30
    %v1862 = vsub.s32 %v1858, %v1861
    %vm1863 = vcmp.lt.s32.totalorder %v1862, 0
    %v1864 = vsub.s32 0, %v1862
    %v1865 = vsel %vm1863, %v1864, %v1862
    %v1866 = vclz %v1865
    %v1867 = vsub.s32 %v1866, 2
    %vm1868 = vcmp.gt.s32.totalorder 0, %v1867
    %v1869 = vsel %vm1868, 0, %v1867
    %v1870 = vsub.s32 32, %v1869
    %v1871 = vshll.u32 %v1862, %v1869
    %v1872 = vshrl.u32 %v1854, %v1870
    %v1873 = vor.u32 %v1871, %v1872
    %v1874 = vsub.s32 4294967266, %v1869
    %v1875 = vadd.s32 %v1874, 127
    %v1876 = vshll.u32 %v1875, 23
    %v1877 = vor.u32 4788187, %v1876
    %v1878 = vand.u32 2147483647, %v1877
    %v1880 = vcvt.s32.f32 %v1873
    %v1881 = vmul.f32 %v1880, %v1878
    %v1882 = vxor.u32 %v1881, 2147483648
    %v1883 = vsel %vm1800, %v1882, %v1881
    %v1884 = vsub.s32 4, %v1860
    %v1885 = vsel %vm1800, %v1884, %v1860
    %v1886 = vsel %vm1799, %v46, %v1883
    %v1887 = vsel %vm1799, 0, %v1885
    %v1888 = vcosq.f32.pop %v1886
    %v1889 = vsinq.f32.pop %v1886
    %vm1890 = vweird.f32 %v46
    %v1891 = vand.u32 %v1887, 3
    %vm1892 = vcmp.lt.s32.totalorder %v1891, 2
    %vm1893 = vcmp.eq.s32.totalorder %v1891, 0
    %v1894 = vxor.u32 %v1889, 2147483648
    %v1895 = vsel %vm1893, %v1888, %v1894
    %vm1896 = vcmp.eq.s32.totalorder %v1891, 2
    %v1897 = vxor.u32 %v1888, 2147483648
    %v1898 = vsel %vm1896, %v1897, %v1889
    %v1899 = vsel %vm1892, %v1895, %v1898
    %v1900 = vsel %vm1890, nan, %v1899
    %v1901 = vand.u32 2147483647, %v47
    %vm1902 = vcmp.le.f32.partialorder %v1901, 0.7853982
    %vm1903 = vcmp.lt.s32.totalorder %v47, 0
    %v1904 = vand.u32 %v47, 2139095040
    %v1905 = vshrl.u32 %v1904, 23
    %v1906 = vsub.s32 %v1905, 127
    %v1907 = vand.u32 2147483647, %v47
    %v1908 = vand.u32 %v1907, 8388607
    %v1909 = vor.u32 %v1908, 8388608
    %v1910 = vsub.s32 0, %v1909
    %v1911 = vadd.s32 %v1906, 1
    %vm1912 = vcmp.gt.s32.totalorder %v1911, 0
    %v1913 = vsel %vm1912, %v1911, 0
    %v1914 = vshrl.u32 %v1913, 5
    %v1915 = vand.u32 %v1913, 31
    %v1916 = vsub.s32 32, %v1915
    %v1917 = vshrl.u32 683565275, %v1916
    %v1918 = vshll.u32 683565275, %v1915
    %v1919 = vshrl.u32 2475754826, %v1916
    %v1920 = vor.u32 %v1918, %v1919
    %v1921 = vshll.u32 2475754826, %v1915
    %v1922 = vshrl.u32 2131351028, %v1916
    %v1923 = vor.u32 %v1921, %v1922
    %v1924 = vshll.u32 2131351028, %v1915
    %v1925 = vshrl.u32 2102212464, %v1916
    %v1926 = vor.u32 %v1924, %v1925
    %v1927 = vshll.u32 2102212464, %v1915
    %v1928 = vshrl.u32 920167782, %v1916
    %v1929 = vor.u32 %v1927, %v1928
    %v1930 = vshll.u32 920167782, %v1915
    %v1931 = vshrl.u32 1326507024, %v1916
    %v1932 = vor.u32 %v1930, %v1931
    %vm1933 = vcmp.lt.s32.totalorder %v1914, 1
    %vm1934 = vcmp.lt.s32.totalorder %v1914, 2
    %vm1935 = vcmp.lt.s32.totalorder %v1914, 3
    %vm1936 = vcmp.lt.s32.totalorder %v1914, 4
    %v1937 = vsel %vm1933, %v1917, %v1920
    %v1938 = vsel %vm1936, %v1926, 2102212464
    %v1939 = vsel %vm1935, %v1923, %v1938
    %v1940 = vsel %vm1934, %v1937, %v1939
    %v1941 = vsel %vm1933, %v1920, %v1923
    %v1942 = vsel %vm1936, %v1929, 920167782
    %v1943 = vsel %vm1935, %v1926, %v1942
    %v1944 = vsel %vm1934, %v1941, %v1943
    %v1945 = vsel %vm1933, %v1923, %v1926
    %v1946 = vsel %vm1936, %v1932, 1326507024
    %v1947 = vsel %vm1935, %v1929, %v1946
    %v1948 = vsel %vm1934, %v1945, %v1947
    %v1949 = vshll.u32 %v1909, 8
    %v1950 = vmul.u32.u64.compose %v1949, %v1948
    %v1951 = vextract.low.u32 %v1950
    %v1952 = vextract.high.u32 %v1950
    %v1953 = vmul.u32.u64.compose %v1949, %v1944
    %v1954 = vextract.low.u32 %v1953
    %v1955 = vextract.high.u32 %v1953
    %v1956 = vmul.u32 %v1949, %v1940
    %v1957 = vadd.s32 %v1952, %v1954
    %vm1958 = vc.u32 %v1952, %v1954
    %v1959 = vadd.s32 %v1955, 1
    %v1960 = vsel %vm1958, %v1959, %v1955
    %v1961 = vadd.s32 %v1956, %v1960
    %v1962 = vadd.s32 %v1961, 536870912
    %v1963 = vshrl.u32 %v1962, 30
    %v1964 = vshll.u32 %v1963, 30
    %v1965 = vsub.s32 %v1961, %v1964
    %vm1966 = vcmp.lt.s32.totalorder %v1965, 0
    %v1967 = vsub.s32 0, %v1965
    %v1968 = vsel %vm1966, %v1967, %v1965
    %v1969 = vclz %v1968
    %v1970 = vsub.s32 %v1969, 2
    %vm1971 = vcmp.gt.s32.totalorder 0, %v1970
    %v1972 = vsel %vm1971, 0, %v1970
    %v1973 = vsub.s32 32, %v1972
    %v1974 = vshll.u32 %v1965, %v1972
    %v1975 = vshrl.u32 %v1957, %v1973
    %v1976 = vor.u32 %v1974, %v1975
    %v1977 = vsub.s32 4294967266, %v1972
    %v1978 = vadd.s32 %v1977, 127
    %v1979 = vshll.u32 %v1978, 23
    %v1980 = vor.u32 4788187, %v1979
    %v1981 = vand.u32 2147483647, %v1980
    %v1983 = vcvt.s32.f32 %v1976
    %v1984 = vmul.f32 %v1983, %v1981
    %v1985 = vxor.u32 %v1984, 2147483648
    %v1986 = vsel %vm1903, %v1985, %v1984
    %v1987 = vsub.s32 4, %v1963
    %v1988 = vsel %vm1903, %v1987, %v1963
    %v1989 = vsel %vm1902, %v47, %v1986
    %v1990 = vsel %vm1902, 0, %v1988
    %v1991 = vcosq.f32.pop %v1989
    %v1992 = vsinq.f32.pop %v1989
    %vm1993 = vweird.f32 %v47
    %v1994 = vand.u32 %v1990, 3
    %vm1995 = vcmp.lt.s32.totalorder %v1994, 2
    %vm1996 = vcmp.eq.s32.totalorder %v1994, 0
    %v1997 = vxor.u32 %v1992, 2147483648
    %v1998 = vsel %vm1996, %v1991, %v1997
    %vm1999 = vcmp.eq.s32.totalorder %v1994, 2
    %v2000 = vxor.u32 %v1991, 2147483648
    %v2001 = vsel %vm1999, %v2000, %v1992
    %v2002 = vsel %vm1995, %v1998, %v2001
    %v2003 = vsel %vm1993, nan, %v2002
    %v2004 = vand.u32 2147483647, %v48
    %vm2005 = vcmp.le.f32.partialorder %v2004, 0.7853982
    %vm2006 = vcmp.lt.s32.totalorder %v48, 0
    %v2007 = vand.u32 %v48, 2139095040
    %v2008 = vshrl.u32 %v2007, 23
    %v2009 = vsub.s32 %v2008, 127
    %v2010 = vand.u32 2147483647, %v48
    %v2011 = vand.u32 %v2010, 8388607
    %v2012 = vor.u32 %v2011, 8388608
    %v2013 = vsub.s32 0, %v2012
    %v2014 = vadd.s32 %v2009, 1
    %vm2015 = vcmp.gt.s32.totalorder %v2014, 0
    %v2016 = vsel %vm2015, %v2014, 0
    %v2017 = vshrl.u32 %v2016, 5
    %v2018 = vand.u32 %v2016, 31
    %v2019 = vsub.s32 32, %v2018
    %v2020 = vshrl.u32 683565275, %v2019
    %v2021 = vshll.u32 683565275, %v2018
    %v2022 = vshrl.u32 2475754826, %v2019
    %v2023 = vor.u32 %v2021, %v2022
    %v2024 = vshll.u32 2475754826, %v2018
    %v2025 = vshrl.u32 2131351028, %v2019
    %v2026 = vor.u32 %v2024, %v2025
    %v2027 = vshll.u32 2131351028, %v2018
    %v2028 = vshrl.u32 2102212464, %v2019
    %v2029 = vor.u32 %v2027, %v2028
    %v2030 = vshll.u32 2102212464, %v2018
    %v2031 = vshrl.u32 920167782, %v2019
    %v2032 = vor.u32 %v2030, %v2031
    %v2033 = vshll.u32 920167782, %v2018
    %v2034 = vshrl.u32 1326507024, %v2019
    %v2035 = vor.u32 %v2033, %v2034
    %vm2036 = vcmp.lt.s32.totalorder %v2017, 1
    %vm2037 = vcmp.lt.s32.totalorder %v2017, 2
    %vm2038 = vcmp.lt.s32.totalorder %v2017, 3
    %vm2039 = vcmp.lt.s32.totalorder %v2017, 4
    %v2040 = vsel %vm2036, %v2020, %v2023
    %v2041 = vsel %vm2039, %v2029, 2102212464
    %v2042 = vsel %vm2038, %v2026, %v2041
    %v2043 = vsel %vm2037, %v2040, %v2042
    %v2044 = vsel %vm2036, %v2023, %v2026
    %v2045 = vsel %vm2039, %v2032, 920167782
    %v2046 = vsel %vm2038, %v2029, %v2045
    %v2047 = vsel %vm2037, %v2044, %v2046
    %v2048 = vsel %vm2036, %v2026, %v2029
    %v2049 = vsel %vm2039, %v2035, 1326507024
    %v2050 = vsel %vm2038, %v2032, %v2049
    %v2051 = vsel %vm2037, %v2048, %v2050
    %v2052 = vshll.u32 %v2012, 8
    %v2053 = vmul.u32.u64.compose %v2052, %v2051
    %v2054 = vextract.low.u32 %v2053
    %v2055 = vextract.high.u32 %v2053
    %v2056 = vmul.u32.u64.compose %v2052, %v2047
    %v2057 = vextract.low.u32 %v2056
    %v2058 = vextract.high.u32 %v2056
    %v2059 = vmul.u32 %v2052, %v2043
    %v2060 = vadd.s32 %v2055, %v2057
    %vm2061 = vc.u32 %v2055, %v2057
    %v2062 = vadd.s32 %v2058, 1
    %v2063 = vsel %vm2061, %v2062, %v2058
    %v2064 = vadd.s32 %v2059, %v2063
    %v2065 = vadd.s32 %v2064, 536870912
    %v2066 = vshrl.u32 %v2065, 30
    %v2067 = vshll.u32 %v2066, 30
    %v2068 = vsub.s32 %v2064, %v2067
    %vm2069 = vcmp.lt.s32.totalorder %v2068, 0
    %v2070 = vsub.s32 0, %v2068
    %v2071 = vsel %vm2069, %v2070, %v2068
    %v2072 = vclz %v2071
    %v2073 = vsub.s32 %v2072, 2
    %vm2074 = vcmp.gt.s32.totalorder 0, %v2073
    %v2075 = vsel %vm2074, 0, %v2073
    %v2076 = vsub.s32 32, %v2075
    %v2077 = vshll.u32 %v2068, %v2075
    %v2078 = vshrl.u32 %v2060, %v2076
    %v2079 = vor.u32 %v2077, %v2078
    %v2080 = vsub.s32 4294967266, %v2075
    %v2081 = vadd.s32 %v2080, 127
    %v2082 = vshll.u32 %v2081, 23
    %v2083 = vor.u32 4788187, %v2082
    %v2084 = vand.u32 2147483647, %v2083
    %v2086 = vcvt.s32.f32 %v2079
    %v2087 = vmul.f32 %v2086, %v2084
    %v2088 = vxor.u32 %v2087, 2147483648
    %v2089 = vsel %vm2006, %v2088, %v2087
    %v2090 = vsub.s32 4, %v2066
    %v2091 = vsel %vm2006, %v2090, %v2066
    %v2092 = vsel %vm2005, %v48, %v2089
    %v2093 = vsel %vm2005, 0, %v2091
    %v2094 = vcosq.f32.pop %v2092
    %v2095 = vsinq.f32.pop %v2092
    %vm2096 = vweird.f32 %v48
    %v2097 = vand.u32 %v2093, 3
    %vm2098 = vcmp.lt.s32.totalorder %v2097, 2
    %vm2099 = vcmp.eq.s32.totalorder %v2097, 0
    %v2100 = vxor.u32 %v2095, 2147483648
    %v2101 = vsel %vm2099, %v2094, %v2100
    %vm2102 = vcmp.eq.s32.totalorder %v2097, 2
    %v2103 = vxor.u32 %v2094, 2147483648
    %v2104 = vsel %vm2102, %v2103, %v2095
    %v2105 = vsel %vm2098, %v2101, %v2104
    %v2106 = vsel %vm2096, nan, %v2105
    %v2107 = vand.u32 2147483647, %v49
    %vm2108 = vcmp.le.f32.partialorder %v2107, 0.7853982
    %vm2109 = vcmp.lt.s32.totalorder %v49, 0
    %v2110 = vand.u32 %v49, 2139095040
    %v2111 = vshrl.u32 %v2110, 23
    %v2112 = vsub.s32 %v2111, 127
    %v2113 = vand.u32 2147483647, %v49
    %v2114 = vand.u32 %v2113, 8388607
    %v2115 = vor.u32 %v2114, 8388608
    %v2116 = vsub.s32 0, %v2115
    %v2117 = vadd.s32 %v2112, 1
    %vm2118 = vcmp.gt.s32.totalorder %v2117, 0
    %v2119 = vsel %vm2118, %v2117, 0
    %v2120 = vshrl.u32 %v2119, 5
    %v2121 = vand.u32 %v2119, 31
    %v2122 = vsub.s32 32, %v2121
    %v2123 = vshrl.u32 683565275, %v2122
    %v2124 = vshll.u32 683565275, %v2121
    %v2125 = vshrl.u32 2475754826, %v2122
    %v2126 = vor.u32 %v2124, %v2125
    %v2127 = vshll.u32 2475754826, %v2121
    %v2128 = vshrl.u32 2131351028, %v2122
    %v2129 = vor.u32 %v2127, %v2128
    %v2130 = vshll.u32 2131351028, %v2121
    %v2131 = vshrl.u32 2102212464, %v2122
    %v2132 = vor.u32 %v2130, %v2131
    %v2133 = vshll.u32 2102212464, %v2121
    %v2134 = vshrl.u32 920167782, %v2122
    %v2135 = vor.u32 %v2133, %v2134
    %v2136 = vshll.u32 920167782, %v2121
    %v2137 = vshrl.u32 1326507024, %v2122
    %v2138 = vor.u32 %v2136, %v2137
    %vm2139 = vcmp.lt.s32.totalorder %v2120, 1
    %vm2140 = vcmp.lt.s32.totalorder %v2120, 2
    %vm2141 = vcmp.lt.s32.totalorder %v2120, 3
    %vm2142 = vcmp.lt.s32.totalorder %v2120, 4
    %v2143 = vsel %vm2139, %v2123, %v2126
    %v2144 = vsel %vm2142, %v2132, 2102212464
    %v2145 = vsel %vm2141, %v2129, %v2144
    %v2146 = vsel %vm2140, %v2143, %v2145
    %v2147 = vsel %vm2139, %v2126, %v2129
    %v2148 = vsel %vm2142, %v2135, 920167782
    %v2149 = vsel %vm2141, %v2132, %v2148
    %v2150 = vsel %vm2140, %v2147, %v2149
    %v2151 = vsel %vm2139, %v2129, %v2132
    %v2152 = vsel %vm2142, %v2138, 1326507024
    %v2153 = vsel %vm2141, %v2135, %v2152
    %v2154 = vsel %vm2140, %v2151, %v2153
    %v2155 = vshll.u32 %v2115, 8
    %v2156 = vmul.u32.u64.compose %v2155, %v2154
    %v2157 = vextract.low.u32 %v2156
    %v2158 = vextract.high.u32 %v2156
    %v2159 = vmul.u32.u64.compose %v2155, %v2150
    %v2160 = vextract.low.u32 %v2159
    %v2161 = vextract.high.u32 %v2159
    %v2162 = vmul.u32 %v2155, %v2146
    %v2163 = vadd.s32 %v2158, %v2160
    %vm2164 = vc.u32 %v2158, %v2160
    %v2165 = vadd.s32 %v2161, 1
    %v2166 = vsel %vm2164, %v2165, %v2161
    %v2167 = vadd.s32 %v2162, %v2166
    %v2168 = vadd.s32 %v2167, 536870912
    %v2169 = vshrl.u32 %v2168, 30
    %v2170 = vshll.u32 %v2169, 30
    %v2171 = vsub.s32 %v2167, %v2170
    %vm2172 = vcmp.lt.s32.totalorder %v2171, 0
    %v2173 = vsub.s32 0, %v2171
    %v2174 = vsel %vm2172, %v2173, %v2171
    %v2175 = vclz %v2174
    %v2176 = vsub.s32 %v2175, 2
    %vm2177 = vcmp.gt.s32.totalorder 0, %v2176
    %v2178 = vsel %vm2177, 0, %v2176
    %v2179 = vsub.s32 32, %v2178
    %v2180 = vshll.u32 %v2171, %v2178
    %v2181 = vshrl.u32 %v2163, %v2179
    %v2182 = vor.u32 %v2180, %v2181
    %v2183 = vsub.s32 4294967266, %v2178
    %v2184 = vadd.s32 %v2183, 127
    %v2185 = vshll.u32 %v2184, 23
    %v2186 = vor.u32 4788187, %v2185
    %v2187 = vand.u32 2147483647, %v2186
    %v2189 = vcvt.s32.f32 %v2182
    %v2190 = vmul.f32 %v2189, %v2187
    %v2191 = vxor.u32 %v2190, 2147483648
    %v2192 = vsel %vm2109, %v2191, %v2190
    %v2193 = vsub.s32 4, %v2169
    %v2194 = vsel %vm2109, %v2193, %v2169
    %v2195 = vsel %vm2108, %v49, %v2192
    %v2196 = vsel %vm2108, 0, %v2194
    %v2197 = vcosq.f32.pop %v2195
    %v2198 = vsinq.f32.pop %v2195
    %vm2199 = vweird.f32 %v49
    %v2200 = vand.u32 %v2196, 3
    %vm2201 = vcmp.lt.s32.totalorder %v2200, 2
    %vm2202 = vcmp.eq.s32.totalorder %v2200, 0
    %v2203 = vxor.u32 %v2198, 2147483648
    %v2204 = vsel %vm2202, %v2197, %v2203
    %vm2205 = vcmp.eq.s32.totalorder %v2200, 2
    %v2206 = vxor.u32 %v2197, 2147483648
    %v2207 = vsel %vm2205, %v2206, %v2198
    %v2208 = vsel %vm2201, %v2204, %v2207
    %v2209 = vsel %vm2199, nan, %v2208
    %v2210 = vand.u32 2147483647, %v50
    %vm2211 = vcmp.le.f32.partialorder %v2210, 0.7853982
    %vm2212 = vcmp.lt.s32.totalorder %v50, 0
    %v2213 = vand.u32 %v50, 2139095040
    %v2214 = vshrl.u32 %v2213, 23
    %v2215 = vsub.s32 %v2214, 127
    %v2216 = vand.u32 2147483647, %v50
    %v2217 = vand.u32 %v2216, 8388607
    %v2218 = vor.u32 %v2217, 8388608
    %v2219 = vsub.s32 0, %v2218
    %v2220 = vadd.s32 %v2215, 1
    %vm2221 = vcmp.gt.s32.totalorder %v2220, 0
    %v2222 = vsel %vm2221, %v2220, 0
    %v2223 = vshrl.u32 %v2222, 5
    %v2224 = vand.u32 %v2222, 31
    %v2225 = vsub.s32 32, %v2224
    %v2226 = vshrl.u32 683565275, %v2225
    %v2227 = vshll.u32 683565275, %v2224
    %v2228 = vshrl.u32 2475754826, %v2225
    %v2229 = vor.u32 %v2227, %v2228
    %v2230 = vshll.u32 2475754826, %v2224
    %v2231 = vshrl.u32 2131351028, %v2225
    %v2232 = vor.u32 %v2230, %v2231
    %v2233 = vshll.u32 2131351028, %v2224
    %v2234 = vshrl.u32 2102212464, %v2225
    %v2235 = vor.u32 %v2233, %v2234
    %v2236 = vshll.u32 2102212464, %v2224
    %v2237 = vshrl.u32 920167782, %v2225
    %v2238 = vor.u32 %v2236, %v2237
    %v2239 = vshll.u32 920167782, %v2224
    %v2240 = vshrl.u32 1326507024, %v2225
    %v2241 = vor.u32 %v2239, %v2240
    %vm2242 = vcmp.lt.s32.totalorder %v2223, 1
    %vm2243 = vcmp.lt.s32.totalorder %v2223, 2
    %vm2244 = vcmp.lt.s32.totalorder %v2223, 3
    %vm2245 = vcmp.lt.s32.totalorder %v2223, 4
    %v2246 = vsel %vm2242, %v2226, %v2229
    %v2247 = vsel %vm2245, %v2235, 2102212464
    %v2248 = vsel %vm2244, %v2232, %v2247
    %v2249 = vsel %vm2243, %v2246, %v2248
    %v2250 = vsel %vm2242, %v2229, %v2232
    %v2251 = vsel %vm2245, %v2238, 920167782
    %v2252 = vsel %vm2244, %v2235, %v2251
    %v2253 = vsel %vm2243, %v2250, %v2252
    %v2254 = vsel %vm2242, %v2232, %v2235
    %v2255 = vsel %vm2245, %v2241, 1326507024
    %v2256 = vsel %vm2244, %v2238, %v2255
    %v2257 = vsel %vm2243, %v2254, %v2256
    %v2258 = vshll.u32 %v2218, 8
    %v2259 = vmul.u32.u64.compose %v2258, %v2257
    %v2260 = vextract.low.u32 %v2259
    %v2261 = vextract.high.u32 %v2259
    %v2262 = vmul.u32.u64.compose %v2258, %v2253
    %v2263 = vextract.low.u32 %v2262
    %v2264 = vextract.high.u32 %v2262
    %v2265 = vmul.u32 %v2258, %v2249
    %v2266 = vadd.s32 %v2261, %v2263
    %vm2267 = vc.u32 %v2261, %v2263
    %v2268 = vadd.s32 %v2264, 1
    %v2269 = vsel %vm2267, %v2268, %v2264
    %v2270 = vadd.s32 %v2265, %v2269
    %v2271 = vadd.s32 %v2270, 536870912
    %v2272 = vshrl.u32 %v2271, 30
    %v2273 = vshll.u32 %v2272, 30
    %v2274 = vsub.s32 %v2270, %v2273
    %vm2275 = vcmp.lt.s32.totalorder %v2274, 0
    %v2276 = vsub.s32 0, %v2274
    %v2277 = vsel %vm2275, %v2276, %v2274
    %v2278 = vclz %v2277
    %v2279 = vsub.s32 %v2278, 2
    %vm2280 = vcmp.gt.s32.totalorder 0, %v2279
    %v2281 = vsel %vm2280, 0, %v2279
    %v2282 = vsub.s32 32, %v2281
    %v2283 = vshll.u32 %v2274, %v2281
    %v2284 = vshrl.u32 %v2266, %v2282
    %v2285 = vor.u32 %v2283, %v2284
    %v2286 = vsub.s32 4294967266, %v2281
    %v2287 = vadd.s32 %v2286, 127
    %v2288 = vshll.u32 %v2287, 23
    %v2289 = vor.u32 4788187, %v2288
    %v2290 = vand.u32 2147483647, %v2289
    %v2292 = vcvt.s32.f32 %v2285
    %v2293 = vmul.f32 %v2292, %v2290
    %v2294 = vxor.u32 %v2293, 2147483648
    %v2295 = vsel %vm2212, %v2294, %v2293
    %v2296 = vsub.s32 4, %v2272
    %v2297 = vsel %vm2212, %v2296, %v2272
    %v2298 = vsel %vm2211, %v50, %v2295
    %v2299 = vsel %vm2211, 0, %v2297
    %v2300 = vcosq.f32.pop %v2298
    %v2301 = vsinq.f32.pop %v2298
    %vm2302 = vweird.f32 %v50
    %v2303 = vand.u32 %v2299, 3
    %vm2304 = vcmp.lt.s32.totalorder %v2303, 2
    %vm2305 = vcmp.eq.s32.totalorder %v2303, 0
    %v2306 = vxor.u32 %v2301, 2147483648
    %v2307 = vsel %vm2305, %v2300, %v2306
    %vm2308 = vcmp.eq.s32.totalorder %v2303, 2
    %v2309 = vxor.u32 %v2300, 2147483648
    %v2310 = vsel %vm2308, %v2309, %v2301
    %v2311 = vsel %vm2304, %v2307, %v2310
    %v2312 = vsel %vm2302, nan, %v2311
    %v2313 = vand.u32 2147483647, %v51
    %vm2314 = vcmp.le.f32.partialorder %v2313, 0.7853982
    %vm2315 = vcmp.lt.s32.totalorder %v51, 0
    %v2316 = vand.u32 %v51, 2139095040
    %v2317 = vshrl.u32 %v2316, 23
    %v2318 = vsub.s32 %v2317, 127
    %v2319 = vand.u32 2147483647, %v51
    %v2320 = vand.u32 %v2319, 8388607
    %v2321 = vor.u32 %v2320, 8388608
    %v2322 = vsub.s32 0, %v2321
    %v2323 = vadd.s32 %v2318, 1
    %vm2324 = vcmp.gt.s32.totalorder %v2323, 0
    %v2325 = vsel %vm2324, %v2323, 0
    %v2326 = vshrl.u32 %v2325, 5
    %v2327 = vand.u32 %v2325, 31
    %v2328 = vsub.s32 32, %v2327
    %v2329 = vshrl.u32 683565275, %v2328
    %v2330 = vshll.u32 683565275, %v2327
    %v2331 = vshrl.u32 2475754826, %v2328
    %v2332 = vor.u32 %v2330, %v2331
    %v2333 = vshll.u32 2475754826, %v2327
    %v2334 = vshrl.u32 2131351028, %v2328
    %v2335 = vor.u32 %v2333, %v2334
    %v2336 = vshll.u32 2131351028, %v2327
    %v2337 = vshrl.u32 2102212464, %v2328
    %v2338 = vor.u32 %v2336, %v2337
    %v2339 = vshll.u32 2102212464, %v2327
    %v2340 = vshrl.u32 920167782, %v2328
    %v2341 = vor.u32 %v2339, %v2340
    %v2342 = vshll.u32 920167782, %v2327
    %v2343 = vshrl.u32 1326507024, %v2328
    %v2344 = vor.u32 %v2342, %v2343
    %vm2345 = vcmp.lt.s32.totalorder %v2326, 1
    %vm2346 = vcmp.lt.s32.totalorder %v2326, 2
    %vm2347 = vcmp.lt.s32.totalorder %v2326, 3
    %vm2348 = vcmp.lt.s32.totalorder %v2326, 4
    %v2349 = vsel %vm2345, %v2329, %v2332
    %v2350 = vsel %vm2348, %v2338, 2102212464
    %v2351 = vsel %vm2347, %v2335, %v2350
    %v2352 = vsel %vm2346, %v2349, %v2351
    %v2353 = vsel %vm2345, %v2332, %v2335
    %v2354 = vsel %vm2348, %v2341, 920167782
    %v2355 = vsel %vm2347, %v2338, %v2354
    %v2356 = vsel %vm2346, %v2353, %v2355
    %v2357 = vsel %vm2345, %v2335, %v2338
    %v2358 = vsel %vm2348, %v2344, 1326507024
    %v2359 = vsel %vm2347, %v2341, %v2358
    %v2360 = vsel %vm2346, %v2357, %v2359
    %v2361 = vshll.u32 %v2321, 8
    %v2362 = vmul.u32.u64.compose %v2361, %v2360
    %v2363 = vextract.low.u32 %v2362
    %v2364 = vextract.high.u32 %v2362
    %v2365 = vmul.u32.u64.compose %v2361, %v2356
    %v2366 = vextract.low.u32 %v2365
    %v2367 = vextract.high.u32 %v2365
    %v2368 = vmul.u32 %v2361, %v2352
    %v2369 = vadd.s32 %v2364, %v2366
    %vm2370 = vc.u32 %v2364, %v2366
    %v2371 = vadd.s32 %v2367, 1
    %v2372 = vsel %vm2370, %v2371, %v2367
    %v2373 = vadd.s32 %v2368, %v2372
    %v2374 = vadd.s32 %v2373, 536870912
    %v2375 = vshrl.u32 %v2374, 30
    %v2376 = vshll.u32 %v2375, 30
    %v2377 = vsub.s32 %v2373, %v2376
    %vm2378 = vcmp.lt.s32.totalorder %v2377, 0
    %v2379 = vsub.s32 0, %v2377
    %v2380 = vsel %vm2378, %v2379, %v2377
    %v2381 = vclz %v2380
    %v2382 = vsub.s32 %v2381, 2
    %vm2383 = vcmp.gt.s32.totalorder 0, %v2382
    %v2384 = vsel %vm2383, 0, %v2382
    %v2385 = vsub.s32 32, %v2384
    %v2386 = vshll.u32 %v2377, %v2384
    %v2387 = vshrl.u32 %v2369, %v2385
    %v2388 = vor.u32 %v2386, %v2387
    %v2389 = vsub.s32 4294967266, %v2384
    %v2390 = vadd.s32 %v2389, 127
    %v2391 = vshll.u32 %v2390, 23
    %v2392 = vor.u32 4788187, %v2391
    %v2393 = vand.u32 2147483647, %v2392
    %v2395 = vcvt.s32.f32 %v2388
    %v2396 = vmul.f32 %v2395, %v2393
    %v2397 = vxor.u32 %v2396, 2147483648
    %v2398 = vsel %vm2315, %v2397, %v2396
    %v2399 = vsub.s32 4, %v2375
    %v2400 = vsel %vm2315, %v2399, %v2375
    %v2401 = vsel %vm2314, %v51, %v2398
    %v2402 = vsel %vm2314, 0, %v2400
    %v2403 = vcosq.f32.pop %v2401
    %v2404 = vsinq.f32.pop %v2401
    %vm2405 = vweird.f32 %v51
    %v2406 = vand.u32 %v2402, 3
    %vm2407 = vcmp.lt.s32.totalorder %v2406, 2
    %vm2408 = vcmp.eq.s32.totalorder %v2406, 0
    %v2409 = vxor.u32 %v2404, 2147483648
    %v2410 = vsel %vm2408, %v2403, %v2409
    %vm2411 = vcmp.eq.s32.totalorder %v2406, 2
    %v2412 = vxor.u32 %v2403, 2147483648
    %v2413 = vsel %vm2411, %v2412, %v2404
    %v2414 = vsel %vm2407, %v2410, %v2413
    %v2415 = vsel %vm2405, nan, %v2414
    %v2416 = vand.u32 2147483647, %v52
    %vm2417 = vcmp.le.f32.partialorder %v2416, 0.7853982
    %vm2418 = vcmp.lt.s32.totalorder %v52, 0
    %v2419 = vand.u32 %v52, 2139095040
    %v2420 = vshrl.u32 %v2419, 23
    %v2421 = vsub.s32 %v2420, 127
    %v2422 = vand.u32 2147483647, %v52
    %v2423 = vand.u32 %v2422, 8388607
    %v2424 = vor.u32 %v2423, 8388608
    %v2425 = vsub.s32 0, %v2424
    %v2426 = vadd.s32 %v2421, 1
    %vm2427 = vcmp.gt.s32.totalorder %v2426, 0
    %v2428 = vsel %vm2427, %v2426, 0
    %v2429 = vshrl.u32 %v2428, 5
    %v2430 = vand.u32 %v2428, 31
    %v2431 = vsub.s32 32, %v2430
    %v2432 = vshrl.u32 683565275, %v2431
    %v2433 = vshll.u32 683565275, %v2430
    %v2434 = vshrl.u32 2475754826, %v2431
    %v2435 = vor.u32 %v2433, %v2434
    %v2436 = vshll.u32 2475754826, %v2430
    %v2437 = vshrl.u32 2131351028, %v2431
    %v2438 = vor.u32 %v2436, %v2437
    %v2439 = vshll.u32 2131351028, %v2430
    %v2440 = vshrl.u32 2102212464, %v2431
    %v2441 = vor.u32 %v2439, %v2440
    %v2442 = vshll.u32 2102212464, %v2430
    %v2443 = vshrl.u32 920167782, %v2431
    %v2444 = vor.u32 %v2442, %v2443
    %v2445 = vshll.u32 920167782, %v2430
    %v2446 = vshrl.u32 1326507024, %v2431
    %v2447 = vor.u32 %v2445, %v2446
    %vm2448 = vcmp.lt.s32.totalorder %v2429, 1
    %vm2449 = vcmp.lt.s32.totalorder %v2429, 2
    %vm2450 = vcmp.lt.s32.totalorder %v2429, 3
    %vm2451 = vcmp.lt.s32.totalorder %v2429, 4
    %v2452 = vsel %vm2448, %v2432, %v2435
    %v2453 = vsel %vm2451, %v2441, 2102212464
    %v2454 = vsel %vm2450, %v2438, %v2453
    %v2455 = vsel %vm2449, %v2452, %v2454
    %v2456 = vsel %vm2448, %v2435, %v2438
    %v2457 = vsel %vm2451, %v2444, 920167782
    %v2458 = vsel %vm2450, %v2441, %v2457
    %v2459 = vsel %vm2449, %v2456, %v2458
    %v2460 = vsel %vm2448, %v2438, %v2441
    %v2461 = vsel %vm2451, %v2447, 1326507024
    %v2462 = vsel %vm2450, %v2444, %v2461
    %v2463 = vsel %vm2449, %v2460, %v2462
    %v2464 = vshll.u32 %v2424, 8
    %v2465 = vmul.u32.u64.compose %v2464, %v2463
    %v2466 = vextract.low.u32 %v2465
    %v2467 = vextract.high.u32 %v2465
    %v2468 = vmul.u32.u64.compose %v2464, %v2459
    %v2469 = vextract.low.u32 %v2468
    %v2470 = vextract.high.u32 %v2468
    %v2471 = vmul.u32 %v2464, %v2455
    %v2472 = vadd.s32 %v2467, %v2469
    %vm2473 = vc.u32 %v2467, %v2469
    %v2474 = vadd.s32 %v2470, 1
    %v2475 = vsel %vm2473, %v2474, %v2470
    %v2476 = vadd.s32 %v2471, %v2475
    %v2477 = vadd.s32 %v2476, 536870912
    %v2478 = vshrl.u32 %v2477, 30
    %v2479 = vshll.u32 %v2478, 30
    %v2480 = vsub.s32 %v2476, %v2479
    %vm2481 = vcmp.lt.s32.totalorder %v2480, 0
    %v2482 = vsub.s32 0, %v2480
    %v2483 = vsel %vm2481, %v2482, %v2480
    %v2484 = vclz %v2483
    %v2485 = vsub.s32 %v2484, 2
    %vm2486 = vcmp.gt.s32.totalorder 0, %v2485
    %v2487 = vsel %vm2486, 0, %v2485
    %v2488 = vsub.s32 32, %v2487
    %v2489 = vshll.u32 %v2480, %v2487
    %v2490 = vshrl.u32 %v2472, %v2488
    %v2491 = vor.u32 %v2489, %v2490
    %v2492 = vsub.s32 4294967266, %v2487
    %v2493 = vadd.s32 %v2492, 127
    %v2494 = vshll.u32 %v2493, 23
    %v2495 = vor.u32 4788187, %v2494
    %v2496 = vand.u32 2147483647, %v2495
    %v2498 = vcvt.s32.f32 %v2491
    %v2499 = vmul.f32 %v2498, %v2496
    %v2500 = vxor.u32 %v2499, 2147483648
    %v2501 = vsel %vm2418, %v2500, %v2499
    %v2502 = vsub.s32 4, %v2478
    %v2503 = vsel %vm2418, %v2502, %v2478
    %v2504 = vsel %vm2417, %v52, %v2501
    %v2505 = vsel %vm2417, 0, %v2503
    %v2506 = vcosq.f32.pop %v2504
    %v2507 = vsinq.f32.pop %v2504
    %vm2508 = vweird.f32 %v52
    %v2509 = vand.u32 %v2505, 3
    %vm2510 = vcmp.lt.s32.totalorder %v2509, 2
    %vm2511 = vcmp.eq.s32.totalorder %v2509, 0
    %v2512 = vxor.u32 %v2507, 2147483648
    %v2513 = vsel %vm2511, %v2506, %v2512
    %vm2514 = vcmp.eq.s32.totalorder %v2509, 2
    %v2515 = vxor.u32 %v2506, 2147483648
    %v2516 = vsel %vm2514, %v2515, %v2507
    %v2517 = vsel %vm2510, %v2513, %v2516
    %v2518 = vsel %vm2508, nan, %v2517
    %v2519 = vand.u32 2147483647, %v53
    %vm2520 = vcmp.le.f32.partialorder %v2519, 0.7853982
    %vm2521 = vcmp.lt.s32.totalorder %v53, 0
    %v2522 = vand.u32 %v53, 2139095040
    %v2523 = vshrl.u32 %v2522, 23
    %v2524 = vsub.s32 %v2523, 127
    %v2525 = vand.u32 2147483647, %v53
    %v2526 = vand.u32 %v2525, 8388607
    %v2527 = vor.u32 %v2526, 8388608
    %v2528 = vsub.s32 0, %v2527
    %v2529 = vadd.s32 %v2524, 1
    %vm2530 = vcmp.gt.s32.totalorder %v2529, 0
    %v2531 = vsel %vm2530, %v2529, 0
    %v2532 = vshrl.u32 %v2531, 5
    %v2533 = vand.u32 %v2531, 31
    %v2534 = vsub.s32 32, %v2533
    %v2535 = vshrl.u32 683565275, %v2534
    %v2536 = vshll.u32 683565275, %v2533
    %v2537 = vshrl.u32 2475754826, %v2534
    %v2538 = vor.u32 %v2536, %v2537
    %v2539 = vshll.u32 2475754826, %v2533
    %v2540 = vshrl.u32 2131351028, %v2534
    %v2541 = vor.u32 %v2539, %v2540
    %v2542 = vshll.u32 2131351028, %v2533
    %v2543 = vshrl.u32 2102212464, %v2534
    %v2544 = vor.u32 %v2542, %v2543
    %v2545 = vshll.u32 2102212464, %v2533
    %v2546 = vshrl.u32 920167782, %v2534
    %v2547 = vor.u32 %v2545, %v2546
    %v2548 = vshll.u32 920167782, %v2533
    %v2549 = vshrl.u32 1326507024, %v2534
    %v2550 = vor.u32 %v2548, %v2549
    %vm2551 = vcmp.lt.s32.totalorder %v2532, 1
    %vm2552 = vcmp.lt.s32.totalorder %v2532, 2
    %vm2553 = vcmp.lt.s32.totalorder %v2532, 3
    %vm2554 = vcmp.lt.s32.totalorder %v2532, 4
    %v2555 = vsel %vm2551, %v2535, %v2538
    %v2556 = vsel %vm2554, %v2544, 2102212464
    %v2557 = vsel %vm2553, %v2541, %v2556
    %v2558 = vsel %vm2552, %v2555, %v2557
    %v2559 = vsel %vm2551, %v2538, %v2541
    %v2560 = vsel %vm2554, %v2547, 920167782
    %v2561 = vsel %vm2553, %v2544, %v2560
    %v2562 = vsel %vm2552, %v2559, %v2561
    %v2563 = vsel %vm2551, %v2541, %v2544
    %v2564 = vsel %vm2554, %v2550, 1326507024
    %v2565 = vsel %vm2553, %v2547, %v2564
    %v2566 = vsel %vm2552, %v2563, %v2565
    %v2567 = vshll.u32 %v2527, 8
    %v2568 = vmul.u32.u64.compose %v2567, %v2566
    %v2569 = vextract.low.u32 %v2568
    %v2570 = vextract.high.u32 %v2568
    %v2571 = vmul.u32.u64.compose %v2567, %v2562
    %v2572 = vextract.low.u32 %v2571
    %v2573 = vextract.high.u32 %v2571
    %v2574 = vmul.u32 %v2567, %v2558
    %v2575 = vadd.s32 %v2570, %v2572
    %vm2576 = vc.u32 %v2570, %v2572
    %v2577 = vadd.s32 %v2573, 1
    %v2578 = vsel %vm2576, %v2577, %v2573
    %v2579 = vadd.s32 %v2574, %v2578
    %v2580 = vadd.s32 %v2579, 536870912
    %v2581 = vshrl.u32 %v2580, 30
    %v2582 = vshll.u32 %v2581, 30
    %v2583 = vsub.s32 %v2579, %v2582
    %vm2584 = vcmp.lt.s32.totalorder %v2583, 0
    %v2585 = vsub.s32 0, %v2583
    %v2586 = vsel %vm2584, %v2585, %v2583
    %v2587 = vclz %v2586
    %v2588 = vsub.s32 %v2587, 2
    %vm2589 = vcmp.gt.s32.totalorder 0, %v2588
    %v2590 = vsel %vm2589, 0, %v2588
    %v2591 = vsub.s32 32, %v2590
    %v2592 = vshll.u32 %v2583, %v2590
    %v2593 = vshrl.u32 %v2575, %v2591
    %v2594 = vor.u32 %v2592, %v2593
    %v2595 = vsub.s32 4294967266, %v2590
    %v2596 = vadd.s32 %v2595, 127
    %v2597 = vshll.u32 %v2596, 23
    %v2598 = vor.u32 4788187, %v2597
    %v2599 = vand.u32 2147483647, %v2598
    %v2601 = vcvt.s32.f32 %v2594
    %v2602 = vmul.f32 %v2601, %v2599
    %v2603 = vxor.u32 %v2602, 2147483648
    %v2604 = vsel %vm2521, %v2603, %v2602
    %v2605 = vsub.s32 4, %v2581
    %v2606 = vsel %vm2521, %v2605, %v2581
    %v2607 = vsel %vm2520, %v53, %v2604
    %v2608 = vsel %vm2520, 0, %v2606
    %v2609 = vcosq.f32.pop %v2607
    %v2610 = vsinq.f32.pop %v2607
    %vm2611 = vweird.f32 %v53
    %v2612 = vand.u32 %v2608, 3
    %vm2613 = vcmp.lt.s32.totalorder %v2612, 2
    %vm2614 = vcmp.eq.s32.totalorder %v2612, 0
    %v2615 = vxor.u32 %v2610, 2147483648
    %v2616 = vsel %vm2614, %v2609, %v2615
    %vm2617 = vcmp.eq.s32.totalorder %v2612, 2
    %v2618 = vxor.u32 %v2609, 2147483648
    %v2619 = vsel %vm2617, %v2618, %v2610
    %v2620 = vsel %vm2613, %v2616, %v2619
    %v2621 = vsel %vm2611, nan, %v2620
    %v2622 = vand.u32 2147483647, %v54
    %vm2623 = vcmp.le.f32.partialorder %v2622, 0.7853982
    %vm2624 = vcmp.lt.s32.totalorder %v54, 0
    %v2625 = vand.u32 %v54, 2139095040
    %v2626 = vshrl.u32 %v2625, 23
    %v2627 = vsub.s32 %v2626, 127
    %v2628 = vand.u32 2147483647, %v54
    %v2629 = vand.u32 %v2628, 8388607
    %v2630 = vor.u32 %v2629, 8388608
    %v2631 = vsub.s32 0, %v2630
    %v2632 = vadd.s32 %v2627, 1
    %vm2633 = vcmp.gt.s32.totalorder %v2632, 0
    %v2634 = vsel %vm2633, %v2632, 0
    %v2635 = vshrl.u32 %v2634, 5
    %v2636 = vand.u32 %v2634, 31
    %v2637 = vsub.s32 32, %v2636
    %v2638 = vshrl.u32 683565275, %v2637
    %v2639 = vshll.u32 683565275, %v2636
    %v2640 = vshrl.u32 2475754826, %v2637
    %v2641 = vor.u32 %v2639, %v2640
    %v2642 = vshll.u32 2475754826, %v2636
    %v2643 = vshrl.u32 2131351028, %v2637
    %v2644 = vor.u32 %v2642, %v2643
    %v2645 = vshll.u32 2131351028, %v2636
    %v2646 = vshrl.u32 2102212464, %v2637
    %v2647 = vor.u32 %v2645, %v2646
    %v2648 = vshll.u32 2102212464, %v2636
    %v2649 = vshrl.u32 920167782, %v2637
    %v2650 = vor.u32 %v2648, %v2649
    %v2651 = vshll.u32 920167782, %v2636
    %v2652 = vshrl.u32 1326507024, %v2637
    %v2653 = vor.u32 %v2651, %v2652
    %vm2654 = vcmp.lt.s32.totalorder %v2635, 1
    %vm2655 = vcmp.lt.s32.totalorder %v2635, 2
    %vm2656 = vcmp.lt.s32.totalorder %v2635, 3
    %vm2657 = vcmp.lt.s32.totalorder %v2635, 4
    %v2658 = vsel %vm2654, %v2638, %v2641
    %v2659 = vsel %vm2657, %v2647, 2102212464
    %v2660 = vsel %vm2656, %v2644, %v2659
    %v2661 = vsel %vm2655, %v2658, %v2660
    %v2662 = vsel %vm2654, %v2641, %v2644
    %v2663 = vsel %vm2657, %v2650, 920167782
    %v2664 = vsel %vm2656, %v2647, %v2663
    %v2665 = vsel %vm2655, %v2662, %v2664
    %v2666 = vsel %vm2654, %v2644, %v2647
    %v2667 = vsel %vm2657, %v2653, 1326507024
    %v2668 = vsel %vm2656, %v2650, %v2667
    %v2669 = vsel %vm2655, %v2666, %v2668
    %v2670 = vshll.u32 %v2630, 8
    %v2671 = vmul.u32.u64.compose %v2670, %v2669
    %v2672 = vextract.low.u32 %v2671
    %v2673 = vextract.high.u32 %v2671
    %v2674 = vmul.u32.u64.compose %v2670, %v2665
    %v2675 = vextract.low.u32 %v2674
    %v2676 = vextract.high.u32 %v2674
    %v2677 = vmul.u32 %v2670, %v2661
    %v2678 = vadd.s32 %v2673, %v2675
    %vm2679 = vc.u32 %v2673, %v2675
    %v2680 = vadd.s32 %v2676, 1
    %v2681 = vsel %vm2679, %v2680, %v2676
    %v2682 = vadd.s32 %v2677, %v2681
    %v2683 = vadd.s32 %v2682, 536870912
    %v2684 = vshrl.u32 %v2683, 30
    %v2685 = vshll.u32 %v2684, 30
    %v2686 = vsub.s32 %v2682, %v2685
    %vm2687 = vcmp.lt.s32.totalorder %v2686, 0
    %v2688 = vsub.s32 0, %v2686
    %v2689 = vsel %vm2687, %v2688, %v2686
    %v2690 = vclz %v2689
    %v2691 = vsub.s32 %v2690, 2
    %vm2692 = vcmp.gt.s32.totalorder 0, %v2691
    %v2693 = vsel %vm2692, 0, %v2691
    %v2694 = vsub.s32 32, %v2693
    %v2695 = vshll.u32 %v2686, %v2693
    %v2696 = vshrl.u32 %v2678, %v2694
    %v2697 = vor.u32 %v2695, %v2696
    %v2698 = vsub.s32 4294967266, %v2693
    %v2699 = vadd.s32 %v2698, 127
    %v2700 = vshll.u32 %v2699, 23
    %v2701 = vor.u32 4788187, %v2700
    %v2702 = vand.u32 2147483647, %v2701
    %v2704 = vcvt.s32.f32 %v2697
    %v2705 = vmul.f32 %v2704, %v2702
    %v2706 = vxor.u32 %v2705, 2147483648
    %v2707 = vsel %vm2624, %v2706, %v2705
    %v2708 = vsub.s32 4, %v2684
    %v2709 = vsel %vm2624, %v2708, %v2684
    %v2710 = vsel %vm2623, %v54, %v2707
    %v2711 = vsel %vm2623, 0, %v2709
    %v2712 = vcosq.f32.pop %v2710
    %v2713 = vsinq.f32.pop %v2710
    %vm2714 = vweird.f32 %v54
    %v2715 = vand.u32 %v2711, 3
    %vm2716 = vcmp.lt.s32.totalorder %v2715, 2
    %vm2717 = vcmp.eq.s32.totalorder %v2715, 0
    %v2718 = vxor.u32 %v2713, 2147483648
    %v2719 = vsel %vm2717, %v2712, %v2718
    %vm2720 = vcmp.eq.s32.totalorder %v2715, 2
    %v2721 = vxor.u32 %v2712, 2147483648
    %v2722 = vsel %vm2720, %v2721, %v2713
    %v2723 = vsel %vm2716, %v2719, %v2722
    %v2724 = vsel %vm2714, nan, %v2723
    %v2725 = vand.u32 2147483647, %v55
    %vm2726 = vcmp.le.f32.partialorder %v2725, 0.7853982
    %vm2727 = vcmp.lt.s32.totalorder %v55, 0
    %v2728 = vand.u32 %v55, 2139095040
    %v2729 = vshrl.u32 %v2728, 23
    %v2730 = vsub.s32 %v2729, 127
    %v2731 = vand.u32 2147483647, %v55
    %v2732 = vand.u32 %v2731, 8388607
    %v2733 = vor.u32 %v2732, 8388608
    %v2734 = vsub.s32 0, %v2733
    %v2735 = vadd.s32 %v2730, 1
    %vm2736 = vcmp.gt.s32.totalorder %v2735, 0
    %v2737 = vsel %vm2736, %v2735, 0
    %v2738 = vshrl.u32 %v2737, 5
    %v2739 = vand.u32 %v2737, 31
    %v2740 = vsub.s32 32, %v2739
    %v2741 = vshrl.u32 683565275, %v2740
    %v2742 = vshll.u32 683565275, %v2739
    %v2743 = vshrl.u32 2475754826, %v2740
    %v2744 = vor.u32 %v2742, %v2743
    %v2745 = vshll.u32 2475754826, %v2739
    %v2746 = vshrl.u32 2131351028, %v2740
    %v2747 = vor.u32 %v2745, %v2746
    %v2748 = vshll.u32 2131351028, %v2739
    %v2749 = vshrl.u32 2102212464, %v2740
    %v2750 = vor.u32 %v2748, %v2749
    %v2751 = vshll.u32 2102212464, %v2739
    %v2752 = vshrl.u32 920167782, %v2740
    %v2753 = vor.u32 %v2751, %v2752
    %v2754 = vshll.u32 920167782, %v2739
    %v2755 = vshrl.u32 1326507024, %v2740
    %v2756 = vor.u32 %v2754, %v2755
    %vm2757 = vcmp.lt.s32.totalorder %v2738, 1
    %vm2758 = vcmp.lt.s32.totalorder %v2738, 2
    %vm2759 = vcmp.lt.s32.totalorder %v2738, 3
    %vm2760 = vcmp.lt.s32.totalorder %v2738, 4
    %v2761 = vsel %vm2757, %v2741, %v2744
    %v2762 = vsel %vm2760, %v2750, 2102212464
    %v2763 = vsel %vm2759, %v2747, %v2762
    %v2764 = vsel %vm2758, %v2761, %v2763
    %v2765 = vsel %vm2757, %v2744, %v2747
    %v2766 = vsel %vm2760, %v2753, 920167782
    %v2767 = vsel %vm2759, %v2750, %v2766
    %v2768 = vsel %vm2758, %v2765, %v2767
    %v2769 = vsel %vm2757, %v2747, %v2750
    %v2770 = vsel %vm2760, %v2756, 1326507024
    %v2771 = vsel %vm2759, %v2753, %v2770
    %v2772 = vsel %vm2758, %v2769, %v2771
    %v2773 = vshll.u32 %v2733, 8
    %v2774 = vmul.u32.u64.compose %v2773, %v2772
    %v2775 = vextract.low.u32 %v2774
    %v2776 = vextract.high.u32 %v2774
    %v2777 = vmul.u32.u64.compose %v2773, %v2768
    %v2778 = vextract.low.u32 %v2777
    %v2779 = vextract.high.u32 %v2777
    %v2780 = vmul.u32 %v2773, %v2764
    %v2781 = vadd.s32 %v2776, %v2778
    %vm2782 = vc.u32 %v2776, %v2778
    %v2783 = vadd.s32 %v2779, 1
    %v2784 = vsel %vm2782, %v2783, %v2779
    %v2785 = vadd.s32 %v2780, %v2784
    %v2786 = vadd.s32 %v2785, 536870912
    %v2787 = vshrl.u32 %v2786, 30
    %v2788 = vshll.u32 %v2787, 30
    %v2789 = vsub.s32 %v2785, %v2788
    %vm2790 = vcmp.lt.s32.totalorder %v2789, 0
    %v2791 = vsub.s32 0, %v2789
    %v2792 = vsel %vm2790, %v2791, %v2789
    %v2793 = vclz %v2792
    %v2794 = vsub.s32 %v2793, 2
    %vm2795 = vcmp.gt.s32.totalorder 0, %v2794
    %v2796 = vsel %vm2795, 0, %v2794
    %v2797 = vsub.s32 32, %v2796
    %v2798 = vshll.u32 %v2789, %v2796
    %v2799 = vshrl.u32 %v2781, %v2797
    %v2800 = vor.u32 %v2798, %v2799
    %v2801 = vsub.s32 4294967266, %v2796
    %v2802 = vadd.s32 %v2801, 127
    %v2803 = vshll.u32 %v2802, 23
    %v2804 = vor.u32 4788187, %v2803
    %v2805 = vand.u32 2147483647, %v2804
    %v2807 = vcvt.s32.f32 %v2800
    %v2808 = vmul.f32 %v2807, %v2805
    %v2809 = vxor.u32 %v2808, 2147483648
    %v2810 = vsel %vm2727, %v2809, %v2808
    %v2811 = vsub.s32 4, %v2787
    %v2812 = vsel %vm2727, %v2811, %v2787
    %v2813 = vsel %vm2726, %v55, %v2810
    %v2814 = vsel %vm2726, 0, %v2812
    %v2815 = vcosq.f32.pop %v2813
    %v2816 = vsinq.f32.pop %v2813
    %vm2817 = vweird.f32 %v55
    %v2818 = vand.u32 %v2814, 3
    %vm2819 = vcmp.lt.s32.totalorder %v2818, 2
    %vm2820 = vcmp.eq.s32.totalorder %v2818, 0
    %v2821 = vxor.u32 %v2816, 2147483648
    %v2822 = vsel %vm2820, %v2815, %v2821
    %vm2823 = vcmp.eq.s32.totalorder %v2818, 2
    %v2824 = vxor.u32 %v2815, 2147483648
    %v2825 = vsel %vm2823, %v2824, %v2816
    %v2826 = vsel %vm2819, %v2822, %v2825
    %v2827 = vsel %vm2817, nan, %v2826
    %v2828 = vand.u32 2147483647, %v56
    %vm2829 = vcmp.le.f32.partialorder %v2828, 0.7853982
    %vm2830 = vcmp.lt.s32.totalorder %v56, 0
    %v2831 = vand.u32 %v56, 2139095040
    %v2832 = vshrl.u32 %v2831, 23
    %v2833 = vsub.s32 %v2832, 127
    %v2834 = vand.u32 2147483647, %v56
    %v2835 = vand.u32 %v2834, 8388607
    %v2836 = vor.u32 %v2835, 8388608
    %v2837 = vsub.s32 0, %v2836
    %v2838 = vadd.s32 %v2833, 1
    %vm2839 = vcmp.gt.s32.totalorder %v2838, 0
    %v2840 = vsel %vm2839, %v2838, 0
    %v2841 = vshrl.u32 %v2840, 5
    %v2842 = vand.u32 %v2840, 31
    %v2843 = vsub.s32 32, %v2842
    %v2844 = vshrl.u32 683565275, %v2843
    %v2845 = vshll.u32 683565275, %v2842
    %v2846 = vshrl.u32 2475754826, %v2843
    %v2847 = vor.u32 %v2845, %v2846
    %v2848 = vshll.u32 2475754826, %v2842
    %v2849 = vshrl.u32 2131351028, %v2843
    %v2850 = vor.u32 %v2848, %v2849
    %v2851 = vshll.u32 2131351028, %v2842
    %v2852 = vshrl.u32 2102212464, %v2843
    %v2853 = vor.u32 %v2851, %v2852
    %v2854 = vshll.u32 2102212464, %v2842
    %v2855 = vshrl.u32 920167782, %v2843
    %v2856 = vor.u32 %v2854, %v2855
    %v2857 = vshll.u32 920167782, %v2842
    %v2858 = vshrl.u32 1326507024, %v2843
    %v2859 = vor.u32 %v2857, %v2858
    %vm2860 = vcmp.lt.s32.totalorder %v2841, 1
    %vm2861 = vcmp.lt.s32.totalorder %v2841, 2
    %vm2862 = vcmp.lt.s32.totalorder %v2841, 3
    %vm2863 = vcmp.lt.s32.totalorder %v2841, 4
    %v2864 = vsel %vm2860, %v2844, %v2847
    %v2865 = vsel %vm2863, %v2853, 2102212464
    %v2866 = vsel %vm2862, %v2850, %v2865
    %v2867 = vsel %vm2861, %v2864, %v2866
    %v2868 = vsel %vm2860, %v2847, %v2850
    %v2869 = vsel %vm2863, %v2856, 920167782
    %v2870 = vsel %vm2862, %v2853, %v2869
    %v2871 = vsel %vm2861, %v2868, %v2870
    %v2872 = vsel %vm2860, %v2850, %v2853
    %v2873 = vsel %vm2863, %v2859, 1326507024
    %v2874 = vsel %vm2862, %v2856, %v2873
    %v2875 = vsel %vm2861, %v2872, %v2874
    %v2876 = vshll.u32 %v2836, 8
    %v2877 = vmul.u32.u64.compose %v2876, %v2875
    %v2878 = vextract.low.u32 %v2877
    %v2879 = vextract.high.u32 %v2877
    %v2880 = vmul.u32.u64.compose %v2876, %v2871
    %v2881 = vextract.low.u32 %v2880
    %v2882 = vextract.high.u32 %v2880
    %v2883 = vmul.u32 %v2876, %v2867
    %v2884 = vadd.s32 %v2879, %v2881
    %vm2885 = vc.u32 %v2879, %v2881
    %v2886 = vadd.s32 %v2882, 1
    %v2887 = vsel %vm2885, %v2886, %v2882
    %v2888 = vadd.s32 %v2883, %v2887
    %v2889 = vadd.s32 %v2888, 536870912
    %v2890 = vshrl.u32 %v2889, 30
    %v2891 = vshll.u32 %v2890, 30
    %v2892 = vsub.s32 %v2888, %v2891
    %vm2893 = vcmp.lt.s32.totalorder %v2892, 0
    %v2894 = vsub.s32 0, %v2892
    %v2895 = vsel %vm2893, %v2894, %v2892
    %v2896 = vclz %v2895
    %v2897 = vsub.s32 %v2896, 2
    %vm2898 = vcmp.gt.s32.totalorder 0, %v2897
    %v2899 = vsel %vm2898, 0, %v2897
    %v2900 = vsub.s32 32, %v2899
    %v2901 = vshll.u32 %v2892, %v2899
    %v2902 = vshrl.u32 %v2884, %v2900
    %v2903 = vor.u32 %v2901, %v2902
    %v2904 = vsub.s32 4294967266, %v2899
    %v2905 = vadd.s32 %v2904, 127
    %v2906 = vshll.u32 %v2905, 23
    %v2907 = vor.u32 4788187, %v2906
    %v2908 = vand.u32 2147483647, %v2907
    %v2910 = vcvt.s32.f32 %v2903
    %v2911 = vmul.f32 %v2910, %v2908
    %v2912 = vxor.u32 %v2911, 2147483648
    %v2913 = vsel %vm2830, %v2912, %v2911
    %v2914 = vsub.s32 4, %v2890
    %v2915 = vsel %vm2830, %v2914, %v2890
    %v2916 = vsel %vm2829, %v56, %v2913
    %v2917 = vsel %vm2829, 0, %v2915
    %v2918 = vcosq.f32.pop %v2916
    %v2919 = vsinq.f32.pop %v2916
    %vm2920 = vweird.f32 %v56
    %v2921 = vand.u32 %v2917, 3
    %vm2922 = vcmp.lt.s32.totalorder %v2921, 2
    %vm2923 = vcmp.eq.s32.totalorder %v2921, 0
    %v2924 = vxor.u32 %v2919, 2147483648
    %v2925 = vsel %vm2923, %v2918, %v2924
    %vm2926 = vcmp.eq.s32.totalorder %v2921, 2
    %v2927 = vxor.u32 %v2918, 2147483648
    %v2928 = vsel %vm2926, %v2927, %v2919
    %v2929 = vsel %vm2922, %v2925, %v2928
    %v2930 = vsel %vm2920, nan, %v2929
    %v2931 = vand.u32 2147483647, %v57
    %vm2932 = vcmp.le.f32.partialorder %v2931, 0.7853982
    %vm2933 = vcmp.lt.s32.totalorder %v57, 0
    %v2934 = vand.u32 %v57, 2139095040
    %v2935 = vshrl.u32 %v2934, 23
    %v2936 = vsub.s32 %v2935, 127
    %v2937 = vand.u32 2147483647, %v57
    %v2938 = vand.u32 %v2937, 8388607
    %v2939 = vor.u32 %v2938, 8388608
    %v2940 = vsub.s32 0, %v2939
    %v2941 = vadd.s32 %v2936, 1
    %vm2942 = vcmp.gt.s32.totalorder %v2941, 0
    %v2943 = vsel %vm2942, %v2941, 0
    %v2944 = vshrl.u32 %v2943, 5
    %v2945 = vand.u32 %v2943, 31
    %v2946 = vsub.s32 32, %v2945
    %v2947 = vshrl.u32 683565275, %v2946
    %v2948 = vshll.u32 683565275, %v2945
    %v2949 = vshrl.u32 2475754826, %v2946
    %v2950 = vor.u32 %v2948, %v2949
    %v2951 = vshll.u32 2475754826, %v2945
    %v2952 = vshrl.u32 2131351028, %v2946
    %v2953 = vor.u32 %v2951, %v2952
    %v2954 = vshll.u32 2131351028, %v2945
    %v2955 = vshrl.u32 2102212464, %v2946
    %v2956 = vor.u32 %v2954, %v2955
    %v2957 = vshll.u32 2102212464, %v2945
    %v2958 = vshrl.u32 920167782, %v2946
    %v2959 = vor.u32 %v2957, %v2958
    %v2960 = vshll.u32 920167782, %v2945
    %v2961 = vshrl.u32 1326507024, %v2946
    %v2962 = vor.u32 %v2960, %v2961
    %vm2963 = vcmp.lt.s32.totalorder %v2944, 1
    %vm2964 = vcmp.lt.s32.totalorder %v2944, 2
    %vm2965 = vcmp.lt.s32.totalorder %v2944, 3
    %vm2966 = vcmp.lt.s32.totalorder %v2944, 4
    %v2967 = vsel %vm2963, %v2947, %v2950
    %v2968 = vsel %vm2966, %v2956, 2102212464
    %v2969 = vsel %vm2965, %v2953, %v2968
    %v2970 = vsel %vm2964, %v2967, %v2969
    %v2971 = vsel %vm2963, %v2950, %v2953
    %v2972 = vsel %vm2966, %v2959, 920167782
    %v2973 = vsel %vm2965, %v2956, %v2972
    %v2974 = vsel %vm2964, %v2971, %v2973
    %v2975 = vsel %vm2963, %v2953, %v2956
    %v2976 = vsel %vm2966, %v2962, 1326507024
    %v2977 = vsel %vm2965, %v2959, %v2976
    %v2978 = vsel %vm2964, %v2975, %v2977
    %v2979 = vshll.u32 %v2939, 8
    %v2980 = vmul.u32.u64.compose %v2979, %v2978
    %v2981 = vextract.low.u32 %v2980
    %v2982 = vextract.high.u32 %v2980
    %v2983 = vmul.u32.u64.compose %v2979, %v2974
    %v2984 = vextract.low.u32 %v2983
    %v2985 = vextract.high.u32 %v2983
    %v2986 = vmul.u32 %v2979, %v2970
    %v2987 = vadd.s32 %v2982, %v2984
    %vm2988 = vc.u32 %v2982, %v2984
    %v2989 = vadd.s32 %v2985, 1
    %v2990 = vsel %vm2988, %v2989, %v2985
    %v2991 = vadd.s32 %v2986, %v2990
    %v2992 = vadd.s32 %v2991, 536870912
    %v2993 = vshrl.u32 %v2992, 30
    %v2994 = vshll.u32 %v2993, 30
    %v2995 = vsub.s32 %v2991, %v2994
    %vm2996 = vcmp.lt.s32.totalorder %v2995, 0
    %v2997 = vsub.s32 0, %v2995
    %v2998 = vsel %vm2996, %v2997, %v2995
    %v2999 = vclz %v2998
    %v3000 = vsub.s32 %v2999, 2
    %vm3001 = vcmp.gt.s32.totalorder 0, %v3000
    %v3002 = vsel %vm3001, 0, %v3000
    %v3003 = vsub.s32 32, %v3002
    %v3004 = vshll.u32 %v2995, %v3002
    %v3005 = vshrl.u32 %v2987, %v3003
    %v3006 = vor.u32 %v3004, %v3005
    %v3007 = vsub.s32 4294967266, %v3002
    %v3008 = vadd.s32 %v3007, 127
    %v3009 = vshll.u32 %v3008, 23
    %v3010 = vor.u32 4788187, %v3009
    %v3011 = vand.u32 2147483647, %v3010
    %v3013 = vcvt.s32.f32 %v3006
    %v3014 = vmul.f32 %v3013, %v3011
    %v3015 = vxor.u32 %v3014, 2147483648
    %v3016 = vsel %vm2933, %v3015, %v3014
    %v3017 = vsub.s32 4, %v2993
    %v3018 = vsel %vm2933, %v3017, %v2993
    %v3019 = vsel %vm2932, %v57, %v3016
    %v3020 = vsel %vm2932, 0, %v3018
    %v3021 = vcosq.f32.pop %v3019
    %v3022 = vsinq.f32.pop %v3019
    %vm3023 = vweird.f32 %v57
    %v3024 = vand.u32 %v3020, 3
    %vm3025 = vcmp.lt.s32.totalorder %v3024, 2
    %vm3026 = vcmp.eq.s32.totalorder %v3024, 0
    %v3027 = vxor.u32 %v3022, 2147483648
    %v3028 = vsel %vm3026, %v3021, %v3027
    %vm3029 = vcmp.eq.s32.totalorder %v3024, 2
    %v3030 = vxor.u32 %v3021, 2147483648
    %v3031 = vsel %vm3029, %v3030, %v3022
    %v3032 = vsel %vm3025, %v3028, %v3031
    %v3033 = vsel %vm3023, nan, %v3032
    %v3034 = vand.u32 2147483647, %v58
    %vm3035 = vcmp.le.f32.partialorder %v3034, 0.7853982
    %vm3036 = vcmp.lt.s32.totalorder %v58, 0
    %v3037 = vand.u32 %v58, 2139095040
    %v3038 = vshrl.u32 %v3037, 23
    %v3039 = vsub.s32 %v3038, 127
    %v3040 = vand.u32 2147483647, %v58
    %v3041 = vand.u32 %v3040, 8388607
    %v3042 = vor.u32 %v3041, 8388608
    %v3043 = vsub.s32 0, %v3042
    %v3044 = vadd.s32 %v3039, 1
    %vm3045 = vcmp.gt.s32.totalorder %v3044, 0
    %v3046 = vsel %vm3045, %v3044, 0
    %v3047 = vshrl.u32 %v3046, 5
    %v3048 = vand.u32 %v3046, 31
    %v3049 = vsub.s32 32, %v3048
    %v3050 = vshrl.u32 683565275, %v3049
    %v3051 = vshll.u32 683565275, %v3048
    %v3052 = vshrl.u32 2475754826, %v3049
    %v3053 = vor.u32 %v3051, %v3052
    %v3054 = vshll.u32 2475754826, %v3048
    %v3055 = vshrl.u32 2131351028, %v3049
    %v3056 = vor.u32 %v3054, %v3055
    %v3057 = vshll.u32 2131351028, %v3048
    %v3058 = vshrl.u32 2102212464, %v3049
    %v3059 = vor.u32 %v3057, %v3058
    %v3060 = vshll.u32 2102212464, %v3048
    %v3061 = vshrl.u32 920167782, %v3049
    %v3062 = vor.u32 %v3060, %v3061
    %v3063 = vshll.u32 920167782, %v3048
    %v3064 = vshrl.u32 1326507024, %v3049
    %v3065 = vor.u32 %v3063, %v3064
    %vm3066 = vcmp.lt.s32.totalorder %v3047, 1
    %vm3067 = vcmp.lt.s32.totalorder %v3047, 2
    %vm3068 = vcmp.lt.s32.totalorder %v3047, 3
    %vm3069 = vcmp.lt.s32.totalorder %v3047, 4
    %v3070 = vsel %vm3066, %v3050, %v3053
    %v3071 = vsel %vm3069, %v3059, 2102212464
    %v3072 = vsel %vm3068, %v3056, %v3071
    %v3073 = vsel %vm3067, %v3070, %v3072
    %v3074 = vsel %vm3066, %v3053, %v3056
    %v3075 = vsel %vm3069, %v3062, 920167782
    %v3076 = vsel %vm3068, %v3059, %v3075
    %v3077 = vsel %vm3067, %v3074, %v3076
    %v3078 = vsel %vm3066, %v3056, %v3059
    %v3079 = vsel %vm3069, %v3065, 1326507024
    %v3080 = vsel %vm3068, %v3062, %v3079
    %v3081 = vsel %vm3067, %v3078, %v3080
    %v3082 = vshll.u32 %v3042, 8
    %v3083 = vmul.u32.u64.compose %v3082, %v3081
    %v3084 = vextract.low.u32 %v3083
    %v3085 = vextract.high.u32 %v3083
    %v3086 = vmul.u32.u64.compose %v3082, %v3077
    %v3087 = vextract.low.u32 %v3086
    %v3088 = vextract.high.u32 %v3086
    %v3089 = vmul.u32 %v3082, %v3073
    %v3090 = vadd.s32 %v3085, %v3087
    %vm3091 = vc.u32 %v3085, %v3087
    %v3092 = vadd.s32 %v3088, 1
    %v3093 = vsel %vm3091, %v3092, %v3088
    %v3094 = vadd.s32 %v3089, %v3093
    %v3095 = vadd.s32 %v3094, 536870912
    %v3096 = vshrl.u32 %v3095, 30
    %v3097 = vshll.u32 %v3096, 30
    %v3098 = vsub.s32 %v3094, %v3097
    %vm3099 = vcmp.lt.s32.totalorder %v3098, 0
    %v3100 = vsub.s32 0, %v3098
    %v3101 = vsel %vm3099, %v3100, %v3098
    %v3102 = vclz %v3101
    %v3103 = vsub.s32 %v3102, 2
    %vm3104 = vcmp.gt.s32.totalorder 0, %v3103
    %v3105 = vsel %vm3104, 0, %v3103
    %v3106 = vsub.s32 32, %v3105
    %v3107 = vshll.u32 %v3098, %v3105
    %v3108 = vshrl.u32 %v3090, %v3106
    %v3109 = vor.u32 %v3107, %v3108
    %v3110 = vsub.s32 4294967266, %v3105
    %v3111 = vadd.s32 %v3110, 127
    %v3112 = vshll.u32 %v3111, 23
    %v3113 = vor.u32 4788187, %v3112
    %v3114 = vand.u32 2147483647, %v3113
    %v3116 = vcvt.s32.f32 %v3109
    %v3117 = vmul.f32 %v3116, %v3114
    %v3118 = vxor.u32 %v3117, 2147483648
    %v3119 = vsel %vm3036, %v3118, %v3117
    %v3120 = vsub.s32 4, %v3096
    %v3121 = vsel %vm3036, %v3120, %v3096
    %v3122 = vsel %vm3035, %v58, %v3119
    %v3123 = vsel %vm3035, 0, %v3121
    %v3124 = vcosq.f32.pop %v3122
    %v3125 = vsinq.f32.pop %v3122
    %vm3126 = vweird.f32 %v58
    %v3127 = vand.u32 %v3123, 3
    %vm3128 = vcmp.lt.s32.totalorder %v3127, 2
    %vm3129 = vcmp.eq.s32.totalorder %v3127, 0
    %v3130 = vxor.u32 %v3125, 2147483648
    %v3131 = vsel %vm3129, %v3124, %v3130
    %vm3132 = vcmp.eq.s32.totalorder %v3127, 2
    %v3133 = vxor.u32 %v3124, 2147483648
    %v3134 = vsel %vm3132, %v3133, %v3125
    %v3135 = vsel %vm3128, %v3131, %v3134
    %v3136 = vsel %vm3126, nan, %v3135
    %v3137 = vmul.f32 %v1694, 3.0
    %v3138 = vmul.f32 %v1797, 3.0
    %v3139 = vmul.f32 %v1900, 3.0
    %v3140 = vmul.f32 %v2003, 3.0
    %v3141 = vmul.f32 %v2106, 3.0
    %v3142 = vmul.f32 %v2209, 3.0
    %v3143 = vmul.f32 %v2312, 3.0
    %v3144 = vmul.f32 %v2415, 3.0
    %v3145 = vmul.f32 %v2518, 3.0
    %v3146 = vmul.f32 %v2621, 3.0
    %v3147 = vmul.f32 %v2724, 3.0
    %v3148 = vmul.f32 %v2827, 3.0
    %v3149 = vmul.f32 %v2930, 3.0
    %v3150 = vmul.f32 %v3033, 3.0
    %v3151 = vmul.f32 %v3136, 3.0
    %v3152 = vmul.f32 %v3137, %v1694
    %v3153 = vmul.f32 %v3138, %v1797
    %v3154 = vmul.f32 %v3139, %v1900
    %v3155 = vmul.f32 %v3140, %v2003
    %v3156 = vmul.f32 %v3141, %v2106
    %v3157 = vmul.f32 %v3142, %v2209
    %v3158 = vmul.f32 %v3143, %v2312
    %v3159 = vmul.f32 %v3144, %v2415
    %v3160 = vmul.f32 %v3145, %v2518
    %v3161 = vmul.f32 %v3146, %v2621
    %v3162 = vmul.f32 %v3147, %v2724
    %v3163 = vmul.f32 %v3148, %v2827
    %v3164 = vmul.f32 %v3149, %v2930
    %v3165 = vmul.f32 %v3150, %v3033
    %v3166 = vmul.f32 %v3151, %v3136
    %v3167 = vsub.f32 %v3152, 1.0
    %v3168 = vsub.f32 %v3153, 1.0
    %v3169 = vsub.f32 %v3154, 1.0
    %v3170 = vsub.f32 %v3155, 1.0
    %v3171 = vsub.f32 %v3156, 1.0
    %v3172 = vsub.f32 %v3157, 1.0
    %v3173 = vsub.f32 %v3158, 1.0
    %v3174 = vsub.f32 %v3159, 1.0
    %v3175 = vsub.f32 %v3160, 1.0
    %v3176 = vsub.f32 %v3161, 1.0
    %v3177 = vsub.f32 %v3162, 1.0
    %v3178 = vsub.f32 %v3163, 1.0
    %v3179 = vsub.f32 %v3164, 1.0
    %v3180 = vsub.f32 %v3165, 1.0
    %v3181 = vsub.f32 %v3166, 1.0
    %v3182 = vrcp.pop 2.0
    %v3183 = vmul.f32 %v3167, %v3182
    %v3184 = vmul.f32 %v3168, %v3182
    %v3185 = vmul.f32 %v3169, %v3182
    %v3186 = vmul.f32 %v3170, %v3182
    %v3187 = vmul.f32 %v3171, %v3182
    %v3188 = vmul.f32 %v3172, %v3182
    %v3189 = vmul.f32 %v3173, %v3182
    %v3190 = vmul.f32 %v3174, %v3182
    %v3191 = vmul.f32 %v3175, %v3182
    %v3192 = vmul.f32 %v3176, %v3182
    %v3193 = vmul.f32 %v3177, %v3182
    %v3194 = vmul.f32 %v3178, %v3182
    %v3195 = vmul.f32 %v3179, %v3182
    %v3196 = vmul.f32 %v3180, %v3182
    %v3197 = vmul.f32 %v3181, %v3182
    %v3198 = vmul.f32 %v1694, 5.0
    %v3199 = vmul.f32 %v1797, 5.0
    %v3200 = vmul.f32 %v1900, 5.0
    %v3201 = vmul.f32 %v2003, 5.0
    %v3202 = vmul.f32 %v2106, 5.0
    %v3203 = vmul.f32 %v2209, 5.0
    %v3204 = vmul.f32 %v2312, 5.0
    %v3205 = vmul.f32 %v2415, 5.0
    %v3206 = vmul.f32 %v2518, 5.0
    %v3207 = vmul.f32 %v2621, 5.0
    %v3208 = vmul.f32 %v2724, 5.0
    %v3209 = vmul.f32 %v2827, 5.0
    %v3210 = vmul.f32 %v2930, 5.0
    %v3211 = vmul.f32 %v3033, 5.0
    %v3212 = vmul.f32 %v3136, 5.0
    %v3213 = vmul.f32 %v3198, %v3183
    %v3214 = vmul.f32 %v3199, %v3184
    %v3215 = vmul.f32 %v3200, %v3185
    %v3216 = vmul.f32 %v3201, %v3186
    %v3217 = vmul.f32 %v3202, %v3187
    %v3218 = vmul.f32 %v3203, %v3188
    %v3219 = vmul.f32 %v3204, %v3189
    %v3220 = vmul.f32 %v3205, %v3190
    %v3221 = vmul.f32 %v3206, %v3191
    %v3222 = vmul.f32 %v3207, %v3192
    %v3223 = vmul.f32 %v3208, %v3193
    %v3224 = vmul.f32 %v3209, %v3194
    %v3225 = vmul.f32 %v3210, %v3195
    %v3226 = vmul.f32 %v3211, %v3196
    %v3227 = vmul.f32 %v3212, %v3197
    %v3228 = vmul.f32 %v1694, 2.0
    %v3229 = vmul.f32 %v1797, 2.0
    %v3230 = vmul.f32 %v1900, 2.0
    %v3231 = vmul.f32 %v2003, 2.0
    %v3232 = vmul.f32 %v2106, 2.0
    %v3233 = vmul.f32 %v2209, 2.0
    %v3234 = vmul.f32 %v2312, 2.0
    %v3235 = vmul.f32 %v2415, 2.0
    %v3236 = vmul.f32 %v2518, 2.0
    %v3237 = vmul.f32 %v2621, 2.0
    %v3238 = vmul.f32 %v2724, 2.0
    %v3239 = vmul.f32 %v2827, 2.0
    %v3240 = vmul.f32 %v2930, 2.0
    %v3241 = vmul.f32 %v3033, 2.0
    %v3242 = vmul.f32 %v3136, 2.0
    %v3243 = vsub.f32 %v3213, %v3228
    %v3244 = vsub.f32 %v3214, %v3229
    %v3245 = vsub.f32 %v3215, %v3230
    %v3246 = vsub.f32 %v3216, %v3231
    %v3247 = vsub.f32 %v3217, %v3232
    %v3248 = vsub.f32 %v3218, %v3233
    %v3249 = vsub.f32 %v3219, %v3234
    %v3250 = vsub.f32 %v3220, %v3235
    %v3251 = vsub.f32 %v3221, %v3236
    %v3252 = vsub.f32 %v3222, %v3237
    %v3253 = vsub.f32 %v3223, %v3238
    %v3254 = vsub.f32 %v3224, %v3239
    %v3255 = vsub.f32 %v3225, %v3240
    %v3256 = vsub.f32 %v3226, %v3241
    %v3257 = vsub.f32 %v3227, %v3242
    %v3258 = vrcp.pop 3.0
    %v3259 = vmul.f32 %v3243, %v3258
    %v3260 = vmul.f32 %v3244, %v3258
    %v3261 = vmul.f32 %v3245, %v3258
    %v3262 = vmul.f32 %v3246, %v3258
    %v3263 = vmul.f32 %v3247, %v3258
    %v3264 = vmul.f32 %v3248, %v3258
    %v3265 = vmul.f32 %v3249, %v3258
    %v3266 = vmul.f32 %v3250, %v3258
    %v3267 = vmul.f32 %v3251, %v3258
    %v3268 = vmul.f32 %v3252, %v3258
    %v3269 = vmul.f32 %v3253, %v3258
    %v3270 = vmul.f32 %v3254, %v3258
    %v3271 = vmul.f32 %v3255, %v3258
    %v3272 = vmul.f32 %v3256, %v3258
    %v3273 = vmul.f32 %v3257, %v3258
    %v3274 = vmul.f32 %v1694, 7.0
    %v3275 = vmul.f32 %v1797, 7.0
    %v3276 = vmul.f32 %v1900, 7.0
    %v3277 = vmul.f32 %v2003, 7.0
    %v3278 = vmul.f32 %v2106, 7.0
    %v3279 = vmul.f32 %v2209, 7.0
    %v3280 = vmul.f32 %v2312, 7.0
    %v3281 = vmul.f32 %v2415, 7.0
    %v3282 = vmul.f32 %v2518, 7.0
    %v3283 = vmul.f32 %v2621, 7.0
    %v3284 = vmul.f32 %v2724, 7.0
    %v3285 = vmul.f32 %v2827, 7.0
    %v3286 = vmul.f32 %v2930, 7.0
    %v3287 = vmul.f32 %v3033, 7.0
    %v3288 = vmul.f32 %v3136, 7.0
    %v3289 = vmul.f32 %v3274, %v3259
    %v3290 = vmul.f32 %v3275, %v3260
    %v3291 = vmul.f32 %v3276, %v3261
    %v3292 = vmul.f32 %v3277, %v3262
    %v3293 = vmul.f32 %v3278, %v3263
    %v3294 = vmul.f32 %v3279, %v3264
    %v3295 = vmul.f32 %v3280, %v3265
    %v3296 = vmul.f32 %v3281, %v3266
    %v3297 = vmul.f32 %v3282, %v3267
    %v3298 = vmul.f32 %v3283, %v3268
    %v3299 = vmul.f32 %v3284, %v3269
    %v3300 = vmul.f32 %v3285, %v3270
    %v3301 = vmul.f32 %v3286, %v3271
    %v3302 = vmul.f32 %v3287, %v3272
    %v3303 = vmul.f32 %v3288, %v3273
    %v3304 = vmul.f32 %v3183, 3.0
    %v3305 = vmul.f32 %v3184, 3.0
    %v3306 = vmul.f32 %v3185, 3.0
    %v3307 = vmul.f32 %v3186, 3.0
    %v3308 = vmul.f32 %v3187, 3.0
    %v3309 = vmul.f32 %v3188, 3.0
    %v3310 = vmul.f32 %v3189, 3.0
    %v3311 = vmul.f32 %v3190, 3.0
    %v3312 = vmul.f32 %v3191, 3.0
    %v3313 = vmul.f32 %v3192, 3.0
    %v3314 = vmul.f32 %v3193, 3.0
    %v3315 = vmul.f32 %v3194, 3.0
    %v3316 = vmul.f32 %v3195, 3.0
    %v3317 = vmul.f32 %v3196, 3.0
    %v3318 = vmul.f32 %v3197, 3.0
    %v3319 = vsub.f32 %v3289, %v3304
    %v3320 = vsub.f32 %v3290, %v3305
    %v3321 = vsub.f32 %v3291, %v3306
    %v3322 = vsub.f32 %v3292, %v3307
    %v3323 = vsub.f32 %v3293, %v3308
    %v3324 = vsub.f32 %v3294, %v3309
    %v3325 = vsub.f32 %v3295, %v3310
    %v3326 = vsub.f32 %v3296, %v3311
    %v3327 = vsub.f32 %v3297, %v3312
    %v3328 = vsub.f32 %v3298, %v3313
    %v3329 = vsub.f32 %v3299, %v3314
    %v3330 = vsub.f32 %v3300, %v3315
    %v3331 = vsub.f32 %v3301, %v3316
    %v3332 = vsub.f32 %v3302, %v3317
    %v3333 = vsub.f32 %v3303, %v3318
    %v3334 = vrcp.pop 4.0
    %v3335 = vmul.f32 %v3319, %v3334
    %v3336 = vmul.f32 %v3320, %v3334
    %v3337 = vmul.f32 %v3321, %v3334
    %v3338 = vmul.f32 %v3322, %v3334
    %v3339 = vmul.f32 %v3323, %v3334
    %v3340 = vmul.f32 %v3324, %v3334
    %v3341 = vmul.f32 %v3325, %v3334
    %v3342 = vmul.f32 %v3326, %v3334
    %v3343 = vmul.f32 %v3327, %v3334
    %v3344 = vmul.f32 %v3328, %v3334
    %v3345 = vmul.f32 %v3329, %v3334
    %v3346 = vmul.f32 %v3330, %v3334
    %v3347 = vmul.f32 %v3331, %v3334
    %v3348 = vmul.f32 %v3332, %v3334
    %v3349 = vmul.f32 %v3333, %v3334
    %v3350 = vmul.f32 %v1694, 9.0
    %v3351 = vmul.f32 %v1797, 9.0
    %v3352 = vmul.f32 %v1900, 9.0
    %v3353 = vmul.f32 %v2003, 9.0
    %v3354 = vmul.f32 %v2106, 9.0
    %v3355 = vmul.f32 %v2209, 9.0
    %v3356 = vmul.f32 %v2312, 9.0
    %v3357 = vmul.f32 %v2415, 9.0
    %v3358 = vmul.f32 %v2518, 9.0
    %v3359 = vmul.f32 %v2621, 9.0
    %v3360 = vmul.f32 %v2724, 9.0
    %v3361 = vmul.f32 %v2827, 9.0
    %v3362 = vmul.f32 %v2930, 9.0
    %v3363 = vmul.f32 %v3033, 9.0
    %v3364 = vmul.f32 %v3136, 9.0
    %v3365 = vmul.f32 %v3350, %v3335
    %v3366 = vmul.f32 %v3351, %v3336
    %v3367 = vmul.f32 %v3352, %v3337
    %v3368 = vmul.f32 %v3353, %v3338
    %v3369 = vmul.f32 %v3354, %v3339
    %v3370 = vmul.f32 %v3355, %v3340
    %v3371 = vmul.f32 %v3356, %v3341
    %v3372 = vmul.f32 %v3357, %v3342
    %v3373 = vmul.f32 %v3358, %v3343
    %v3374 = vmul.f32 %v3359, %v3344
    %v3375 = vmul.f32 %v3360, %v3345
    %v3376 = vmul.f32 %v3361, %v3346
    %v3377 = vmul.f32 %v3362, %v3347
    %v3378 = vmul.f32 %v3363, %v3348
    %v3379 = vmul.f32 %v3364, %v3349
    %v3380 = vmul.f32 %v3259, 4.0
    %v3381 = vmul.f32 %v3260, 4.0
    %v3382 = vmul.f32 %v3261, 4.0
    %v3383 = vmul.f32 %v3262, 4.0
    %v3384 = vmul.f32 %v3263, 4.0
    %v3385 = vmul.f32 %v3264, 4.0
    %v3386 = vmul.f32 %v3265, 4.0
    %v3387 = vmul.f32 %v3266, 4.0
    %v3388 = vmul.f32 %v3267, 4.0
    %v3389 = vmul.f32 %v3268, 4.0
    %v3390 = vmul.f32 %v3269, 4.0
    %v3391 = vmul.f32 %v3270, 4.0
    %v3392 = vmul.f32 %v3271, 4.0
    %v3393 = vmul.f32 %v3272, 4.0
    %v3394 = vmul.f32 %v3273, 4.0
    %v3395 = vsub.f32 %v3365, %v3380
    %v3396 = vsub.f32 %v3366, %v3381
    %v3397 = vsub.f32 %v3367, %v3382
    %v3398 = vsub.f32 %v3368, %v3383
    %v3399 = vsub.f32 %v3369, %v3384
    %v3400 = vsub.f32 %v3370, %v3385
    %v3401 = vsub.f32 %v3371, %v3386
    %v3402 = vsub.f32 %v3372, %v3387
    %v3403 = vsub.f32 %v3373, %v3388
    %v3404 = vsub.f32 %v3374, %v3389
    %v3405 = vsub.f32 %v3375, %v3390
    %v3406 = vsub.f32 %v3376, %v3391
    %v3407 = vsub.f32 %v3377, %v3392
    %v3408 = vsub.f32 %v3378, %v3393
    %v3409 = vsub.f32 %v3379, %v3394
    %v3410 = vrcp.pop 5.0
    %v3411 = vmul.f32 %v3395, %v3410
    %v3412 = vmul.f32 %v3396, %v3410
    %v3413 = vmul.f32 %v3397, %v3410
    %v3414 = vmul.f32 %v3398, %v3410
    %v3415 = vmul.f32 %v3399, %v3410
    %v3416 = vmul.f32 %v3400, %v3410
    %v3417 = vmul.f32 %v3401, %v3410
    %v3418 = vmul.f32 %v3402, %v3410
    %v3419 = vmul.f32 %v3403, %v3410
    %v3420 = vmul.f32 %v3404, %v3410
    %v3421 = vmul.f32 %v3405, %v3410
    %v3422 = vmul.f32 %v3406, %v3410
    %v3423 = vmul.f32 %v3407, %v3410
    %v3424 = vmul.f32 %v3408, %v3410
    %v3425 = vmul.f32 %v3409, %v3410
    %v3426 = vmul.f32 %v1694, 0.48860252
    %v3427 = vmul.f32 %v1797, 0.48860252
    %v3428 = vmul.f32 %v1900, 0.48860252
    %v3429 = vmul.f32 %v2003, 0.48860252
    %v3430 = vmul.f32 %v2106, 0.48860252
    %v3431 = vmul.f32 %v2209, 0.48860252
    %v3432 = vmul.f32 %v2312, 0.48860252
    %v3433 = vmul.f32 %v2415, 0.48860252
    %v3434 = vmul.f32 %v2518, 0.48860252
    %v3435 = vmul.f32 %v2621, 0.48860252
    %v3436 = vmul.f32 %v2724, 0.48860252
    %v3437 = vmul.f32 %v2827, 0.48860252
    %v3438 = vmul.f32 %v2930, 0.48860252
    %v3439 = vmul.f32 %v3033, 0.48860252
    %v3440 = vmul.f32 %v3136, 0.48860252
    %v3441 = vmul.f32 %v3183, 0.63078314
    %v3442 = vmul.f32 %v3184, 0.63078314
    %v3443 = vmul.f32 %v3185, 0.63078314
    %v3444 = vmul.f32 %v3186, 0.63078314
    %v3445 = vmul.f32 %v3187, 0.63078314
    %v3446 = vmul.f32 %v3188, 0.63078314
    %v3447 = vmul.f32 %v3189, 0.63078314
    %v3448 = vmul.f32 %v3190, 0.63078314
    %v3449 = vmul.f32 %v3191, 0.63078314
    %v3450 = vmul.f32 %v3192, 0.63078314
    %v3451 = vmul.f32 %v3193, 0.63078314
    %v3452 = vmul.f32 %v3194, 0.63078314
    %v3453 = vmul.f32 %v3195, 0.63078314
    %v3454 = vmul.f32 %v3196, 0.63078314
    %v3455 = vmul.f32 %v3197, 0.63078314
    %v3456 = vmul.f32 %v3259, 0.7463527
    %v3457 = vmul.f32 %v3260, 0.7463527
    %v3458 = vmul.f32 %v3261, 0.7463527
    %v3459 = vmul.f32 %v3262, 0.7463527
    %v3460 = vmul.f32 %v3263, 0.7463527
    %v3461 = vmul.f32 %v3264, 0.7463527
    %v3462 = vmul.f32 %v3265, 0.7463527
    %v3463 = vmul.f32 %v3266, 0.7463527
    %v3464 = vmul.f32 %v3267, 0.7463527
    %v3465 = vmul.f32 %v3268, 0.7463527
    %v3466 = vmul.f32 %v3269, 0.7463527
    %v3467 = vmul.f32 %v3270, 0.7463527
    %v3468 = vmul.f32 %v3271, 0.7463527
    %v3469 = vmul.f32 %v3272, 0.7463527
    %v3470 = vmul.f32 %v3273, 0.7463527
    %v3471 = vmul.f32 %v3335, 0.8462844
    %v3472 = vmul.f32 %v3336, 0.8462844
    %v3473 = vmul.f32 %v3337, 0.8462844
    %v3474 = vmul.f32 %v3338, 0.8462844
    %v3475 = vmul.f32 %v3339, 0.8462844
    %v3476 = vmul.f32 %v3340, 0.8462844
    %v3477 = vmul.f32 %v3341, 0.8462844
    %v3478 = vmul.f32 %v3342, 0.8462844
    %v3479 = vmul.f32 %v3343, 0.8462844
    %v3480 = vmul.f32 %v3344, 0.8462844
    %v3481 = vmul.f32 %v3345, 0.8462844
    %v3482 = vmul.f32 %v3346, 0.8462844
    %v3483 = vmul.f32 %v3347, 0.8462844
    %v3484 = vmul.f32 %v3348, 0.8462844
    %v3485 = vmul.f32 %v3349, 0.8462844
    %v3486 = vmul.f32 %v3411, 0.9356026
    %v3487 = vmul.f32 %v3412, 0.9356026
    %v3488 = vmul.f32 %v3413, 0.9356026
    %v3489 = vmul.f32 %v3414, 0.9356026
    %v3490 = vmul.f32 %v3415, 0.9356026
    %v3491 = vmul.f32 %v3416, 0.9356026
    %v3492 = vmul.f32 %v3417, 0.9356026
    %v3493 = vmul.f32 %v3418, 0.9356026
    %v3494 = vmul.f32 %v3419, 0.9356026
    %v3495 = vmul.f32 %v3420, 0.9356026
    %v3496 = vmul.f32 %v3421, 0.9356026
    %v3497 = vmul.f32 %v3422, 0.9356026
    %v3498 = vmul.f32 %v3423, 0.9356026
    %v3499 = vmul.f32 %v3424, 0.9356026
    %v3500 = vmul.f32 %v3425, 0.9356026
    %3516 = vrot.lane.b32.xlu0 %v3426, 1
    %v3517 = vpop.permute.xlu0 %3516
    %3518 = vrot.lane.b32.xlu0 %v3427, 1
    %v3519 = vpop.permute.xlu0 %3518
    %3520 = vrot.lane.b32.xlu0 %v3428, 1
    %v3521 = vpop.permute.xlu0 %3520
    %3522 = vrot.lane.b32.xlu0 %v3429, 1
    %v3523 = vpop.permute.xlu0 %3522
    %3524 = vrot.lane.b32.xlu0 %v3430, 1
    %v3525 = vpop.permute.xlu0 %3524
    %3526 = vrot.lane.b32.xlu0 %v3431, 1
    %v3527 = vpop.permute.xlu0 %3526
    %3528 = vrot.lane.b32.xlu0 %v3432, 1
    %v3529 = vpop.permute.xlu0 %3528
    %3530 = vrot.lane.b32.xlu0 %v3433, 1
    %v3531 = vpop.permute.xlu0 %3530
    %3532 = vrot.lane.b32.xlu0 %v3434, 1
    %v3533 = vpop.permute.xlu0 %3532
    %3534 = vrot.lane.b32.xlu0 %v3435, 1
    %v3535 = vpop.permute.xlu0 %3534
    %3536 = vrot.lane.b32.xlu0 %v3436, 1
    %v3537 = vpop.permute.xlu0 %3536
    %3538 = vrot.lane.b32.xlu0 %v3437, 1
    %v3539 = vpop.permute.xlu0 %3538
    %3540 = vrot.lane.b32.xlu0 %v3438, 1
    %v3541 = vpop.permute.xlu0 %3540
    %3542 = vrot.lane.b32.xlu0 %v3439, 1
    %v3543 = vpop.permute.xlu0 %3542
    %3544 = vrot.lane.b32.xlu0 %v3440, 1
    %v3545 = vpop.permute.xlu0 %3544
    %3576 = vrot.lane.b32.xlu0 %v3441, 2
    %v3577 = vpop.permute.xlu0 %3576
    %3578 = vrot.lane.b32.xlu0 %v3442, 2
    %v3579 = vpop.permute.xlu0 %3578
    %3580 = vrot.lane.b32.xlu0 %v3443, 2
    %v3581 = vpop.permute.xlu0 %3580
    %3582 = vrot.lane.b32.xlu0 %v3444, 2
    %v3583 = vpop.permute.xlu0 %3582
    %3584 = vrot.lane.b32.xlu0 %v3445, 2
    %v3585 = vpop.permute.xlu0 %3584
    %3586 = vrot.lane.b32.xlu0 %v3446, 2
    %v3587 = vpop.permute.xlu0 %3586
    %3588 = vrot.lane.b32.xlu0 %v3447, 2
    %v3589 = vpop.permute.xlu0 %3588
    %3590 = vrot.lane.b32.xlu0 %v3448, 2
    %v3591 = vpop.permute.xlu0 %3590
    %3592 = vrot.lane.b32.xlu0 %v3449, 2
    %v3593 = vpop.permute.xlu0 %3592
    %3594 = vrot.lane.b32.xlu0 %v3450, 2
    %v3595 = vpop.permute.xlu0 %3594
    %3596 = vrot.lane.b32.xlu0 %v3451, 2
    %v3597 = vpop.permute.xlu0 %3596
    %3598 = vrot.lane.b32.xlu0 %v3452, 2
    %v3599 = vpop.permute.xlu0 %3598
    %3600 = vrot.lane.b32.xlu0 %v3453, 2
    %v3601 = vpop.permute.xlu0 %3600
    %3602 = vrot.lane.b32.xlu0 %v3454, 2
    %v3603 = vpop.permute.xlu0 %3602
    %3604 = vrot.lane.b32.xlu0 %v3455, 2
    %v3605 = vpop.permute.xlu0 %3604
    %3636 = vrot.lane.b32.xlu0 %v3456, 3
    %v3637 = vpop.permute.xlu0 %3636
    %3638 = vrot.lane.b32.xlu0 %v3457, 3
    %v3639 = vpop.permute.xlu0 %3638
    %3640 = vrot.lane.b32.xlu0 %v3458, 3
    %v3641 = vpop.permute.xlu0 %3640
    %3642 = vrot.lane.b32.xlu0 %v3459, 3
    %v3643 = vpop.permute.xlu0 %3642
    %3644 = vrot.lane.b32.xlu0 %v3460, 3
    %v3645 = vpop.permute.xlu0 %3644
    %3646 = vrot.lane.b32.xlu0 %v3461, 3
    %v3647 = vpop.permute.xlu0 %3646
    %3648 = vrot.lane.b32.xlu0 %v3462, 3
    %v3649 = vpop.permute.xlu0 %3648
    %3650 = vrot.lane.b32.xlu0 %v3463, 3
    %v3651 = vpop.permute.xlu0 %3650
    %3652 = vrot.lane.b32.xlu0 %v3464, 3
    %v3653 = vpop.permute.xlu0 %3652
    %3654 = vrot.lane.b32.xlu0 %v3465, 3
    %v3655 = vpop.permute.xlu0 %3654
    %3656 = vrot.lane.b32.xlu0 %v3466, 3
    %v3657 = vpop.permute.xlu0 %3656
    %3658 = vrot.lane.b32.xlu0 %v3467, 3
    %v3659 = vpop.permute.xlu0 %3658
    %3660 = vrot.lane.b32.xlu0 %v3468, 3
    %v3661 = vpop.permute.xlu0 %3660
    %3662 = vrot.lane.b32.xlu0 %v3469, 3
    %v3663 = vpop.permute.xlu0 %3662
    %3664 = vrot.lane.b32.xlu0 %v3470, 3
    %v3665 = vpop.permute.xlu0 %3664
    %3696 = vrot.lane.b32.xlu0 %v3471, 4
    %v3697 = vpop.permute.xlu0 %3696
    %3698 = vrot.lane.b32.xlu0 %v3472, 4
    %v3699 = vpop.permute.xlu0 %3698
    %3700 = vrot.lane.b32.xlu0 %v3473, 4
    %v3701 = vpop.permute.xlu0 %3700
    %3702 = vrot.lane.b32.xlu0 %v3474, 4
    %v3703 = vpop.permute.xlu0 %3702
    %3704 = vrot.lane.b32.xlu0 %v3475, 4
    %v3705 = vpop.permute.xlu0 %3704
    %3706 = vrot.lane.b32.xlu0 %v3476, 4
    %v3707 = vpop.permute.xlu0 %3706
    %3708 = vrot.lane.b32.xlu0 %v3477, 4
    %v3709 = vpop.permute.xlu0 %3708
    %3710 = vrot.lane.b32.xlu0 %v3478, 4
    %v3711 = vpop.permute.xlu0 %3710
    %3712 = vrot.lane.b32.xlu0 %v3479, 4
    %v3713 = vpop.permute.xlu0 %3712
    %3714 = vrot.lane.b32.xlu0 %v3480, 4
    %v3715 = vpop.permute.xlu0 %3714
    %3716 = vrot.lane.b32.xlu0 %v3481, 4
    %v3717 = vpop.permute.xlu0 %3716
    %3718 = vrot.lane.b32.xlu0 %v3482, 4
    %v3719 = vpop.permute.xlu0 %3718
    %3720 = vrot.lane.b32.xlu0 %v3483, 4
    %v3721 = vpop.permute.xlu0 %3720
    %3722 = vrot.lane.b32.xlu0 %v3484, 4
    %v3723 = vpop.permute.xlu0 %3722
    %3724 = vrot.lane.b32.xlu0 %v3485, 4
    %v3725 = vpop.permute.xlu0 %3724
    %3756 = vrot.lane.b32.xlu0 %v3486, 5
    %v3757 = vpop.permute.xlu0 %3756
    %3758 = vrot.lane.b32.xlu0 %v3487, 5
    %v3759 = vpop.permute.xlu0 %3758
    %3760 = vrot.lane.b32.xlu0 %v3488, 5
    %v3761 = vpop.permute.xlu0 %3760
    %3762 = vrot.lane.b32.xlu0 %v3489, 5
    %v3763 = vpop.permute.xlu0 %3762
    %3764 = vrot.lane.b32.xlu0 %v3490, 5
    %v3765 = vpop.permute.xlu0 %3764
    %3766 = vrot.lane.b32.xlu0 %v3491, 5
    %v3767 = vpop.permute.xlu0 %3766
    %3768 = vrot.lane.b32.xlu0 %v3492, 5
    %v3769 = vpop.permute.xlu0 %3768
    %3770 = vrot.lane.b32.xlu0 %v3493, 5
    %v3771 = vpop.permute.xlu0 %3770
    %3772 = vrot.lane.b32.xlu0 %v3494, 5
    %v3773 = vpop.permute.xlu0 %3772
    %3774 = vrot.lane.b32.xlu0 %v3495, 5
    %v3775 = vpop.permute.xlu0 %3774
    %3776 = vrot.lane.b32.xlu0 %v3496, 5
    %v3777 = vpop.permute.xlu0 %3776
    %3778 = vrot.lane.b32.xlu0 %v3497, 5
    %v3779 = vpop.permute.xlu0 %3778
    %3780 = vrot.lane.b32.xlu0 %v3498, 5
    %v3781 = vpop.permute.xlu0 %3780
    %3782 = vrot.lane.b32.xlu0 %v3499, 5
    %v3783 = vpop.permute.xlu0 %3782
    %3784 = vrot.lane.b32.xlu0 %v3500, 5
    %v3785 = vpop.permute.xlu0 %3784
    %vm3801 = vcmask 7168
    %v3802 = vsel %vm3801, 0.2820948, %v3517
    %v3803 = vsel %vm3801, 0.2820948, %v3519
    %v3804 = vsel %vm3801, 0.2820948, %v3521
    %v3805 = vsel %vm3801, 0.2820948, %v3523
    %v3806 = vsel %vm3801, 0.2820948, %v3525
    %v3807 = vsel %vm3801, 0.2820948, %v3527
    %v3808 = vsel %vm3801, 0.2820948, %v3529
    %v3809 = vsel %vm3801, 0.2820948, %v3531
    %v3810 = vsel %vm3801, 0.2820948, %v3533
    %v3811 = vsel %vm3801, 0.2820948, %v3535
    %v3812 = vsel %vm3801, 0.2820948, %v3537
    %v3813 = vsel %vm3801, 0.2820948, %v3539
    %v3814 = vsel %vm3801, 0.2820948, %v3541
    %v3815 = vsel %vm3801, 0.2820948, %v3543
    %v3816 = vsel %vm3801, 0.2820948, %v3545
    %vm3817 = vcmask 15360
    %v3818 = vsel %vm3817, %v3802, %v3577
    %v3819 = vsel %vm3817, %v3803, %v3579
    %v3820 = vsel %vm3817, %v3804, %v3581
    %v3821 = vsel %vm3817, %v3805, %v3583
    %v3822 = vsel %vm3817, %v3806, %v3585
    %v3823 = vsel %vm3817, %v3807, %v3587
    %v3824 = vsel %vm3817, %v3808, %v3589
    %v3825 = vsel %vm3817, %v3809, %v3591
    %v3826 = vsel %vm3817, %v3810, %v3593
    %v3827 = vsel %vm3817, %v3811, %v3595
    %v3828 = vsel %vm3817, %v3812, %v3597
    %v3829 = vsel %vm3817, %v3813, %v3599
    %v3830 = vsel %vm3817, %v3814, %v3601
    %v3831 = vsel %vm3817, %v3815, %v3603
    %v3832 = vsel %vm3817, %v3816, %v3605
    %vm3833 = vcmask 23552
    %v3834 = vsel %vm3833, %v3818, %v3637
    %v3835 = vsel %vm3833, %v3819, %v3639
    %v3836 = vsel %vm3833, %v3820, %v3641
    %v3837 = vsel %vm3833, %v3821, %v3643
    %v3838 = vsel %vm3833, %v3822, %v3645
    %v3839 = vsel %vm3833, %v3823, %v3647
    %v3840 = vsel %vm3833, %v3824, %v3649
    %v3841 = vsel %vm3833, %v3825, %v3651
    %v3842 = vsel %vm3833, %v3826, %v3653
    %v3843 = vsel %vm3833, %v3827, %v3655
    %v3844 = vsel %vm3833, %v3828, %v3657
    %v3845 = vsel %vm3833, %v3829, %v3659
    %v3846 = vsel %vm3833, %v3830, %v3661
    %v3847 = vsel %vm3833, %v3831, %v3663
    %v3848 = vsel %vm3833, %v3832, %v3665
    %vm3849 = vcmask 31744
    %v3850 = vsel %vm3849, %v3834, %v3697
    %v3851 = vsel %vm3849, %v3835, %v3699
    %v3852 = vsel %vm3849, %v3836, %v3701
    %v3853 = vsel %vm3849, %v3837, %v3703
    %v3854 = vsel %vm3849, %v3838, %v3705
    %v3855 = vsel %vm3849, %v3839, %v3707
    %v3856 = vsel %vm3849, %v3840, %v3709
    %v3857 = vsel %vm3849, %v3841, %v3711
    %v3858 = vsel %vm3849, %v3842, %v3713
    %v3859 = vsel %vm3849, %v3843, %v3715
    %v3860 = vsel %vm3849, %v3844, %v3717
    %v3861 = vsel %vm3849, %v3845, %v3719
    %v3862 = vsel %vm3849, %v3846, %v3721
    %v3863 = vsel %vm3849, %v3847, %v3723
    %v3864 = vsel %vm3849, %v3848, %v3725
    %vm3865 = vcmask 39936
    %v3866 = vsel %vm3865, %v3850, %v3757
    %v3867 = vsel %vm3865, %v3851, %v3759
    %v3868 = vsel %vm3865, %v3852, %v3761
    %v3869 = vsel %vm3865, %v3853, %v3763
    %v3870 = vsel %vm3865, %v3854, %v3765
    %v3871 = vsel %vm3865, %v3855, %v3767
    %v3872 = vsel %vm3865, %v3856, %v3769
    %v3873 = vsel %vm3865, %v3857, %v3771
    %v3874 = vsel %vm3865, %v3858, %v3773
    %v3875 = vsel %vm3865, %v3859, %v3775
    %v3876 = vsel %vm3865, %v3860, %v3777
    %v3877 = vsel %vm3865, %v3861, %v3779
    %v3878 = vsel %vm3865, %v3862, %v3781
    %v3879 = vsel %vm3865, %v3863, %v3783
    %v3880 = vsel %vm3865, %v3864, %v3785
    %v3881 = vpack.c.bf16 %v45, %v44
    %v3882 = vpack.c.bf16 %v47, %v46
    %v3883 = vpack.c.bf16 %v49, %v48
    %v3884 = vpack.c.bf16 %v51, %v50
    %v3885 = vpack.c.bf16 %v53, %v52
    %v3886 = vpack.c.bf16 %v55, %v54
    %v3887 = vpack.c.bf16 %v57, %v56
    %v3888 = vpack.c.bf16 %v58, %v58
    %v3889 = vpack.c.bf16 %v1589, %v1588
    %v3890 = vpack.c.bf16 %v1591, %v1590
    %3899 = vrot.lane.b32.xlu0 %v3881, 127
    %v3900 = vpop.permute.xlu0 %3899
    %3901 = vrot.lane.b32.xlu0 %v3882, 127
    %v3902 = vpop.permute.xlu0 %3901
    %3903 = vrot.lane.b32.xlu0 %v3883, 127
    %v3904 = vpop.permute.xlu0 %3903
    %3905 = vrot.lane.b32.xlu0 %v3884, 127
    %v3906 = vpop.permute.xlu0 %3905
    %3907 = vrot.lane.b32.xlu0 %v3885, 127
    %v3908 = vpop.permute.xlu0 %3907
    %3909 = vrot.lane.b32.xlu0 %v3886, 127
    %v3910 = vpop.permute.xlu0 %3909
    %3911 = vrot.lane.b32.xlu0 %v3887, 127
    %v3912 = vpop.permute.xlu0 %3911
    %3913 = vrot.lane.b32.xlu0 %v3888, 127
    %v3914 = vpop.permute.xlu0 %3913
    %vm3915 = vcmask 244736
    %v3917 = vsel %vm3915, %v3900, 0
    %v3920 = vsel %vm3915, %v3902, 0
    %v3923 = vsel %vm3915, %v3904, 0
    %v3926 = vsel %vm3915, %v3906, 0
    %v3929 = vsel %vm3915, %v3908, 0
    %v3932 = vsel %vm3915, %v3910, 0
    %v3935 = vsel %vm3915, %v3912, 0
    %v3938 = vsel %vm3915, %v3914, 0
    %vm3940 = vcmask 1046528
    %v3942 = vsel %vm3940, %v3890, 0
    %3944 = vmatprep.subr.bf16.mxu0 0
    %3945 = vmatpush1.bf16.msra.mxu0 %v3889
    %3946 = vmatprep.subr.bf16.mxu0 0
    %3947 = vmatpush1.bf16.msra.mxu0 %v3942
    %3948 = vmatprep.subr.bf16.mxu0 0
    %3949 = vmatpush1.bf16.msra.mxu0 0
    %3950 = vmatprep.subr.bf16.mxu0 0
    %3951 = vmatpush1.bf16.msra.mxu0 0
    %3952 = vmatprep.subr.bf16.mxu0 0
    %3953 = vmatpush1.bf16.msra.mxu0 0
    %3954 = vmatprep.subr.bf16.mxu0 0
    %3955 = vmatpush1.bf16.msra.mxu0 0
    %3956 = vmatprep.subr.bf16.mxu0 0
    %3957 = vmatpush1.bf16.msra.mxu0 0
    %3958 = vmatprep.subr.bf16.mxu0 0
    %3959 = vmatpush1.bf16.msra.mxu0 0
    %3960 = vmatprep.subr.bf16.mxu0 0
    %3961 = vmatpush1.bf16.msra.mxu0 0
    %3962 = vmatprep.subr.bf16.mxu0 0
    %3963 = vmatpush1.bf16.msra.mxu0 0
    %3964 = vmatprep.subr.bf16.mxu0 0
    %3965 = vmatpush1.bf16.msra.mxu0 0
    %3966 = vmatprep.subr.bf16.mxu0 0
    %3967 = vmatpush1.bf16.msra.mxu0 0
    %3968 = vmatprep.subr.bf16.mxu0 0
    %3969 = vmatpush1.bf16.msra.mxu0 0
    %3970 = vmatprep.subr.bf16.mxu0 0
    %3971 = vmatpush1.bf16.msra.mxu0 0
    %3972 = vmatprep.subr.bf16.mxu0 0
    %3973 = vmatpush1.bf16.msra.mxu0 0
    %3974 = vmatprep.subr.bf16.mxu0 0
    %3975 = vmatpush1.bf16.msra.mxu0 0
    %3976 = vmatprep.mubr.bf16.mxu0 0
    %3977 = vmatmul.mubr.bf16.gmra.mrb[0].mxu0 %v3917
    %v3978 = vpop.f32.mrb[0].mxu0
    %v3979 = vadd.f32 0.0, %v3978
    %v3980 = vpop.f32.mrb[0].mxu0
    %v3981 = vpop.f32.mrb[0].mxu0
    %v3982 = vadd.f32 0.0, %v3981
    %v3983 = vpop.f32.mrb[0].mxu0
    %3984 = vmatprep.mubr.bf16.mxu0 0
    %3985 = vmatmul.mubr.bf16.gmra.mrb[0].mxu0 %v3920
    %v3986 = vpop.f32.mrb[0].mxu0
    %v3987 = vadd.f32 0.0, %v3986
    %v3988 = vpop.f32.mrb[0].mxu0
    %v3989 = vpop.f32.mrb[0].mxu0
    %v3990 = vadd.f32 0.0, %v3989
    %v3991 = vpop.f32.mrb[0].mxu0
    %3992 = vmatprep.mubr.bf16.mxu0 0
    %3993 = vmatmul.mubr.bf16.gmra.mrb[0].mxu0 %v3923
    %v3994 = vpop.f32.mrb[0].mxu0
    %v3995 = vadd.f32 0.0, %v3994
    %v3996 = vpop.f32.mrb[0].mxu0
    %v3997 = vpop.f32.mrb[0].mxu0
    %v3998 = vadd.f32 0.0, %v3997
    %v3999 = vpop.f32.mrb[0].mxu0
    %4000 = vmatprep.mubr.bf16.mxu0 0
    %4001 = vmatmul.mubr.bf16.gmra.mrb[0].mxu0 %v3926
    %v4002 = vpop.f32.mrb[0].mxu0
    %v4003 = vadd.f32 0.0, %v4002
    %v4004 = vpop.f32.mrb[0].mxu0
    %v4005 = vpop.f32.mrb[0].mxu0
    %v4006 = vadd.f32 0.0, %v4005
    %v4007 = vpop.f32.mrb[0].mxu0
    %4008 = vmatprep.mubr.bf16.mxu0 0
    %4009 = vmatmul.mubr.bf16.gmra.mrb[0].mxu0 %v3929
    %v4010 = vpop.f32.mrb[0].mxu0
    %v4011 = vadd.f32 0.0, %v4010
    %v4012 = vpop.f32.mrb[0].mxu0
    %v4013 = vpop.f32.mrb[0].mxu0
    %v4014 = vadd.f32 0.0, %v4013
    %v4015 = vpop.f32.mrb[0].mxu0
    %4016 = vmatprep.mubr.bf16.mxu0 0
    %4017 = vmatmul.mubr.bf16.gmra.mrb[0].mxu0 %v3932
    %v4018 = vpop.f32.mrb[0].mxu0
    %v4019 = vadd.f32 0.0, %v4018
    %v4020 = vpop.f32.mrb[0].mxu0
    %v4021 = vpop.f32.mrb[0].mxu0
    %v4022 = vadd.f32 0.0, %v4021
    %v4023 = vpop.f32.mrb[0].mxu0
    %4024 = vmatprep.mubr.bf16.mxu0 0
    %4025 = vmatmul.mubr.bf16.gmra.mrb[0].mxu0 %v3935
    %v4026 = vpop.f32.mrb[0].mxu0
    %v4027 = vadd.f32 0.0, %v4026
    %v4028 = vpop.f32.mrb[0].mxu0
    %v4029 = vpop.f32.mrb[0].mxu0
    %v4030 = vadd.f32 0.0, %v4029
    %v4031 = vpop.f32.mrb[0].mxu0
    %4032 = vmatprep.mubr.bf16.mxu0 0
    %4033 = vmatmul.mubr.bf16.gmra.mrb[0].mxu0 %v3938
    %v4034 = vpop.f32.mrb[0].mxu0
    %v4035 = vadd.f32 0.0, %v4034
    %v4036 = vpop.f32.mrb[0].mxu0
    %v4037 = vpop.f32.mrb[0].mxu0
    %v4038 = vpop.f32.mrb[0].mxu0
    %4039 = vdwg.mxu0
    %v4040 = vpack.c.bf16 %v3867, %v3866
    %v4041 = vpack.c.bf16 %v3869, %v3868
    %v4042 = vpack.c.bf16 %v3871, %v3870
    %v4043 = vpack.c.bf16 %v3873, %v3872
    %v4044 = vpack.c.bf16 %v3875, %v3874
    %v4045 = vpack.c.bf16 %v3877, %v3876
    %v4046 = vpack.c.bf16 %v3879, %v3878
    %v4047 = vpack.c.bf16 %v3880, %v3880
    %v4048 = vpack.c.bf16 %v62, %v62
    %vm4049 = vcmask 48128
    %v4051 = vsel %vm4049, %v4040, 0
    %v4054 = vsel %vm4049, %v4041, 0
    %v4057 = vsel %vm4049, %v4042, 0
    %v4060 = vsel %vm4049, %v4043, 0
    %v4063 = vsel %vm4049, %v4044, 0
    %v4066 = vsel %vm4049, %v4045, 0
    %v4069 = vsel %vm4049, %v4046, 0
    %v4072 = vsel %vm4049, %v4047, 0
    %vm4074 = vcmask 1042432
    %v4076 = vsel %vm4074, %v4048, 0
    %4078 = vmatprep.subr.bf16.mxu0 0
    %4079 = vmatpush1.bf16.msra.mxu0 %v4076
    %4080 = vmatprep.subr.bf16.mxu0 0
    %4081 = vmatpush1.bf16.msra.mxu0 0
    %4082 = vmatprep.subr.bf16.mxu0 0
    %4083 = vmatpush1.bf16.msra.mxu0 0
    %4084 = vmatprep.subr.bf16.mxu0 0
    %4085 = vmatpush1.bf16.msra.mxu0 0
    %4086 = vmatprep.subr.bf16.mxu0 0
    %4087 = vmatpush1.bf16.msra.mxu0 0
    %4088 = vmatprep.subr.bf16.mxu0 0
    %4089 = vmatpush1.bf16.msra.mxu0 0
    %4090 = vmatprep.subr.bf16.mxu0 0
    %4091 = vmatpush1.bf16.msra.mxu0 0
    %4092 = vmatprep.subr.bf16.mxu0 0
    %4093 = vmatpush1.bf16.msra.mxu0 0
    %4094 = vmatprep.subr.bf16.mxu0 0
    %4095 = vmatpush1.bf16.msra.mxu0 0
    %4096 = vmatprep.subr.bf16.mxu0 0
    %4097 = vmatpush1.bf16.msra.mxu0 0
    %4098 = vmatprep.subr.bf16.mxu0 0
    %4099 = vmatpush1.bf16.msra.mxu0 0
    %4100 = vmatprep.subr.bf16.mxu0 0
    %4101 = vmatpush1.bf16.msra.mxu0 0
    %4102 = vmatprep.subr.bf16.mxu0 0
    %4103 = vmatpush1.bf16.msra.mxu0 0
    %4104 = vmatprep.subr.bf16.mxu0 0
    %4105 = vmatpush1.bf16.msra.mxu0 0
    %4106 = vmatprep.subr.bf16.mxu0 0
    %4107 = vmatpush1.bf16.msra.mxu0 0
    %4108 = vmatprep.subr.bf16.mxu0 0
    %4109 = vmatpush1.bf16.msra.mxu0 0
    %4110 = vmatprep.mubr.bf16.mxu0 0
    %4111 = vmatmul.mubr.bf16.gmra.mrb[0].mxu0 %v4051
    %v4112 = vpop.f32.mrb[0].mxu0
    %v4113 = vadd.f32 0.0, %v4112
    %v4114 = vpop.f32.mrb[0].mxu0
    %v4115 = vpop.f32.mrb[0].mxu0
    %v4116 = vadd.f32 0.0, %v4115
    %v4117 = vpop.f32.mrb[0].mxu0
    %4118 = vmatprep.mubr.bf16.mxu0 0
    %4119 = vmatmul.mubr.bf16.gmra.mrb[0].mxu0 %v4054
    %v4120 = vpop.f32.mrb[0].mxu0
    %v4121 = vadd.f32 0.0, %v4120
    %v4122 = vpop.f32.mrb[0].mxu0
    %v4123 = vpop.f32.mrb[0].mxu0
    %v4124 = vadd.f32 0.0, %v4123
    %v4125 = vpop.f32.mrb[0].mxu0
    %4126 = vmatprep.mubr.bf16.mxu0 0
    %4127 = vmatmul.mubr.bf16.gmra.mrb[0].mxu0 %v4057
    %v4128 = vpop.f32.mrb[0].mxu0
    %v4129 = vadd.f32 0.0, %v4128
    %v4130 = vpop.f32.mrb[0].mxu0
    %v4131 = vpop.f32.mrb[0].mxu0
    %v4132 = vadd.f32 0.0, %v4131
    %v4133 = vpop.f32.mrb[0].mxu0
    %4134 = vmatprep.mubr.bf16.mxu0 0
    %4135 = vmatmul.mubr.bf16.gmra.mrb[0].mxu0 %v4060
    %v4136 = vpop.f32.mrb[0].mxu0
    %v4137 = vadd.f32 0.0, %v4136
    %v4138 = vpop.f32.mrb[0].mxu0
    %v4139 = vpop.f32.mrb[0].mxu0
    %v4140 = vadd.f32 0.0, %v4139
    %v4141 = vpop.f32.mrb[0].mxu0
    %4142 = vmatprep.mubr.bf16.mxu0 0
    %4143 = vmatmul.mubr.bf16.gmra.mrb[0].mxu0 %v4063
    %v4144 = vpop.f32.mrb[0].mxu0
    %v4145 = vadd.f32 0.0, %v4144
    %v4146 = vpop.f32.mrb[0].mxu0
    %v4147 = vpop.f32.mrb[0].mxu0
    %v4148 = vadd.f32 0.0, %v4147
    %v4149 = vpop.f32.mrb[0].mxu0
    %4150 = vmatprep.mubr.bf16.mxu0 0
    %4151 = vmatmul.mubr.bf16.gmra.mrb[0].mxu0 %v4066
    %v4152 = vpop.f32.mrb[0].mxu0
    %v4153 = vadd.f32 0.0, %v4152
    %v4154 = vpop.f32.mrb[0].mxu0
    %v4155 = vpop.f32.mrb[0].mxu0
    %v4156 = vadd.f32 0.0, %v4155
    %v4157 = vpop.f32.mrb[0].mxu0
    %4158 = vmatprep.mubr.bf16.mxu0 0
    %4159 = vmatmul.mubr.bf16.gmra.mrb[0].mxu0 %v4069
    %v4160 = vpop.f32.mrb[0].mxu0
    %v4161 = vadd.f32 0.0, %v4160
    %v4162 = vpop.f32.mrb[0].mxu0
    %v4163 = vpop.f32.mrb[0].mxu0
    %v4164 = vadd.f32 0.0, %v4163
    %v4165 = vpop.f32.mrb[0].mxu0
    %4166 = vmatprep.mubr.bf16.mxu0 0
    %4167 = vmatmul.mubr.bf16.gmra.mrb[0].mxu0 %v4072
    %v4168 = vpop.f32.mrb[0].mxu0
    %v4169 = vadd.f32 0.0, %v4168
    %v4170 = vpop.f32.mrb[0].mxu0
    %v4171 = vpop.f32.mrb[0].mxu0
    %v4172 = vpop.f32.mrb[0].mxu0
    %4173 = vdwg.mxu0
    %v4174 = vmul.f32 %v3979, %v4113
    %v4175 = vmul.f32 %v3982, %v4116
    %v4176 = vmul.f32 %v3987, %v4121
    %v4177 = vmul.f32 %v3990, %v4124
    %v4178 = vmul.f32 %v3995, %v4129
    %v4179 = vmul.f32 %v3998, %v4132
    %v4180 = vmul.f32 %v4003, %v4137
    %v4181 = vmul.f32 %v4006, %v4140
    %v4182 = vmul.f32 %v4011, %v4145
    %v4183 = vmul.f32 %v4014, %v4148
    %v4184 = vmul.f32 %v4019, %v4153
    %v4185 = vmul.f32 %v4022, %v4156
    %v4186 = vmul.f32 %v4027, %v4161
    %v4187 = vmul.f32 %v4030, %v4164
    %v4188 = vmul.f32 %v4035, %v4169
    %v4189 = vld [vmem:[#allocation2] sm:$0xff]
    %v4190 = vld [vmem:[#allocation2 + $0x28] sm:$0xff]
    %v4191 = vpack.c.bf16 %v605, %v604
    %v4192 = vpack.c.bf16 %v607, %v606
    %v4193 = vpack.c.bf16 %v4190, %v4189
    %vm4194 = vcmask 130048
    %v4196 = vsel %vm4194, %v4191, 0
    %v4199 = vsel %vm4194, %v4192, 0
    %4201 = vmatprep.subr.bf16.mxu0 0
    %4202 = vmatpush1.bf16.msra.mxu0 %v4193
    %4203 = vmatprep.subr.bf16.mxu0 0
    %4204 = vmatpush1.bf16.msra.mxu0 0
    %4205 = vmatprep.subr.bf16.mxu0 0
    %4206 = vmatpush1.bf16.msra.mxu0 0
    %4207 = vmatprep.subr.bf16.mxu0 0
    %4208 = vmatpush1.bf16.msra.mxu0 0
    %4209 = vmatprep.subr.bf16.mxu0 0
    %4210 = vmatpush1.bf16.msra.mxu0 0
    %4211 = vmatprep.subr.bf16.mxu0 0
    %4212 = vmatpush1.bf16.msra.mxu0 0
    %4213 = vmatprep.subr.bf16.mxu0 0
    %4214 = vmatpush1.bf16.msra.mxu0 0
    %4215 = vmatprep.subr.bf16.mxu0 0
    %4216 = vmatpush1.bf16.msra.mxu0 0
    %4217 = vmatprep.subr.bf16.mxu0 0
    %4218 = vmatpush1.bf16.msra.mxu0 0
    %4219 = vmatprep.subr.bf16.mxu0 0
    %4220 = vmatpush1.bf16.msra.mxu0 0
    %4221 = vmatprep.subr.bf16.mxu0 0
    %4222 = vmatpush1.bf16.msra.mxu0 0
    %4223 = vmatprep.subr.bf16.mxu0 0
    %4224 = vmatpush1.bf16.msra.mxu0 0
    %4225 = vmatprep.subr.bf16.mxu0 0
    %4226 = vmatpush1.bf16.msra.mxu0 0
    %4227 = vmatprep.subr.bf16.mxu0 0
    %4228 = vmatpush1.bf16.msra.mxu0 0
    %4229 = vmatprep.subr.bf16.mxu0 0
    %4230 = vmatpush1.bf16.msra.mxu0 0
    %4231 = vmatprep.subr.bf16.mxu0 0
    %4232 = vmatpush1.bf16.msra.mxu0 0
    %4233 = vmatprep.mubr.bf16.mxu0 0
    %4234 = vmatmul.mubr.bf16.gmra.mrb[0].mxu0 %v4196
    %v4235 = vpop.f32.mrb[0].mxu0
    %v4236 = vadd.f32 0.0, %v4235
    %v4237 = vpop.f32.mrb[0].mxu0
    %v4238 = vpop.f32.mrb[0].mxu0
    %v4239 = vadd.f32 0.0, %v4238
    %v4240 = vpop.f32.mrb[0].mxu0
    %4241 = vmatprep.mubr.bf16.mxu0 0
    %4242 = vmatmul.mubr.bf16.gmra.mrb[0].mxu0 %v4199
    %v4243 = vpop.f32.mrb[0].mxu0
    %v4244 = vadd.f32 0.0, %v4243
    %v4245 = vpop.f32.mrb[0].mxu0
    %v4246 = vpop.f32.mrb[0].mxu0
    %v4247 = vadd.f32 0.0, %v4246
    %v4248 = vpop.f32.mrb[0].mxu0
    %4249 = vdwg.mxu0
    %v4250 = vld [vmem:[#allocation2 + $0x18] sm:$0xff]
    %v4251 = vld [vmem:[#allocation2 + $0x40] sm:$0xff]
    %v4252 = vld [vmem:[#allocation2 + $0x68] sm:$0xff]
    %v4253 = vld [vmem:[#allocation2 + $0x90] sm:$0xff]
    %v4254 = vld [vmem:[#allocation2 + $0xb8] sm:$0xff]
    %v4255 = vld [vmem:[#allocation2 + $0xe0] sm:$0xff]
    %v4256 = vld [vmem:[#allocation2 + $0x108] sm:$0xff]
    %v4257 = vld [vmem:[#allocation2 + $0x130] sm:$0xff]
    %v4258 = vld [vmem:[#allocation2 + $0x158] sm:$0xff]
    %v4259 = vld [vmem:[#allocation2 + $0x180] sm:$0xff]
    %v4260 = vld [vmem:[#allocation2 + $0x1a8] sm:$0xff]
    %v4261 = vld [vmem:[#allocation2 + $0x1d0] sm:$0xff]
    %v4262 = vpack.c.bf16 %v4175, %v4174
    %v4263 = vpack.c.bf16 %v4177, %v4176
    %v4264 = vpack.c.bf16 %v4179, %v4178
    %v4265 = vpack.c.bf16 %v4181, %v4180
    %v4266 = vpack.c.bf16 %v4183, %v4182
    %v4267 = vpack.c.bf16 %v4185, %v4184
    %v4268 = vpack.c.bf16 %v4187, %v4186
    %v4269 = vpack.c.bf16 %v4188, %v4188
    %v4270 = vpack.c.bf16 %v4251, %v4250
    %v4271 = vpack.c.bf16 %v4253, %v4252
    %v4272 = vpack.c.bf16 %v4255, %v4254
    %v4273 = vpack.c.bf16 %v4257, %v4256
    %v4274 = vpack.c.bf16 %v4259, %v4258
    %v4275 = vpack.c.bf16 %v4261, %v4260
    %4282 = vrot.lane.b32.xlu0 %v4270, 80
    %v4283 = vpop.permute.xlu0 %4282
    %4284 = vrot.lane.b32.xlu0 %v4271, 80
    %v4285 = vpop.permute.xlu0 %4284
    %4286 = vrot.lane.b32.xlu0 %v4272, 80
    %v4287 = vpop.permute.xlu0 %4286
    %4288 = vrot.lane.b32.xlu0 %v4273, 80
    %v4289 = vpop.permute.xlu0 %4288
    %4290 = vrot.lane.b32.xlu0 %v4274, 80
    %v4291 = vpop.permute.xlu0 %4290
    %4292 = vrot.lane.b32.xlu0 %v4275, 80
    %v4293 = vpop.permute.xlu0 %4292
    %vm4300 = vcmask 785408
    %v4302 = vsel %vm4300, %v4262, 0
    %v4305 = vsel %vm4300, %v4263, 0
    %v4308 = vsel %vm4300, %v4264, 0
    %v4311 = vsel %vm4300, %v4265, 0
    %v4314 = vsel %vm4300, %v4266, 0
    %v4317 = vsel %vm4300, %v4267, 0
    %v4320 = vsel %vm4300, %v4268, 0
    %v4323 = vsel %vm4300, %v4269, 0
    %4325 = vmatprep.subr.bf16.mxu0 0
    %4326 = vmatpush1.bf16.msra.mxu0 %v4283
    %4327 = vmatprep.subr.bf16.mxu0 0
    %4328 = vmatpush1.bf16.msra.mxu0 %v4285
    %4329 = vmatprep.subr.bf16.mxu0 0
    %4330 = vmatpush1.bf16.msra.mxu0 %v4287
    %4331 = vmatprep.subr.bf16.mxu0 0
    %4332 = vmatpush1.bf16.msra.mxu0 %v4289
    %4333 = vmatprep.subr.bf16.mxu0 0
    %4334 = vmatpush1.bf16.msra.mxu0 %v4291
    %4335 = vmatprep.subr.bf16.mxu0 0
    %4336 = vmatpush1.bf16.msra.mxu0 %v4293
    %4337 = vmatprep.subr.bf16.mxu0 0
    %4338 = vmatpush1.bf16.msra.mxu0 0
    %4339 = vmatprep.subr.bf16.mxu0 0
    %4340 = vmatpush1.bf16.msra.mxu0 0
    %4341 = vmatprep.subr.bf16.mxu0 0
    %4342 = vmatpush1.bf16.msra.mxu0 0
    %4343 = vmatprep.subr.bf16.mxu0 0
    %4344 = vmatpush1.bf16.msra.mxu0 0
    %4345 = vmatprep.subr.bf16.mxu0 0
    %4346 = vmatpush1.bf16.msra.mxu0 0
    %4347 = vmatprep.subr.bf16.mxu0 0
    %4348 = vmatpush1.bf16.msra.mxu0 0
    %4349 = vmatprep.subr.bf16.mxu0 0
    %4350 = vmatpush1.bf16.msra.mxu0 0
    %4351 = vmatprep.subr.bf16.mxu0 0
    %4352 = vmatpush1.bf16.msra.mxu0 0
    %4353 = vmatprep.subr.bf16.mxu0 0
    %4354 = vmatpush1.bf16.msra.mxu0 0
    %4355 = vmatprep.subr.bf16.mxu0 0
    %4356 = vmatpush1.bf16.msra.mxu0 0
    %4357 = vmatprep.mubr.bf16.mxu0 0
    %4358 = vmatmul.mubr.bf16.gmra.mrb[0].mxu0 %v4302
    %v4359 = vpop.f32.mrb[0].mxu0
    %v4360 = vadd.f32 0.0, %v4359
    %v4361 = vpop.f32.mrb[0].mxu0
    %v4362 = vpop.f32.mrb[0].mxu0
    %v4363 = vadd.f32 0.0, %v4362
    %v4364 = vpop.f32.mrb[0].mxu0
    %4365 = vmatprep.mubr.bf16.mxu0 0
    %4366 = vmatmul.mubr.bf16.gmra.mrb[0].mxu0 %v4305
    %v4367 = vpop.f32.mrb[0].mxu0
    %v4368 = vadd.f32 0.0, %v4367
    %v4369 = vpop.f32.mrb[0].mxu0
    %v4370 = vpop.f32.mrb[0].mxu0
    %v4371 = vadd.f32 0.0, %v4370
    %v4372 = vpop.f32.mrb[0].mxu0
    %4373 = vmatprep.mubr.bf16.mxu0 0
    %4374 = vmatmul.mubr.bf16.gmra.mrb[0].mxu0 %v4308
    %v4375 = vpop.f32.mrb[0].mxu0
    %v4376 = vadd.f32 0.0, %v4375
    %v4377 = vpop.f32.mrb[0].mxu0
    %v4378 = vpop.f32.mrb[0].mxu0
    %v4379 = vadd.f32 0.0, %v4378
    %v4380 = vpop.f32.mrb[0].mxu0
    %4381 = vmatprep.mubr.bf16.mxu0 0
    %4382 = vmatmul.mubr.bf16.gmra.mrb[0].mxu0 %v4311
    %v4383 = vpop.f32.mrb[0].mxu0
    %v4384 = vadd.f32 0.0, %v4383
    %v4385 = vpop.f32.mrb[0].mxu0
    %v4386 = vpop.f32.mrb[0].mxu0
    %v4387 = vadd.f32 0.0, %v4386
    %v4388 = vpop.f32.mrb[0].mxu0
    %4389 = vmatprep.mubr.bf16.mxu0 0
    %4390 = vmatmul.mubr.bf16.gmra.mrb[0].mxu0 %v4314
    %v4391 = vpop.f32.mrb[0].mxu0
    %v4392 = vadd.f32 0.0, %v4391
    %v4393 = vpop.f32.mrb[0].mxu0
    %v4394 = vpop.f32.mrb[0].mxu0
    %v4395 = vadd.f32 0.0, %v4394
    %v4396 = vpop.f32.mrb[0].mxu0
    %4397 = vmatprep.mubr.bf16.mxu0 0
    %4398 = vmatmul.mubr.bf16.gmra.mrb[0].mxu0 %v4317
    %v4399 = vpop.f32.mrb[0].mxu0
    %v4400 = vadd.f32 0.0, %v4399
    %v4401 = vpop.f32.mrb[0].mxu0
    %v4402 = vpop.f32.mrb[0].mxu0
    %v4403 = vadd.f32 0.0, %v4402
    %v4404 = vpop.f32.mrb[0].mxu0
    %4405 = vmatprep.mubr.bf16.mxu0 0
    %4406 = vmatmul.mubr.bf16.gmra.mrb[0].mxu0 %v4320
    %v4407 = vpop.f32.mrb[0].mxu0
    %v4408 = vadd.f32 0.0, %v4407
    %v4409 = vpop.f32.mrb[0].mxu0
    %v4410 = vpop.f32.mrb[0].mxu0
    %v4411 = vadd.f32 0.0, %v4410
    %v4412 = vpop.f32.mrb[0].mxu0
    %4413 = vmatprep.mubr.bf16.mxu0 0
    %4414 = vmatmul.mubr.bf16.gmra.mrb[0].mxu0 %v4323
    %v4415 = vpop.f32.mrb[0].mxu0
    %v4416 = vadd.f32 0.0, %v4415
    %v4417 = vpop.f32.mrb[0].mxu0
    %v4418 = vpop.f32.mrb[0].mxu0
    %v4419 = vpop.f32.mrb[0].mxu0
    %4420 = vdwg.mxu0
    %v4421 = vld [vmem:[%s4] sm:$0x1]
    %v4422 = vlaneseq
    %v4423 = vshrl.u32 %v4422, 7
    %v4424 = vsub.s32 0, %v4423
    %v4425 = vrot.slane %v4421, %v4424
    %v4426 = vadd.f32 %v4236, %v4425
    %v4427 = vadd.f32 %v4239, %v4425
    %v4428 = vadd.f32 %v4244, %v4425
    %v4429 = vadd.f32 %v4247, %v4425
    %v4430 = vxor.u32 %v4426, 2147483648
    %v4431 = vxor.u32 %v4427, 2147483648
    %v4432 = vxor.u32 %v4428, 2147483648
    %v4433 = vxor.u32 %v4429, 2147483648
    %v4434 = vmul.f32 %v4430, 1.442695
    %v4435 = vpow.pop %v4434
    %v4436 = vmul.f32 %v4431, 1.442695
    %v4437 = vpow.pop %v4436
    %v4438 = vmul.f32 %v4432, 1.442695
    %v4439 = vpow.pop %v4438
    %v4440 = vmul.f32 %v4433, 1.442695
    %v4441 = vpow.pop %v4440
    %v4442 = vadd.f32 %v4435, 1.0
    %v4443 = vadd.f32 %v4437, 1.0
    %v4444 = vadd.f32 %v4439, 1.0
    %v4445 = vadd.f32 %v4441, 1.0
    %v4446 = vrcp.pop %v4442
    %v4447 = vmul.f32 1.0, %v4446
    %v4448 = vrcp.pop %v4443
    %v4449 = vmul.f32 1.0, %v4448
    %v4450 = vrcp.pop %v4444
    %v4451 = vmul.f32 1.0, %v4450
    %v4452 = vrcp.pop %v4445
    %v4453 = vmul.f32 1.0, %v4452
    %v4454 = vmul.f32 %v4426, %v4447
    %v4455 = vmul.f32 %v4427, %v4449
    %v4456 = vmul.f32 %v4428, %v4451
    %v4457 = vmul.f32 %v4429, %v4453
    %4462 = vrot.lane.b32.xlu0 %v36, 127
    %v4463 = vpop.permute.xlu0 %4462
    %4464 = vrot.lane.b32.xlu0 %v37, 127
    %v4465 = vpop.permute.xlu0 %4464
    %4466 = vrot.lane.b32.xlu0 %v38, 127
    %v4467 = vpop.permute.xlu0 %4466
    %4468 = vrot.lane.b32.xlu0 %v39, 127
    %v4469 = vpop.permute.xlu0 %4468
    %4478 = vrot.lane.b32.xlu0 %v4454, 32
    %v4479 = vpop.permute.xlu0 %4478
    %4480 = vrot.lane.b32.xlu0 %v4455, 32
    %v4481 = vpop.permute.xlu0 %4480
    %4482 = vrot.lane.b32.xlu0 %v4456, 32
    %v4483 = vpop.permute.xlu0 %4482
    %4484 = vrot.lane.b32.xlu0 %v4457, 32
    %v4485 = vpop.permute.xlu0 %4484
    %vm4490 = vcmask 261120
    %v4491 = vsel %vm4490, %v4463, %v4479
    %v4492 = vsel %vm4490, %v4465, %v4481
    %v4493 = vsel %vm4490, %v4467, %v4483
    %v4494 = vsel %vm4490, %v4469, %v4485
    %v4495 = vld [vmem:[#allocation2] sm:$0xff]
    %v4496 = vld [vmem:[#allocation2 + $0x28] sm:$0xff]
    %v4497 = vld [vmem:[#allocation2 + $0x50] sm:$0xff]
    %v4498 = vld [vmem:[#allocation2 + $0x78] sm:$0xff]
    %v4499 = vld [vmem:[#allocation2 + $0xa0] sm:$0xff]
    %v4500 = vld [vmem:[#allocation2 + $0xc8] sm:$0xff]
    %v4501 = vpack.c.bf16 %v4492, %v4491
    %v4502 = vpack.c.bf16 %v4494, %v4493
    %v4503 = vpack.c.bf16 %v4496, %v4495
    %v4504 = vpack.c.bf16 %v4498, %v4497
    %v4505 = vpack.c.bf16 %v4500, %v4499
    %v4506 = vld [vmem:[%s4 + $0x1] sm:$0x1]
    %v4507 = vlaneseq
    %v4508 = vshrl.u32 %v4507, 7
    %v4509 = vsub.s32 0, %v4508
    %v4510 = vrot.slane %v4506, %v4509
    %4514 = vrot.lane.b32.xlu0 %v4503, 32
    %v4515 = vpop.permute.xlu0 %4514
    %4516 = vrot.lane.b32.xlu0 %v4504, 32
    %v4517 = vpop.permute.xlu0 %4516
    %4518 = vrot.lane.b32.xlu0 %v4505, 32
    %v4519 = vpop.permute.xlu0 %4518
    %vm4523 = vcmask 392192
    %v4525 = vsel %vm4523, %v4501, 0
    %v4528 = vsel %vm4523, %v4502, 0
    %4530 = vmatprep.subr.bf16.mxu0 0
    %4531 = vmatpush1.bf16.msra.mxu0 %v4515
    %4532 = vmatprep.subr.bf16.mxu0 0
    %4533 = vmatpush1.bf16.msra.mxu0 %v4517
    %4534 = vmatprep.subr.bf16.mxu0 0
    %4535 = vmatpush1.bf16.msra.mxu0 %v4519
    %4536 = vmatprep.subr.bf16.mxu0 0
    %4537 = vmatpush1.bf16.msra.mxu0 0
    %4538 = vmatprep.subr.bf16.mxu0 0
    %4539 = vmatpush1.bf16.msra.mxu0 0
    %4540 = vmatprep.subr.bf16.mxu0 0
    %4541 = vmatpush1.bf16.msra.mxu0 0
    %4542 = vmatprep.subr.bf16.mxu0 0
    %4543 = vmatpush1.bf16.msra.mxu0 0
    %4544 = vmatprep.subr.bf16.mxu0 0
    %4545 = vmatpush1.bf16.msra.mxu0 0
    %4546 = vmatprep.subr.bf16.mxu0 0
    %4547 = vmatpush1.bf16.msra.mxu0 0
    %4548 = vmatprep.subr.bf16.mxu0 0
    %4549 = vmatpush1.bf16.msra.mxu0 0
    %4550 = vmatprep.subr.bf16.mxu0 0
    %4551 = vmatpush1.bf16.msra.mxu0 0
    %4552 = vmatprep.subr.bf16.mxu0 0
    %4553 = vmatpush1.bf16.msra.mxu0 0
    %4554 = vmatprep.subr.bf16.mxu0 0
    %4555 = vmatpush1.bf16.msra.mxu0 0
    %4556 = vmatprep.subr.bf16.mxu0 0
    %4557 = vmatpush1.bf16.msra.mxu0 0
    %4558 = vmatprep.subr.bf16.mxu0 0
    %4559 = vmatpush1.bf16.msra.mxu0 0
    %4560 = vmatprep.subr.bf16.mxu0 0
    %4561 = vmatpush1.bf16.msra.mxu0 0
    %4562 = vmatprep.mubr.bf16.mxu0 0
    %4563 = vmatmul.mubr.bf16.gmra.mrb[0].mxu0 %v4525
    %v4564 = vpop.f32.mrb[0].mxu0
    %v4565 = vadd.f32 %v4510, %v4564
    %v4566 = vpop.f32.mrb[0].mxu0
    %v4567 = vpop.f32.mrb[0].mxu0
    %v4568 = vadd.f32 %v4510, %v4567
    %v4569 = vpop.f32.mrb[0].mxu0
    %4570 = vmatprep.mubr.bf16.mxu0 0
    %4571 = vmatmul.mubr.bf16.gmra.mrb[0].mxu0 %v4528
    %v4572 = vpop.f32.mrb[0].mxu0
    %v4573 = vadd.f32 %v4510, %v4572
    %v4574 = vpop.f32.mrb[0].mxu0
    %v4575 = vpop.f32.mrb[0].mxu0
    %v4576 = vadd.f32 %v4510, %v4575
    %v4577 = vpop.f32.mrb[0].mxu0
    %4578 = vdwg.mxu0
    %v4579 = vxor.u32 %v4565, 2147483648
    %v4580 = vxor.u32 %v4568, 2147483648
    %v4581 = vxor.u32 %v4573, 2147483648
    %v4582 = vxor.u32 %v4576, 2147483648
    %v4583 = vmul.f32 %v4579, 1.442695
    %v4584 = vpow.pop %v4583
    %v4585 = vmul.f32 %v4580, 1.442695
    %v4586 = vpow.pop %v4585
    %v4587 = vmul.f32 %v4581, 1.442695
    %v4588 = vpow.pop %v4587
    %v4589 = vmul.f32 %v4582, 1.442695
    %v4590 = vpow.pop %v4589
    %v4591 = vadd.f32 %v4584, 1.0
    %v4592 = vadd.f32 %v4586, 1.0
    %v4593 = vadd.f32 %v4588, 1.0
    %v4594 = vadd.f32 %v4590, 1.0
    %v4595 = vrcp.pop %v4591
    %v4596 = vmul.f32 1.0, %v4595
    %v4597 = vrcp.pop %v4592
    %v4598 = vmul.f32 1.0, %v4597
    %v4599 = vrcp.pop %v4593
    %v4600 = vmul.f32 1.0, %v4599
    %v4601 = vrcp.pop %v4594
    %v4602 = vmul.f32 1.0, %v4601
    %v4603 = vmul.f32 %v4565, %v4596
    %v4604 = vmul.f32 %v4568, %v4598
    %v4605 = vmul.f32 %v4573, %v4600
    %v4606 = vmul.f32 %v4576, %v4602
    %v4607 = vld [vmem:[#allocation2 + $0x10] sm:$0xff]
    %v4608 = vld [vmem:[#allocation2 + $0x38] sm:$0xff]
    %v4609 = vpack.c.bf16 %v4604, %v4603
    %v4610 = vpack.c.bf16 %v4606, %v4605
    %v4611 = vpack.c.bf16 %v4608, %v4607
    %v4612 = vld [vmem:[%s4 + $0x14] sm:$0x1]
    %v4613 = vlaneseq
    %v4614 = vshrl.u32 %v4613, 7
    %v4615 = vsub.s32 0, %v4614
    %v4616 = vrot.slane %v4612, %v4615
    %4618 = vrot.lane.b32.xlu0 %v4611, 48
    %v4619 = vpop.permute.xlu0 %4618
    %v4622 = vsel %vm4194, %v4609, 0
    %v4625 = vsel %vm4194, %v4610, 0
    %4627 = vmatprep.subr.bf16.mxu0 0
    %4628 = vmatpush1.bf16.msra.mxu0 %v4619
    %4629 = vmatprep.subr.bf16.mxu0 0
    %4630 = vmatpush1.bf16.msra.mxu0 0
    %4631 = vmatprep.subr.bf16.mxu0 0
    %4632 = vmatpush1.bf16.msra.mxu0 0
    %4633 = vmatprep.subr.bf16.mxu0 0
    %4634 = vmatpush1.bf16.msra.mxu0 0
    %4635 = vmatprep.subr.bf16.mxu0 0
    %4636 = vmatpush1.bf16.msra.mxu0 0
    %4637 = vmatprep.subr.bf16.mxu0 0
    %4638 = vmatpush1.bf16.msra.mxu0 0
    %4639 = vmatprep.subr.bf16.mxu0 0
    %4640 = vmatpush1.bf16.msra.mxu0 0
    %4641 = vmatprep.subr.bf16.mxu0 0
    %4642 = vmatpush1.bf16.msra.mxu0 0
    %4643 = vmatprep.subr.bf16.mxu0 0
    %4644 = vmatpush1.bf16.msra.mxu0 0
    %4645 = vmatprep.subr.bf16.mxu0 0
    %4646 = vmatpush1.bf16.msra.mxu0 0
    %4647 = vmatprep.subr.bf16.mxu0 0
    %4648 = vmatpush1.bf16.msra.mxu0 0
    %4649 = vmatprep.subr.bf16.mxu0 0
    %4650 = vmatpush1.bf16.msra.mxu0 0
    %4651 = vmatprep.subr.bf16.mxu0 0
    %4652 = vmatpush1.bf16.msra.mxu0 0
    %4653 = vmatprep.subr.bf16.mxu0 0
    %4654 = vmatpush1.bf16.msra.mxu0 0
    %4655 = vmatprep.subr.bf16.mxu0 0
    %4656 = vmatpush1.bf16.msra.mxu0 0
    %4657 = vmatprep.subr.bf16.mxu0 0
    %4658 = vmatpush1.bf16.msra.mxu0 0
    %4659 = vmatprep.mubr.bf16.mxu0 0
    %4660 = vmatmul.mubr.bf16.gmra.mrb[0].mxu0 %v4622
    %v4661 = vpop.f32.mrb[0].mxu0
    %v4662 = vadd.f32 %v4616, %v4661
    %v4663 = vpop.f32.mrb[0].mxu0
    %v4664 = vpop.f32.mrb[0].mxu0
    %v4665 = vadd.f32 %v4616, %v4664
    %v4666 = vpop.f32.mrb[0].mxu0
    %4667 = vmatprep.mubr.bf16.mxu0 0
    %4668 = vmatmul.mubr.bf16.gmra.mrb[0].mxu0 %v4625
    %v4669 = vpop.f32.mrb[0].mxu0
    %v4670 = vadd.f32 %v4616, %v4669
    %v4671 = vpop.f32.mrb[0].mxu0
    %v4672 = vpop.f32.mrb[0].mxu0
    %v4673 = vadd.f32 %v4616, %v4672
    %v4674 = vpop.f32.mrb[0].mxu0
    %4675 = vdwg.mxu0
    %v4676 = vxor.u32 %v4662, 2147483648
    %v4677 = vxor.u32 %v4665, 2147483648
    %v4678 = vxor.u32 %v4670, 2147483648
    %v4679 = vxor.u32 %v4673, 2147483648
    %v4680 = vmul.f32 %v4676, 1.442695
    %v4681 = vpow.pop %v4680
    %v4682 = vmul.f32 %v4677, 1.442695
    %v4683 = vpow.pop %v4682
    %v4684 = vmul.f32 %v4678, 1.442695
    %v4685 = vpow.pop %v4684
    %v4686 = vmul.f32 %v4679, 1.442695
    %v4687 = vpow.pop %v4686
    %v4688 = vadd.f32 %v4681, 1.0
    %v4689 = vadd.f32 %v4683, 1.0
    %v4690 = vadd.f32 %v4685, 1.0
    %v4691 = vadd.f32 %v4687, 1.0
    %v4692 = vrcp.pop %v4688
    %v4693 = vmul.f32 1.0, %v4692
    %v4694 = vrcp.pop %v4689
    %v4695 = vmul.f32 1.0, %v4694
    %v4696 = vrcp.pop %v4690
    %v4697 = vmul.f32 1.0, %v4696
    %v4698 = vrcp.pop %v4691
    %v4699 = vmul.f32 1.0, %v4698
    %v4700 = vmul.f32 %v4662, %v4693
    %v4701 = vmul.f32 %v4665, %v4695
    %v4702 = vmul.f32 %v4670, %v4697
    %v4703 = vmul.f32 %v4673, %v4699
    %v4704 = vmul.f32 %v4700, %v4236
    %v4705 = vmul.f32 %v4701, %v4239
    %v4706 = vmul.f32 %v4702, %v4244
    %v4707 = vmul.f32 %v4703, %v4247
    %v4708 = vpack.c.bf16 %v4705, %v4704
    %v4709 = vpack.c.bf16 %v4707, %v4706
    %4712 = vrot.lane.b32.xlu0 %v4708, 112
    %v4713 = vpop.permute.xlu0 %4712
    %4714 = vrot.lane.b32.xlu0 %v4709, 112
    %v4715 = vpop.permute.xlu0 %4714
    %v4718 = vsel %vm3940, %v4715, 0
    %4720 = vmatprep.subr.bf16.mxu0 0
    %4721 = vmatpush1.bf16.msra.mxu0 %v4713
    %4722 = vmatprep.subr.bf16.mxu0 0
    %4723 = vmatpush1.bf16.msra.mxu0 %v4718
    %4724 = vmatprep.subr.bf16.mxu0 0
    %4725 = vmatpush1.bf16.msra.mxu0 0
    %4726 = vmatprep.subr.bf16.mxu0 0
    %4727 = vmatpush1.bf16.msra.mxu0 0
    %4728 = vmatprep.subr.bf16.mxu0 0
    %4729 = vmatpush1.bf16.msra.mxu0 0
    %4730 = vmatprep.subr.bf16.mxu0 0
    %4731 = vmatpush1.bf16.msra.mxu0 0
    %4732 = vmatprep.subr.bf16.mxu0 0
    %4733 = vmatpush1.bf16.msra.mxu0 0
    %4734 = vmatprep.subr.bf16.mxu0 0
    %4735 = vmatpush1.bf16.msra.mxu0 0
    %4736 = vmatprep.subr.bf16.mxu0 0
    %4737 = vmatpush1.bf16.msra.mxu0 0
    %4738 = vmatprep.subr.bf16.mxu0 0
    %4739 = vmatpush1.bf16.msra.mxu0 0
    %4740 = vmatprep.subr.bf16.mxu0 0
    %4741 = vmatpush1.bf16.msra.mxu0 0
    %4742 = vmatprep.subr.bf16.mxu0 0
    %4743 = vmatpush1.bf16.msra.mxu0 0
    %4744 = vmatprep.subr.bf16.mxu0 0
    %4745 = vmatpush1.bf16.msra.mxu0 0
    %4746 = vmatprep.subr.bf16.mxu0 0
    %4747 = vmatpush1.bf16.msra.mxu0 0
    %4748 = vmatprep.subr.bf16.mxu0 0
    %4749 = vmatpush1.bf16.msra.mxu0 0
    %4750 = vmatprep.subr.bf16.mxu0 0
    %4751 = vmatpush1.bf16.msra.mxu0 0
    %4752 = vmatprep.mubr.bf16.mxu0 0
    %4753 = vmatmul.mubr.bf16.gmra.mrb[0].mxu0 %v3917
    %v4754 = vpop.f32.mrb[0].mxu0
    %v4755 = vadd.f32 0.0, %v4754
    %v4756 = vpop.f32.mrb[0].mxu0
    %v4757 = vpop.f32.mrb[0].mxu0
    %v4758 = vadd.f32 0.0, %v4757
    %v4759 = vpop.f32.mrb[0].mxu0
    %4760 = vmatprep.mubr.bf16.mxu0 0
    %4761 = vmatmul.mubr.bf16.gmra.mrb[0].mxu0 %v3920
    %v4762 = vpop.f32.mrb[0].mxu0
    %v4763 = vadd.f32 0.0, %v4762
    %v4764 = vpop.f32.mrb[0].mxu0
    %v4765 = vpop.f32.mrb[0].mxu0
    %v4766 = vadd.f32 0.0, %v4765
    %v4767 = vpop.f32.mrb[0].mxu0
    %4768 = vmatprep.mubr.bf16.mxu0 0
    %4769 = vmatmul.mubr.bf16.gmra.mrb[0].mxu0 %v3923
    %v4770 = vpop.f32.mrb[0].mxu0
    %v4771 = vadd.f32 0.0, %v4770
    %v4772 = vpop.f32.mrb[0].mxu0
    %v4773 = vpop.f32.mrb[0].mxu0
    %v4774 = vadd.f32 0.0, %v4773
    %v4775 = vpop.f32.mrb[0].mxu0
    %4776 = vmatprep.mubr.bf16.mxu0 0
    %4777 = vmatmul.mubr.bf16.gmra.mrb[0].mxu0 %v3926
    %v4778 = vpop.f32.mrb[0].mxu0
    %v4779 = vadd.f32 0.0, %v4778
    %v4780 = vpop.f32.mrb[0].mxu0
    %v4781 = vpop.f32.mrb[0].mxu0
    %v4782 = vadd.f32 0.0, %v4781
    %v4783 = vpop.f32.mrb[0].mxu0
    %4784 = vmatprep.mubr.bf16.mxu0 0
    %4785 = vmatmul.mubr.bf16.gmra.mrb[0].mxu0 %v3929
    %v4786 = vpop.f32.mrb[0].mxu0
    %v4787 = vadd.f32 0.0, %v4786
    %v4788 = vpop.f32.mrb[0].mxu0
    %v4789 = vpop.f32.mrb[0].mxu0
    %v4790 = vadd.f32 0.0, %v4789
    %v4791 = vpop.f32.mrb[0].mxu0
    %4792 = vmatprep.mubr.bf16.mxu0 0
    %4793 = vmatmul.mubr.bf16.gmra.mrb[0].mxu0 %v3932
    %v4794 = vpop.f32.mrb[0].mxu0
    %v4795 = vadd.f32 0.0, %v4794
    %v4796 = vpop.f32.mrb[0].mxu0
    %v4797 = vpop.f32.mrb[0].mxu0
    %v4798 = vadd.f32 0.0, %v4797
    %v4799 = vpop.f32.mrb[0].mxu0
    %4800 = vmatprep.mubr.bf16.mxu0 0
    %4801 = vmatmul.mubr.bf16.gmra.mrb[0].mxu0 %v3935
    %v4802 = vpop.f32.mrb[0].mxu0
    %v4803 = vadd.f32 0.0, %v4802
    %v4804 = vpop.f32.mrb[0].mxu0
    %v4805 = vpop.f32.mrb[0].mxu0
    %v4806 = vadd.f32 0.0, %v4805
    %v4807 = vpop.f32.mrb[0].mxu0
    %4808 = vmatprep.mubr.bf16.mxu0 0
    %4809 = vmatmul.mubr.bf16.gmra.mrb[0].mxu0 %v3938
    %v4810 = vpop.f32.mrb[0].mxu0
    %v4811 = vadd.f32 0.0, %v4810
    %v4812 = vpop.f32.mrb[0].mxu0
    %v4813 = vpop.f32.mrb[0].mxu0
    %v4814 = vpop.f32.mrb[0].mxu0
    %4815 = vdwg.mxu0
    %4817 = vset.pattern.permute.xlu0 0
    %4818 = vperm.xlu0 %4817, %v4360
    %v4819 = vpop.permute.xlu0 %4818
    %4822 = vset.pattern.permute.xlu0 0
    %4823 = vperm.xlu0 %4822, %v4363
    %v4824 = vpop.permute.xlu0 %4823
    %4827 = vset.pattern.permute.xlu0 0
    %4828 = vperm.xlu0 %4827, %v4368
    %v4829 = vpop.permute.xlu0 %4828
    %4832 = vset.pattern.permute.xlu0 0
    %4833 = vperm.xlu0 %4832, %v4371
    %v4834 = vpop.permute.xlu0 %4833
    %4837 = vset.pattern.permute.xlu0 0
    %4838 = vperm.xlu0 %4837, %v4376
    %v4839 = vpop.permute.xlu0 %4838
    %4842 = vset.pattern.permute.xlu0 0
    %4843 = vperm.xlu0 %4842, %v4379
    %v4844 = vpop.permute.xlu0 %4843
    %4847 = vset.pattern.permute.xlu0 0
    %4848 = vperm.xlu0 %4847, %v4384
    %v4849 = vpop.permute.xlu0 %4848
    %4852 = vset.pattern.permute.xlu0 0
    %4853 = vperm.xlu0 %4852, %v4387
    %v4854 = vpop.permute.xlu0 %4853
    %4857 = vset.pattern.permute.xlu0 0
    %4858 = vperm.xlu0 %4857, %v4392
    %v4859 = vpop.permute.xlu0 %4858
    %4862 = vset.pattern.permute.xlu0 0
    %4863 = vperm.xlu0 %4862, %v4395
    %v4864 = vpop.permute.xlu0 %4863
    %4867 = vset.pattern.permute.xlu0 0
    %4868 = vperm.xlu0 %4867, %v4400
    %v4869 = vpop.permute.xlu0 %4868
    %4872 = vset.pattern.permute.xlu0 0
    %4873 = vperm.xlu0 %4872, %v4403
    %v4874 = vpop.permute.xlu0 %4873
    %4877 = vset.pattern.permute.xlu0 0
    %4878 = vperm.xlu0 %4877, %v4408
    %v4879 = vpop.permute.xlu0 %4878
    %4882 = vset.pattern.permute.xlu0 0
    %4883 = vperm.xlu0 %4882, %v4411
    %v4884 = vpop.permute.xlu0 %4883
    %4887 = vset.pattern.permute.xlu0 0
    %4888 = vperm.xlu0 %4887, %v4416
    %v4889 = vpop.permute.xlu0 %4888
    %v4891 = vmul.f32 %v4755, %v4819
    %v4892 = vmul.f32 %v4758, %v4824
    %v4893 = vmul.f32 %v4763, %v4829
    %v4894 = vmul.f32 %v4766, %v4834
    %v4895 = vmul.f32 %v4771, %v4839
    %v4896 = vmul.f32 %v4774, %v4844
    %v4897 = vmul.f32 %v4779, %v4849
    %v4898 = vmul.f32 %v4782, %v4854
    %v4899 = vmul.f32 %v4787, %v4859
    %v4900 = vmul.f32 %v4790, %v4864
    %v4901 = vmul.f32 %v4795, %v4869
    %v4902 = vmul.f32 %v4798, %v4874
    %v4903 = vmul.f32 %v4803, %v4879
    %v4904 = vmul.f32 %v4806, %v4884
    %v4905 = vmul.f32 %v4811, %v4889
    %4906 = vset.pattern.permute.xlu0 1
    %4907 = vperm.xlu0 %4906, %v4360
    %v4908 = vpop.permute.xlu0 %4907
    %4910 = vset.pattern.permute.xlu0 1
    %4911 = vperm.xlu0 %4910, %v4363
    %v4912 = vpop.permute.xlu0 %4911
    %4914 = vset.pattern.permute.xlu0 1
    %4915 = vperm.xlu0 %4914, %v4368
    %v4916 = vpop.permute.xlu0 %4915
    %4918 = vset.pattern.permute.xlu0 1
    %4919 = vperm.xlu0 %4918, %v4371
    %v4920 = vpop.permute.xlu0 %4919
    %4922 = vset.pattern.permute.xlu0 1
    %4923 = vperm.xlu0 %4922, %v4376
    %v4924 = vpop.permute.xlu0 %4923
    %4926 = vset.pattern.permute.xlu0 1
    %4927 = vperm.xlu0 %4926, %v4379
    %v4928 = vpop.permute.xlu0 %4927
    %4930 = vset.pattern.permute.xlu0 1
    %4931 = vperm.xlu0 %4930, %v4384
    %v4932 = vpop.permute.xlu0 %4931
    %4934 = vset.pattern.permute.xlu0 1
    %4935 = vperm.xlu0 %4934, %v4387
    %v4936 = vpop.permute.xlu0 %4935
    %4938 = vset.pattern.permute.xlu0 1
    %4939 = vperm.xlu0 %4938, %v4392
    %v4940 = vpop.permute.xlu0 %4939
    %4942 = vset.pattern.permute.xlu0 1
    %4943 = vperm.xlu0 %4942, %v4395
    %v4944 = vpop.permute.xlu0 %4943
    %4946 = vset.pattern.permute.xlu0 1
    %4947 = vperm.xlu0 %4946, %v4400
    %v4948 = vpop.permute.xlu0 %4947
    %4950 = vset.pattern.permute.xlu0 1
    %4951 = vperm.xlu0 %4950, %v4403
    %v4952 = vpop.permute.xlu0 %4951
    %4954 = vset.pattern.permute.xlu0 1
    %4955 = vperm.xlu0 %4954, %v4408
    %v4956 = vpop.permute.xlu0 %4955
    %4958 = vset.pattern.permute.xlu0 1
    %4959 = vperm.xlu0 %4958, %v4411
    %v4960 = vpop.permute.xlu0 %4959
    %4962 = vset.pattern.permute.xlu0 1
    %4963 = vperm.xlu0 %4962, %v4416
    %v4964 = vpop.permute.xlu0 %4963
    %v4966 = vmul.f32 %v4755, %v4908
    %v4967 = vmul.f32 %v4758, %v4912
    %v4968 = vmul.f32 %v4763, %v4916
    %v4969 = vmul.f32 %v4766, %v4920
    %v4970 = vmul.f32 %v4771, %v4924
    %v4971 = vmul.f32 %v4774, %v4928
    %v4972 = vmul.f32 %v4779, %v4932
    %v4973 = vmul.f32 %v4782, %v4936
    %v4974 = vmul.f32 %v4787, %v4940
    %v4975 = vmul.f32 %v4790, %v4944
    %v4976 = vmul.f32 %v4795, %v4948
    %v4977 = vmul.f32 %v4798, %v4952
    %v4978 = vmul.f32 %v4803, %v4956
    %v4979 = vmul.f32 %v4806, %v4960
    %v4980 = vmul.f32 %v4811, %v4964
    %4996 = vrot.lane.b32.xlu0 %v4966, 16
    %v4997 = vpop.permute.xlu0 %4996
    %4998 = vrot.lane.b32.xlu0 %v4967, 16
    %v4999 = vpop.permute.xlu0 %4998
    %5000 = vrot.lane.b32.xlu0 %v4968, 16
    %v5001 = vpop.permute.xlu0 %5000
    %5002 = vrot.lane.b32.xlu0 %v4969, 16
    %v5003 = vpop.permute.xlu0 %5002
    %5004 = vrot.lane.b32.xlu0 %v4970, 16
    %v5005 = vpop.permute.xlu0 %5004
    %5006 = vrot.lane.b32.xlu0 %v4971, 16
    %v5007 = vpop.permute.xlu0 %5006
    %5008 = vrot.lane.b32.xlu0 %v4972, 16
    %v5009 = vpop.permute.xlu0 %5008
    %5010 = vrot.lane.b32.xlu0 %v4973, 16
    %v5011 = vpop.permute.xlu0 %5010
    %5012 = vrot.lane.b32.xlu0 %v4974, 16
    %v5013 = vpop.permute.xlu0 %5012
    %5014 = vrot.lane.b32.xlu0 %v4975, 16
    %v5015 = vpop.permute.xlu0 %5014
    %5016 = vrot.lane.b32.xlu0 %v4976, 16
    %v5017 = vpop.permute.xlu0 %5016
    %5018 = vrot.lane.b32.xlu0 %v4977, 16
    %v5019 = vpop.permute.xlu0 %5018
    %5020 = vrot.lane.b32.xlu0 %v4978, 16
    %v5021 = vpop.permute.xlu0 %5020
    %5022 = vrot.lane.b32.xlu0 %v4979, 16
    %v5023 = vpop.permute.xlu0 %5022
    %5024 = vrot.lane.b32.xlu0 %v4980, 16
    %v5025 = vpop.permute.xlu0 %5024
    %v5041 = vsel %vm4194, %v4891, %v4997
    %v5042 = vsel %vm4194, %v4892, %v4999
    %v5043 = vsel %vm4194, %v4893, %v5001
    %v5044 = vsel %vm4194, %v4894, %v5003
    %v5045 = vsel %vm4194, %v4895, %v5005
    %v5046 = vsel %vm4194, %v4896, %v5007
    %v5047 = vsel %vm4194, %v4897, %v5009
    %v5048 = vsel %vm4194, %v4898, %v5011
    %v5049 = vsel %vm4194, %v4899, %v5013
    %v5050 = vsel %vm4194, %v4900, %v5015
    %v5051 = vsel %vm4194, %v4901, %v5017
    %v5052 = vsel %vm4194, %v4902, %v5019
    %v5053 = vsel %vm4194, %v4903, %v5021
    %v5054 = vsel %vm4194, %v4904, %v5023
    %v5055 = vsel %vm4194, %v4905, %v5025
    %v5056 = vld [vmem:[#allocation2 + $0x18] sm:$0xff]
    %v5057 = vld [vmem:[#allocation2 + $0x40] sm:$0xff]
    %v5058 = vld [vmem:[#allocation2 + $0x68] sm:$0xff]
    %v5059 = vld [vmem:[#allocation2 + $0x90] sm:$0xff]
    %v5060 = vpack.c.bf16 %v5042, %v5041
    %v5061 = vpack.c.bf16 %v5044, %v5043
    %v5062 = vpack.c.bf16 %v5046, %v5045
    %v5063 = vpack.c.bf16 %v5048, %v5047
    %v5064 = vpack.c.bf16 %v5050, %v5049
    %v5065 = vpack.c.bf16 %v5052, %v5051
    %v5066 = vpack.c.bf16 %v5054, %v5053
    %v5067 = vpack.c.bf16 %v5055, %v5055
    %v5068 = vpack.c.bf16 %v5057, %v5056
    %v5069 = vpack.c.bf16 %v5059, %v5058
    %5072 = vrot.lane.b32.xlu0 %v5068, 112
    %v5073 = vpop.permute.xlu0 %5072
    %5074 = vrot.lane.b32.xlu0 %v5069, 112
    %v5075 = vpop.permute.xlu0 %5074
    %v5079 = vsel %vm4490, %v5060, 0
    %v5082 = vsel %vm4490, %v5061, 0
    %v5085 = vsel %vm4490, %v5062, 0
    %v5088 = vsel %vm4490, %v5063, 0
    %v5091 = vsel %vm4490, %v5064, 0
    %v5094 = vsel %vm4490, %v5065, 0
    %v5097 = vsel %vm4490, %v5066, 0
    %v5100 = vsel %vm4490, %v5067, 0
    %5102 = vmatprep.subr.bf16.mxu0 0
    %5103 = vmatpush1.bf16.msra.mxu0 %v5073
    %5104 = vmatprep.subr.bf16.mxu0 0
    %5105 = vmatpush1.bf16.msra.mxu0 %v5075
    %5106 = vmatprep.subr.bf16.mxu0 0
    %5107 = vmatpush1.bf16.msra.mxu0 0
    %5108 = vmatprep.subr.bf16.mxu0 0
    %5109 = vmatpush1.bf16.msra.mxu0 0
    %5110 = vmatprep.subr.bf16.mxu0 0
    %5111 = vmatpush1.bf16.msra.mxu0 0
    %5112 = vmatprep.subr.bf16.mxu0 0
    %5113 = vmatpush1.bf16.msra.mxu0 0
    %5114 = vmatprep.subr.bf16.mxu0 0
    %5115 = vmatpush1.bf16.msra.mxu0 0
    %5116 = vmatprep.subr.bf16.mxu0 0
    %5117 = vmatpush1.bf16.msra.mxu0 0
    %5118 = vmatprep.subr.bf16.mxu0 0
    %5119 = vmatpush1.bf16.msra.mxu0 0
    %5120 = vmatprep.subr.bf16.mxu0 0
    %5121 = vmatpush1.bf16.msra.mxu0 0
    %5122 = vmatprep.subr.bf16.mxu0 0
    %5123 = vmatpush1.bf16.msra.mxu0 0
    %5124 = vmatprep.subr.bf16.mxu0 0
    %5125 = vmatpush1.bf16.msra.mxu0 0
    %5126 = vmatprep.subr.bf16.mxu0 0
    %5127 = vmatpush1.bf16.msra.mxu0 0
    %5128 = vmatprep.subr.bf16.mxu0 0
    %5129 = vmatpush1.bf16.msra.mxu0 0
    %5130 = vmatprep.subr.bf16.mxu0 0
    %5131 = vmatpush1.bf16.msra.mxu0 0
    %5132 = vmatprep.subr.bf16.mxu0 0
    %5133 = vmatpush1.bf16.msra.mxu0 0
    %5134 = vmatprep.mubr.bf16.mxu0 0
    %5135 = vmatmul.mubr.bf16.gmra.mrb[0].mxu0 %v5079
    %v5136 = vpop.f32.mrb[0].mxu0
    %v5137 = vadd.f32 0.0, %v5136
    %v5138 = vpop.f32.mrb[0].mxu0
    %v5139 = vpop.f32.mrb[0].mxu0
    %v5140 = vadd.f32 0.0, %v5139
    %v5141 = vpop.f32.mrb[0].mxu0
    %5142 = vmatprep.mubr.bf16.mxu0 0
    %5143 = vmatmul.mubr.bf16.gmra.mrb[0].mxu0 %v5082
    %v5144 = vpop.f32.mrb[0].mxu0
    %v5145 = vadd.f32 0.0, %v5144
    %v5146 = vpop.f32.mrb[0].mxu0
    %v5147 = vpop.f32.mrb[0].mxu0
    %v5148 = vadd.f32 0.0, %v5147
    %v5149 = vpop.f32.mrb[0].mxu0
    %5150 = vmatprep.mubr.bf16.mxu0 0
    %5151 = vmatmul.mubr.bf16.gmra.mrb[0].mxu0 %v5085
    %v5152 = vpop.f32.mrb[0].mxu0
    %v5153 = vadd.f32 0.0, %v5152
    %v5154 = vpop.f32.mrb[0].mxu0
    %v5155 = vpop.f32.mrb[0].mxu0
    %v5156 = vadd.f32 0.0, %v5155
    %v5157 = vpop.f32.mrb[0].mxu0
    %5158 = vmatprep.mubr.bf16.mxu0 0
    %5159 = vmatmul.mubr.bf16.gmra.mrb[0].mxu0 %v5088
    %v5160 = vpop.f32.mrb[0].mxu0
    %v5161 = vadd.f32 0.0, %v5160
    %v5162 = vpop.f32.mrb[0].mxu0
    %v5163 = vpop.f32.mrb[0].mxu0
    %v5164 = vadd.f32 0.0, %v5163
    %v5165 = vpop.f32.mrb[0].mxu0
    %5166 = vmatprep.mubr.bf16.mxu0 0
    %5167 = vmatmul.mubr.bf16.gmra.mrb[0].mxu0 %v5091
    %v5168 = vpop.f32.mrb[0].mxu0
    %v5169 = vadd.f32 0.0, %v5168
    %v5170 = vpop.f32.mrb[0].mxu0
    %v5171 = vpop.f32.mrb[0].mxu0
    %v5172 = vadd.f32 0.0, %v5171
    %v5173 = vpop.f32.mrb[0].mxu0
    %5174 = vmatprep.mubr.bf16.mxu0 0
    %5175 = vmatmul.mubr.bf16.gmra.mrb[0].mxu0 %v5094
    %v5176 = vpop.f32.mrb[0].mxu0
    %v5177 = vadd.f32 0.0, %v5176
    %v5178 = vpop.f32.mrb[0].mxu0
    %v5179 = vpop.f32.mrb[0].mxu0
    %v5180 = vadd.f32 0.0, %v5179
    %v5181 = vpop.f32.mrb[0].mxu0
    %5182 = vmatprep.mubr.bf16.mxu0 0
    %5183 = vmatmul.mubr.bf16.gmra.mrb[0].mxu0 %v5097
    %v5184 = vpop.f32.mrb[0].mxu0
    %v5185 = vadd.f32 0.0, %v5184
    %v5186 = vpop.f32.mrb[0].mxu0
    %v5187 = vpop.f32.mrb[0].mxu0
    %v5188 = vadd.f32 0.0, %v5187
    %v5189 = vpop.f32.mrb[0].mxu0
    %5190 = vmatprep.mubr.bf16.mxu0 0
    %5191 = vmatmul.mubr.bf16.gmra.mrb[0].mxu0 %v5100
    %v5192 = vpop.f32.mrb[0].mxu0
    %v5193 = vadd.f32 0.0, %v5192
    %v5194 = vpop.f32.mrb[0].mxu0
    %v5195 = vpop.f32.mrb[0].mxu0
    %v5196 = vpop.f32.mrb[0].mxu0
    %5197 = vdwg.mxu0
    %v5198 = vpack.c.bf16 %v37, %v36
    %v5199 = vpack.c.bf16 %v41, %v40
    %v5200 = vpack.c.bf16 %v39, %v38
    %v5201 = vpack.c.bf16 %v43, %v42
    %v5202 = vpack.c.bf16 %v5140, %v5137
    %v5203 = vpack.c.bf16 %v5148, %v5145
    %v5204 = vpack.c.bf16 %v5156, %v5153
    %v5205 = vpack.c.bf16 %v5164, %v5161
    %v5206 = vpack.c.bf16 %v5172, %v5169
    %v5207 = vpack.c.bf16 %v5180, %v5177
    %v5208 = vpack.c.bf16 %v5188, %v5185
    %v5209 = vpack.c.bf16 %v5193, %v5193
    %5214 = vrot.lane.b32.xlu0 %v5198, 95
    %v5215 = vpop.permute.xlu0 %5214
    %5216 = vrot.lane.b32.xlu0 %v5199, 95
    %v5217 = vpop.permute.xlu0 %5216
    %5218 = vrot.lane.b32.xlu0 %v5200, 95
    %v5219 = vpop.permute.xlu0 %5218
    %5220 = vrot.lane.b32.xlu0 %v5201, 95
    %v5221 = vpop.permute.xlu0 %5220
    %vm5222 = vcmask 777216
    %v5223 = vsel %vm5222, %v5215, %v5217
    %v5224 = vsel %vm5222, %v5219, %v5221
    %vm5225 = vcmask 982016
    %v5227 = vsel %vm5225, %v5223, 0
    %v5230 = vsel %vm5225, %v5224, 0
    %vm5232 = vcmask 1043456
    %v5234 = vsel %vm5232, %v5209, 0
    %5236 = vmatprep.subr.bf16.mxu0 0
    %5237 = vmatpush1.bf16.msra.mxu0 %v5202
    %5238 = vmatprep.subr.bf16.mxu0 0
    %5239 = vmatpush1.bf16.msra.mxu0 %v5203
    %5240 = vmatprep.subr.bf16.mxu0 0
    %5241 = vmatpush1.bf16.msra.mxu0 %v5204
    %5242 = vmatprep.subr.bf16.mxu0 0
    %5243 = vmatpush1.bf16.msra.mxu0 %v5205
    %5244 = vmatprep.subr.bf16.mxu0 0
    %5245 = vmatpush1.bf16.msra.mxu0 %v5206
    %5246 = vmatprep.subr.bf16.mxu0 0
    %5247 = vmatpush1.bf16.msra.mxu0 %v5207
    %5248 = vmatprep.subr.bf16.mxu0 0
    %5249 = vmatpush1.bf16.msra.mxu0 %v5208
    %5250 = vmatprep.subr.bf16.mxu0 0
    %5251 = vmatpush1.bf16.msra.mxu0 %v5234
    %5252 = vmatprep.subr.bf16.mxu0 0
    %5253 = vmatpush1.bf16.msra.mxu0 0
    %5254 = vmatprep.subr.bf16.mxu0 0
    %5255 = vmatpush1.bf16.msra.mxu0 0
    %5256 = vmatprep.subr.bf16.mxu0 0
    %5257 = vmatpush1.bf16.msra.mxu0 0
    %5258 = vmatprep.subr.bf16.mxu0 0
    %5259 = vmatpush1.bf16.msra.mxu0 0
    %5260 = vmatprep.subr.bf16.mxu0 0
    %5261 = vmatpush1.bf16.msra.mxu0 0
    %5262 = vmatprep.subr.bf16.mxu0 0
    %5263 = vmatpush1.bf16.msra.mxu0 0
    %5264 = vmatprep.subr.bf16.mxu0 0
    %5265 = vmatpush1.bf16.msra.mxu0 0
    %5266 = vmatprep.subr.bf16.mxu0 0
    %5267 = vmatpush1.bf16.msra.mxu0 0
    %5268 = vmatprep.mubr.bf16.mxu0 0
    %5269 = vmatmul.mubr.bf16.gmra.mrb[0].mxu0 %v5227
    %v5270 = vpop.f32.mrb[0].mxu0
    %v5271 = vadd.f32 0.0, %v5270
    %v5272 = vpop.f32.mrb[0].mxu0
    %v5273 = vpop.f32.mrb[0].mxu0
    %v5274 = vadd.f32 0.0, %v5273
    %v5275 = vpop.f32.mrb[0].mxu0
    %5276 = vmatprep.mubr.bf16.mxu0 0
    %5277 = vmatmul.mubr.bf16.gmra.mrb[0].mxu0 %v5230
    %v5278 = vpop.f32.mrb[0].mxu0
    %v5279 = vadd.f32 0.0, %v5278
    %v5280 = vpop.f32.mrb[0].mxu0
    %v5281 = vpop.f32.mrb[0].mxu0
    %v5282 = vadd.f32 0.0, %v5281
    %v5283 = vpop.f32.mrb[0].mxu0
    %5284 = vdwg.mxu0
    %v5285 = vadd.f32 %v4700, %v5271
    %v5286 = vadd.f32 %v4701, %v5274
    %v5287 = vadd.f32 %v4702, %v5279
    %v5288 = vadd.f32 %v4703, %v5282
    %v5289 = vpack.c.bf16 %v5286, %v5285
    %v5290 = vpack.c.bf16 %v5288, %v5287
    %v5291 = vld [vmem:[%s4 + $0x2] sm:$0x1]
    %v5292 = vlaneseq
    %v5293 = vshrl.u32 %v5292, 7
    %v5294 = vsub.s32 0, %v5293
    %v5295 = vrot.slane %v5291, %v5294
    %5297 = vrot.lane.b32.xlu0 %v4193, 16
    %v5298 = vpop.permute.xlu0 %5297
    %v5301 = vsel %vm4194, %v5289, 0
    %v5304 = vsel %vm4194, %v5290, 0
    %5306 = vmatprep.subr.bf16.mxu0 0
    %5307 = vmatpush1.bf16.msra.mxu0 %v5298
    %5308 = vmatprep.subr.bf16.mxu0 0
    %5309 = vmatpush1.bf16.msra.mxu0 0
    %5310 = vmatprep.subr.bf16.mxu0 0
    %5311 = vmatpush1.bf16.msra.mxu0 0
    %5312 = vmatprep.subr.bf16.mxu0 0
    %5313 = vmatpush1.bf16.msra.mxu0 0
    %5314 = vmatprep.subr.bf16.mxu0 0
    %5315 = vmatpush1.bf16.msra.mxu0 0
    %5316 = vmatprep.subr.bf16.mxu0 0
    %5317 = vmatpush1.bf16.msra.mxu0 0
    %5318 = vmatprep.subr.bf16.mxu0 0
    %5319 = vmatpush1.bf16.msra.mxu0 0
    %5320 = vmatprep.subr.bf16.mxu0 0
    %5321 = vmatpush1.bf16.msra.mxu0 0
    %5322 = vmatprep.subr.bf16.mxu0 0
    %5323 = vmatpush1.bf16.msra.mxu0 0
    %5324 = vmatprep.subr.bf16.mxu0 0
    %5325 = vmatpush1.bf16.msra.mxu0 0
    %5326 = vmatprep.subr.bf16.mxu0 0
    %5327 = vmatpush1.bf16.msra.mxu0 0
    %5328 = vmatprep.subr.bf16.mxu0 0
    %5329 = vmatpush1.bf16.msra.mxu0 0
    %5330 = vmatprep.subr.bf16.mxu0 0
    %5331 = vmatpush1.bf16.msra.mxu0 0
    %5332 = vmatprep.subr.bf16.mxu0 0
    %5333 = vmatpush1.bf16.msra.mxu0 0
    %5334 = vmatprep.subr.bf16.mxu0 0
    %5335 = vmatpush1.bf16.msra.mxu0 0
    %5336 = vmatprep.subr.bf16.mxu0 0
    %5337 = vmatpush1.bf16.msra.mxu0 0
    %5338 = vmatprep.mubr.bf16.mxu0 0
    %5339 = vmatmul.mubr.bf16.gmra.mrb[0].mxu0 %v5301
    %v5340 = vpop.f32.mrb[0].mxu0
    %v5341 = vadd.f32 %v5295, %v5340
    %v5342 = vpop.f32.mrb[0].mxu0
    %v5343 = vpop.f32.mrb[0].mxu0
    %v5344 = vadd.f32 %v5295, %v5343
    %v5345 = vpop.f32.mrb[0].mxu0
    %5346 = vmatprep.mubr.bf16.mxu0 0
    %5347 = vmatmul.mubr.bf16.gmra.mrb[0].mxu0 %v5304
    %v5348 = vpop.f32.mrb[0].mxu0
    %v5349 = vadd.f32 %v5295, %v5348
    %v5350 = vpop.f32.mrb[0].mxu0
    %v5351 = vpop.f32.mrb[0].mxu0
    %v5352 = vadd.f32 %v5295, %v5351
    %v5353 = vpop.f32.mrb[0].mxu0
    %5354 = vdwg.mxu0
    %v5355 = vxor.u32 %v5341, 2147483648
    %v5356 = vxor.u32 %v5344, 2147483648
    %v5357 = vxor.u32 %v5349, 2147483648
    %v5358 = vxor.u32 %v5352, 2147483648
    %v5359 = vmul.f32 %v5355, 1.442695
    %v5360 = vpow.pop %v5359
    %v5361 = vmul.f32 %v5356, 1.442695
    %v5362 = vpow.pop %v5361
    %v5363 = vmul.f32 %v5357, 1.442695
    %v5364 = vpow.pop %v5363
    %v5365 = vmul.f32 %v5358, 1.442695
    %v5366 = vpow.pop %v5365
    %v5367 = vadd.f32 %v5360, 1.0
    %v5368 = vadd.f32 %v5362, 1.0
    %v5369 = vadd.f32 %v5364, 1.0
    %v5370 = vadd.f32 %v5366, 1.0
    %v5371 = vrcp.pop %v5367
    %v5372 = vmul.f32 1.0, %v5371
    %v5373 = vrcp.pop %v5368
    %v5374 = vmul.f32 1.0, %v5373
    %v5375 = vrcp.pop %v5369
    %v5376 = vmul.f32 1.0, %v5375
    %v5377 = vrcp.pop %v5370
    %v5378 = vmul.f32 1.0, %v5377
    %v5379 = vmul.f32 %v5341, %v5372
    %v5380 = vmul.f32 %v5344, %v5374
    %v5381 = vmul.f32 %v5349, %v5376
    %v5382 = vmul.f32 %v5352, %v5378
    %v5383 = vld [vmem:[#allocation2 + $0x8] sm:$0xff]
    %v5384 = vld [vmem:[#allocation2 + $0x30] sm:$0xff]
    %v5385 = vpack.c.bf16 %v5380, %v5379
    %v5386 = vpack.c.bf16 %v5382, %v5381
    %v5387 = vpack.c.bf16 %v5384, %v5383
    %v5388 = vld [vmem:[%s4 + $0x3] sm:$0x1]
    %v5389 = vlaneseq
    %v5390 = vshrl.u32 %v5389, 7
    %v5391 = vsub.s32 0, %v5390
    %v5392 = vrot.slane %v5388, %v5391
    %v5394 = vsel %vm4194, %v5385, 0
    %v5397 = vsel %vm4194, %v5386, 0
    %5399 = vmatprep.subr.bf16.mxu0 0
    %5400 = vmatpush1.bf16.msra.mxu0 %v5387
    %5401 = vmatprep.subr.bf16.mxu0 0
    %5402 = vmatpush1.bf16.msra.mxu0 0
    %5403 = vmatprep.subr.bf16.mxu0 0
    %5404 = vmatpush1.bf16.msra.mxu0 0
    %5405 = vmatprep.subr.bf16.mxu0 0
    %5406 = vmatpush1.bf16.msra.mxu0 0
    %5407 = vmatprep.subr.bf16.mxu0 0
    %5408 = vmatpush1.bf16.msra.mxu0 0
    %5409 = vmatprep.subr.bf16.mxu0 0
    %5410 = vmatpush1.bf16.msra.mxu0 0
    %5411 = vmatprep.subr.bf16.mxu0 0
    %5412 = vmatpush1.bf16.msra.mxu0 0
    %5413 = vmatprep.subr.bf16.mxu0 0
    %5414 = vmatpush1.bf16.msra.mxu0 0
    %5415 = vmatprep.subr.bf16.mxu0 0
    %5416 = vmatpush1.bf16.msra.mxu0 0
    %5417 = vmatprep.subr.bf16.mxu0 0
    %5418 = vmatpush1.bf16.msra.mxu0 0
    %5419 = vmatprep.subr.bf16.mxu0 0
    %5420 = vmatpush1.bf16.msra.mxu0 0
    %5421 = vmatprep.subr.bf16.mxu0 0
    %5422 = vmatpush1.bf16.msra.mxu0 0
    %5423 = vmatprep.subr.bf16.mxu0 0
    %5424 = vmatpush1.bf16.msra.mxu0 0
    %5425 = vmatprep.subr.bf16.mxu0 0
    %5426 = vmatpush1.bf16.msra.mxu0 0
    %5427 = vmatprep.subr.bf16.mxu0 0
    %5428 = vmatpush1.bf16.msra.mxu0 0
    %5429 = vmatprep.subr.bf16.mxu0 0
    %5430 = vmatpush1.bf16.msra.mxu0 0
    %5431 = vmatprep.mubr.bf16.mxu0 0
    %5432 = vmatmul.mubr.bf16.gmra.mrb[0].mxu0 %v5394
    %v5433 = vpop.f32.mrb[0].mxu0
    %v5434 = vadd.f32 %v5392, %v5433
    %v5435 = vpop.f32.mrb[0].mxu0
    %v5436 = vpop.f32.mrb[0].mxu0
    %v5437 = vadd.f32 %v5392, %v5436
    %v5438 = vpop.f32.mrb[0].mxu0
    %5439 = vmatprep.mubr.bf16.mxu0 0
    %5440 = vmatmul.mubr.bf16.gmra.mrb[0].mxu0 %v5397
    %v5441 = vpop.f32.mrb[0].mxu0
    %v5442 = vadd.f32 %v5392, %v5441
    %v5443 = vpop.f32.mrb[0].mxu0
    %v5444 = vpop.f32.mrb[0].mxu0
    %v5445 = vadd.f32 %v5392, %v5444
    %v5446 = vpop.f32.mrb[0].mxu0
    %5447 = vdwg.mxu0
    %v5448 = vxor.u32 %v5434, 2147483648
    %v5449 = vxor.u32 %v5437, 2147483648
    %v5450 = vxor.u32 %v5442, 2147483648
    %v5451 = vxor.u32 %v5445, 2147483648
    %v5452 = vmul.f32 %v5448, 1.442695
    %v5453 = vpow.pop %v5452
    %v5454 = vmul.f32 %v5449, 1.442695
    %v5455 = vpow.pop %v5454
    %v5456 = vmul.f32 %v5450, 1.442695
    %v5457 = vpow.pop %v5456
    %v5458 = vmul.f32 %v5451, 1.442695
    %v5459 = vpow.pop %v5458
    %v5460 = vadd.f32 %v5453, 1.0
    %v5461 = vadd.f32 %v5455, 1.0
    %v5462 = vadd.f32 %v5457, 1.0
    %v5463 = vadd.f32 %v5459, 1.0
    %v5464 = vrcp.pop %v5460
    %v5465 = vmul.f32 1.0, %v5464
    %v5466 = vrcp.pop %v5461
    %v5467 = vmul.f32 1.0, %v5466
    %v5468 = vrcp.pop %v5462
    %v5469 = vmul.f32 1.0, %v5468
    %v5470 = vrcp.pop %v5463
    %v5471 = vmul.f32 1.0, %v5470
    %v5472 = vmul.f32 %v5434, %v5465
    %v5473 = vmul.f32 %v5437, %v5467
    %v5474 = vmul.f32 %v5442, %v5469
    %v5475 = vmul.f32 %v5445, %v5471
    %v5476 = vadd.f32 %v5285, %v5472
    %v5477 = vadd.f32 %v5286, %v5473
    %v5478 = vadd.f32 %v5287, %v5474
    %v5479 = vadd.f32 %v5288, %v5475
    %v5480 = vpack.c.bf16 %v5477, %v5476
    %v5481 = vpack.c.bf16 %v5479, %v5478
    %v5482 = vld [vmem:[%s4 + $0x4] sm:$0x1]
    %v5483 = vlaneseq
    %v5484 = vshrl.u32 %v5483, 7
    %v5485 = vsub.s32 0, %v5484
    %v5486 = vrot.slane %v5482, %v5485
    %5488 = vrot.lane.b32.xlu0 %v5387, 112
    %v5489 = vpop.permute.xlu0 %5488
    %v5492 = vsel %vm4194, %v5480, 0
    %v5495 = vsel %vm4194, %v5481, 0
    %5497 = vmatprep.subr.bf16.mxu0 0
    %5498 = vmatpush1.bf16.msra.mxu0 %v5489
    %5499 = vmatprep.subr.bf16.mxu0 0
    %5500 = vmatpush1.bf16.msra.mxu0 0
    %5501 = vmatprep.subr.bf16.mxu0 0
    %5502 = vmatpush1.bf16.msra.mxu0 0
    %5503 = vmatprep.subr.bf16.mxu0 0
    %5504 = vmatpush1.bf16.msra.mxu0 0
    %5505 = vmatprep.subr.bf16.mxu0 0
    %5506 = vmatpush1.bf16.msra.mxu0 0
    %5507 = vmatprep.subr.bf16.mxu0 0
    %5508 = vmatpush1.bf16.msra.mxu0 0
    %5509 = vmatprep.subr.bf16.mxu0 0
    %5510 = vmatpush1.bf16.msra.mxu0 0
    %5511 = vmatprep.subr.bf16.mxu0 0
    %5512 = vmatpush1.bf16.msra.mxu0 0
    %5513 = vmatprep.subr.bf16.mxu0 0
    %5514 = vmatpush1.bf16.msra.mxu0 0
    %5515 = vmatprep.subr.bf16.mxu0 0
    %5516 = vmatpush1.bf16.msra.mxu0 0
    %5517 = vmatprep.subr.bf16.mxu0 0
    %5518 = vmatpush1.bf16.msra.mxu0 0
    %5519 = vmatprep.subr.bf16.mxu0 0
    %5520 = vmatpush1.bf16.msra.mxu0 0
    %5521 = vmatprep.subr.bf16.mxu0 0
    %5522 = vmatpush1.bf16.msra.mxu0 0
    %5523 = vmatprep.subr.bf16.mxu0 0
    %5524 = vmatpush1.bf16.msra.mxu0 0
    %5525 = vmatprep.subr.bf16.mxu0 0
    %5526 = vmatpush1.bf16.msra.mxu0 0
    %5527 = vmatprep.subr.bf16.mxu0 0
    %5528 = vmatpush1.bf16.msra.mxu0 0
    %5529 = vmatprep.mubr.bf16.mxu0 0
    %5530 = vmatmul.mubr.bf16.gmra.mrb[0].mxu0 %v5492
    %v5531 = vpop.f32.mrb[0].mxu0
    %v5532 = vadd.f32 %v5486, %v5531
    %v5533 = vpop.f32.mrb[0].mxu0
    %v5534 = vpop.f32.mrb[0].mxu0
    %v5535 = vadd.f32 %v5486, %v5534
    %v5536 = vpop.f32.mrb[0].mxu0
    %5537 = vmatprep.mubr.bf16.mxu0 0
    %5538 = vmatmul.mubr.bf16.gmra.mrb[0].mxu0 %v5495
    %v5539 = vpop.f32.mrb[0].mxu0
    %v5540 = vadd.f32 %v5486, %v5539
    %v5541 = vpop.f32.mrb[0].mxu0
    %v5542 = vpop.f32.mrb[0].mxu0
    %v5543 = vadd.f32 %v5486, %v5542
    %v5544 = vpop.f32.mrb[0].mxu0
    %5545 = vdwg.mxu0
    %v5546 = vxor.u32 %v5532, 2147483648
    %v5547 = vxor.u32 %v5535, 2147483648
    %v5548 = vxor.u32 %v5540, 2147483648
    %v5549 = vxor.u32 %v5543, 2147483648
    %v5550 = vmul.f32 %v5546, 1.442695
    %v5551 = vpow.pop %v5550
    %v5552 = vmul.f32 %v5547, 1.442695
    %v5553 = vpow.pop %v5552
    %v5554 = vmul.f32 %v5548, 1.442695
    %v5555 = vpow.pop %v5554
    %v5556 = vmul.f32 %v5549, 1.442695
    %v5557 = vpow.pop %v5556
    %v5558 = vadd.f32 %v5551, 1.0
    %v5559 = vadd.f32 %v5553, 1.0
    %v5560 = vadd.f32 %v5555, 1.0
    %v5561 = vadd.f32 %v5557, 1.0
    %v5562 = vrcp.pop %v5558
    %v5563 = vmul.f32 1.0, %v5562
    %v5564 = vrcp.pop %v5559
    %v5565 = vmul.f32 1.0, %v5564
    %v5566 = vrcp.pop %v5560
    %v5567 = vmul.f32 1.0, %v5566
    %v5568 = vrcp.pop %v5561
    %v5569 = vmul.f32 1.0, %v5568
    %v5570 = vmul.f32 %v5532, %v5563
    %v5571 = vmul.f32 %v5535, %v5565
    %v5572 = vmul.f32 %v5540, %v5567
    %v5573 = vmul.f32 %v5543, %v5569
    %v5574 = vadd.f32 %v5570, %v4603
    %v5575 = vadd.f32 %v5571, %v4604
    %v5576 = vadd.f32 %v5572, %v4605
    %v5577 = vadd.f32 %v5573, %v4606
    %v5578 = vpack.c.bf16 %v5575, %v5574
    %v5579 = vpack.c.bf16 %v5577, %v5576
    %v5580 = vld [vmem:[%s4 + $0x5] sm:$0x1]
    %v5581 = vlaneseq
    %v5582 = vshrl.u32 %v5581, 7
    %v5583 = vsub.s32 0, %v5582
    %v5584 = vrot.slane %v5580, %v5583
    %5585 = vrot.lane.b32.xlu0 %v5387, 96
    %v5586 = vpop.permute.xlu0 %5585
    %v5589 = vsel %vm4194, %v5578, 0
    %v5592 = vsel %vm4194, %v5579, 0
    %5594 = vmatprep.subr.bf16.mxu0 0
    %5595 = vmatpush1.bf16.msra.mxu0 %v5586
    %5596 = vmatprep.subr.bf16.mxu0 0
    %5597 = vmatpush1.bf16.msra.mxu0 0
    %5598 = vmatprep.subr.bf16.mxu0 0
    %5599 = vmatpush1.bf16.msra.mxu0 0
    %5600 = vmatprep.subr.bf16.mxu0 0
    %5601 = vmatpush1.bf16.msra.mxu0 0
    %5602 = vmatprep.subr.bf16.mxu0 0
    %5603 = vmatpush1.bf16.msra.mxu0 0
    %5604 = vmatprep.subr.bf16.mxu0 0
    %5605 = vmatpush1.bf16.msra.mxu0 0
    %5606 = vmatprep.subr.bf16.mxu0 0
    %5607 = vmatpush1.bf16.msra.mxu0 0
    %5608 = vmatprep.subr.bf16.mxu0 0
    %5609 = vmatpush1.bf16.msra.mxu0 0
    %5610 = vmatprep.subr.bf16.mxu0 0
    %5611 = vmatpush1.bf16.msra.mxu0 0
    %5612 = vmatprep.subr.bf16.mxu0 0
    %5613 = vmatpush1.bf16.msra.mxu0 0
    %5614 = vmatprep.subr.bf16.mxu0 0
    %5615 = vmatpush1.bf16.msra.mxu0 0
    %5616 = vmatprep.subr.bf16.mxu0 0
    %5617 = vmatpush1.bf16.msra.mxu0 0
    %5618 = vmatprep.subr.bf16.mxu0 0
    %5619 = vmatpush1.bf16.msra.mxu0 0
    %5620 = vmatprep.subr.bf16.mxu0 0
    %5621 = vmatpush1.bf16.msra.mxu0 0
    %5622 = vmatprep.subr.bf16.mxu0 0
    %5623 = vmatpush1.bf16.msra.mxu0 0
    %5624 = vmatprep.subr.bf16.mxu0 0
    %5625 = vmatpush1.bf16.msra.mxu0 0
    %5626 = vmatprep.mubr.bf16.mxu0 0
    %5627 = vmatmul.mubr.bf16.gmra.mrb[0].mxu0 %v5589
    %v5628 = vpop.f32.mrb[0].mxu0
    %v5629 = vadd.f32 %v5584, %v5628
    %v5630 = vpop.f32.mrb[0].mxu0
    %v5631 = vpop.f32.mrb[0].mxu0
    %v5632 = vadd.f32 %v5584, %v5631
    %v5633 = vpop.f32.mrb[0].mxu0
    %5634 = vmatprep.mubr.bf16.mxu0 0
    %5635 = vmatmul.mubr.bf16.gmra.mrb[0].mxu0 %v5592
    %v5636 = vpop.f32.mrb[0].mxu0
    %v5637 = vadd.f32 %v5584, %v5636
    %v5638 = vpop.f32.mrb[0].mxu0
    %v5639 = vpop.f32.mrb[0].mxu0
    %v5640 = vadd.f32 %v5584, %v5639
    %v5641 = vpop.f32.mrb[0].mxu0
    %5642 = vdwg.mxu0
    %v5643 = vxor.u32 %v5629, 2147483648
    %v5644 = vxor.u32 %v5632, 2147483648
    %v5645 = vxor.u32 %v5637, 2147483648
    %v5646 = vxor.u32 %v5640, 2147483648
    %v5647 = vmul.f32 %v5643, 1.442695
    %v5648 = vpow.pop %v5647
    %v5649 = vmul.f32 %v5644, 1.442695
    %v5650 = vpow.pop %v5649
    %v5651 = vmul.f32 %v5645, 1.442695
    %v5652 = vpow.pop %v5651
    %v5653 = vmul.f32 %v5646, 1.442695
    %v5654 = vpow.pop %v5653
    %v5655 = vadd.f32 %v5648, 1.0
    %v5656 = vadd.f32 %v5650, 1.0
    %v5657 = vadd.f32 %v5652, 1.0
    %v5658 = vadd.f32 %v5654, 1.0
    %v5659 = vrcp.pop %v5655
    %v5660 = vmul.f32 1.0, %v5659
    %v5661 = vrcp.pop %v5656
    %v5662 = vmul.f32 1.0, %v5661
    %v5663 = vrcp.pop %v5657
    %v5664 = vmul.f32 1.0, %v5663
    %v5665 = vrcp.pop %v5658
    %v5666 = vmul.f32 1.0, %v5665
    %v5667 = vmul.f32 %v5629, %v5660
    %v5668 = vmul.f32 %v5632, %v5662
    %v5669 = vmul.f32 %v5637, %v5664
    %v5670 = vmul.f32 %v5640, %v5666
    %v5671 = vpack.c.bf16 %v5668, %v5667
    %v5672 = vpack.c.bf16 %v5670, %v5669
    %v5673 = vld [vmem:[%s4 + $0x6] sm:$0x1]
    %v5674 = vlaneseq
    %v5675 = vshrl.u32 %v5674, 7
    %v5676 = vsub.s32 0, %v5675
    %v5677 = vrot.slane %v5673, %v5676
    %5678 = vrot.lane.b32.xlu0 %v5387, 80
    %v5679 = vpop.permute.xlu0 %5678
    %v5682 = vsel %vm4194, %v5671, 0
    %v5685 = vsel %vm4194, %v5672, 0
    %5687 = vmatprep.subr.bf16.mxu0 0
    %5688 = vmatpush1.bf16.msra.mxu0 %v5679
    %5689 = vmatprep.subr.bf16.mxu0 0
    %5690 = vmatpush1.bf16.msra.mxu0 0
    %5691 = vmatprep.subr.bf16.mxu0 0
    %5692 = vmatpush1.bf16.msra.mxu0 0
    %5693 = vmatprep.subr.bf16.mxu0 0
    %5694 = vmatpush1.bf16.msra.mxu0 0
    %5695 = vmatprep.subr.bf16.mxu0 0
    %5696 = vmatpush1.bf16.msra.mxu0 0
    %5697 = vmatprep.subr.bf16.mxu0 0
    %5698 = vmatpush1.bf16.msra.mxu0 0
    %5699 = vmatprep.subr.bf16.mxu0 0
    %5700 = vmatpush1.bf16.msra.mxu0 0
    %5701 = vmatprep.subr.bf16.mxu0 0
    %5702 = vmatpush1.bf16.msra.mxu0 0
    %5703 = vmatprep.subr.bf16.mxu0 0
    %5704 = vmatpush1.bf16.msra.mxu0 0
    %5705 = vmatprep.subr.bf16.mxu0 0
    %5706 = vmatpush1.bf16.msra.mxu0 0
    %5707 = vmatprep.subr.bf16.mxu0 0
    %5708 = vmatpush1.bf16.msra.mxu0 0
    %5709 = vmatprep.subr.bf16.mxu0 0
    %5710 = vmatpush1.bf16.msra.mxu0 0
    %5711 = vmatprep.subr.bf16.mxu0 0
    %5712 = vmatpush1.bf16.msra.mxu0 0
    %5713 = vmatprep.subr.bf16.mxu0 0
    %5714 = vmatpush1.bf16.msra.mxu0 0
    %5715 = vmatprep.subr.bf16.mxu0 0
    %5716 = vmatpush1.bf16.msra.mxu0 0
    %5717 = vmatprep.subr.bf16.mxu0 0
    %5718 = vmatpush1.bf16.msra.mxu0 0
    %5719 = vmatprep.mubr.bf16.mxu0 0
    %5720 = vmatmul.mubr.bf16.gmra.mrb[0].mxu0 %v5682
    %v5721 = vpop.f32.mrb[0].mxu0
    %v5722 = vadd.f32 %v5677, %v5721
    %v5723 = vpop.f32.mrb[0].mxu0
    %v5724 = vpop.f32.mrb[0].mxu0
    %v5725 = vadd.f32 %v5677, %v5724
    %v5726 = vpop.f32.mrb[0].mxu0
    %5727 = vmatprep.mubr.bf16.mxu0 0
    %5728 = vmatmul.mubr.bf16.gmra.mrb[0].mxu0 %v5685
    %v5729 = vpop.f32.mrb[0].mxu0
    %v5730 = vadd.f32 %v5677, %v5729
    %v5731 = vpop.f32.mrb[0].mxu0
    %v5732 = vpop.f32.mrb[0].mxu0
    %v5733 = vadd.f32 %v5677, %v5732
    %v5734 = vpop.f32.mrb[0].mxu0
    %5735 = vdwg.mxu0
    %v5736 = vxor.u32 %v5722, 2147483648
    %v5737 = vxor.u32 %v5725, 2147483648
    %v5738 = vxor.u32 %v5730, 2147483648
    %v5739 = vxor.u32 %v5733, 2147483648
    %v5740 = vmul.f32 %v5736, 1.442695
    %v5741 = vpow.pop %v5740
    %v5742 = vmul.f32 %v5737, 1.442695
    %v5743 = vpow.pop %v5742
    %v5744 = vmul.f32 %v5738, 1.442695
    %v5745 = vpow.pop %v5744
    %v5746 = vmul.f32 %v5739, 1.442695
    %v5747 = vpow.pop %v5746
    %v5748 = vadd.f32 %v5741, 1.0
    %v5749 = vadd.f32 %v5743, 1.0
    %v5750 = vadd.f32 %v5745, 1.0
    %v5751 = vadd.f32 %v5747, 1.0
    %v5752 = vrcp.pop %v5748
    %v5753 = vmul.f32 1.0, %v5752
    %v5754 = vrcp.pop %v5749
    %v5755 = vmul.f32 1.0, %v5754
    %v5756 = vrcp.pop %v5750
    %v5757 = vmul.f32 1.0, %v5756
    %v5758 = vrcp.pop %v5751
    %v5759 = vmul.f32 1.0, %v5758
    %v5760 = vmul.f32 %v5722, %v5753
    %v5761 = vmul.f32 %v5725, %v5755
    %v5762 = vmul.f32 %v5730, %v5757
    %v5763 = vmul.f32 %v5733, %v5759
    %v5764 = vadd.f32 %v5574, %v5760
    %v5765 = vadd.f32 %v5575, %v5761
    %v5766 = vadd.f32 %v5576, %v5762
    %v5767 = vadd.f32 %v5577, %v5763
    %v5768 = vpack.c.bf16 %v5765, %v5764
    %v5769 = vpack.c.bf16 %v5767, %v5766
    %v5770 = vld [vmem:[%s4 + $0x7] sm:$0x1]
    %v5771 = vlaneseq
    %v5772 = vshrl.u32 %v5771, 7
    %v5773 = vsub.s32 0, %v5772
    %v5774 = vrot.slane %v5770, %v5773
    %5775 = vrot.lane.b32.xlu0 %v5387, 64
    %v5776 = vpop.permute.xlu0 %5775
    %v5779 = vsel %vm4194, %v5768, 0
    %v5782 = vsel %vm4194, %v5769, 0
    %5784 = vmatprep.subr.bf16.mxu0 0
    %5785 = vmatpush1.bf16.msra.mxu0 %v5776
    %5786 = vmatprep.subr.bf16.mxu0 0
    %5787 = vmatpush1.bf16.msra.mxu0 0
    %5788 = vmatprep.subr.bf16.mxu0 0
    %5789 = vmatpush1.bf16.msra.mxu0 0
    %5790 = vmatprep.subr.bf16.mxu0 0
    %5791 = vmatpush1.bf16.msra.mxu0 0
    %5792 = vmatprep.subr.bf16.mxu0 0
    %5793 = vmatpush1.bf16.msra.mxu0 0
    %5794 = vmatprep.subr.bf16.mxu0 0
    %5795 = vmatpush1.bf16.msra.mxu0 0
    %5796 = vmatprep.subr.bf16.mxu0 0
    %5797 = vmatpush1.bf16.msra.mxu0 0
    %5798 = vmatprep.subr.bf16.mxu0 0
    %5799 = vmatpush1.bf16.msra.mxu0 0
    %5800 = vmatprep.subr.bf16.mxu0 0
    %5801 = vmatpush1.bf16.msra.mxu0 0
    %5802 = vmatprep.subr.bf16.mxu0 0
    %5803 = vmatpush1.bf16.msra.mxu0 0
    %5804 = vmatprep.subr.bf16.mxu0 0
    %5805 = vmatpush1.bf16.msra.mxu0 0
    %5806 = vmatprep.subr.bf16.mxu0 0
    %5807 = vmatpush1.bf16.msra.mxu0 0
    %5808 = vmatprep.subr.bf16.mxu0 0
    %5809 = vmatpush1.bf16.msra.mxu0 0
    %5810 = vmatprep.subr.bf16.mxu0 0
    %5811 = vmatpush1.bf16.msra.mxu0 0
    %5812 = vmatprep.subr.bf16.mxu0 0
    %5813 = vmatpush1.bf16.msra.mxu0 0
    %5814 = vmatprep.subr.bf16.mxu0 0
    %5815 = vmatpush1.bf16.msra.mxu0 0
    %5816 = vmatprep.mubr.bf16.mxu0 0
    %5817 = vmatmul.mubr.bf16.gmra.mrb[0].mxu0 %v5779
    %v5818 = vpop.f32.mrb[0].mxu0
    %v5819 = vadd.f32 %v5774, %v5818
    %v5820 = vpop.f32.mrb[0].mxu0
    %v5821 = vpop.f32.mrb[0].mxu0
    %v5822 = vadd.f32 %v5774, %v5821
    %v5823 = vpop.f32.mrb[0].mxu0
    %5824 = vmatprep.mubr.bf16.mxu0 0
    %5825 = vmatmul.mubr.bf16.gmra.mrb[0].mxu0 %v5782
    %v5826 = vpop.f32.mrb[0].mxu0
    %v5827 = vadd.f32 %v5774, %v5826
    %v5828 = vpop.f32.mrb[0].mxu0
    %v5829 = vpop.f32.mrb[0].mxu0
    %v5830 = vadd.f32 %v5774, %v5829
    %v5831 = vpop.f32.mrb[0].mxu0
    %5832 = vdwg.mxu0
    %v5833 = vxor.u32 %v5819, 2147483648
    %v5834 = vxor.u32 %v5822, 2147483648
    %v5835 = vxor.u32 %v5827, 2147483648
    %v5836 = vxor.u32 %v5830, 2147483648
    %v5837 = vmul.f32 %v5833, 1.442695
    %v5838 = vpow.pop %v5837
    %v5839 = vmul.f32 %v5834, 1.442695
    %v5840 = vpow.pop %v5839
    %v5841 = vmul.f32 %v5835, 1.442695
    %v5842 = vpow.pop %v5841
    %v5843 = vmul.f32 %v5836, 1.442695
    %v5844 = vpow.pop %v5843
    %v5845 = vadd.f32 %v5838, 1.0
    %v5846 = vadd.f32 %v5840, 1.0
    %v5847 = vadd.f32 %v5842, 1.0
    %v5848 = vadd.f32 %v5844, 1.0
    %v5849 = vrcp.pop %v5845
    %v5850 = vmul.f32 1.0, %v5849
    %v5851 = vrcp.pop %v5846
    %v5852 = vmul.f32 1.0, %v5851
    %v5853 = vrcp.pop %v5847
    %v5854 = vmul.f32 1.0, %v5853
    %v5855 = vrcp.pop %v5848
    %v5856 = vmul.f32 1.0, %v5855
    %v5857 = vmul.f32 %v5819, %v5850
    %v5858 = vmul.f32 %v5822, %v5852
    %v5859 = vmul.f32 %v5827, %v5854
    %v5860 = vmul.f32 %v5830, %v5856
    %v5861 = vpack.c.bf16 %v5858, %v5857
    %v5862 = vpack.c.bf16 %v5860, %v5859
    %v5863 = vld [vmem:[%s4 + $0x8] sm:$0x1]
    %v5864 = vlaneseq
    %v5865 = vshrl.u32 %v5864, 7
    %v5866 = vsub.s32 0, %v5865
    %v5867 = vrot.slane %v5863, %v5866
    %5868 = vrot.lane.b32.xlu0 %v5387, 48
    %v5869 = vpop.permute.xlu0 %5868
    %v5872 = vsel %vm4194, %v5861, 0
    %v5875 = vsel %vm4194, %v5862, 0
    %5877 = vmatprep.subr.bf16.mxu0 0
    %5878 = vmatpush1.bf16.msra.mxu0 %v5869
    %5879 = vmatprep.subr.bf16.mxu0 0
    %5880 = vmatpush1.bf16.msra.mxu0 0
    %5881 = vmatprep.subr.bf16.mxu0 0
    %5882 = vmatpush1.bf16.msra.mxu0 0
    %5883 = vmatprep.subr.bf16.mxu0 0
    %5884 = vmatpush1.bf16.msra.mxu0 0
    %5885 = vmatprep.subr.bf16.mxu0 0
    %5886 = vmatpush1.bf16.msra.mxu0 0
    %5887 = vmatprep.subr.bf16.mxu0 0
    %5888 = vmatpush1.bf16.msra.mxu0 0
    %5889 = vmatprep.subr.bf16.mxu0 0
    %5890 = vmatpush1.bf16.msra.mxu0 0
    %5891 = vmatprep.subr.bf16.mxu0 0
    %5892 = vmatpush1.bf16.msra.mxu0 0
    %5893 = vmatprep.subr.bf16.mxu0 0
    %5894 = vmatpush1.bf16.msra.mxu0 0
    %5895 = vmatprep.subr.bf16.mxu0 0
    %5896 = vmatpush1.bf16.msra.mxu0 0
    %5897 = vmatprep.subr.bf16.mxu0 0
    %5898 = vmatpush1.bf16.msra.mxu0 0
    %5899 = vmatprep.subr.bf16.mxu0 0
    %5900 = vmatpush1.bf16.msra.mxu0 0
    %5901 = vmatprep.subr.bf16.mxu0 0
    %5902 = vmatpush1.bf16.msra.mxu0 0
    %5903 = vmatprep.subr.bf16.mxu0 0
    %5904 = vmatpush1.bf16.msra.mxu0 0
    %5905 = vmatprep.subr.bf16.mxu0 0
    %5906 = vmatpush1.bf16.msra.mxu0 0
    %5907 = vmatprep.subr.bf16.mxu0 0
    %5908 = vmatpush1.bf16.msra.mxu0 0
    %5909 = vmatprep.mubr.bf16.mxu0 0
    %5910 = vmatmul.mubr.bf16.gmra.mrb[0].mxu0 %v5872
    %v5911 = vpop.f32.mrb[0].mxu0
    %v5912 = vadd.f32 %v5867, %v5911
    %v5913 = vpop.f32.mrb[0].mxu0
    %v5914 = vpop.f32.mrb[0].mxu0
    %v5915 = vadd.f32 %v5867, %v5914
    %v5916 = vpop.f32.mrb[0].mxu0
    %5917 = vmatprep.mubr.bf16.mxu0 0
    %5918 = vmatmul.mubr.bf16.gmra.mrb[0].mxu0 %v5875
    %v5919 = vpop.f32.mrb[0].mxu0
    %v5920 = vadd.f32 %v5867, %v5919
    %v5921 = vpop.f32.mrb[0].mxu0
    %v5922 = vpop.f32.mrb[0].mxu0
    %v5923 = vadd.f32 %v5867, %v5922
    %v5924 = vpop.f32.mrb[0].mxu0
    %5925 = vdwg.mxu0
    %v5926 = vxor.u32 %v5912, 2147483648
    %v5927 = vxor.u32 %v5915, 2147483648
    %v5928 = vxor.u32 %v5920, 2147483648
    %v5929 = vxor.u32 %v5923, 2147483648
    %v5930 = vmul.f32 %v5926, 1.442695
    %v5931 = vpow.pop %v5930
    %v5932 = vmul.f32 %v5927, 1.442695
    %v5933 = vpow.pop %v5932
    %v5934 = vmul.f32 %v5928, 1.442695
    %v5935 = vpow.pop %v5934
    %v5936 = vmul.f32 %v5929, 1.442695
    %v5937 = vpow.pop %v5936
    %v5938 = vadd.f32 %v5931, 1.0
    %v5939 = vadd.f32 %v5933, 1.0
    %v5940 = vadd.f32 %v5935, 1.0
    %v5941 = vadd.f32 %v5937, 1.0
    %v5942 = vrcp.pop %v5938
    %v5943 = vmul.f32 1.0, %v5942
    %v5944 = vrcp.pop %v5939
    %v5945 = vmul.f32 1.0, %v5944
    %v5946 = vrcp.pop %v5940
    %v5947 = vmul.f32 1.0, %v5946
    %v5948 = vrcp.pop %v5941
    %v5949 = vmul.f32 1.0, %v5948
    %v5950 = vmul.f32 %v5912, %v5943
    %v5951 = vmul.f32 %v5915, %v5945
    %v5952 = vmul.f32 %v5920, %v5947
    %v5953 = vmul.f32 %v5923, %v5949
    %v5954 = vadd.f32 %v5764, %v5950
    %v5955 = vadd.f32 %v5765, %v5951
    %v5956 = vadd.f32 %v5766, %v5952
    %v5957 = vadd.f32 %v5767, %v5953
    %v5958 = vld [vmem:[#allocation2 + $0x10] sm:$0xff]
    %v5959 = vld [vmem:[#allocation2 + $0x18] sm:$0xff]
    %v5960 = vld [vmem:[#allocation2 + $0x38] sm:$0xff]
    %v5961 = vld [vmem:[#allocation2 + $0x40] sm:$0xff]
    %v5962 = vpack.c.bf16 %v5955, %v5954
    %v5963 = vpack.c.bf16 %v5957, %v5956
    %v5964 = vpack.c.bf16 %v5960, %v5958
    %v5965 = vpack.c.bf16 %v5961, %v5959
    %v5966 = vld [vmem:[%s4 + $0x15] sm:$0x1]
    %v5967 = vlaneseq
    %v5968 = vshrl.u32 %v5967, 7
    %v5969 = vsub.s32 0, %v5968
    %v5970 = vrot.slane %v5966, %v5969
    %5973 = vrot.lane.b32.xlu0 %v5964, 16
    %v5974 = vpop.permute.xlu0 %5973
    %5975 = vrot.lane.b32.xlu0 %v5965, 16
    %v5976 = vpop.permute.xlu0 %5975
    %vm5977 = vcmask 130048
    %v5978 = vsel %vm5977, %v5974, %v5976
    %v5981 = vsel %vm4194, %v5962, 0
    %v5984 = vsel %vm4194, %v5963, 0
    %5986 = vmatprep.subr.bf16.mxu0 0
    %5987 = vmatpush1.bf16.msra.mxu0 %v5978
    %5988 = vmatprep.subr.bf16.mxu0 0
    %5989 = vmatpush1.bf16.msra.mxu0 0
    %5990 = vmatprep.subr.bf16.mxu0 0
    %5991 = vmatpush1.bf16.msra.mxu0 0
    %5992 = vmatprep.subr.bf16.mxu0 0
    %5993 = vmatpush1.bf16.msra.mxu0 0
    %5994 = vmatprep.subr.bf16.mxu0 0
    %5995 = vmatpush1.bf16.msra.mxu0 0
    %5996 = vmatprep.subr.bf16.mxu0 0
    %5997 = vmatpush1.bf16.msra.mxu0 0
    %5998 = vmatprep.subr.bf16.mxu0 0
    %5999 = vmatpush1.bf16.msra.mxu0 0
    %6000 = vmatprep.subr.bf16.mxu0 0
    %6001 = vmatpush1.bf16.msra.mxu0 0
    %6002 = vmatprep.subr.bf16.mxu0 0
    %6003 = vmatpush1.bf16.msra.mxu0 0
    %6004 = vmatprep.subr.bf16.mxu0 0
    %6005 = vmatpush1.bf16.msra.mxu0 0
    %6006 = vmatprep.subr.bf16.mxu0 0
    %6007 = vmatpush1.bf16.msra.mxu0 0
    %6008 = vmatprep.subr.bf16.mxu0 0
    %6009 = vmatpush1.bf16.msra.mxu0 0
    %6010 = vmatprep.subr.bf16.mxu0 0
    %6011 = vmatpush1.bf16.msra.mxu0 0
    %6012 = vmatprep.subr.bf16.mxu0 0
    %6013 = vmatpush1.bf16.msra.mxu0 0
    %6014 = vmatprep.subr.bf16.mxu0 0
    %6015 = vmatpush1.bf16.msra.mxu0 0
    %6016 = vmatprep.subr.bf16.mxu0 0
    %6017 = vmatpush1.bf16.msra.mxu0 0
    %6018 = vmatprep.mubr.bf16.mxu0 0
    %6019 = vmatmul.mubr.bf16.gmra.mrb[0].mxu0 %v5981
    %v6020 = vpop.f32.mrb[0].mxu0
    %v6021 = vadd.f32 %v5970, %v6020
    %v6022 = vpop.f32.mrb[0].mxu0
    %v6023 = vpop.f32.mrb[0].mxu0
    %v6024 = vadd.f32 %v5970, %v6023
    %v6025 = vpop.f32.mrb[0].mxu0
    %6026 = vmatprep.mubr.bf16.mxu0 0
    %6027 = vmatmul.mubr.bf16.gmra.mrb[0].mxu0 %v5984
    %v6028 = vpop.f32.mrb[0].mxu0
    %v6029 = vadd.f32 %v5970, %v6028
    %v6030 = vpop.f32.mrb[0].mxu0
    %v6031 = vpop.f32.mrb[0].mxu0
    %v6032 = vadd.f32 %v5970, %v6031
    %v6033 = vpop.f32.mrb[0].mxu0
    %6034 = vdwg.mxu0
    %v6035 = vxor.u32 %v6021, 2147483648
    %v6036 = vxor.u32 %v6024, 2147483648
    %v6037 = vxor.u32 %v6029, 2147483648
    %v6038 = vxor.u32 %v6032, 2147483648
    %v6039 = vmul.f32 %v6035, 1.442695
    %v6040 = vpow.pop %v6039
    %v6041 = vmul.f32 %v6036, 1.442695
    %v6042 = vpow.pop %v6041
    %v6043 = vmul.f32 %v6037, 1.442695
    %v6044 = vpow.pop %v6043
    %v6045 = vmul.f32 %v6038, 1.442695
    %v6046 = vpow.pop %v6045
    %v6047 = vadd.f32 %v6040, 1.0
    %v6048 = vadd.f32 %v6042, 1.0
    %v6049 = vadd.f32 %v6044, 1.0
    %v6050 = vadd.f32 %v6046, 1.0
    %v6051 = vrcp.pop %v6047
    %v6052 = vmul.f32 1.0, %v6051
    %v6053 = vrcp.pop %v6048
    %v6054 = vmul.f32 1.0, %v6053
    %v6055 = vrcp.pop %v6049
    %v6056 = vmul.f32 1.0, %v6055
    %v6057 = vrcp.pop %v6050
    %v6058 = vmul.f32 1.0, %v6057
    %v6059 = vmul.f32 %v6021, %v6052
    %v6060 = vmul.f32 %v6024, %v6054
    %v6061 = vmul.f32 %v6029, %v6056
    %v6062 = vmul.f32 %v6032, %v6058
    %6067 = vrot.lane.b32.xlu0 %v4236, 112
    %v6068 = vpop.permute.xlu0 %6067
    %6069 = vrot.lane.b32.xlu0 %v4239, 112
    %v6070 = vpop.permute.xlu0 %6069
    %6071 = vrot.lane.b32.xlu0 %v4244, 112
    %v6072 = vpop.permute.xlu0 %6071
    %6073 = vrot.lane.b32.xlu0 %v4247, 112
    %v6074 = vpop.permute.xlu0 %6073
    %v6079 = vmul.f32 %v6059, %v6068
    %v6080 = vmul.f32 %v6060, %v6070
    %v6081 = vmul.f32 %v6061, %v6072
    %v6082 = vmul.f32 %v6062, %v6074
    %v6083 = vpack.c.bf16 %v6080, %v6079
    %v6084 = vpack.c.bf16 %v6082, %v6081
    %6087 = vrot.lane.b32.xlu0 %v6083, 112
    %v6088 = vpop.permute.xlu0 %6087
    %6089 = vrot.lane.b32.xlu0 %v6084, 112
    %v6090 = vpop.permute.xlu0 %6089
    %v6093 = vsel %vm3940, %v6090, 0
    %6095 = vmatprep.subr.bf16.mxu0 0
    %6096 = vmatpush1.bf16.msra.mxu0 %v6088
    %6097 = vmatprep.subr.bf16.mxu0 0
    %6098 = vmatpush1.bf16.msra.mxu0 %v6093
    %6099 = vmatprep.subr.bf16.mxu0 0
    %6100 = vmatpush1.bf16.msra.mxu0 0
    %6101 = vmatprep.subr.bf16.mxu0 0
    %6102 = vmatpush1.bf16.msra.mxu0 0
    %6103 = vmatprep.subr.bf16.mxu0 0
    %6104 = vmatpush1.bf16.msra.mxu0 0
    %6105 = vmatprep.subr.bf16.mxu0 0
    %6106 = vmatpush1.bf16.msra.mxu0 0
    %6107 = vmatprep.subr.bf16.mxu0 0
    %6108 = vmatpush1.bf16.msra.mxu0 0
    %6109 = vmatprep.subr.bf16.mxu0 0
    %6110 = vmatpush1.bf16.msra.mxu0 0
    %6111 = vmatprep.subr.bf16.mxu0 0
    %6112 = vmatpush1.bf16.msra.mxu0 0
    %6113 = vmatprep.subr.bf16.mxu0 0
    %6114 = vmatpush1.bf16.msra.mxu0 0
    %6115 = vmatprep.subr.bf16.mxu0 0
    %6116 = vmatpush1.bf16.msra.mxu0 0
    %6117 = vmatprep.subr.bf16.mxu0 0
    %6118 = vmatpush1.bf16.msra.mxu0 0
    %6119 = vmatprep.subr.bf16.mxu0 0
    %6120 = vmatpush1.bf16.msra.mxu0 0
    %6121 = vmatprep.subr.bf16.mxu0 0
    %6122 = vmatpush1.bf16.msra.mxu0 0
    %6123 = vmatprep.subr.bf16.mxu0 0
    %6124 = vmatpush1.bf16.msra.mxu0 0
    %6125 = vmatprep.subr.bf16.mxu0 0
    %6126 = vmatpush1.bf16.msra.mxu0 0
    %6127 = vmatprep.mubr.bf16.mxu0 0
    %6128 = vmatmul.mubr.bf16.gmra.mrb[0].mxu0 %v3917
    %v6129 = vpop.f32.mrb[0].mxu0
    %v6130 = vadd.f32 0.0, %v6129
    %v6131 = vpop.f32.mrb[0].mxu0
    %v6132 = vpop.f32.mrb[0].mxu0
    %v6133 = vadd.f32 0.0, %v6132
    %v6134 = vpop.f32.mrb[0].mxu0
    %6135 = vmatprep.mubr.bf16.mxu0 0
    %6136 = vmatmul.mubr.bf16.gmra.mrb[0].mxu0 %v3920
    %v6137 = vpop.f32.mrb[0].mxu0
    %v6138 = vadd.f32 0.0, %v6137
    %v6139 = vpop.f32.mrb[0].mxu0
    %v6140 = vpop.f32.mrb[0].mxu0
    %v6141 = vadd.f32 0.0, %v6140
    %v6142 = vpop.f32.mrb[0].mxu0
    %6143 = vmatprep.mubr.bf16.mxu0 0
    %6144 = vmatmul.mubr.bf16.gmra.mrb[0].mxu0 %v3923
    %v6145 = vpop.f32.mrb[0].mxu0
    %v6146 = vadd.f32 0.0, %v6145
    %v6147 = vpop.f32.mrb[0].mxu0
    %v6148 = vpop.f32.mrb[0].mxu0
    %v6149 = vadd.f32 0.0, %v6148
    %v6150 = vpop.f32.mrb[0].mxu0
    %6151 = vmatprep.mubr.bf16.mxu0 0
    %6152 = vmatmul.mubr.bf16.gmra.mrb[0].mxu0 %v3926
    %v6153 = vpop.f32.mrb[0].mxu0
    %v6154 = vadd.f32 0.0, %v6153
    %v6155 = vpop.f32.mrb[0].mxu0
    %v6156 = vpop.f32.mrb[0].mxu0
    %v6157 = vadd.f32 0.0, %v6156
    %v6158 = vpop.f32.mrb[0].mxu0
    %6159 = vmatprep.mubr.bf16.mxu0 0
    %6160 = vmatmul.mubr.bf16.gmra.mrb[0].mxu0 %v3929
    %v6161 = vpop.f32.mrb[0].mxu0
    %v6162 = vadd.f32 0.0, %v6161
    %v6163 = vpop.f32.mrb[0].mxu0
    %v6164 = vpop.f32.mrb[0].mxu0
    %v6165 = vadd.f32 0.0, %v6164
    %v6166 = vpop.f32.mrb[0].mxu0
    %6167 = vmatprep.mubr.bf16.mxu0 0
    %6168 = vmatmul.mubr.bf16.gmra.mrb[0].mxu0 %v3932
    %v6169 = vpop.f32.mrb[0].mxu0
    %v6170 = vadd.f32 0.0, %v6169
    %v6171 = vpop.f32.mrb[0].mxu0
    %v6172 = vpop.f32.mrb[0].mxu0
    %v6173 = vadd.f32 0.0, %v6172
    %v6174 = vpop.f32.mrb[0].mxu0
    %6175 = vmatprep.mubr.bf16.mxu0 0
    %6176 = vmatmul.mubr.bf16.gmra.mrb[0].mxu0 %v3935
    %v6177 = vpop.f32.mrb[0].mxu0
    %v6178 = vadd.f32 0.0, %v6177
    %v6179 = vpop.f32.mrb[0].mxu0
    %v6180 = vpop.f32.mrb[0].mxu0
    %v6181 = vadd.f32 0.0, %v6180
    %v6182 = vpop.f32.mrb[0].mxu0
    %6183 = vmatprep.mubr.bf16.mxu0 0
    %6184 = vmatmul.mubr.bf16.gmra.mrb[0].mxu0 %v3938
    %v6185 = vpop.f32.mrb[0].mxu0
    %v6186 = vadd.f32 0.0, %v6185
    %v6187 = vpop.f32.mrb[0].mxu0
    %v6188 = vpop.f32.mrb[0].mxu0
    %v6189 = vpop.f32.mrb[0].mxu0
    %6190 = vdwg.mxu0
    %6191 = vset.pattern.permute.xlu0 2
    %6192 = vperm.xlu0 %6191, %v4360
    %v6193 = vpop.permute.xlu0 %6192
    %6195 = vset.pattern.permute.xlu0 2
    %6196 = vperm.xlu0 %6195, %v4363
    %v6197 = vpop.permute.xlu0 %6196
    %6199 = vset.pattern.permute.xlu0 2
    %6200 = vperm.xlu0 %6199, %v4368
    %v6201 = vpop.permute.xlu0 %6200
    %6203 = vset.pattern.permute.xlu0 2
    %6204 = vperm.xlu0 %6203, %v4371
    %v6205 = vpop.permute.xlu0 %6204
    %6207 = vset.pattern.permute.xlu0 2
    %6208 = vperm.xlu0 %6207, %v4376
    %v6209 = vpop.permute.xlu0 %6208
    %6211 = vset.pattern.permute.xlu0 2
    %6212 = vperm.xlu0 %6211, %v4379
    %v6213 = vpop.permute.xlu0 %6212
    %6215 = vset.pattern.permute.xlu0 2
    %6216 = vperm.xlu0 %6215, %v4384
    %v6217 = vpop.permute.xlu0 %6216
    %6219 = vset.pattern.permute.xlu0 2
    %6220 = vperm.xlu0 %6219, %v4387
    %v6221 = vpop.permute.xlu0 %6220
    %6223 = vset.pattern.permute.xlu0 2
    %6224 = vperm.xlu0 %6223, %v4392
    %v6225 = vpop.permute.xlu0 %6224
    %6227 = vset.pattern.permute.xlu0 2
    %6228 = vperm.xlu0 %6227, %v4395
    %v6229 = vpop.permute.xlu0 %6228
    %6231 = vset.pattern.permute.xlu0 2
    %6232 = vperm.xlu0 %6231, %v4400
    %v6233 = vpop.permute.xlu0 %6232
    %6235 = vset.pattern.permute.xlu0 2
    %6236 = vperm.xlu0 %6235, %v4403
    %v6237 = vpop.permute.xlu0 %6236
    %6239 = vset.pattern.permute.xlu0 2
    %6240 = vperm.xlu0 %6239, %v4408
    %v6241 = vpop.permute.xlu0 %6240
    %6243 = vset.pattern.permute.xlu0 2
    %6244 = vperm.xlu0 %6243, %v4411
    %v6245 = vpop.permute.xlu0 %6244
    %6247 = vset.pattern.permute.xlu0 2
    %6248 = vperm.xlu0 %6247, %v4416
    %v6249 = vpop.permute.xlu0 %6248
    %v6251 = vmul.f32 %v6130, %v6193
    %v6252 = vmul.f32 %v6133, %v6197
    %v6253 = vmul.f32 %v6138, %v6201
    %v6254 = vmul.f32 %v6141, %v6205
    %v6255 = vmul.f32 %v6146, %v6209
    %v6256 = vmul.f32 %v6149, %v6213
    %v6257 = vmul.f32 %v6154, %v6217
    %v6258 = vmul.f32 %v6157, %v6221
    %v6259 = vmul.f32 %v6162, %v6225
    %v6260 = vmul.f32 %v6165, %v6229
    %v6261 = vmul.f32 %v6170, %v6233
    %v6262 = vmul.f32 %v6173, %v6237
    %v6263 = vmul.f32 %v6178, %v6241
    %v6264 = vmul.f32 %v6181, %v6245
    %v6265 = vmul.f32 %v6186, %v6249
    %6266 = vset.pattern.permute.xlu0 3
    %6267 = vperm.xlu0 %6266, %v4360
    %v6268 = vpop.permute.xlu0 %6267
    %6270 = vset.pattern.permute.xlu0 3
    %6271 = vperm.xlu0 %6270, %v4363
    %v6272 = vpop.permute.xlu0 %6271
    %6274 = vset.pattern.permute.xlu0 3
    %6275 = vperm.xlu0 %6274, %v4368
    %v6276 = vpop.permute.xlu0 %6275
    %6278 = vset.pattern.permute.xlu0 3
    %6279 = vperm.xlu0 %6278, %v4371
    %v6280 = vpop.permute.xlu0 %6279
    %6282 = vset.pattern.permute.xlu0 3
    %6283 = vperm.xlu0 %6282, %v4376
    %v6284 = vpop.permute.xlu0 %6283
    %6286 = vset.pattern.permute.xlu0 3
    %6287 = vperm.xlu0 %6286, %v4379
    %v6288 = vpop.permute.xlu0 %6287
    %6290 = vset.pattern.permute.xlu0 3
    %6291 = vperm.xlu0 %6290, %v4384
    %v6292 = vpop.permute.xlu0 %6291
    %6294 = vset.pattern.permute.xlu0 3
    %6295 = vperm.xlu0 %6294, %v4387
    %v6296 = vpop.permute.xlu0 %6295
    %6298 = vset.pattern.permute.xlu0 3
    %6299 = vperm.xlu0 %6298, %v4392
    %v6300 = vpop.permute.xlu0 %6299
    %6302 = vset.pattern.permute.xlu0 3
    %6303 = vperm.xlu0 %6302, %v4395
    %v6304 = vpop.permute.xlu0 %6303
    %6306 = vset.pattern.permute.xlu0 3
    %6307 = vperm.xlu0 %6306, %v4400
    %v6308 = vpop.permute.xlu0 %6307
    %6310 = vset.pattern.permute.xlu0 3
    %6311 = vperm.xlu0 %6310, %v4403
    %v6312 = vpop.permute.xlu0 %6311
    %6314 = vset.pattern.permute.xlu0 3
    %6315 = vperm.xlu0 %6314, %v4408
    %v6316 = vpop.permute.xlu0 %6315
    %6318 = vset.pattern.permute.xlu0 3
    %6319 = vperm.xlu0 %6318, %v4411
    %v6320 = vpop.permute.xlu0 %6319
    %6322 = vset.pattern.permute.xlu0 3
    %6323 = vperm.xlu0 %6322, %v4416
    %v6324 = vpop.permute.xlu0 %6323
    %v6326 = vmul.f32 %v6130, %v6268
    %v6327 = vmul.f32 %v6133, %v6272
    %v6328 = vmul.f32 %v6138, %v6276
    %v6329 = vmul.f32 %v6141, %v6280
    %v6330 = vmul.f32 %v6146, %v6284
    %v6331 = vmul.f32 %v6149, %v6288
    %v6332 = vmul.f32 %v6154, %v6292
    %v6333 = vmul.f32 %v6157, %v6296
    %v6334 = vmul.f32 %v6162, %v6300
    %v6335 = vmul.f32 %v6165, %v6304
    %v6336 = vmul.f32 %v6170, %v6308
    %v6337 = vmul.f32 %v6173, %v6312
    %v6338 = vmul.f32 %v6178, %v6316
    %v6339 = vmul.f32 %v6181, %v6320
    %v6340 = vmul.f32 %v6186, %v6324
    %6356 = vrot.lane.b32.xlu0 %v6326, 16
    %v6357 = vpop.permute.xlu0 %6356
    %6358 = vrot.lane.b32.xlu0 %v6327, 16
    %v6359 = vpop.permute.xlu0 %6358
    %6360 = vrot.lane.b32.xlu0 %v6328, 16
    %v6361 = vpop.permute.xlu0 %6360
    %6362 = vrot.lane.b32.xlu0 %v6329, 16
    %v6363 = vpop.permute.xlu0 %6362
    %6364 = vrot.lane.b32.xlu0 %v6330, 16
    %v6365 = vpop.permute.xlu0 %6364
    %6366 = vrot.lane.b32.xlu0 %v6331, 16
    %v6367 = vpop.permute.xlu0 %6366
    %6368 = vrot.lane.b32.xlu0 %v6332, 16
    %v6369 = vpop.permute.xlu0 %6368
    %6370 = vrot.lane.b32.xlu0 %v6333, 16
    %v6371 = vpop.permute.xlu0 %6370
    %6372 = vrot.lane.b32.xlu0 %v6334, 16
    %v6373 = vpop.permute.xlu0 %6372
    %6374 = vrot.lane.b32.xlu0 %v6335, 16
    %v6375 = vpop.permute.xlu0 %6374
    %6376 = vrot.lane.b32.xlu0 %v6336, 16
    %v6377 = vpop.permute.xlu0 %6376
    %6378 = vrot.lane.b32.xlu0 %v6337, 16
    %v6379 = vpop.permute.xlu0 %6378
    %6380 = vrot.lane.b32.xlu0 %v6338, 16
    %v6381 = vpop.permute.xlu0 %6380
    %6382 = vrot.lane.b32.xlu0 %v6339, 16
    %v6383 = vpop.permute.xlu0 %6382
    %6384 = vrot.lane.b32.xlu0 %v6340, 16
    %v6385 = vpop.permute.xlu0 %6384
    %v6401 = vsel %vm4194, %v6251, %v6357
    %v6402 = vsel %vm4194, %v6252, %v6359
    %v6403 = vsel %vm4194, %v6253, %v6361
    %v6404 = vsel %vm4194, %v6254, %v6363
    %v6405 = vsel %vm4194, %v6255, %v6365
    %v6406 = vsel %vm4194, %v6256, %v6367
    %v6407 = vsel %vm4194, %v6257, %v6369
    %v6408 = vsel %vm4194, %v6258, %v6371
    %v6409 = vsel %vm4194, %v6259, %v6373
    %v6410 = vsel %vm4194, %v6260, %v6375
    %v6411 = vsel %vm4194, %v6261, %v6377
    %v6412 = vsel %vm4194, %v6262, %v6379
    %v6413 = vsel %vm4194, %v6263, %v6381
    %v6414 = vsel %vm4194, %v6264, %v6383
    %v6415 = vsel %vm4194, %v6265, %v6385
    %v6416 = vpack.c.bf16 %v6402, %v6401
    %v6417 = vpack.c.bf16 %v6404, %v6403
    %v6418 = vpack.c.bf16 %v6406, %v6405
    %v6419 = vpack.c.bf16 %v6408, %v6407
    %v6420 = vpack.c.bf16 %v6410, %v6409
    %v6421 = vpack.c.bf16 %v6412, %v6411
    %v6422 = vpack.c.bf16 %v6414, %v6413
    %v6423 = vpack.c.bf16 %v6415, %v6415
    %6424 = vrot.lane.b32.xlu0 %v5068, 96
    %v6425 = vpop.permute.xlu0 %6424
    %6426 = vrot.lane.b32.xlu0 %v5069, 96
    %v6427 = vpop.permute.xlu0 %6426
    %v6431 = vsel %vm4490, %v6416, 0
    %v6434 = vsel %vm4490, %v6417, 0
    %v6437 = vsel %vm4490, %v6418, 0
    %v6440 = vsel %vm4490, %v6419, 0
    %v6443 = vsel %vm4490, %v6420, 0
    %v6446 = vsel %vm4490, %v6421, 0
    %v6449 = vsel %vm4490, %v6422, 0
    %v6452 = vsel %vm4490, %v6423, 0
    %6454 = vmatprep.subr.bf16.mxu0 0
    %6455 = vmatpush1.bf16.msra.mxu0 %v6425
    %6456 = vmatprep.subr.bf16.mxu0 0
    %6457 = vmatpush1.bf16.msra.mxu0 %v6427
    %6458 = vmatprep.subr.bf16.mxu0 0
    %6459 = vmatpush1.bf16.msra.mxu0 0
    %6460 = vmatprep.subr.bf16.mxu0 0
    %6461 = vmatpush1.bf16.msra.mxu0 0
    %6462 = vmatprep.subr.bf16.mxu0 0
    %6463 = vmatpush1.bf16.msra.mxu0 0
    %6464 = vmatprep.subr.bf16.mxu0 0
    %6465 = vmatpush1.bf16.msra.mxu0 0
    %6466 = vmatprep.subr.bf16.mxu0 0
    %6467 = vmatpush1.bf16.msra.mxu0 0
    %6468 = vmatprep.subr.bf16.mxu0 0
    %6469 = vmatpush1.bf16.msra.mxu0 0
    %6470 = vmatprep.subr.bf16.mxu0 0
    %6471 = vmatpush1.bf16.msra.mxu0 0
    %6472 = vmatprep.subr.bf16.mxu0 0
    %6473 = vmatpush1.bf16.msra.mxu0 0
    %6474 = vmatprep.subr.bf16.mxu0 0
    %6475 = vmatpush1.bf16.msra.mxu0 0
    %6476 = vmatprep.subr.bf16.mxu0 0
    %6477 = vmatpush1.bf16.msra.mxu0 0
    %6478 = vmatprep.subr.bf16.mxu0 0
    %6479 = vmatpush1.bf16.msra.mxu0 0
    %6480 = vmatprep.subr.bf16.mxu0 0
    %6481 = vmatpush1.bf16.msra.mxu0 0
    %6482 = vmatprep.subr.bf16.mxu0 0
    %6483 = vmatpush1.bf16.msra.mxu0 0
    %6484 = vmatprep.subr.bf16.mxu0 0
    %6485 = vmatpush1.bf16.msra.mxu0 0
    %6486 = vmatprep.mubr.bf16.mxu0 0
    %6487 = vmatmul.mubr.bf16.gmra.mrb[0].mxu0 %v6431
    %v6488 = vpop.f32.mrb[0].mxu0
    %v6489 = vadd.f32 0.0, %v6488
    %v6490 = vpop.f32.mrb[0].mxu0
    %v6491 = vpop.f32.mrb[0].mxu0
    %v6492 = vadd.f32 0.0, %v6491
    %v6493 = vpop.f32.mrb[0].mxu0
    %6494 = vmatprep.mubr.bf16.mxu0 0
    %6495 = vmatmul.mubr.bf16.gmra.mrb[0].mxu0 %v6434
    %v6496 = vpop.f32.mrb[0].mxu0
    %v6497 = vadd.f32 0.0, %v6496
    %v6498 = vpop.f32.mrb[0].mxu0
    %v6499 = vpop.f32.mrb[0].mxu0
    %v6500 = vadd.f32 0.0, %v6499
    %v6501 = vpop.f32.mrb[0].mxu0
    %6502 = vmatprep.mubr.bf16.mxu0 0
    %6503 = vmatmul.mubr.bf16.gmra.mrb[0].mxu0 %v6437
    %v6504 = vpop.f32.mrb[0].mxu0
    %v6505 = vadd.f32 0.0, %v6504
    %v6506 = vpop.f32.mrb[0].mxu0
    %v6507 = vpop.f32.mrb[0].mxu0
    %v6508 = vadd.f32 0.0, %v6507
    %v6509 = vpop.f32.mrb[0].mxu0
    %6510 = vmatprep.mubr.bf16.mxu0 0
    %6511 = vmatmul.mubr.bf16.gmra.mrb[0].mxu0 %v6440
    %v6512 = vpop.f32.mrb[0].mxu0
    %v6513 = vadd.f32 0.0, %v6512
    %v6514 = vpop.f32.mrb[0].mxu0
    %v6515 = vpop.f32.mrb[0].mxu0
    %v6516 = vadd.f32 0.0, %v6515
    %v6517 = vpop.f32.mrb[0].mxu0
    %6518 = vmatprep.mubr.bf16.mxu0 0
    %6519 = vmatmul.mubr.bf16.gmra.mrb[0].mxu0 %v6443
    %v6520 = vpop.f32.mrb[0].mxu0
    %v6521 = vadd.f32 0.0, %v6520
    %v6522 = vpop.f32.mrb[0].mxu0
    %v6523 = vpop.f32.mrb[0].mxu0
    %v6524 = vadd.f32 0.0, %v6523
    %v6525 = vpop.f32.mrb[0].mxu0
    %6526 = vmatprep.mubr.bf16.mxu0 0
    %6527 = vmatmul.mubr.bf16.gmra.mrb[0].mxu0 %v6446
    %v6528 = vpop.f32.mrb[0].mxu0
    %v6529 = vadd.f32 0.0, %v6528
    %v6530 = vpop.f32.mrb[0].mxu0
    %v6531 = vpop.f32.mrb[0].mxu0
    %v6532 = vadd.f32 0.0, %v6531
    %v6533 = vpop.f32.mrb[0].mxu0
    %6534 = vmatprep.mubr.bf16.mxu0 0
    %6535 = vmatmul.mubr.bf16.gmra.mrb[0].mxu0 %v6449
    %v6536 = vpop.f32.mrb[0].mxu0
    %v6537 = vadd.f32 0.0, %v6536
    %v6538 = vpop.f32.mrb[0].mxu0
    %v6539 = vpop.f32.mrb[0].mxu0
    %v6540 = vadd.f32 0.0, %v6539
    %v6541 = vpop.f32.mrb[0].mxu0
    %6542 = vmatprep.mubr.bf16.mxu0 0
    %6543 = vmatmul.mubr.bf16.gmra.mrb[0].mxu0 %v6452
    %v6544 = vpop.f32.mrb[0].mxu0
    %v6545 = vadd.f32 0.0, %v6544
    %v6546 = vpop.f32.mrb[0].mxu0
    %v6547 = vpop.f32.mrb[0].mxu0
    %v6548 = vpop.f32.mrb[0].mxu0
    %6549 = vdwg.mxu0
    %v6550 = vpack.c.bf16 %v6492, %v6489
    %v6551 = vpack.c.bf16 %v6500, %v6497
    %v6552 = vpack.c.bf16 %v6508, %v6505
    %v6553 = vpack.c.bf16 %v6516, %v6513
    %v6554 = vpack.c.bf16 %v6524, %v6521
    %v6555 = vpack.c.bf16 %v6532, %v6529
    %v6556 = vpack.c.bf16 %v6540, %v6537
    %v6557 = vpack.c.bf16 %v6545, %v6545
    %v6559 = vsel %vm5232, %v6557, 0
    %6561 = vmatprep.subr.bf16.mxu0 0
    %6562 = vmatpush1.bf16.msra.mxu0 %v6550
    %6563 = vmatprep.subr.bf16.mxu0 0
    %6564 = vmatpush1.bf16.msra.mxu0 %v6551
    %6565 = vmatprep.subr.bf16.mxu0 0
    %6566 = vmatpush1.bf16.msra.mxu0 %v6552
    %6567 = vmatprep.subr.bf16.mxu0 0
    %6568 = vmatpush1.bf16.msra.mxu0 %v6553
    %6569 = vmatprep.subr.bf16.mxu0 0
    %6570 = vmatpush1.bf16.msra.mxu0 %v6554
    %6571 = vmatprep.subr.bf16.mxu0 0
    %6572 = vmatpush1.bf16.msra.mxu0 %v6555
    %6573 = vmatprep.subr.bf16.mxu0 0
    %6574 = vmatpush1.bf16.msra.mxu0 %v6556
    %6575 = vmatprep.subr.bf16.mxu0 0
    %6576 = vmatpush1.bf16.msra.mxu0 %v6559
    %6577 = vmatprep.subr.bf16.mxu0 0
    %6578 = vmatpush1.bf16.msra.mxu0 0
    %6579 = vmatprep.subr.bf16.mxu0 0
    %6580 = vmatpush1.bf16.msra.mxu0 0
    %6581 = vmatprep.subr.bf16.mxu0 0
    %6582 = vmatpush1.bf16.msra.mxu0 0
    %6583 = vmatprep.subr.bf16.mxu0 0
    %6584 = vmatpush1.bf16.msra.mxu0 0
    %6585 = vmatprep.subr.bf16.mxu0 0
    %6586 = vmatpush1.bf16.msra.mxu0 0
    %6587 = vmatprep.subr.bf16.mxu0 0
    %6588 = vmatpush1.bf16.msra.mxu0 0
    %6589 = vmatprep.subr.bf16.mxu0 0
    %6590 = vmatpush1.bf16.msra.mxu0 0
    %6591 = vmatprep.subr.bf16.mxu0 0
    %6592 = vmatpush1.bf16.msra.mxu0 0
    %6593 = vmatprep.mubr.bf16.mxu0 0
    %6594 = vmatmul.mubr.bf16.gmra.mrb[0].mxu0 %v5227
    %v6595 = vpop.f32.mrb[0].mxu0
    %v6596 = vadd.f32 0.0, %v6595
    %v6597 = vpop.f32.mrb[0].mxu0
    %v6598 = vpop.f32.mrb[0].mxu0
    %v6599 = vadd.f32 0.0, %v6598
    %v6600 = vpop.f32.mrb[0].mxu0
    %6601 = vmatprep.mubr.bf16.mxu0 0
    %6602 = vmatmul.mubr.bf16.gmra.mrb[0].mxu0 %v5230
    %v6603 = vpop.f32.mrb[0].mxu0
    %v6604 = vadd.f32 0.0, %v6603
    %v6605 = vpop.f32.mrb[0].mxu0
    %v6606 = vpop.f32.mrb[0].mxu0
    %v6607 = vadd.f32 0.0, %v6606
    %v6608 = vpop.f32.mrb[0].mxu0
    %6609 = vdwg.mxu0
    %v6610 = vadd.f32 %v6059, %v6596
    %v6611 = vadd.f32 %v6060, %v6599
    %v6612 = vadd.f32 %v6061, %v6604
    %v6613 = vadd.f32 %v6062, %v6607
    %v6614 = vpack.c.bf16 %v6611, %v6610
    %v6615 = vpack.c.bf16 %v6613, %v6612
    %v6616 = vld [vmem:[%s4 + $0x9] sm:$0x1]
    %v6617 = vlaneseq
    %v6618 = vshrl.u32 %v6617, 7
    %v6619 = vsub.s32 0, %v6618
    %v6620 = vrot.slane %v6616, %v6619
    %6621 = vrot.lane.b32.xlu0 %v5387, 32
    %v6622 = vpop.permute.xlu0 %6621
    %v6625 = vsel %vm4194, %v6614, 0
    %v6628 = vsel %vm4194, %v6615, 0
    %6630 = vmatprep.subr.bf16.mxu0 0
    %6631 = vmatpush1.bf16.msra.mxu0 %v6622
    %6632 = vmatprep.subr.bf16.mxu0 0
    %6633 = vmatpush1.bf16.msra.mxu0 0
    %6634 = vmatprep.subr.bf16.mxu0 0
    %6635 = vmatpush1.bf16.msra.mxu0 0
    %6636 = vmatprep.subr.bf16.mxu0 0
    %6637 = vmatpush1.bf16.msra.mxu0 0
    %6638 = vmatprep.subr.bf16.mxu0 0
    %6639 = vmatpush1.bf16.msra.mxu0 0
    %6640 = vmatprep.subr.bf16.mxu0 0
    %6641 = vmatpush1.bf16.msra.mxu0 0
    %6642 = vmatprep.subr.bf16.mxu0 0
    %6643 = vmatpush1.bf16.msra.mxu0 0
    %6644 = vmatprep.subr.bf16.mxu0 0
    %6645 = vmatpush1.bf16.msra.mxu0 0
    %6646 = vmatprep.subr.bf16.mxu0 0
    %6647 = vmatpush1.bf16.msra.mxu0 0
    %6648 = vmatprep.subr.bf16.mxu0 0
    %6649 = vmatpush1.bf16.msra.mxu0 0
    %6650 = vmatprep.subr.bf16.mxu0 0
    %6651 = vmatpush1.bf16.msra.mxu0 0
    %6652 = vmatprep.subr.bf16.mxu0 0
    %6653 = vmatpush1.bf16.msra.mxu0 0
    %6654 = vmatprep.subr.bf16.mxu0 0
    %6655 = vmatpush1.bf16.msra.mxu0 0
    %6656 = vmatprep.subr.bf16.mxu0 0
    %6657 = vmatpush1.bf16.msra.mxu0 0
    %6658 = vmatprep.subr.bf16.mxu0 0
    %6659 = vmatpush1.bf16.msra.mxu0 0
    %6660 = vmatprep.subr.bf16.mxu0 0
    %6661 = vmatpush1.bf16.msra.mxu0 0
    %6662 = vmatprep.mubr.bf16.mxu0 0
    %6663 = vmatmul.mubr.bf16.gmra.mrb[0].mxu0 %v6625
    %v6664 = vpop.f32.mrb[0].mxu0
    %v6665 = vadd.f32 %v6620, %v6664
    %v6666 = vpop.f32.mrb[0].mxu0
    %v6667 = vpop.f32.mrb[0].mxu0
    %v6668 = vadd.f32 %v6620, %v6667
    %v6669 = vpop.f32.mrb[0].mxu0
    %6670 = vmatprep.mubr.bf16.mxu0 0
    %6671 = vmatmul.mubr.bf16.gmra.mrb[0].mxu0 %v6628
    %v6672 = vpop.f32.mrb[0].mxu0
    %v6673 = vadd.f32 %v6620, %v6672
    %v6674 = vpop.f32.mrb[0].mxu0
    %v6675 = vpop.f32.mrb[0].mxu0
    %v6676 = vadd.f32 %v6620, %v6675
    %v6677 = vpop.f32.mrb[0].mxu0
    %6678 = vdwg.mxu0
    %v6679 = vxor.u32 %v6665, 2147483648
    %v6680 = vxor.u32 %v6668, 2147483648
    %v6681 = vxor.u32 %v6673, 2147483648
    %v6682 = vxor.u32 %v6676, 2147483648
    %v6683 = vmul.f32 %v6679, 1.442695
    %v6684 = vpow.pop %v6683
    %v6685 = vmul.f32 %v6680, 1.442695
    %v6686 = vpow.pop %v6685
    %v6687 = vmul.f32 %v6681, 1.442695
    %v6688 = vpow.pop %v6687
    %v6689 = vmul.f32 %v6682, 1.442695
    %v6690 = vpow.pop %v6689
    %v6691 = vadd.f32 %v6684, 1.0
    %v6692 = vadd.f32 %v6686, 1.0
    %v6693 = vadd.f32 %v6688, 1.0
    %v6694 = vadd.f32 %v6690, 1.0
    %v6695 = vrcp.pop %v6691
    %v6696 = vmul.f32 1.0, %v6695
    %v6697 = vrcp.pop %v6692
    %v6698 = vmul.f32 1.0, %v6697
    %v6699 = vrcp.pop %v6693
    %v6700 = vmul.f32 1.0, %v6699
    %v6701 = vrcp.pop %v6694
    %v6702 = vmul.f32 1.0, %v6701
    %v6703 = vmul.f32 %v6665, %v6696
    %v6704 = vmul.f32 %v6668, %v6698
    %v6705 = vmul.f32 %v6673, %v6700
    %v6706 = vmul.f32 %v6676, %v6702
    %v6707 = vpack.c.bf16 %v6704, %v6703
    %v6708 = vpack.c.bf16 %v6706, %v6705
    %v6709 = vld [vmem:[%s4 + $0xa] sm:$0x1]
    %v6710 = vlaneseq
    %v6711 = vshrl.u32 %v6710, 7
    %v6712 = vsub.s32 0, %v6711
    %v6713 = vrot.slane %v6709, %v6712
    %6714 = vrot.lane.b32.xlu0 %v5387, 16
    %v6715 = vpop.permute.xlu0 %6714
    %v6718 = vsel %vm4194, %v6707, 0
    %v6721 = vsel %vm4194, %v6708, 0
    %6723 = vmatprep.subr.bf16.mxu0 0
    %6724 = vmatpush1.bf16.msra.mxu0 %v6715
    %6725 = vmatprep.subr.bf16.mxu0 0
    %6726 = vmatpush1.bf16.msra.mxu0 0
    %6727 = vmatprep.subr.bf16.mxu0 0
    %6728 = vmatpush1.bf16.msra.mxu0 0
    %6729 = vmatprep.subr.bf16.mxu0 0
    %6730 = vmatpush1.bf16.msra.mxu0 0
    %6731 = vmatprep.subr.bf16.mxu0 0
    %6732 = vmatpush1.bf16.msra.mxu0 0
    %6733 = vmatprep.subr.bf16.mxu0 0
    %6734 = vmatpush1.bf16.msra.mxu0 0
    %6735 = vmatprep.subr.bf16.mxu0 0
    %6736 = vmatpush1.bf16.msra.mxu0 0
    %6737 = vmatprep.subr.bf16.mxu0 0
    %6738 = vmatpush1.bf16.msra.mxu0 0
    %6739 = vmatprep.subr.bf16.mxu0 0
    %6740 = vmatpush1.bf16.msra.mxu0 0
    %6741 = vmatprep.subr.bf16.mxu0 0
    %6742 = vmatpush1.bf16.msra.mxu0 0
    %6743 = vmatprep.subr.bf16.mxu0 0
    %6744 = vmatpush1.bf16.msra.mxu0 0
    %6745 = vmatprep.subr.bf16.mxu0 0
    %6746 = vmatpush1.bf16.msra.mxu0 0
    %6747 = vmatprep.subr.bf16.mxu0 0
    %6748 = vmatpush1.bf16.msra.mxu0 0
    %6749 = vmatprep.subr.bf16.mxu0 0
    %6750 = vmatpush1.bf16.msra.mxu0 0
    %6751 = vmatprep.subr.bf16.mxu0 0
    %6752 = vmatpush1.bf16.msra.mxu0 0
    %6753 = vmatprep.subr.bf16.mxu0 0
    %6754 = vmatpush1.bf16.msra.mxu0 0
    %6755 = vmatprep.mubr.bf16.mxu0 0
    %6756 = vmatmul.mubr.bf16.gmra.mrb[0].mxu0 %v6718
    %v6757 = vpop.f32.mrb[0].mxu0
    %v6758 = vadd.f32 %v6713, %v6757
    %v6759 = vpop.f32.mrb[0].mxu0
    %v6760 = vpop.f32.mrb[0].mxu0
    %v6761 = vadd.f32 %v6713, %v6760
    %v6762 = vpop.f32.mrb[0].mxu0
    %6763 = vmatprep.mubr.bf16.mxu0 0
    %6764 = vmatmul.mubr.bf16.gmra.mrb[0].mxu0 %v6721
    %v6765 = vpop.f32.mrb[0].mxu0
    %v6766 = vadd.f32 %v6713, %v6765
    %v6767 = vpop.f32.mrb[0].mxu0
    %v6768 = vpop.f32.mrb[0].mxu0
    %v6769 = vadd.f32 %v6713, %v6768
    %v6770 = vpop.f32.mrb[0].mxu0
    %6771 = vdwg.mxu0
    %v6772 = vxor.u32 %v6758, 2147483648
    %v6773 = vxor.u32 %v6761, 2147483648
    %v6774 = vxor.u32 %v6766, 2147483648
    %v6775 = vxor.u32 %v6769, 2147483648
    %v6776 = vmul.f32 %v6772, 1.442695
    %v6777 = vpow.pop %v6776
    %v6778 = vmul.f32 %v6773, 1.442695
    %v6779 = vpow.pop %v6778
    %v6780 = vmul.f32 %v6774, 1.442695
    %v6781 = vpow.pop %v6780
    %v6782 = vmul.f32 %v6775, 1.442695
    %v6783 = vpow.pop %v6782
    %v6784 = vadd.f32 %v6777, 1.0
    %v6785 = vadd.f32 %v6779, 1.0
    %v6786 = vadd.f32 %v6781, 1.0
    %v6787 = vadd.f32 %v6783, 1.0
    %v6788 = vrcp.pop %v6784
    %v6789 = vmul.f32 1.0, %v6788
    %v6790 = vrcp.pop %v6785
    %v6791 = vmul.f32 1.0, %v6790
    %v6792 = vrcp.pop %v6786
    %v6793 = vmul.f32 1.0, %v6792
    %v6794 = vrcp.pop %v6787
    %v6795 = vmul.f32 1.0, %v6794
    %v6796 = vmul.f32 %v6758, %v6789
    %v6797 = vmul.f32 %v6761, %v6791
    %v6798 = vmul.f32 %v6766, %v6793
    %v6799 = vmul.f32 %v6769, %v6795
    %v6800 = vadd.f32 %v6610, %v6796
    %v6801 = vadd.f32 %v6611, %v6797
    %v6802 = vadd.f32 %v6612, %v6798
    %v6803 = vadd.f32 %v6613, %v6799
    %v6804 = vpack.c.bf16 %v6801, %v6800
    %v6805 = vpack.c.bf16 %v6803, %v6802
    %v6806 = vld [vmem:[%s4 + $0xb] sm:$0x1]
    %v6807 = vlaneseq
    %v6808 = vshrl.u32 %v6807, 7
    %v6809 = vsub.s32 0, %v6808
    %v6810 = vrot.slane %v6806, %v6809
    %v6812 = vsel %vm4194, %v6804, 0
    %v6815 = vsel %vm4194, %v6805, 0
    %6817 = vmatprep.subr.bf16.mxu0 0
    %6818 = vmatpush1.bf16.msra.mxu0 %v4611
    %6819 = vmatprep.subr.bf16.mxu0 0
    %6820 = vmatpush1.bf16.msra.mxu0 0
    %6821 = vmatprep.subr.bf16.mxu0 0
    %6822 = vmatpush1.bf16.msra.mxu0 0
    %6823 = vmatprep.subr.bf16.mxu0 0
    %6824 = vmatpush1.bf16.msra.mxu0 0
    %6825 = vmatprep.subr.bf16.mxu0 0
    %6826 = vmatpush1.bf16.msra.mxu0 0
    %6827 = vmatprep.subr.bf16.mxu0 0
    %6828 = vmatpush1.bf16.msra.mxu0 0
    %6829 = vmatprep.subr.bf16.mxu0 0
    %6830 = vmatpush1.bf16.msra.mxu0 0
    %6831 = vmatprep.subr.bf16.mxu0 0
    %6832 = vmatpush1.bf16.msra.mxu0 0
    %6833 = vmatprep.subr.bf16.mxu0 0
    %6834 = vmatpush1.bf16.msra.mxu0 0
    %6835 = vmatprep.subr.bf16.mxu0 0
    %6836 = vmatpush1.bf16.msra.mxu0 0
    %6837 = vmatprep.subr.bf16.mxu0 0
    %6838 = vmatpush1.bf16.msra.mxu0 0
    %6839 = vmatprep.subr.bf16.mxu0 0
    %6840 = vmatpush1.bf16.msra.mxu0 0
    %6841 = vmatprep.subr.bf16.mxu0 0
    %6842 = vmatpush1.bf16.msra.mxu0 0
    %6843 = vmatprep.subr.bf16.mxu0 0
    %6844 = vmatpush1.bf16.msra.mxu0 0
    %6845 = vmatprep.subr.bf16.mxu0 0
    %6846 = vmatpush1.bf16.msra.mxu0 0
    %6847 = vmatprep.subr.bf16.mxu0 0
    %6848 = vmatpush1.bf16.msra.mxu0 0
    %6849 = vmatprep.mubr.bf16.mxu0 0
    %6850 = vmatmul.mubr.bf16.gmra.mrb[0].mxu0 %v6812
    %v6851 = vpop.f32.mrb[0].mxu0
    %v6852 = vadd.f32 %v6810, %v6851
    %v6853 = vpop.f32.mrb[0].mxu0
    %v6854 = vpop.f32.mrb[0].mxu0
    %v6855 = vadd.f32 %v6810, %v6854
    %v6856 = vpop.f32.mrb[0].mxu0
    %6857 = vmatprep.mubr.bf16.mxu0 0
    %6858 = vmatmul.mubr.bf16.gmra.mrb[0].mxu0 %v6815
    %v6859 = vpop.f32.mrb[0].mxu0
    %v6860 = vadd.f32 %v6810, %v6859
    %v6861 = vpop.f32.mrb[0].mxu0
    %v6862 = vpop.f32.mrb[0].mxu0
    %v6863 = vadd.f32 %v6810, %v6862
    %v6864 = vpop.f32.mrb[0].mxu0
    %6865 = vdwg.mxu0
    %v6866 = vxor.u32 %v6852, 2147483648
    %v6867 = vxor.u32 %v6855, 2147483648
    %v6868 = vxor.u32 %v6860, 2147483648
    %v6869 = vxor.u32 %v6863, 2147483648
    %v6870 = vmul.f32 %v6866, 1.442695
    %v6871 = vpow.pop %v6870
    %v6872 = vmul.f32 %v6867, 1.442695
    %v6873 = vpow.pop %v6872
    %v6874 = vmul.f32 %v6868, 1.442695
    %v6875 = vpow.pop %v6874
    %v6876 = vmul.f32 %v6869, 1.442695
    %v6877 = vpow.pop %v6876
    %v6878 = vadd.f32 %v6871, 1.0
    %v6879 = vadd.f32 %v6873, 1.0
    %v6880 = vadd.f32 %v6875, 1.0
    %v6881 = vadd.f32 %v6877, 1.0
    %v6882 = vrcp.pop %v6878
    %v6883 = vmul.f32 1.0, %v6882
    %v6884 = vrcp.pop %v6879
    %v6885 = vmul.f32 1.0, %v6884
    %v6886 = vrcp.pop %v6880
    %v6887 = vmul.f32 1.0, %v6886
    %v6888 = vrcp.pop %v6881
    %v6889 = vmul.f32 1.0, %v6888
    %v6890 = vmul.f32 %v6852, %v6883
    %v6891 = vmul.f32 %v6855, %v6885
    %v6892 = vmul.f32 %v6860, %v6887
    %v6893 = vmul.f32 %v6863, %v6889
    %v6894 = vadd.f32 %v6890, %v5954
    %v6895 = vadd.f32 %v6891, %v5955
    %v6896 = vadd.f32 %v6892, %v5956
    %v6897 = vadd.f32 %v6893, %v5957
    %v6898 = vpack.c.bf16 %v6895, %v6894
    %v6899 = vpack.c.bf16 %v6897, %v6896
    %v6900 = vld [vmem:[%s4 + $0xc] sm:$0x1]
    %v6901 = vlaneseq
    %v6902 = vshrl.u32 %v6901, 7
    %v6903 = vsub.s32 0, %v6902
    %v6904 = vrot.slane %v6900, %v6903
    %6905 = vrot.lane.b32.xlu0 %v4611, 112
    %v6906 = vpop.permute.xlu0 %6905
    %v6909 = vsel %vm4194, %v6898, 0
    %v6912 = vsel %vm4194, %v6899, 0
    %6914 = vmatprep.subr.bf16.mxu0 0
    %6915 = vmatpush1.bf16.msra.mxu0 %v6906
    %6916 = vmatprep.subr.bf16.mxu0 0
    %6917 = vmatpush1.bf16.msra.mxu0 0
    %6918 = vmatprep.subr.bf16.mxu0 0
    %6919 = vmatpush1.bf16.msra.mxu0 0
    %6920 = vmatprep.subr.bf16.mxu0 0
    %6921 = vmatpush1.bf16.msra.mxu0 0
    %6922 = vmatprep.subr.bf16.mxu0 0
    %6923 = vmatpush1.bf16.msra.mxu0 0
    %6924 = vmatprep.subr.bf16.mxu0 0
    %6925 = vmatpush1.bf16.msra.mxu0 0
    %6926 = vmatprep.subr.bf16.mxu0 0
    %6927 = vmatpush1.bf16.msra.mxu0 0
    %6928 = vmatprep.subr.bf16.mxu0 0
    %6929 = vmatpush1.bf16.msra.mxu0 0
    %6930 = vmatprep.subr.bf16.mxu0 0
    %6931 = vmatpush1.bf16.msra.mxu0 0
    %6932 = vmatprep.subr.bf16.mxu0 0
    %6933 = vmatpush1.bf16.msra.mxu0 0
    %6934 = vmatprep.subr.bf16.mxu0 0
    %6935 = vmatpush1.bf16.msra.mxu0 0
    %6936 = vmatprep.subr.bf16.mxu0 0
    %6937 = vmatpush1.bf16.msra.mxu0 0
    %6938 = vmatprep.subr.bf16.mxu0 0
    %6939 = vmatpush1.bf16.msra.mxu0 0
    %6940 = vmatprep.subr.bf16.mxu0 0
    %6941 = vmatpush1.bf16.msra.mxu0 0
    %6942 = vmatprep.subr.bf16.mxu0 0
    %6943 = vmatpush1.bf16.msra.mxu0 0
    %6944 = vmatprep.subr.bf16.mxu0 0
    %6945 = vmatpush1.bf16.msra.mxu0 0
    %6946 = vmatprep.mubr.bf16.mxu0 0
    %6947 = vmatmul.mubr.bf16.gmra.mrb[0].mxu0 %v6909
    %v6948 = vpop.f32.mrb[0].mxu0
    %v6949 = vadd.f32 %v6904, %v6948
    %v6950 = vpop.f32.mrb[0].mxu0
    %v6951 = vpop.f32.mrb[0].mxu0
    %v6952 = vadd.f32 %v6904, %v6951
    %v6953 = vpop.f32.mrb[0].mxu0
    %6954 = vmatprep.mubr.bf16.mxu0 0
    %6955 = vmatmul.mubr.bf16.gmra.mrb[0].mxu0 %v6912
    %v6956 = vpop.f32.mrb[0].mxu0
    %v6957 = vadd.f32 %v6904, %v6956
    %v6958 = vpop.f32.mrb[0].mxu0
    %v6959 = vpop.f32.mrb[0].mxu0
    %v6960 = vadd.f32 %v6904, %v6959
    %v6961 = vpop.f32.mrb[0].mxu0
    %6962 = vdwg.mxu0
    %v6963 = vxor.u32 %v6949, 2147483648
    %v6964 = vxor.u32 %v6952, 2147483648
    %v6965 = vxor.u32 %v6957, 2147483648
    %v6966 = vxor.u32 %v6960, 2147483648
    %v6967 = vmul.f32 %v6963, 1.442695
    %v6968 = vpow.pop %v6967
    %v6969 = vmul.f32 %v6964, 1.442695
    %v6970 = vpow.pop %v6969
    %v6971 = vmul.f32 %v6965, 1.442695
    %v6972 = vpow.pop %v6971
    %v6973 = vmul.f32 %v6966, 1.442695
    %v6974 = vpow.pop %v6973
    %v6975 = vadd.f32 %v6968, 1.0
    %v6976 = vadd.f32 %v6970, 1.0
    %v6977 = vadd.f32 %v6972, 1.0
    %v6978 = vadd.f32 %v6974, 1.0
    %v6979 = vrcp.pop %v6975
    %v6980 = vmul.f32 1.0, %v6979
    %v6981 = vrcp.pop %v6976
    %v6982 = vmul.f32 1.0, %v6981
    %v6983 = vrcp.pop %v6977
    %v6984 = vmul.f32 1.0, %v6983
    %v6985 = vrcp.pop %v6978
    %v6986 = vmul.f32 1.0, %v6985
    %v6987 = vmul.f32 %v6949, %v6980
    %v6988 = vmul.f32 %v6952, %v6982
    %v6989 = vmul.f32 %v6957, %v6984
    %v6990 = vmul.f32 %v6960, %v6986
    %v6991 = vpack.c.bf16 %v6988, %v6987
    %v6992 = vpack.c.bf16 %v6990, %v6989
    %v6993 = vld [vmem:[%s4 + $0xd] sm:$0x1]
    %v6994 = vlaneseq
    %v6995 = vshrl.u32 %v6994, 7
    %v6996 = vsub.s32 0, %v6995
    %v6997 = vrot.slane %v6993, %v6996
    %6998 = vrot.lane.b32.xlu0 %v4611, 96
    %v6999 = vpop.permute.xlu0 %6998
    %v7002 = vsel %vm4194, %v6991, 0
    %v7005 = vsel %vm4194, %v6992, 0
    %7007 = vmatprep.subr.bf16.mxu0 0
    %7008 = vmatpush1.bf16.msra.mxu0 %v6999
    %7009 = vmatprep.subr.bf16.mxu0 0
    %7010 = vmatpush1.bf16.msra.mxu0 0
    %7011 = vmatprep.subr.bf16.mxu0 0
    %7012 = vmatpush1.bf16.msra.mxu0 0
    %7013 = vmatprep.subr.bf16.mxu0 0
    %7014 = vmatpush1.bf16.msra.mxu0 0
    %7015 = vmatprep.subr.bf16.mxu0 0
    %7016 = vmatpush1.bf16.msra.mxu0 0
    %7017 = vmatprep.subr.bf16.mxu0 0
    %7018 = vmatpush1.bf16.msra.mxu0 0
    %7019 = vmatprep.subr.bf16.mxu0 0
    %7020 = vmatpush1.bf16.msra.mxu0 0
    %7021 = vmatprep.subr.bf16.mxu0 0
    %7022 = vmatpush1.bf16.msra.mxu0 0
    %7023 = vmatprep.subr.bf16.mxu0 0
    %7024 = vmatpush1.bf16.msra.mxu0 0
    %7025 = vmatprep.subr.bf16.mxu0 0
    %7026 = vmatpush1.bf16.msra.mxu0 0
    %7027 = vmatprep.subr.bf16.mxu0 0
    %7028 = vmatpush1.bf16.msra.mxu0 0
    %7029 = vmatprep.subr.bf16.mxu0 0
    %7030 = vmatpush1.bf16.msra.mxu0 0
    %7031 = vmatprep.subr.bf16.mxu0 0
    %7032 = vmatpush1.bf16.msra.mxu0 0
    %7033 = vmatprep.subr.bf16.mxu0 0
    %7034 = vmatpush1.bf16.msra.mxu0 0
    %7035 = vmatprep.subr.bf16.mxu0 0
    %7036 = vmatpush1.bf16.msra.mxu0 0
    %7037 = vmatprep.subr.bf16.mxu0 0
    %7038 = vmatpush1.bf16.msra.mxu0 0
    %7039 = vmatprep.mubr.bf16.mxu0 0
    %7040 = vmatmul.mubr.bf16.gmra.mrb[0].mxu0 %v7002
    %v7041 = vpop.f32.mrb[0].mxu0
    %v7042 = vadd.f32 %v6997, %v7041
    %v7043 = vpop.f32.mrb[0].mxu0
    %v7044 = vpop.f32.mrb[0].mxu0
    %v7045 = vadd.f32 %v6997, %v7044
    %v7046 = vpop.f32.mrb[0].mxu0
    %7047 = vmatprep.mubr.bf16.mxu0 0
    %7048 = vmatmul.mubr.bf16.gmra.mrb[0].mxu0 %v7005
    %v7049 = vpop.f32.mrb[0].mxu0
    %v7050 = vadd.f32 %v6997, %v7049
    %v7051 = vpop.f32.mrb[0].mxu0
    %v7052 = vpop.f32.mrb[0].mxu0
    %v7053 = vadd.f32 %v6997, %v7052
    %v7054 = vpop.f32.mrb[0].mxu0
    %7055 = vdwg.mxu0
    %v7056 = vxor.u32 %v7042, 2147483648
    %v7057 = vxor.u32 %v7045, 2147483648
    %v7058 = vxor.u32 %v7050, 2147483648
    %v7059 = vxor.u32 %v7053, 2147483648
    %v7060 = vmul.f32 %v7056, 1.442695
    %v7061 = vpow.pop %v7060
    %v7062 = vmul.f32 %v7057, 1.442695
    %v7063 = vpow.pop %v7062
    %v7064 = vmul.f32 %v7058, 1.442695
    %v7065 = vpow.pop %v7064
    %v7066 = vmul.f32 %v7059, 1.442695
    %v7067 = vpow.pop %v7066
    %v7068 = vadd.f32 %v7061, 1.0
    %v7069 = vadd.f32 %v7063, 1.0
    %v7070 = vadd.f32 %v7065, 1.0
    %v7071 = vadd.f32 %v7067, 1.0
    %v7072 = vrcp.pop %v7068
    %v7073 = vmul.f32 1.0, %v7072
    %v7074 = vrcp.pop %v7069
    %v7075 = vmul.f32 1.0, %v7074
    %v7076 = vrcp.pop %v7070
    %v7077 = vmul.f32 1.0, %v7076
    %v7078 = vrcp.pop %v7071
    %v7079 = vmul.f32 1.0, %v7078
    %v7080 = vmul.f32 %v7042, %v7073
    %v7081 = vmul.f32 %v7045, %v7075
    %v7082 = vmul.f32 %v7050, %v7077
    %v7083 = vmul.f32 %v7053, %v7079
    %v7084 = vadd.f32 %v6894, %v7080
    %v7085 = vadd.f32 %v6895, %v7081
    %v7086 = vadd.f32 %v6896, %v7082
    %v7087 = vadd.f32 %v6897, %v7083
    %v7088 = vpack.c.bf16 %v7085, %v7084
    %v7089 = vpack.c.bf16 %v7087, %v7086
    %v7090 = vld [vmem:[%s4 + $0xe] sm:$0x1]
    %v7091 = vlaneseq
    %v7092 = vshrl.u32 %v7091, 7
    %v7093 = vsub.s32 0, %v7092
    %v7094 = vrot.slane %v7090, %v7093
    %7095 = vrot.lane.b32.xlu0 %v4611, 80
    %v7096 = vpop.permute.xlu0 %7095
    %v7099 = vsel %vm4194, %v7088, 0
    %v7102 = vsel %vm4194, %v7089, 0
    %7104 = vmatprep.subr.bf16.mxu0 0
    %7105 = vmatpush1.bf16.msra.mxu0 %v7096
    %7106 = vmatprep.subr.bf16.mxu0 0
    %7107 = vmatpush1.bf16.msra.mxu0 0
    %7108 = vmatprep.subr.bf16.mxu0 0
    %7109 = vmatpush1.bf16.msra.mxu0 0
    %7110 = vmatprep.subr.bf16.mxu0 0
    %7111 = vmatpush1.bf16.msra.mxu0 0
    %7112 = vmatprep.subr.bf16.mxu0 0
    %7113 = vmatpush1.bf16.msra.mxu0 0
    %7114 = vmatprep.subr.bf16.mxu0 0
    %7115 = vmatpush1.bf16.msra.mxu0 0
    %7116 = vmatprep.subr.bf16.mxu0 0
    %7117 = vmatpush1.bf16.msra.mxu0 0
    %7118 = vmatprep.subr.bf16.mxu0 0
    %7119 = vmatpush1.bf16.msra.mxu0 0
    %7120 = vmatprep.subr.bf16.mxu0 0
    %7121 = vmatpush1.bf16.msra.mxu0 0
    %7122 = vmatprep.subr.bf16.mxu0 0
    %7123 = vmatpush1.bf16.msra.mxu0 0
    %7124 = vmatprep.subr.bf16.mxu0 0
    %7125 = vmatpush1.bf16.msra.mxu0 0
    %7126 = vmatprep.subr.bf16.mxu0 0
    %7127 = vmatpush1.bf16.msra.mxu0 0
    %7128 = vmatprep.subr.bf16.mxu0 0
    %7129 = vmatpush1.bf16.msra.mxu0 0
    %7130 = vmatprep.subr.bf16.mxu0 0
    %7131 = vmatpush1.bf16.msra.mxu0 0
    %7132 = vmatprep.subr.bf16.mxu0 0
    %7133 = vmatpush1.bf16.msra.mxu0 0
    %7134 = vmatprep.subr.bf16.mxu0 0
    %7135 = vmatpush1.bf16.msra.mxu0 0
    %7136 = vmatprep.mubr.bf16.mxu0 0
    %7137 = vmatmul.mubr.bf16.gmra.mrb[0].mxu0 %v7099
    %v7138 = vpop.f32.mrb[0].mxu0
    %v7139 = vadd.f32 %v7094, %v7138
    %v7140 = vpop.f32.mrb[0].mxu0
    %v7141 = vpop.f32.mrb[0].mxu0
    %v7142 = vadd.f32 %v7094, %v7141
    %v7143 = vpop.f32.mrb[0].mxu0
    %7144 = vmatprep.mubr.bf16.mxu0 0
    %7145 = vmatmul.mubr.bf16.gmra.mrb[0].mxu0 %v7102
    %v7146 = vpop.f32.mrb[0].mxu0
    %v7147 = vadd.f32 %v7094, %v7146
    %v7148 = vpop.f32.mrb[0].mxu0
    %v7149 = vpop.f32.mrb[0].mxu0
    %v7150 = vadd.f32 %v7094, %v7149
    %v7151 = vpop.f32.mrb[0].mxu0
    %7152 = vdwg.mxu0
    %v7153 = vxor.u32 %v7139, 2147483648
    %v7154 = vxor.u32 %v7142, 2147483648
    %v7155 = vxor.u32 %v7147, 2147483648
    %v7156 = vxor.u32 %v7150, 2147483648
    %v7157 = vmul.f32 %v7153, 1.442695
    %v7158 = vpow.pop %v7157
    %v7159 = vmul.f32 %v7154, 1.442695
    %v7160 = vpow.pop %v7159
    %v7161 = vmul.f32 %v7155, 1.442695
    %v7162 = vpow.pop %v7161
    %v7163 = vmul.f32 %v7156, 1.442695
    %v7164 = vpow.pop %v7163
    %v7165 = vadd.f32 %v7158, 1.0
    %v7166 = vadd.f32 %v7160, 1.0
    %v7167 = vadd.f32 %v7162, 1.0
    %v7168 = vadd.f32 %v7164, 1.0
    %v7169 = vrcp.pop %v7165
    %v7170 = vmul.f32 1.0, %v7169
    %v7171 = vrcp.pop %v7166
    %v7172 = vmul.f32 1.0, %v7171
    %v7173 = vrcp.pop %v7167
    %v7174 = vmul.f32 1.0, %v7173
    %v7175 = vrcp.pop %v7168
    %v7176 = vmul.f32 1.0, %v7175
    %v7177 = vmul.f32 %v7139, %v7170
    %v7178 = vmul.f32 %v7142, %v7172
    %v7179 = vmul.f32 %v7147, %v7174
    %v7180 = vmul.f32 %v7150, %v7176
    %v7181 = vpack.c.bf16 %v7178, %v7177
    %v7182 = vpack.c.bf16 %v7180, %v7179
    %v7183 = vld [vmem:[%s4 + $0xf] sm:$0x1]
    %v7184 = vlaneseq
    %v7185 = vshrl.u32 %v7184, 7
    %v7186 = vsub.s32 0, %v7185
    %v7187 = vrot.slane %v7183, %v7186
    %7188 = vrot.lane.b32.xlu0 %v4611, 64
    %v7189 = vpop.permute.xlu0 %7188
    %v7192 = vsel %vm4194, %v7181, 0
    %v7195 = vsel %vm4194, %v7182, 0
    %7197 = vmatprep.subr.bf16.mxu0 0
    %7198 = vmatpush1.bf16.msra.mxu0 %v7189
    %7199 = vmatprep.subr.bf16.mxu0 0
    %7200 = vmatpush1.bf16.msra.mxu0 0
    %7201 = vmatprep.subr.bf16.mxu0 0
    %7202 = vmatpush1.bf16.msra.mxu0 0
    %7203 = vmatprep.subr.bf16.mxu0 0
    %7204 = vmatpush1.bf16.msra.mxu0 0
    %7205 = vmatprep.subr.bf16.mxu0 0
    %7206 = vmatpush1.bf16.msra.mxu0 0
    %7207 = vmatprep.subr.bf16.mxu0 0
    %7208 = vmatpush1.bf16.msra.mxu0 0
    %7209 = vmatprep.subr.bf16.mxu0 0
    %7210 = vmatpush1.bf16.msra.mxu0 0
    %7211 = vmatprep.subr.bf16.mxu0 0
    %7212 = vmatpush1.bf16.msra.mxu0 0
    %7213 = vmatprep.subr.bf16.mxu0 0
    %7214 = vmatpush1.bf16.msra.mxu0 0
    %7215 = vmatprep.subr.bf16.mxu0 0
    %7216 = vmatpush1.bf16.msra.mxu0 0
    %7217 = vmatprep.subr.bf16.mxu0 0
    %7218 = vmatpush1.bf16.msra.mxu0 0
    %7219 = vmatprep.subr.bf16.mxu0 0
    %7220 = vmatpush1.bf16.msra.mxu0 0
    %7221 = vmatprep.subr.bf16.mxu0 0
    %7222 = vmatpush1.bf16.msra.mxu0 0
    %7223 = vmatprep.subr.bf16.mxu0 0
    %7224 = vmatpush1.bf16.msra.mxu0 0
    %7225 = vmatprep.subr.bf16.mxu0 0
    %7226 = vmatpush1.bf16.msra.mxu0 0
    %7227 = vmatprep.subr.bf16.mxu0 0
    %7228 = vmatpush1.bf16.msra.mxu0 0
    %7229 = vmatprep.mubr.bf16.mxu0 0
    %7230 = vmatmul.mubr.bf16.gmra.mrb[0].mxu0 %v7192
    %v7231 = vpop.f32.mrb[0].mxu0
    %v7232 = vadd.f32 %v7187, %v7231
    %v7233 = vpop.f32.mrb[0].mxu0
    %v7234 = vpop.f32.mrb[0].mxu0
    %v7235 = vadd.f32 %v7187, %v7234
    %v7236 = vpop.f32.mrb[0].mxu0
    %7237 = vmatprep.mubr.bf16.mxu0 0
    %7238 = vmatmul.mubr.bf16.gmra.mrb[0].mxu0 %v7195
    %v7239 = vpop.f32.mrb[0].mxu0
    %v7240 = vadd.f32 %v7187, %v7239
    %v7241 = vpop.f32.mrb[0].mxu0
    %v7242 = vpop.f32.mrb[0].mxu0
    %v7243 = vadd.f32 %v7187, %v7242
    %v7244 = vpop.f32.mrb[0].mxu0
    %7245 = vdwg.mxu0
    %v7246 = vxor.u32 %v7232, 2147483648
    %v7247 = vxor.u32 %v7235, 2147483648
    %v7248 = vxor.u32 %v7240, 2147483648
    %v7249 = vxor.u32 %v7243, 2147483648
    %v7250 = vmul.f32 %v7246, 1.442695
    %v7251 = vpow.pop %v7250
    %v7252 = vmul.f32 %v7247, 1.442695
    %v7253 = vpow.pop %v7252
    %v7254 = vmul.f32 %v7248, 1.442695
    %v7255 = vpow.pop %v7254
    %v7256 = vmul.f32 %v7249, 1.442695
    %v7257 = vpow.pop %v7256
    %v7258 = vadd.f32 %v7251, 1.0
    %v7259 = vadd.f32 %v7253, 1.0
    %v7260 = vadd.f32 %v7255, 1.0
    %v7261 = vadd.f32 %v7257, 1.0
    %v7262 = vrcp.pop %v7258
    %v7263 = vmul.f32 1.0, %v7262
    %v7264 = vrcp.pop %v7259
    %v7265 = vmul.f32 1.0, %v7264
    %v7266 = vrcp.pop %v7260
    %v7267 = vmul.f32 1.0, %v7266
    %v7268 = vrcp.pop %v7261
    %v7269 = vmul.f32 1.0, %v7268
    %v7270 = vmul.f32 %v7232, %v7263
    %v7271 = vmul.f32 %v7235, %v7265
    %v7272 = vmul.f32 %v7240, %v7267
    %v7273 = vmul.f32 %v7243, %v7269
    %v7274 = vadd.f32 %v7084, %v7270
    %v7275 = vadd.f32 %v7085, %v7271
    %v7276 = vadd.f32 %v7086, %v7272
    %v7277 = vadd.f32 %v7087, %v7273
    %7282 = vrot.lane.b32.xlu0 %v5954, 16
    %v7283 = vpop.permute.xlu0 %7282
    %7284 = vrot.lane.b32.xlu0 %v5955, 16
    %v7285 = vpop.permute.xlu0 %7284
    %7286 = vrot.lane.b32.xlu0 %v5956, 16
    %v7287 = vpop.permute.xlu0 %7286
    %7288 = vrot.lane.b32.xlu0 %v5957, 16
    %v7289 = vpop.permute.xlu0 %7288
    %7298 = vrot.lane.b32.xlu0 %v7274, 32
    %v7299 = vpop.permute.xlu0 %7298
    %7300 = vrot.lane.b32.xlu0 %v7275, 32
    %v7301 = vpop.permute.xlu0 %7300
    %7302 = vrot.lane.b32.xlu0 %v7276, 32
    %v7303 = vpop.permute.xlu0 %7302
    %7304 = vrot.lane.b32.xlu0 %v7277, 32
    %v7305 = vpop.permute.xlu0 %7304
    %v7310 = vsel %vm4194, %v4603, %v7283
    %v7311 = vsel %vm4194, %v4604, %v7285
    %v7312 = vsel %vm4194, %v4605, %v7287
    %v7313 = vsel %vm4194, %v4606, %v7289
    %v7314 = vsel %vm4490, %v7310, %v7299
    %v7315 = vsel %vm4490, %v7311, %v7301
    %v7316 = vsel %vm4490, %v7312, %v7303
    %v7317 = vsel %vm4490, %v7313, %v7305
    %7322 = vrot.lane.b32.xlu0 %v7314, 48
    %v7323 = vpop.permute.xlu0 %7322
    %7324 = vrot.lane.b32.xlu0 %v7315, 48
    %v7325 = vpop.permute.xlu0 %7324
    %7326 = vrot.lane.b32.xlu0 %v7316, 48
    %v7327 = vpop.permute.xlu0 %7326
    %7328 = vrot.lane.b32.xlu0 %v7317, 48
    %v7329 = vpop.permute.xlu0 %7328
    %v7334 = vmul.f32 %v4236, %v7323
    %v7335 = vmul.f32 %v4239, %v7325
    %v7336 = vmul.f32 %v4244, %v7327
    %v7337 = vmul.f32 %v4247, %v7329
    %v7338 = vpack.c.bf16 %v63, %v63
    %v7339 = vpack.c.bf16 %v7335, %v7334
    %v7340 = vpack.c.bf16 %v7337, %v7336
    %7343 = vrot.lane.b32.xlu0 %v7339, 80
    %v7344 = vpop.permute.xlu0 %7343
    %7345 = vrot.lane.b32.xlu0 %v7340, 80
    %v7346 = vpop.permute.xlu0 %7345
    %v7349 = vsel %vm3915, %v7338, 0
    %v7352 = vsel %vm3940, %v7346, 0
    %7354 = vmatprep.subr.bf16.mxu0 0
    %7355 = vmatpush1.bf16.msra.mxu0 %v7344
    %7356 = vmatprep.subr.bf16.mxu0 0
    %7357 = vmatpush1.bf16.msra.mxu0 %v7352
    %7358 = vmatprep.subr.bf16.mxu0 0
    %7359 = vmatpush1.bf16.msra.mxu0 0
    %7360 = vmatprep.subr.bf16.mxu0 0
    %7361 = vmatpush1.bf16.msra.mxu0 0
    %7362 = vmatprep.subr.bf16.mxu0 0
    %7363 = vmatpush1.bf16.msra.mxu0 0
    %7364 = vmatprep.subr.bf16.mxu0 0
    %7365 = vmatpush1.bf16.msra.mxu0 0
    %7366 = vmatprep.subr.bf16.mxu0 0
    %7367 = vmatpush1.bf16.msra.mxu0 0
    %7368 = vmatprep.subr.bf16.mxu0 0
    %7369 = vmatpush1.bf16.msra.mxu0 0
    %7370 = vmatprep.subr.bf16.mxu0 0
    %7371 = vmatpush1.bf16.msra.mxu0 0
    %7372 = vmatprep.subr.bf16.mxu0 0
    %7373 = vmatpush1.bf16.msra.mxu0 0
    %7374 = vmatprep.subr.bf16.mxu0 0
    %7375 = vmatpush1.bf16.msra.mxu0 0
    %7376 = vmatprep.subr.bf16.mxu0 0
    %7377 = vmatpush1.bf16.msra.mxu0 0
    %7378 = vmatprep.subr.bf16.mxu0 0
    %7379 = vmatpush1.bf16.msra.mxu0 0
    %7380 = vmatprep.subr.bf16.mxu0 0
    %7381 = vmatpush1.bf16.msra.mxu0 0
    %7382 = vmatprep.subr.bf16.mxu0 0
    %7383 = vmatpush1.bf16.msra.mxu0 0
    %7384 = vmatprep.subr.bf16.mxu0 0
    %7385 = vmatpush1.bf16.msra.mxu0 0
    %7386 = vmatprep.mubr.bf16.mxu0 0
    %7387 = vmatmul.mubr.bf16.gmra.mrb[0].mxu0 %v7349
    %v7388 = vpop.f32.mrb[0].mxu0
    %v7389 = vadd.f32 0.0, %v7388
    %v7390 = vpop.f32.mrb[0].mxu0
    %v7391 = vpop.f32.mrb[0].mxu0
    %v7392 = vpop.f32.mrb[0].mxu0
    %7393 = vdwg.mxu0
    %v7394 = vld [vmem:[#allocation2 + $0x18] sm:$0xff]
    %v7395 = vld [vmem:[#allocation2 + $0x40] sm:$0xff]
    %v7396 = vld [vmem:[#allocation2 + $0x68] sm:$0xff]
    %v7397 = vld [vmem:[#allocation2 + $0x90] sm:$0xff]
    %v7398 = vld [vmem:[#allocation2 + $0xb8] sm:$0xff]
    %v7399 = vld [vmem:[#allocation2 + $0xe0] sm:$0xff]
    %v7400 = vpack.c.bf16 %v7389, %v7389
    %v7401 = vpack.c.bf16 %v7395, %v7394
    %v7402 = vpack.c.bf16 %v7397, %v7396
    %v7403 = vpack.c.bf16 %v7399, %v7398
    %v7404 = vld [vmem:[%s4 + $0x10] sm:$0x1]
    %v7405 = vlaneseq
    %v7406 = vshrl.u32 %v7405, 7
    %v7407 = vsub.s32 0, %v7406
    %v7408 = vrot.slane %v7404, %v7407
    %7412 = vrot.lane.b32.xlu0 %v7401, 76
    %v7413 = vpop.permute.xlu0 %7412
    %7414 = vrot.lane.b32.xlu0 %v7402, 76
    %v7415 = vpop.permute.xlu0 %7414
    %7416 = vrot.lane.b32.xlu0 %v7403, 76
    %v7417 = vpop.permute.xlu0 %7416
    %v7422 = vsel %vm4523, %v7400, 0
    %7424 = vmatprep.subr.bf16.mxu0 0
    %7425 = vmatpush1.bf16.msra.mxu0 %v7413
    %7426 = vmatprep.subr.bf16.mxu0 0
    %7427 = vmatpush1.bf16.msra.mxu0 %v7415
    %7428 = vmatprep.subr.bf16.mxu0 0
    %7429 = vmatpush1.bf16.msra.mxu0 %v7417
    %7430 = vmatprep.subr.bf16.mxu0 0
    %7431 = vmatpush1.bf16.msra.mxu0 0
    %7432 = vmatprep.subr.bf16.mxu0 0
    %7433 = vmatpush1.bf16.msra.mxu0 0
    %7434 = vmatprep.subr.bf16.mxu0 0
    %7435 = vmatpush1.bf16.msra.mxu0 0
    %7436 = vmatprep.subr.bf16.mxu0 0
    %7437 = vmatpush1.bf16.msra.mxu0 0
    %7438 = vmatprep.subr.bf16.mxu0 0
    %7439 = vmatpush1.bf16.msra.mxu0 0
    %7440 = vmatprep.subr.bf16.mxu0 0
    %7441 = vmatpush1.bf16.msra.mxu0 0
    %7442 = vmatprep.subr.bf16.mxu0 0
    %7443 = vmatpush1.bf16.msra.mxu0 0
    %7444 = vmatprep.subr.bf16.mxu0 0
    %7445 = vmatpush1.bf16.msra.mxu0 0
    %7446 = vmatprep.subr.bf16.mxu0 0
    %7447 = vmatpush1.bf16.msra.mxu0 0
    %7448 = vmatprep.subr.bf16.mxu0 0
    %7449 = vmatpush1.bf16.msra.mxu0 0
    %7450 = vmatprep.subr.bf16.mxu0 0
    %7451 = vmatpush1.bf16.msra.mxu0 0
    %7452 = vmatprep.subr.bf16.mxu0 0
    %7453 = vmatpush1.bf16.msra.mxu0 0
    %7454 = vmatprep.subr.bf16.mxu0 0
    %7455 = vmatpush1.bf16.msra.mxu0 0
    %7456 = vmatprep.mubr.bf16.mxu0 0
    %7457 = vmatmul.mubr.bf16.gmra.mrb[0].mxu0 %v7422
    %v7458 = vpop.f32.mrb[0].mxu0
    %v7459 = vadd.f32 %v7408, %v7458
    %v7460 = vpop.f32.mrb[0].mxu0
    %v7461 = vpop.f32.mrb[0].mxu0
    %v7462 = vpop.f32.mrb[0].mxu0
    %7463 = vdwg.mxu0
    %v7464 = vxor.u32 %v7459, 2147483648
    %v7465 = vmul.f32 %v7464, 1.442695
    %v7466 = vpow.pop %v7465
    %v7467 = vadd.f32 %v7466, 1.0
    %v7468 = vrcp.pop %v7467
    %v7469 = vmul.f32 1.0, %v7468
    %v7470 = vmul.f32 %v7459, %v7469
    %v7471 = vld [vmem:[#allocation2 + $0x18] sm:$0xff]
    %v7472 = vld [vmem:[#allocation2 + $0x20] sm:$0xff]
    %v7473 = vld [vmem:[#allocation2 + $0x40] sm:$0xff]
    %v7474 = vld [vmem:[#allocation2 + $0x48] sm:$0xff]
    %v7475 = vld [vmem:[#allocation2 + $0x68] sm:$0xff]
    %v7476 = vld [vmem:[#allocation2 + $0x70] sm:$0xff]
    %v7477 = vld [vmem:[#allocation2 + $0x90] sm:$0xff]
    %v7478 = vld [vmem:[#allocation2 + $0x98] sm:$0xff]
    %v7479 = vld [vmem:[#allocation2 + $0xb8] sm:$0xff]
    %v7480 = vld [vmem:[#allocation2 + $0xc0] sm:$0xff]
    %v7481 = vld [vmem:[#allocation2 + $0xe0] sm:$0xff]
    %v7482 = vld [vmem:[#allocation2 + $0xe8] sm:$0xff]
    %v7483 = vpack.c.bf16 %v7470, %v7470
    %v7484 = vpack.c.bf16 %v7473, %v7471
    %v7485 = vpack.c.bf16 %v7474, %v7472
    %v7486 = vpack.c.bf16 %v7477, %v7475
    %v7487 = vpack.c.bf16 %v7478, %v7476
    %v7488 = vpack.c.bf16 %v7481, %v7479
    %v7489 = vpack.c.bf16 %v7482, %v7480
    %v7490 = vld [vmem:[%s4 + $0x11] sm:$0x1]
    %v7491 = vlaneseq
    %v7492 = vshrl.u32 %v7491, 7
    %v7493 = vsub.s32 0, %v7492
    %v7494 = vrot.slane %v7490, %v7493
    %7501 = vrot.lane.b32.xlu0 %v7484, 28
    %v7502 = vpop.permute.xlu0 %7501
    %7503 = vrot.lane.b32.xlu0 %v7485, 28
    %v7504 = vpop.permute.xlu0 %7503
    %7505 = vrot.lane.b32.xlu0 %v7486, 28
    %v7506 = vpop.permute.xlu0 %7505
    %7507 = vrot.lane.b32.xlu0 %v7487, 28
    %v7508 = vpop.permute.xlu0 %7507
    %7509 = vrot.lane.b32.xlu0 %v7488, 28
    %v7510 = vpop.permute.xlu0 %7509
    %7511 = vrot.lane.b32.xlu0 %v7489, 28
    %v7512 = vpop.permute.xlu0 %7511
    %vm7513 = vcmask 228352
    %v7514 = vsel %vm7513, %v7502, %v7504
    %v7515 = vsel %vm7513, %v7506, %v7508
    %v7516 = vsel %vm7513, %v7510, %v7512
    %v7521 = vsel %vm4523, %v7483, 0
    %7523 = vmatprep.subr.bf16.mxu0 0
    %7524 = vmatpush1.bf16.msra.mxu0 %v7514
    %7525 = vmatprep.subr.bf16.mxu0 0
    %7526 = vmatpush1.bf16.msra.mxu0 %v7515
    %7527 = vmatprep.subr.bf16.mxu0 0
    %7528 = vmatpush1.bf16.msra.mxu0 %v7516
    %7529 = vmatprep.subr.bf16.mxu0 0
    %7530 = vmatpush1.bf16.msra.mxu0 0
    %7531 = vmatprep.subr.bf16.mxu0 0
    %7532 = vmatpush1.bf16.msra.mxu0 0
    %7533 = vmatprep.subr.bf16.mxu0 0
    %7534 = vmatpush1.bf16.msra.mxu0 0
    %7535 = vmatprep.subr.bf16.mxu0 0
    %7536 = vmatpush1.bf16.msra.mxu0 0
    %7537 = vmatprep.subr.bf16.mxu0 0
    %7538 = vmatpush1.bf16.msra.mxu0 0
    %7539 = vmatprep.subr.bf16.mxu0 0
    %7540 = vmatpush1.bf16.msra.mxu0 0
    %7541 = vmatprep.subr.bf16.mxu0 0
    %7542 = vmatpush1.bf16.msra.mxu0 0
    %7543 = vmatprep.subr.bf16.mxu0 0
    %7544 = vmatpush1.bf16.msra.mxu0 0
    %7545 = vmatprep.subr.bf16.mxu0 0
    %7546 = vmatpush1.bf16.msra.mxu0 0
    %7547 = vmatprep.subr.bf16.mxu0 0
    %7548 = vmatpush1.bf16.msra.mxu0 0
    %7549 = vmatprep.subr.bf16.mxu0 0
    %7550 = vmatpush1.bf16.msra.mxu0 0
    %7551 = vmatprep.subr.bf16.mxu0 0
    %7552 = vmatpush1.bf16.msra.mxu0 0
    %7553 = vmatprep.subr.bf16.mxu0 0
    %7554 = vmatpush1.bf16.msra.mxu0 0
    %7555 = vmatprep.mubr.bf16.mxu0 0
    %7556 = vmatmul.mubr.bf16.gmra.mrb[0].mxu0 %v7521
    %v7557 = vpop.f32.mrb[0].mxu0
    %v7558 = vadd.f32 %v7494, %v7557
    %v7559 = vpop.f32.mrb[0].mxu0
    %v7560 = vpop.f32.mrb[0].mxu0
    %v7561 = vpop.f32.mrb[0].mxu0
    %7562 = vdwg.mxu0
    %v7563 = vxor.u32 %v7558, 2147483648
    %v7564 = vmul.f32 %v7563, 1.442695
    %v7565 = vpow.pop %v7564
    %v7566 = vadd.f32 %v7565, 1.0
    %v7567 = vrcp.pop %v7566
    %v7568 = vmul.f32 1.0, %v7567
    %v7569 = vmul.f32 %v7558, %v7568
    %v7570 = vpack.c.bf16 %v7569, %v7569
    %v7571 = vld [vmem:[%s4 + $0x12] sm:$0x1]
    %v7572 = vlaneseq
    %v7573 = vshrl.u32 %v7572, 7
    %v7574 = vsub.s32 0, %v7573
    %v7575 = vrot.slane %v7571, %v7574
    %7576 = vrot.lane.b32.xlu0 %v7485, 108
    %v7577 = vpop.permute.xlu0 %7576
    %7578 = vrot.lane.b32.xlu0 %v7487, 108
    %v7579 = vpop.permute.xlu0 %7578
    %7580 = vrot.lane.b32.xlu0 %v7489, 108
    %v7581 = vpop.permute.xlu0 %7580
    %v7586 = vsel %vm4523, %v7570, 0
    %7588 = vmatprep.subr.bf16.mxu0 0
    %7589 = vmatpush1.bf16.msra.mxu0 %v7577
    %7590 = vmatprep.subr.bf16.mxu0 0
    %7591 = vmatpush1.bf16.msra.mxu0 %v7579
    %7592 = vmatprep.subr.bf16.mxu0 0
    %7593 = vmatpush1.bf16.msra.mxu0 %v7581
    %7594 = vmatprep.subr.bf16.mxu0 0
    %7595 = vmatpush1.bf16.msra.mxu0 0
    %7596 = vmatprep.subr.bf16.mxu0 0
    %7597 = vmatpush1.bf16.msra.mxu0 0
    %7598 = vmatprep.subr.bf16.mxu0 0
    %7599 = vmatpush1.bf16.msra.mxu0 0
    %7600 = vmatprep.subr.bf16.mxu0 0
    %7601 = vmatpush1.bf16.msra.mxu0 0
    %7602 = vmatprep.subr.bf16.mxu0 0
    %7603 = vmatpush1.bf16.msra.mxu0 0
    %7604 = vmatprep.subr.bf16.mxu0 0
    %7605 = vmatpush1.bf16.msra.mxu0 0
    %7606 = vmatprep.subr.bf16.mxu0 0
    %7607 = vmatpush1.bf16.msra.mxu0 0
    %7608 = vmatprep.subr.bf16.mxu0 0
    %7609 = vmatpush1.bf16.msra.mxu0 0
    %7610 = vmatprep.subr.bf16.mxu0 0
    %7611 = vmatpush1.bf16.msra.mxu0 0
    %7612 = vmatprep.subr.bf16.mxu0 0
    %7613 = vmatpush1.bf16.msra.mxu0 0
    %7614 = vmatprep.subr.bf16.mxu0 0
    %7615 = vmatpush1.bf16.msra.mxu0 0
    %7616 = vmatprep.subr.bf16.mxu0 0
    %7617 = vmatpush1.bf16.msra.mxu0 0
    %7618 = vmatprep.subr.bf16.mxu0 0
    %7619 = vmatpush1.bf16.msra.mxu0 0
    %7620 = vmatprep.mubr.bf16.mxu0 0
    %7621 = vmatmul.mubr.bf16.gmra.mrb[0].mxu0 %v7586
    %v7622 = vpop.f32.mrb[0].mxu0
    %v7623 = vadd.f32 %v7575, %v7622
    %v7624 = vpop.f32.mrb[0].mxu0
    %v7625 = vpop.f32.mrb[0].mxu0
    %v7626 = vpop.f32.mrb[0].mxu0
    %7627 = vdwg.mxu0
    %v7628 = vxor.u32 %v7623, 2147483648
    %v7629 = vmul.f32 %v7628, 1.442695
    %v7630 = vpow.pop %v7629
    %v7631 = vadd.f32 %v7630, 1.0
    %v7632 = vrcp.pop %v7631
    %v7633 = vmul.f32 1.0, %v7632
    %v7634 = vmul.f32 %v7623, %v7633
    %v7635 = vld [vmem:[%s4 + $0x13] sm:$0x1]
    %v7636 = vlaneseq
    %v7637 = vshrl.u32 %v7636, 7
    %v7638 = vsub.s32 0, %v7637
    %v7639 = vrot.slane %v7635, %v7638
    %v7640 = vmul.f32 %v7634, %v7639
    %vm7641 = vcmask 390144
    %v7642 = vsel %vm7641, %v7640, 0.0
    %7643 = vadd.xlane.f32.xlu0 %v7642
    %v7644 = vpop.xlane.xlu0 %7643
    %v7645 = vrot.slane %v7644, 4
    %v7646 = vadd.f32 %v7644, %v7645
    %v7647 = vrot.slane %v7646, 2
    %v7648 = vadd.f32 %v7646, %v7647
    %v7649 = vrot.slane %v7648, 1
    %v7650 = vadd.f32 %v7648, %v7649
    %s7651 = vtos %v7650
    %v7652 = vstv %s7651
    %vm7653 = vcmask 0
    %7654 = vst.msk [vmem:[#allocation5] sm:$0x1] %vm7653, %v7652
    // Predicated region
    $region26: #{tpu_custom_call.1} parent=1 // pred_check
      _
    $region27: #{tpu_custom_call.1} parent=1 // pred_check_branch
      %7656 = sbr.rel (0) target = $region29
    $region28: #{tpu_custom_call.1} parent=1 // pred_region
      %s7658 = ssub.s32 16, 16
      %7659 = vsyncadd [#allocation4], %s7658
      %s7661 = sshll.u32 [#allocation5], 4
      %s7662 = int_to_ptr.vmem [resolvable:$true] %s7661
      %7664 = dma.vmem_to_hbm [thread:$0]  %s7662, 16, %s5, [#allocation4]
    $region29: #{tpu_custom_call.1} parent=1 // pred_fallthru
      _
    // Predicated region
    $region30: #{tpu_custom_call.1} parent=1 // pred_check
      _
    $region31: #{tpu_custom_call.1} parent=1 // pred_check_branch
      %7666 = sbr.rel (0) target = $region33
    $region32: #{tpu_custom_call.1} parent=1 // pred_region
      %7667 = dma.done [#allocation4], 16
    $region33: #{tpu_custom_call.1} parent=1 // pred_fallthru
      _
    %7668 = vsyncpa [#allocation3], 1
    %7669 = vsyncpa [#allocation4], 1

</llo_original>
